<compile_context>
chip_gen: v5e
topology: v5e:2x2
jax: 0.10.0
libtpu: 0.0.40
codegen_flags: <defaults>
</compile_context>

<pallas_src>
import math
from functools import partial

import jax
import jax.numpy as jnp
from jax.experimental import pallas as pl
from jax.experimental.pallas import tpu as pltpu

INPUT_FEATURES = 4
LSTM_HIDDEN = 64
TFT_HIDDEN = 128
TFT_HEADS = 4
TFT_LAYERS = 2
OUTPUT_DIM = 1
OUT_PAD = 128          # lane-padded width of the final head output


def _cdiv(a, b):
    return -(-a // b)


def _erf(z):
    # Abramowitz & Stegun 7.1.26 polynomial erf (|err| < 1.5e-7).
    p = 0.3275911
    a1, a2, a3, a4, a5 = 0.254829592, -0.284496736, 1.421413741, -1.453152027, 1.061405429
    az = jnp.abs(z)
    t = 1.0 / (1.0 + p * az)
    poly = ((((a5 * t + a4) * t + a3) * t + a2) * t + a1) * t
    y = 1.0 - poly * jnp.exp(-az * az)
    return jnp.where(z >= 0.0, y, -y)


def _gelu_exact(v):
    return 0.5 * v * (1.0 + _erf(v * (1.0 / math.sqrt(2.0))))


def _layer_norm(v, g, b, eps=1e-5):
    mu = jnp.mean(v, axis=-1, keepdims=True)
    var = jnp.mean((v - mu) ** 2, axis=-1, keepdims=True)
    return (v - mu) * jax.lax.rsqrt(var + eps) * g + b


# ---------------------------------------------------------------------------
# Fused kernel: one grid step = one batch block, entire model resident in VMEM.
# ---------------------------------------------------------------------------
def _lstm_tft_fused_kernel(*refs, num_heads, num_layers):
    x_ref, wih_ref, whh_ref, blstm_ref, wemb_ref, bemb_ref = refs[0:6]
    layer_refs = refs[6:6 + 12 * num_layers]
    wout_ref, bout_ref, out_ref = refs[6 + 12 * num_layers:]

    bf16 = jnp.bfloat16

    x3 = x_ref[...]                           # (Bb, S, F) f32
    Bb, S, F = x3.shape
    H2 = whh_ref.shape[0]                     # 2H = 128 (fused fwd|bwd hidden)
    H = H2 // 2
    G4 = 4 * H2                               # 512 fused gate width
    BS = Bb * S

    # ---- bidirectional LSTM, both directions in one 128-lane recurrence ----
    # Input projection hoisted out of the recurrence: one (Bb*S, F)@(F, 512) matmul.
    x_flat = x3.reshape(BS, F).astype(bf16)
    proj = (jnp.dot(x_flat, wih_ref[...], preferred_element_type=jnp.float32)
            + blstm_ref[...])                 # (BS, 512) gate cols [i_f i_b|f_f f_b|g_f g_b|o_f o_b]
    proj3 = proj.reshape(Bb, S, G4)
    # Time-reversed copy via static slices (python-level reversal; no lax.rev lowering needed).
    proj3_rev = jnp.stack([proj3[:, S - 1 - t, :] for t in range(S)], axis=1)
    gate_col = jax.lax.broadcasted_iota(jnp.int32, (1, 1, G4), 2)
    fwd_gate_mask = (gate_col % H2) < H       # forward sub-columns of every gate block
    gx_all = jnp.where(fwd_gate_mask, proj3, proj3_rev)     # (Bb, S, 512), hoisted select

    whh = whh_ref[...]                        # (128, 512) bf16 block-diagonal recurrent weight
    hc = jnp.zeros((Bb, H2), jnp.float32)     # [h_fwd | h_bwd]
    cc = jnp.zeros((Bb, H2), jnp.float32)     # [c_fwd | c_bwd]
    step_h = []
    for t in range(S):                        # S small & static -> fully unrolled
        gates = gx_all[:, t, :] + jnp.dot(hc.astype(bf16), whh,
                                          preferred_element_type=jnp.float32)   # (Bb, 512)
        i_g = jax.nn.sigmoid(gates[:, 0 * H2:1 * H2])     # full 128-lane slices
        f_g = jax.nn.sigmoid(gates[:, 1 * H2:2 * H2])
        g_g = jnp.tanh(gates[:, 2 * H2:3 * H2])
        o_g = jax.nn.sigmoid(gates[:, 3 * H2:4 * H2])
        cc = f_g * cc + i_g * g_g
        hc = o_g * jnp.tanh(cc)
        step_h.append(hc)

    # Re-align to output time order: fwd half from step t, bwd half from step S-1-t.
    h_col = jax.lax.broadcasted_iota(jnp.int32, (1, 1, H2), 2)
    fwd_h_mask = h_col < H
    stacked_f = jnp.stack(step_h, axis=1)               # (Bb, S, 128)
    stacked_b = jnp.stack(step_h[::-1], axis=1)         # flipped copy (list reversal)
    lstm_out = jnp.where(fwd_h_mask, stacked_f, stacked_b).reshape(BS, H2)

    # ---- input embedding ----
    h = (jnp.dot(lstm_out.astype(bf16), wemb_ref[...],
                 preferred_element_type=jnp.float32) + bemb_ref[...])    # (BS, D)
    D = h.shape[1]
    dh = D // num_heads
    scale = 1.0 / math.sqrt(dh)

    def attend(q3, k3, v3):
        # q3: (Bb, Sq, D); k3/v3: (Bb, S, D) -> (Bb, Sq, D); per-head, batch-dim batched einsums
        ctx_heads = []
        for hh in range(num_heads):
            sl = slice(hh * dh, (hh + 1) * dh)
            q_h = q3[:, :, sl].astype(bf16)
            k_h = k3[:, :, sl].astype(bf16)
            v_h = v3[:, :, sl].astype(bf16)
            s = jnp.einsum('bqd,bkd->bqk', q_h, k_h,
                           preferred_element_type=jnp.float32) * scale
            s = s - jnp.max(s, axis=-1, keepdims=True)
            p = jnp.exp(s)
            p = p * pl.reciprocal(jnp.sum(p, axis=-1, keepdims=True), approx=True)
            ctx_heads.append(jnp.einsum('bqk,bkd->bqd', p.astype(bf16), v_h,
                                        preferred_element_type=jnp.float32))
        return jnp.concatenate(ctx_heads, axis=-1)

    # ---- transformer encoder layers (post-LN) ----
    for L in range(num_layers):
        (wqkv, bqkv, wo, bo, ln1g, ln1b, w1, b1, w2, b2, ln2g, ln2b) = (
            r[...] for r in layer_refs[12 * L:12 * (L + 1)])
        last_only = (L == num_layers - 1)

        qkv = jnp.dot(h.astype(bf16), wqkv, preferred_element_type=jnp.float32) + bqkv
        q3 = qkv[:, 0 * D:1 * D].reshape(Bb, S, D)
        k3 = qkv[:, 1 * D:2 * D].reshape(Bb, S, D)
        v3 = qkv[:, 2 * D:3 * D].reshape(Bb, S, D)

        if last_only:
            # Only h[:, -1, :] feeds the head; with post-LN the last output row of this layer
            # depends only on its own attention row -> compute just that row (K/V over all S).
            q3 = q3[:, S - 1:S, :]                         # (Bb, 1, D)
            h_res = h.reshape(Bb, S, D)[:, S - 1, :]       # (Bb, D)
            rows = Bb
        else:
            h_res = h
            rows = BS

        ctx = attend(q3, k3, v3).reshape(rows, D)
        attn = jnp.dot(ctx.astype(bf16), wo, preferred_element_type=jnp.float32) + bo
        y = _layer_norm(h_res + attn, ln1g, ln1b)                                  # res + LN1
        ff = _gelu_exact(jnp.dot(y.astype(bf16), w1,
                                 preferred_element_type=jnp.float32) + b1)
        ff = jnp.dot(ff.astype(bf16), w2, preferred_element_type=jnp.float32) + b2
        h = _layer_norm(y + ff, ln2g, ln2b)                                        # res + LN2

    # ---- output head (last layer already reduced h to (Bb, D)); lane-padded store ----
    out = (jnp.dot(h.astype(bf16), wout_ref[...], preferred_element_type=jnp.float32)
           + bout_ref[...])                                 # (Bb, OUT_PAD)
    out_ref[...] = out.reshape(1, Bb, out.shape[-1])


# ---------------------------------------------------------------------------
# Wrapper
# ---------------------------------------------------------------------------
def lstm_tft_forward(x, packed):
    """x: (B, S, input_features) -> (B, output_dim)"""
    B, S, F = x.shape

    # Batch-block: target ~256 MXU rows per step (B_blk*S) but keep >= 2 grid steps when
    # B >= 2 so v7x's two TensorCores both get work.
    if B >= 2:
        B_blk = max(1, min(max(256 // S, 1), _cdiv(B, 2)))
    else:
        B_blk = 1
    num_blocks = _cdiv(B, B_blk)
    B_pad = num_blocks * B_blk
    if B_pad != B:
        x = jnp.concatenate([x, jnp.zeros((B_pad - B, S, F), x.dtype)], axis=0)

    args = [x, packed['wih'], packed['whh'], packed['b_lstm'],
            packed['w_emb'], packed['b_emb']]
    for lp in packed['layers']:
        args += [lp['wqkv'], lp['bqkv'], lp['wo'], lp['bo'],
                 lp['ln1_g'], lp['ln1_b'], lp['w1'], lp['b1'],
                 lp['w2'], lp['b2'], lp['ln2_g'], lp['ln2_b']]
    args += [packed['w_out'], packed['b_out']]

    def resident_spec(a):
        # full-array block, constant index_map -> weight stays resident in VMEM
        return pl.BlockSpec(a.shape, lambda b, _nd=a.ndim: (0,) * _nd)

    in_specs = ([pl.BlockSpec((B_blk, S, F), lambda b: (b, 0, 0))]
                + [resident_spec(a) for a in args[1:]])
    out_pad = packed['w_out'].shape[1]

    out = pl.pallas_call(
        partial(_lstm_tft_fused_kernel,
                num_heads=TFT_HEADS, num_layers=len(packed['layers'])),
        out_shape=jax.ShapeDtypeStruct((num_blocks, B_blk, out_pad), jnp.float32),
        grid=(num_blocks,),
        in_specs=in_specs,
        out_specs=pl.BlockSpec((1, B_blk, out_pad), lambda b: (b, 0, 0)),
        compiler_params=pltpu.CompilerParams(dimension_semantics=("parallel",)),
    )(*args)
    return out.reshape(B_pad, out_pad)[:B, :OUTPUT_DIM]


# ---------------------------------------------------------------------------
# Parameter init (PyTorch-native layout) + prepack into the fused kernel layout
# ---------------------------------------------------------------------------
def init_params(key):
    H, F, D = LSTM_HIDDEN, INPUT_FEATURES, TFT_HIDDEN
    FF = 4 * D
    keys = iter(jax.random.split(key, 128))

    def uni(shape, fan_in):
        bound = 1.0 / math.sqrt(fan_in)
        return jax.random.uniform(next(keys), shape, jnp.float32, -bound, bound)

    lstm = {
        'w_ih_f': uni((4 * H, F), H), 'w_hh_f': uni((4 * H, H), H),
        'b_ih_f': uni((4 * H,), H), 'b_hh_f': uni((4 * H,), H),
        'w_ih_b': uni((4 * H, F), H), 'w_hh_b': uni((4 * H, H), H),
        'b_ih_b': uni((4 * H,), H), 'b_hh_b': uni((4 * H,), H),
    }
    embed = {'w': uni((D, 2 * H), 2 * H), 'b': uni((D,), 2 * H)}
    layers = []
    for _ in range(TFT_LAYERS):
        layers.append({
            'in_proj_w': uni((3 * D, D), D), 'in_proj_b': uni((3 * D,), D),
            'out_proj_w': uni((D, D), D), 'out_proj_b': uni((D,), D),
            'ln1_g': jnp.ones((D,), jnp.float32), 'ln1_b': jnp.zeros((D,), jnp.float32),
            'w1': uni((FF, D), D), 'b1': uni((FF,), D),
            'w2': uni((D, FF), FF), 'b2': uni((D,), FF),
            'ln2_g': jnp.ones((D,), jnp.float32), 'ln2_b': jnp.zeros((D,), jnp.float32),
        })
    out = {'w': uni((OUTPUT_DIM, D), D), 'b': uni((OUTPUT_DIM,), D)}
    return {'lstm': lstm, 'embed': embed, 'layers': layers, 'out': out}


def prepack_params(p):
    """Pack PyTorch-layout weights into the fused, MXU/lane-aligned kernel layout.

    Matmul weights are stored in bf16 (accumulation stays f32 inside the kernel);
    biases / LayerNorm params stay f32.
    """
    H, F, D = LSTM_HIDDEN, INPUT_FEATURES, TFT_HIDDEN
    H2 = 2 * H
    l = p['lstm']

    # Fused bi-LSTM weights: gate columns [i_f i_b | f_f f_b | g_f g_b | o_f o_b]
    wih = jnp.zeros((F, 4 * H2), jnp.float32)
    whh = jnp.zeros((H2, 4 * H2), jnp.float32)        # block-diagonal recurrent weight
    b = jnp.zeros((1, 4 * H2), jnp.float32)
    for g in range(4):                                 # PyTorch gate order [i, f, g, o]
        cf = slice(g * H2, g * H2 + H)                 # forward sub-cols of gate g
        cb = slice(g * H2 + H, (g + 1) * H2)           # backward sub-cols of gate g
        rg = slice(g * H, (g + 1) * H)                 # PyTorch rows of gate g
        wih = wih.at[:, cf].set(l['w_ih_f'][rg, :].T)
        wih = wih.at[:, cb].set(l['w_ih_b'][rg, :].T)
        whh = whh.at[0:H, cf].set(l['w_hh_f'][rg, :].T)
        whh = whh.at[H:H2, cb].set(l['w_hh_b'][rg, :].T)
        b = b.at[0, cf].set(l['b_ih_f'][rg] + l['b_hh_f'][rg])
        b = b.at[0, cb].set(l['b_ih_b'][rg] + l['b_hh_b'][rg])

    bf16 = jnp.bfloat16
    layers = []
    for lp in p['layers']:
        layers.append({
            'wqkv': lp['in_proj_w'].T.astype(bf16), 'bqkv': lp['in_proj_b'][None, :],
            'wo': lp['out_proj_w'].T.astype(bf16), 'bo': lp['out_proj_b'][None, :],
            'ln1_g': lp['ln1_g'][None, :], 'ln1_b': lp['ln1_b'][None, :],
            'w1': lp['w1'].T.astype(bf16), 'b1': lp['b1'][None, :],
            'w2': lp['w2'].T.astype(bf16), 'b2': lp['b2'][None, :],
            'ln2_g': lp['ln2_g'][None, :], 'ln2_b': lp['ln2_b'][None, :],
        })

    # Output head padded to a full 128-lane slab (extra columns are zero).
    w_out = jnp.zeros((D, OUT_PAD), jnp.float32).at[:, :OUTPUT_DIM].set(p['out']['w'].T)
    b_out = jnp.zeros((1, OUT_PAD), jnp.float32).at[0, :OUTPUT_DIM].set(p['out']['b'])

    return {
        'wih': wih.astype(bf16), 'whh': whh.astype(bf16), 'b_lstm': b,
        'w_emb': p['embed']['w'].T.astype(bf16), 'b_emb': p['embed']['b'][None, :],
        'layers': layers,
        'w_out': w_out.astype(bf16), 'b_out': b_out,
    }


if __name__ == "__main__":
    key = jax.random.PRNGKey(0)
    pkey, xkey = jax.random.split(key)
    params = init_params(pkey)
    packed = prepack_params(params)

    B, S = 2, 8
    x = jax.random.normal(xkey, (B, S, INPUT_FEATURES), dtype=jnp.float32)

    fwd = jax.jit(lstm_tft_forward)
    out = jax.block_until_ready(fwd(x, packed))
    assert out.shape == (B, OUTPUT_DIM), out.shape
    assert bool(jnp.all(jnp.isfinite(out)))
    print("KERNEL_OK")
</pallas_src>

<mosaic_0001>
module attributes {stable_mosaic.version = 11 : i64} {
  func.func @_lstm_tft_fused_kernel(%arg0: i32, %arg1: memref<1x8x4xf32, #tpu.memory_space<vmem>>, %arg2: memref<4x512xbf16, #tpu.memory_space<vmem>>, %arg3: memref<128x512xbf16, #tpu.memory_space<vmem>>, %arg4: memref<1x512xf32, #tpu.memory_space<vmem>>, %arg5: memref<128x128xbf16, #tpu.memory_space<vmem>>, %arg6: memref<1x128xf32, #tpu.memory_space<vmem>>, %arg7: memref<128x384xbf16, #tpu.memory_space<vmem>>, %arg8: memref<1x384xf32, #tpu.memory_space<vmem>>, %arg9: memref<128x128xbf16, #tpu.memory_space<vmem>>, %arg10: memref<1x128xf32, #tpu.memory_space<vmem>>, %arg11: memref<1x128xf32, #tpu.memory_space<vmem>>, %arg12: memref<1x128xf32, #tpu.memory_space<vmem>>, %arg13: memref<128x512xbf16, #tpu.memory_space<vmem>>, %arg14: memref<1x512xf32, #tpu.memory_space<vmem>>, %arg15: memref<512x128xbf16, #tpu.memory_space<vmem>>, %arg16: memref<1x128xf32, #tpu.memory_space<vmem>>, %arg17: memref<1x128xf32, #tpu.memory_space<vmem>>, %arg18: memref<1x128xf32, #tpu.memory_space<vmem>>, %arg19: memref<128x384xbf16, #tpu.memory_space<vmem>>, %arg20: memref<1x384xf32, #tpu.memory_space<vmem>>, %arg21: memref<128x128xbf16, #tpu.memory_space<vmem>>, %arg22: memref<1x128xf32, #tpu.memory_space<vmem>>, %arg23: memref<1x128xf32, #tpu.memory_space<vmem>>, %arg24: memref<1x128xf32, #tpu.memory_space<vmem>>, %arg25: memref<128x512xbf16, #tpu.memory_space<vmem>>, %arg26: memref<1x512xf32, #tpu.memory_space<vmem>>, %arg27: memref<512x128xbf16, #tpu.memory_space<vmem>>, %arg28: memref<1x128xf32, #tpu.memory_space<vmem>>, %arg29: memref<1x128xf32, #tpu.memory_space<vmem>>, %arg30: memref<1x128xf32, #tpu.memory_space<vmem>>, %arg31: memref<128x128xbf16, #tpu.memory_space<vmem>>, %arg32: memref<1x128xf32, #tpu.memory_space<vmem>>, %arg33: memref<1x1x128xf32, #tpu.memory_space<vmem>>) attributes {dimension_semantics = [#tpu.dimension_semantics<parallel>], iteration_bounds = array<i64: 2>, scalar_prefetch = 0 : i64, scratch_operands = 0 : i64, tpu.core_type = #tpu.core_type<tc>, window_params = [{transform_indices = @transform_0, window_bounds = array<i64: 1, 8, 4>}, {pipeline_mode = #tpu.pipeline_mode<synchronous>, transform_indices = @transform_1, window_bounds = array<i64: 4, 512>}, {pipeline_mode = #tpu.pipeline_mode<synchronous>, transform_indices = @transform_2, window_bounds = array<i64: 128, 512>}, {pipeline_mode = #tpu.pipeline_mode<synchronous>, transform_indices = @transform_3, window_bounds = array<i64: 1, 512>}, {pipeline_mode = #tpu.pipeline_mode<synchronous>, transform_indices = @transform_4, window_bounds = array<i64: 128, 128>}, {pipeline_mode = #tpu.pipeline_mode<synchronous>, transform_indices = @transform_5, window_bounds = array<i64: 1, 128>}, {pipeline_mode = #tpu.pipeline_mode<synchronous>, transform_indices = @transform_6, window_bounds = array<i64: 128, 384>}, {pipeline_mode = #tpu.pipeline_mode<synchronous>, transform_indices = @transform_7, window_bounds = array<i64: 1, 384>}, {pipeline_mode = #tpu.pipeline_mode<synchronous>, transform_indices = @transform_8, window_bounds = array<i64: 128, 128>}, {pipeline_mode = #tpu.pipeline_mode<synchronous>, transform_indices = @transform_9, window_bounds = array<i64: 1, 128>}, {pipeline_mode = #tpu.pipeline_mode<synchronous>, transform_indices = @transform_10, window_bounds = array<i64: 1, 128>}, {pipeline_mode = #tpu.pipeline_mode<synchronous>, transform_indices = @transform_11, window_bounds = array<i64: 1, 128>}, {pipeline_mode = #tpu.pipeline_mode<synchronous>, transform_indices = @transform_12, window_bounds = array<i64: 128, 512>}, {pipeline_mode = #tpu.pipeline_mode<synchronous>, transform_indices = @transform_13, window_bounds = array<i64: 1, 512>}, {pipeline_mode = #tpu.pipeline_mode<synchronous>, transform_indices = @transform_14, window_bounds = array<i64: 512, 128>}, {pipeline_mode = #tpu.pipeline_mode<synchronous>, transform_indices = @transform_15, window_bounds = array<i64: 1, 128>}, {pipeline_mode = #tpu.pipeline_mode<synchronous>, transform_indices = @transform_16, window_bounds = array<i64: 1, 128>}, {pipeline_mode = #tpu.pipeline_mode<synchronous>, transform_indices = @transform_17, window_bounds = array<i64: 1, 128>}, {pipeline_mode = #tpu.pipeline_mode<synchronous>, transform_indices = @transform_18, window_bounds = array<i64: 128, 384>}, {pipeline_mode = #tpu.pipeline_mode<synchronous>, transform_indices = @transform_19, window_bounds = array<i64: 1, 384>}, {pipeline_mode = #tpu.pipeline_mode<synchronous>, transform_indices = @transform_20, window_bounds = array<i64: 128, 128>}, {pipeline_mode = #tpu.pipeline_mode<synchronous>, transform_indices = @transform_21, window_bounds = array<i64: 1, 128>}, {pipeline_mode = #tpu.pipeline_mode<synchronous>, transform_indices = @transform_22, window_bounds = array<i64: 1, 128>}, {pipeline_mode = #tpu.pipeline_mode<synchronous>, transform_indices = @transform_23, window_bounds = array<i64: 1, 128>}, {pipeline_mode = #tpu.pipeline_mode<synchronous>, transform_indices = @transform_24, window_bounds = array<i64: 128, 512>}, {pipeline_mode = #tpu.pipeline_mode<synchronous>, transform_indices = @transform_25, window_bounds = array<i64: 1, 512>}, {pipeline_mode = #tpu.pipeline_mode<synchronous>, transform_indices = @transform_26, window_bounds = array<i64: 512, 128>}, {pipeline_mode = #tpu.pipeline_mode<synchronous>, transform_indices = @transform_27, window_bounds = array<i64: 1, 128>}, {pipeline_mode = #tpu.pipeline_mode<synchronous>, transform_indices = @transform_28, window_bounds = array<i64: 1, 128>}, {pipeline_mode = #tpu.pipeline_mode<synchronous>, transform_indices = @transform_29, window_bounds = array<i64: 1, 128>}, {pipeline_mode = #tpu.pipeline_mode<synchronous>, transform_indices = @transform_30, window_bounds = array<i64: 128, 128>}, {pipeline_mode = #tpu.pipeline_mode<synchronous>, transform_indices = @transform_31, window_bounds = array<i64: 1, 128>}, {transform_indices = @transform_32, window_bounds = array<i64: 1, 1, 128>}]} {
    %c0 = arith.constant 0 : index
    %c0_0 = arith.constant 0 : index
    %c0_1 = arith.constant 0 : index
    %0 = vector.load %arg1[%c0, %c0_0, %c0_1] : memref<1x8x4xf32, #tpu.memory_space<vmem>>, vector<1x8x4xf32>
    %1 = vector.shape_cast %0 : vector<1x8x4xf32> to vector<8x4xf32>
    %2 = arith.truncf %1 : vector<8x4xf32> to vector<8x4xbf16>
    %c0_2 = arith.constant 0 : index
    %c0_3 = arith.constant 0 : index
    %3 = vector.load %arg2[%c0_2, %c0_3] : memref<4x512xbf16, #tpu.memory_space<vmem>>, vector<4x512xbf16>
    %cst = arith.constant dense<0.000000e+00> : vector<8x512xf32>
    %4 = tpu.matmul %2, %3, %cst {dimension_numbers = #tpu.dot_dimension_numbers<[1], [0], [0], [1], [0, 0, 1, 1], [], []>} : vector<8x4xbf16>, vector<4x512xbf16>, vector<8x512xf32> -> vector<8x512xf32>
    %c0_4 = arith.constant 0 : index
    %c0_5 = arith.constant 0 : index
    %5 = vector.load %arg4[%c0_4, %c0_5] : memref<1x512xf32, #tpu.memory_space<vmem>>, vector<1x512xf32>
    %6 = vector.broadcast %5 : vector<1x512xf32> to vector<8x512xf32>
    %7 = arith.addf %4, %6 : vector<8x512xf32>
    %8 = vector.shape_cast %7 : vector<8x512xf32> to vector<1x8x512xf32>
    %9 = vector.extract_strided_slice %8 {offsets = [0, 7, 0], sizes = [1, 1, 512], strides = [1, 1, 1]} : vector<1x8x512xf32> to vector<1x1x512xf32>
    %10 = vector.shape_cast %9 : vector<1x1x512xf32> to vector<1x512xf32>
    %11 = vector.extract_strided_slice %8 {offsets = [0, 6, 0], sizes = [1, 1, 512], strides = [1, 1, 1]} : vector<1x8x512xf32> to vector<1x1x512xf32>
    %12 = vector.shape_cast %11 : vector<1x1x512xf32> to vector<1x512xf32>
    %13 = vector.extract_strided_slice %8 {offsets = [0, 5, 0], sizes = [1, 1, 512], strides = [1, 1, 1]} : vector<1x8x512xf32> to vector<1x1x512xf32>
    %14 = vector.shape_cast %13 : vector<1x1x512xf32> to vector<1x512xf32>
    %15 = vector.extract_strided_slice %8 {offsets = [0, 4, 0], sizes = [1, 1, 512], strides = [1, 1, 1]} : vector<1x8x512xf32> to vector<1x1x512xf32>
    %16 = vector.shape_cast %15 : vector<1x1x512xf32> to vector<1x512xf32>
    %17 = vector.extract_strided_slice %8 {offsets = [0, 3, 0], sizes = [1, 1, 512], strides = [1, 1, 1]} : vector<1x8x512xf32> to vector<1x1x512xf32>
    %18 = vector.shape_cast %17 : vector<1x1x512xf32> to vector<1x512xf32>
    %19 = vector.extract_strided_slice %8 {offsets = [0, 2, 0], sizes = [1, 1, 512], strides = [1, 1, 1]} : vector<1x8x512xf32> to vector<1x1x512xf32>
    %20 = vector.shape_cast %19 : vector<1x1x512xf32> to vector<1x512xf32>
    %21 = vector.extract_strided_slice %8 {offsets = [0, 1, 0], sizes = [1, 1, 512], strides = [1, 1, 1]} : vector<1x8x512xf32> to vector<1x1x512xf32>
    %22 = vector.shape_cast %21 : vector<1x1x512xf32> to vector<1x512xf32>
    %23 = vector.extract_strided_slice %8 {offsets = [0, 0, 0], sizes = [1, 1, 512], strides = [1, 1, 1]} : vector<1x8x512xf32> to vector<1x1x512xf32>
    %24 = vector.shape_cast %23 : vector<1x1x512xf32> to vector<1x512xf32>
    %25 = vector.shape_cast %10 : vector<1x512xf32> to vector<1x1x512xf32>
    %26 = vector.shape_cast %12 : vector<1x512xf32> to vector<1x1x512xf32>
    %27 = vector.shape_cast %14 : vector<1x512xf32> to vector<1x1x512xf32>
    %28 = vector.shape_cast %16 : vector<1x512xf32> to vector<1x1x512xf32>
    %29 = vector.shape_cast %18 : vector<1x512xf32> to vector<1x1x512xf32>
    %30 = vector.shape_cast %20 : vector<1x512xf32> to vector<1x1x512xf32>
    %31 = vector.shape_cast %22 : vector<1x512xf32> to vector<1x1x512xf32>
    %32 = vector.shape_cast %24 : vector<1x512xf32> to vector<1x1x512xf32>
    %33 = tpu.concatenate %25, %26, %27, %28, %29, %30, %31, %32 in 1 : vector<1x1x512xf32>, vector<1x1x512xf32>, vector<1x1x512xf32>, vector<1x1x512xf32>, vector<1x1x512xf32>, vector<1x1x512xf32>, vector<1x1x512xf32>, vector<1x1x512xf32> -> vector<1x8x512xf32>
    %34 = tpu.iota {dimensions = array<i32: 2>} : vector<1x1x512xi32>
    %c128_i32 = arith.constant 128 : i32
    %c0_i32 = arith.constant 0 : i32
    %35 = arith.cmpi eq, %c128_i32, %c0_i32 : i32
    %c1_i32 = arith.constant 1 : i32
    %36 = arith.select %35, %c1_i32, %c128_i32 : i32
    %37 = vector.broadcast %36 : i32 to vector<1x1x512xi32>
    %38 = arith.remsi %34, %37 : vector<1x1x512xi32>
    %c0_i32_6 = arith.constant 0 : i32
    %39 = vector.broadcast %c0_i32_6 : i32 to vector<1x1x512xi32>
    %40 = arith.cmpi ne, %38, %39 : vector<1x1x512xi32>
    %c0_i32_7 = arith.constant 0 : i32
    %41 = vector.broadcast %c0_i32_7 : i32 to vector<1x1x512xi32>
    %42 = arith.cmpi slt, %38, %41 : vector<1x1x512xi32>
    %c0_i32_8 = arith.constant 0 : i32
    %43 = arith.cmpi slt, %36, %c0_i32_8 : i32
    %44 = vector.broadcast %43 : i1 to vector<1x1x512xi1>
    %45 = vector.broadcast %44 : vector<1x1x512xi1> to vector<1x1x512xi1>
    %46 = arith.xori %42, %45 : vector<1x1x512xi1>
    %47 = arith.andi %46, %40 : vector<1x1x512xi1>
    %48 = vector.broadcast %36 : i32 to vector<1x1x512xi32>
    %49 = arith.addi %38, %48 : vector<1x1x512xi32>
    %50 = arith.select %47, %49, %38 : vector<1x1x512xi1>, vector<1x1x512xi32>
    %c64_i32 = arith.constant 64 : i32
    %51 = vector.broadcast %c64_i32 : i32 to vector<1x1x512xi32>
    %52 = arith.cmpi slt, %50, %51 : vector<1x1x512xi32>
    %53 = vector.shape_cast %52 : vector<1x1x512xi1> to vector<1x1x512xi1>
    %54 = vector.broadcast %53 : vector<1x1x512xi1> to vector<1x8x512xi1>
    %55 = arith.select %54, %8, %33 : vector<1x8x512xi1>, vector<1x8x512xf32>
    %c0_9 = arith.constant 0 : index
    %c0_10 = arith.constant 0 : index
    %56 = vector.load %arg3[%c0_9, %c0_10] : memref<128x512xbf16, #tpu.memory_space<vmem>>, vector<128x512xbf16>
    %cst_11 = arith.constant 0.000000e+00 : f32
    %57 = vector.broadcast %cst_11 : f32 to vector<1x128xf32>
    %cst_12 = arith.constant 0.000000e+00 : f32
    %58 = vector.broadcast %cst_12 : f32 to vector<1x128xf32>
    %59 = vector.extract_strided_slice %55 {offsets = [0, 0, 0], sizes = [1, 1, 512], strides = [1, 1, 1]} : vector<1x8x512xf32> to vector<1x1x512xf32>
    %60 = vector.shape_cast %59 : vector<1x1x512xf32> to vector<1x512xf32>
    %61 = arith.truncf %57 : vector<1x128xf32> to vector<1x128xbf16>
    %cst_13 = arith.constant dense<0.000000e+00> : vector<1x512xf32>
    %62 = tpu.matmul %61, %56, %cst_13 {dimension_numbers = #tpu.dot_dimension_numbers<[1], [0], [0], [1], [0, 0, 1, 1], [], []>} : vector<1x128xbf16>, vector<128x512xbf16>, vector<1x512xf32> -> vector<1x512xf32>
    %63 = arith.addf %60, %62 : vector<1x512xf32>
    %64 = vector.extract_strided_slice %63 {offsets = [0, 0], sizes = [1, 128], strides = [1, 1]} : vector<1x512xf32> to vector<1x128xf32>
    %65 = arith.negf %64 : vector<1x128xf32>
    %66 = math.exp %65 : vector<1x128xf32>
    %cst_14 = arith.constant 1.000000e+00 : f32
    %67 = vector.broadcast %cst_14 : f32 to vector<1x128xf32>
    %68 = arith.addf %67, %66 : vector<1x128xf32>
    %69 = arith.divf %67, %68 : vector<1x128xf32>
    %70 = vector.extract_strided_slice %63 {offsets = [0, 128], sizes = [1, 128], strides = [1, 1]} : vector<1x512xf32> to vector<1x128xf32>
    %71 = arith.negf %70 : vector<1x128xf32>
    %72 = math.exp %71 : vector<1x128xf32>
    %cst_15 = arith.constant 1.000000e+00 : f32
    %73 = vector.broadcast %cst_15 : f32 to vector<1x128xf32>
    %74 = arith.addf %73, %72 : vector<1x128xf32>
    %75 = arith.divf %73, %74 : vector<1x128xf32>
    %76 = vector.extract_strided_slice %63 {offsets = [0, 256], sizes = [1, 128], strides = [1, 1]} : vector<1x512xf32> to vector<1x128xf32>
    %77 = math.tanh %76 : vector<1x128xf32>
    %78 = vector.extract_strided_slice %63 {offsets = [0, 384], sizes = [1, 128], strides = [1, 1]} : vector<1x512xf32> to vector<1x128xf32>
    %79 = arith.negf %78 : vector<1x128xf32>
    %80 = math.exp %79 : vector<1x128xf32>
    %cst_16 = arith.constant 1.000000e+00 : f32
    %81 = vector.broadcast %cst_16 : f32 to vector<1x128xf32>
    %82 = arith.addf %81, %80 : vector<1x128xf32>
    %83 = arith.divf %81, %82 : vector<1x128xf32>
    %84 = arith.mulf %75, %58 : vector<1x128xf32>
    %85 = arith.mulf %69, %77 : vector<1x128xf32>
    %86 = arith.addf %84, %85 : vector<1x128xf32>
    %87 = math.tanh %86 : vector<1x128xf32>
    %88 = arith.mulf %83, %87 : vector<1x128xf32>
    %89 = vector.extract_strided_slice %55 {offsets = [0, 1, 0], sizes = [1, 1, 512], strides = [1, 1, 1]} : vector<1x8x512xf32> to vector<1x1x512xf32>
    %90 = vector.shape_cast %89 : vector<1x1x512xf32> to vector<1x512xf32>
    %91 = arith.truncf %88 : vector<1x128xf32> to vector<1x128xbf16>
    %cst_17 = arith.constant dense<0.000000e+00> : vector<1x512xf32>
    %92 = tpu.matmul %91, %56, %cst_17 {dimension_numbers = #tpu.dot_dimension_numbers<[1], [0], [0], [1], [0, 0, 1, 1], [], []>} : vector<1x128xbf16>, vector<128x512xbf16>, vector<1x512xf32> -> vector<1x512xf32>
    %93 = arith.addf %90, %92 : vector<1x512xf32>
    %94 = vector.extract_strided_slice %93 {offsets = [0, 0], sizes = [1, 128], strides = [1, 1]} : vector<1x512xf32> to vector<1x128xf32>
    %95 = arith.negf %94 : vector<1x128xf32>
    %96 = math.exp %95 : vector<1x128xf32>
    %cst_18 = arith.constant 1.000000e+00 : f32
    %97 = vector.broadcast %cst_18 : f32 to vector<1x128xf32>
    %98 = arith.addf %97, %96 : vector<1x128xf32>
    %99 = arith.divf %97, %98 : vector<1x128xf32>
    %100 = vector.extract_strided_slice %93 {offsets = [0, 128], sizes = [1, 128], strides = [1, 1]} : vector<1x512xf32> to vector<1x128xf32>
    %101 = arith.negf %100 : vector<1x128xf32>
    %102 = math.exp %101 : vector<1x128xf32>
    %cst_19 = arith.constant 1.000000e+00 : f32
    %103 = vector.broadcast %cst_19 : f32 to vector<1x128xf32>
    %104 = arith.addf %103, %102 : vector<1x128xf32>
    %105 = arith.divf %103, %104 : vector<1x128xf32>
    %106 = vector.extract_strided_slice %93 {offsets = [0, 256], sizes = [1, 128], strides = [1, 1]} : vector<1x512xf32> to vector<1x128xf32>
    %107 = math.tanh %106 : vector<1x128xf32>
    %108 = vector.extract_strided_slice %93 {offsets = [0, 384], sizes = [1, 128], strides = [1, 1]} : vector<1x512xf32> to vector<1x128xf32>
    %109 = arith.negf %108 : vector<1x128xf32>
    %110 = math.exp %109 : vector<1x128xf32>
    %cst_20 = arith.constant 1.000000e+00 : f32
    %111 = vector.broadcast %cst_20 : f32 to vector<1x128xf32>
    %112 = arith.addf %111, %110 : vector<1x128xf32>
    %113 = arith.divf %111, %112 : vector<1x128xf32>
    %114 = arith.mulf %105, %86 : vector<1x128xf32>
    %115 = arith.mulf %99, %107 : vector<1x128xf32>
    %116 = arith.addf %114, %115 : vector<1x128xf32>
    %117 = math.tanh %116 : vector<1x128xf32>
    %118 = arith.mulf %113, %117 : vector<1x128xf32>
    %119 = vector.extract_strided_slice %55 {offsets = [0, 2, 0], sizes = [1, 1, 512], strides = [1, 1, 1]} : vector<1x8x512xf32> to vector<1x1x512xf32>
    %120 = vector.shape_cast %119 : vector<1x1x512xf32> to vector<1x512xf32>
    %121 = arith.truncf %118 : vector<1x128xf32> to vector<1x128xbf16>
    %cst_21 = arith.constant dense<0.000000e+00> : vector<1x512xf32>
    %122 = tpu.matmul %121, %56, %cst_21 {dimension_numbers = #tpu.dot_dimension_numbers<[1], [0], [0], [1], [0, 0, 1, 1], [], []>} : vector<1x128xbf16>, vector<128x512xbf16>, vector<1x512xf32> -> vector<1x512xf32>
    %123 = arith.addf %120, %122 : vector<1x512xf32>
    %124 = vector.extract_strided_slice %123 {offsets = [0, 0], sizes = [1, 128], strides = [1, 1]} : vector<1x512xf32> to vector<1x128xf32>
    %125 = arith.negf %124 : vector<1x128xf32>
    %126 = math.exp %125 : vector<1x128xf32>
    %cst_22 = arith.constant 1.000000e+00 : f32
    %127 = vector.broadcast %cst_22 : f32 to vector<1x128xf32>
    %128 = arith.addf %127, %126 : vector<1x128xf32>
    %129 = arith.divf %127, %128 : vector<1x128xf32>
    %130 = vector.extract_strided_slice %123 {offsets = [0, 128], sizes = [1, 128], strides = [1, 1]} : vector<1x512xf32> to vector<1x128xf32>
    %131 = arith.negf %130 : vector<1x128xf32>
    %132 = math.exp %131 : vector<1x128xf32>
    %cst_23 = arith.constant 1.000000e+00 : f32
    %133 = vector.broadcast %cst_23 : f32 to vector<1x128xf32>
    %134 = arith.addf %133, %132 : vector<1x128xf32>
    %135 = arith.divf %133, %134 : vector<1x128xf32>
    %136 = vector.extract_strided_slice %123 {offsets = [0, 256], sizes = [1, 128], strides = [1, 1]} : vector<1x512xf32> to vector<1x128xf32>
    %137 = math.tanh %136 : vector<1x128xf32>
    %138 = vector.extract_strided_slice %123 {offsets = [0, 384], sizes = [1, 128], strides = [1, 1]} : vector<1x512xf32> to vector<1x128xf32>
    %139 = arith.negf %138 : vector<1x128xf32>
    %140 = math.exp %139 : vector<1x128xf32>
    %cst_24 = arith.constant 1.000000e+00 : f32
    %141 = vector.broadcast %cst_24 : f32 to vector<1x128xf32>
    %142 = arith.addf %141, %140 : vector<1x128xf32>
    %143 = arith.divf %141, %142 : vector<1x128xf32>
    %144 = arith.mulf %135, %116 : vector<1x128xf32>
    %145 = arith.mulf %129, %137 : vector<1x128xf32>
    %146 = arith.addf %144, %145 : vector<1x128xf32>
    %147 = math.tanh %146 : vector<1x128xf32>
    %148 = arith.mulf %143, %147 : vector<1x128xf32>
    %149 = vector.extract_strided_slice %55 {offsets = [0, 3, 0], sizes = [1, 1, 512], strides = [1, 1, 1]} : vector<1x8x512xf32> to vector<1x1x512xf32>
    %150 = vector.shape_cast %149 : vector<1x1x512xf32> to vector<1x512xf32>
    %151 = arith.truncf %148 : vector<1x128xf32> to vector<1x128xbf16>
    %cst_25 = arith.constant dense<0.000000e+00> : vector<1x512xf32>
    %152 = tpu.matmul %151, %56, %cst_25 {dimension_numbers = #tpu.dot_dimension_numbers<[1], [0], [0], [1], [0, 0, 1, 1], [], []>} : vector<1x128xbf16>, vector<128x512xbf16>, vector<1x512xf32> -> vector<1x512xf32>
    %153 = arith.addf %150, %152 : vector<1x512xf32>
    %154 = vector.extract_strided_slice %153 {offsets = [0, 0], sizes = [1, 128], strides = [1, 1]} : vector<1x512xf32> to vector<1x128xf32>
    %155 = arith.negf %154 : vector<1x128xf32>
    %156 = math.exp %155 : vector<1x128xf32>
    %cst_26 = arith.constant 1.000000e+00 : f32
    %157 = vector.broadcast %cst_26 : f32 to vector<1x128xf32>
    %158 = arith.addf %157, %156 : vector<1x128xf32>
    %159 = arith.divf %157, %158 : vector<1x128xf32>
    %160 = vector.extract_strided_slice %153 {offsets = [0, 128], sizes = [1, 128], strides = [1, 1]} : vector<1x512xf32> to vector<1x128xf32>
    %161 = arith.negf %160 : vector<1x128xf32>
    %162 = math.exp %161 : vector<1x128xf32>
    %cst_27 = arith.constant 1.000000e+00 : f32
    %163 = vector.broadcast %cst_27 : f32 to vector<1x128xf32>
    %164 = arith.addf %163, %162 : vector<1x128xf32>
    %165 = arith.divf %163, %164 : vector<1x128xf32>
    %166 = vector.extract_strided_slice %153 {offsets = [0, 256], sizes = [1, 128], strides = [1, 1]} : vector<1x512xf32> to vector<1x128xf32>
    %167 = math.tanh %166 : vector<1x128xf32>
    %168 = vector.extract_strided_slice %153 {offsets = [0, 384], sizes = [1, 128], strides = [1, 1]} : vector<1x512xf32> to vector<1x128xf32>
    %169 = arith.negf %168 : vector<1x128xf32>
    %170 = math.exp %169 : vector<1x128xf32>
    %cst_28 = arith.constant 1.000000e+00 : f32
    %171 = vector.broadcast %cst_28 : f32 to vector<1x128xf32>
    %172 = arith.addf %171, %170 : vector<1x128xf32>
    %173 = arith.divf %171, %172 : vector<1x128xf32>
    %174 = arith.mulf %165, %146 : vector<1x128xf32>
    %175 = arith.mulf %159, %167 : vector<1x128xf32>
    %176 = arith.addf %174, %175 : vector<1x128xf32>
    %177 = math.tanh %176 : vector<1x128xf32>
    %178 = arith.mulf %173, %177 : vector<1x128xf32>
    %179 = vector.extract_strided_slice %55 {offsets = [0, 4, 0], sizes = [1, 1, 512], strides = [1, 1, 1]} : vector<1x8x512xf32> to vector<1x1x512xf32>
    %180 = vector.shape_cast %179 : vector<1x1x512xf32> to vector<1x512xf32>
    %181 = arith.truncf %178 : vector<1x128xf32> to vector<1x128xbf16>
    %cst_29 = arith.constant dense<0.000000e+00> : vector<1x512xf32>
    %182 = tpu.matmul %181, %56, %cst_29 {dimension_numbers = #tpu.dot_dimension_numbers<[1], [0], [0], [1], [0, 0, 1, 1], [], []>} : vector<1x128xbf16>, vector<128x512xbf16>, vector<1x512xf32> -> vector<1x512xf32>
    %183 = arith.addf %180, %182 : vector<1x512xf32>
    %184 = vector.extract_strided_slice %183 {offsets = [0, 0], sizes = [1, 128], strides = [1, 1]} : vector<1x512xf32> to vector<1x128xf32>
    %185 = arith.negf %184 : vector<1x128xf32>
    %186 = math.exp %185 : vector<1x128xf32>
    %cst_30 = arith.constant 1.000000e+00 : f32
    %187 = vector.broadcast %cst_30 : f32 to vector<1x128xf32>
    %188 = arith.addf %187, %186 : vector<1x128xf32>
    %189 = arith.divf %187, %188 : vector<1x128xf32>
    %190 = vector.extract_strided_slice %183 {offsets = [0, 128], sizes = [1, 128], strides = [1, 1]} : vector<1x512xf32> to vector<1x128xf32>
    %191 = arith.negf %190 : vector<1x128xf32>
    %192 = math.exp %191 : vector<1x128xf32>
    %cst_31 = arith.constant 1.000000e+00 : f32
    %193 = vector.broadcast %cst_31 : f32 to vector<1x128xf32>
    %194 = arith.addf %193, %192 : vector<1x128xf32>
    %195 = arith.divf %193, %194 : vector<1x128xf32>
    %196 = vector.extract_strided_slice %183 {offsets = [0, 256], sizes = [1, 128], strides = [1, 1]} : vector<1x512xf32> to vector<1x128xf32>
    %197 = math.tanh %196 : vector<1x128xf32>
    %198 = vector.extract_strided_slice %183 {offsets = [0, 384], sizes = [1, 128], strides = [1, 1]} : vector<1x512xf32> to vector<1x128xf32>
    %199 = arith.negf %198 : vector<1x128xf32>
    %200 = math.exp %199 : vector<1x128xf32>
    %cst_32 = arith.constant 1.000000e+00 : f32
    %201 = vector.broadcast %cst_32 : f32 to vector<1x128xf32>
    %202 = arith.addf %201, %200 : vector<1x128xf32>
    %203 = arith.divf %201, %202 : vector<1x128xf32>
    %204 = arith.mulf %195, %176 : vector<1x128xf32>
    %205 = arith.mulf %189, %197 : vector<1x128xf32>
    %206 = arith.addf %204, %205 : vector<1x128xf32>
    %207 = math.tanh %206 : vector<1x128xf32>
    %208 = arith.mulf %203, %207 : vector<1x128xf32>
    %209 = vector.extract_strided_slice %55 {offsets = [0, 5, 0], sizes = [1, 1, 512], strides = [1, 1, 1]} : vector<1x8x512xf32> to vector<1x1x512xf32>
    %210 = vector.shape_cast %209 : vector<1x1x512xf32> to vector<1x512xf32>
    %211 = arith.truncf %208 : vector<1x128xf32> to vector<1x128xbf16>
    %cst_33 = arith.constant dense<0.000000e+00> : vector<1x512xf32>
    %212 = tpu.matmul %211, %56, %cst_33 {dimension_numbers = #tpu.dot_dimension_numbers<[1], [0], [0], [1], [0, 0, 1, 1], [], []>} : vector<1x128xbf16>, vector<128x512xbf16>, vector<1x512xf32> -> vector<1x512xf32>
    %213 = arith.addf %210, %212 : vector<1x512xf32>
    %214 = vector.extract_strided_slice %213 {offsets = [0, 0], sizes = [1, 128], strides = [1, 1]} : vector<1x512xf32> to vector<1x128xf32>
    %215 = arith.negf %214 : vector<1x128xf32>
    %216 = math.exp %215 : vector<1x128xf32>
    %cst_34 = arith.constant 1.000000e+00 : f32
    %217 = vector.broadcast %cst_34 : f32 to vector<1x128xf32>
    %218 = arith.addf %217, %216 : vector<1x128xf32>
    %219 = arith.divf %217, %218 : vector<1x128xf32>
    %220 = vector.extract_strided_slice %213 {offsets = [0, 128], sizes = [1, 128], strides = [1, 1]} : vector<1x512xf32> to vector<1x128xf32>
    %221 = arith.negf %220 : vector<1x128xf32>
    %222 = math.exp %221 : vector<1x128xf32>
    %cst_35 = arith.constant 1.000000e+00 : f32
    %223 = vector.broadcast %cst_35 : f32 to vector<1x128xf32>
    %224 = arith.addf %223, %222 : vector<1x128xf32>
    %225 = arith.divf %223, %224 : vector<1x128xf32>
    %226 = vector.extract_strided_slice %213 {offsets = [0, 256], sizes = [1, 128], strides = [1, 1]} : vector<1x512xf32> to vector<1x128xf32>
    %227 = math.tanh %226 : vector<1x128xf32>
    %228 = vector.extract_strided_slice %213 {offsets = [0, 384], sizes = [1, 128], strides = [1, 1]} : vector<1x512xf32> to vector<1x128xf32>
    %229 = arith.negf %228 : vector<1x128xf32>
    %230 = math.exp %229 : vector<1x128xf32>
    %cst_36 = arith.constant 1.000000e+00 : f32
    %231 = vector.broadcast %cst_36 : f32 to vector<1x128xf32>
    %232 = arith.addf %231, %230 : vector<1x128xf32>
    %233 = arith.divf %231, %232 : vector<1x128xf32>
    %234 = arith.mulf %225, %206 : vector<1x128xf32>
    %235 = arith.mulf %219, %227 : vector<1x128xf32>
    %236 = arith.addf %234, %235 : vector<1x128xf32>
    %237 = math.tanh %236 : vector<1x128xf32>
    %238 = arith.mulf %233, %237 : vector<1x128xf32>
    %239 = vector.extract_strided_slice %55 {offsets = [0, 6, 0], sizes = [1, 1, 512], strides = [1, 1, 1]} : vector<1x8x512xf32> to vector<1x1x512xf32>
    %240 = vector.shape_cast %239 : vector<1x1x512xf32> to vector<1x512xf32>
    %241 = arith.truncf %238 : vector<1x128xf32> to vector<1x128xbf16>
    %cst_37 = arith.constant dense<0.000000e+00> : vector<1x512xf32>
    %242 = tpu.matmul %241, %56, %cst_37 {dimension_numbers = #tpu.dot_dimension_numbers<[1], [0], [0], [1], [0, 0, 1, 1], [], []>} : vector<1x128xbf16>, vector<128x512xbf16>, vector<1x512xf32> -> vector<1x512xf32>
    %243 = arith.addf %240, %242 : vector<1x512xf32>
    %244 = vector.extract_strided_slice %243 {offsets = [0, 0], sizes = [1, 128], strides = [1, 1]} : vector<1x512xf32> to vector<1x128xf32>
    %245 = arith.negf %244 : vector<1x128xf32>
    %246 = math.exp %245 : vector<1x128xf32>
    %cst_38 = arith.constant 1.000000e+00 : f32
    %247 = vector.broadcast %cst_38 : f32 to vector<1x128xf32>
    %248 = arith.addf %247, %246 : vector<1x128xf32>
    %249 = arith.divf %247, %248 : vector<1x128xf32>
    %250 = vector.extract_strided_slice %243 {offsets = [0, 128], sizes = [1, 128], strides = [1, 1]} : vector<1x512xf32> to vector<1x128xf32>
    %251 = arith.negf %250 : vector<1x128xf32>
    %252 = math.exp %251 : vector<1x128xf32>
    %cst_39 = arith.constant 1.000000e+00 : f32
    %253 = vector.broadcast %cst_39 : f32 to vector<1x128xf32>
    %254 = arith.addf %253, %252 : vector<1x128xf32>
    %255 = arith.divf %253, %254 : vector<1x128xf32>
    %256 = vector.extract_strided_slice %243 {offsets = [0, 256], sizes = [1, 128], strides = [1, 1]} : vector<1x512xf32> to vector<1x128xf32>
    %257 = math.tanh %256 : vector<1x128xf32>
    %258 = vector.extract_strided_slice %243 {offsets = [0, 384], sizes = [1, 128], strides = [1, 1]} : vector<1x512xf32> to vector<1x128xf32>
    %259 = arith.negf %258 : vector<1x128xf32>
    %260 = math.exp %259 : vector<1x128xf32>
    %cst_40 = arith.constant 1.000000e+00 : f32
    %261 = vector.broadcast %cst_40 : f32 to vector<1x128xf32>
    %262 = arith.addf %261, %260 : vector<1x128xf32>
    %263 = arith.divf %261, %262 : vector<1x128xf32>
    %264 = arith.mulf %255, %236 : vector<1x128xf32>
    %265 = arith.mulf %249, %257 : vector<1x128xf32>
    %266 = arith.addf %264, %265 : vector<1x128xf32>
    %267 = math.tanh %266 : vector<1x128xf32>
    %268 = arith.mulf %263, %267 : vector<1x128xf32>
    %269 = vector.extract_strided_slice %55 {offsets = [0, 7, 0], sizes = [1, 1, 512], strides = [1, 1, 1]} : vector<1x8x512xf32> to vector<1x1x512xf32>
    %270 = vector.shape_cast %269 : vector<1x1x512xf32> to vector<1x512xf32>
    %271 = arith.truncf %268 : vector<1x128xf32> to vector<1x128xbf16>
    %cst_41 = arith.constant dense<0.000000e+00> : vector<1x512xf32>
    %272 = tpu.matmul %271, %56, %cst_41 {dimension_numbers = #tpu.dot_dimension_numbers<[1], [0], [0], [1], [0, 0, 1, 1], [], []>} : vector<1x128xbf16>, vector<128x512xbf16>, vector<1x512xf32> -> vector<1x512xf32>
    %273 = arith.addf %270, %272 : vector<1x512xf32>
    %274 = vector.extract_strided_slice %273 {offsets = [0, 0], sizes = [1, 128], strides = [1, 1]} : vector<1x512xf32> to vector<1x128xf32>
    %275 = arith.negf %274 : vector<1x128xf32>
    %276 = math.exp %275 : vector<1x128xf32>
    %cst_42 = arith.constant 1.000000e+00 : f32
    %277 = vector.broadcast %cst_42 : f32 to vector<1x128xf32>
    %278 = arith.addf %277, %276 : vector<1x128xf32>
    %279 = arith.divf %277, %278 : vector<1x128xf32>
    %280 = vector.extract_strided_slice %273 {offsets = [0, 128], sizes = [1, 128], strides = [1, 1]} : vector<1x512xf32> to vector<1x128xf32>
    %281 = arith.negf %280 : vector<1x128xf32>
    %282 = math.exp %281 : vector<1x128xf32>
    %cst_43 = arith.constant 1.000000e+00 : f32
    %283 = vector.broadcast %cst_43 : f32 to vector<1x128xf32>
    %284 = arith.addf %283, %282 : vector<1x128xf32>
    %285 = arith.divf %283, %284 : vector<1x128xf32>
    %286 = vector.extract_strided_slice %273 {offsets = [0, 256], sizes = [1, 128], strides = [1, 1]} : vector<1x512xf32> to vector<1x128xf32>
    %287 = math.tanh %286 : vector<1x128xf32>
    %288 = vector.extract_strided_slice %273 {offsets = [0, 384], sizes = [1, 128], strides = [1, 1]} : vector<1x512xf32> to vector<1x128xf32>
    %289 = arith.negf %288 : vector<1x128xf32>
    %290 = math.exp %289 : vector<1x128xf32>
    %cst_44 = arith.constant 1.000000e+00 : f32
    %291 = vector.broadcast %cst_44 : f32 to vector<1x128xf32>
    %292 = arith.addf %291, %290 : vector<1x128xf32>
    %293 = arith.divf %291, %292 : vector<1x128xf32>
    %294 = arith.mulf %285, %266 : vector<1x128xf32>
    %295 = arith.mulf %279, %287 : vector<1x128xf32>
    %296 = arith.addf %294, %295 : vector<1x128xf32>
    %297 = math.tanh %296 : vector<1x128xf32>
    %298 = arith.mulf %293, %297 : vector<1x128xf32>
    %299 = tpu.iota {dimensions = array<i32: 2>} : vector<1x1x128xi32>
    %c64_i32_45 = arith.constant 64 : i32
    %300 = vector.broadcast %c64_i32_45 : i32 to vector<1x1x128xi32>
    %301 = arith.cmpi slt, %299, %300 : vector<1x1x128xi32>
    %302 = vector.shape_cast %88 : vector<1x128xf32> to vector<1x1x128xf32>
    %303 = vector.shape_cast %118 : vector<1x128xf32> to vector<1x1x128xf32>
    %304 = vector.shape_cast %148 : vector<1x128xf32> to vector<1x1x128xf32>
    %305 = vector.shape_cast %178 : vector<1x128xf32> to vector<1x1x128xf32>
    %306 = vector.shape_cast %208 : vector<1x128xf32> to vector<1x1x128xf32>
    %307 = vector.shape_cast %238 : vector<1x128xf32> to vector<1x1x128xf32>
    %308 = vector.shape_cast %268 : vector<1x128xf32> to vector<1x1x128xf32>
    %309 = vector.shape_cast %298 : vector<1x128xf32> to vector<1x1x128xf32>
    %310 = tpu.concatenate %302, %303, %304, %305, %306, %307, %308, %309 in 1 : vector<1x1x128xf32>, vector<1x1x128xf32>, vector<1x1x128xf32>, vector<1x1x128xf32>, vector<1x1x128xf32>, vector<1x1x128xf32>, vector<1x1x128xf32>, vector<1x1x128xf32> -> vector<1x8x128xf32>
    %311 = vector.shape_cast %298 : vector<1x128xf32> to vector<1x1x128xf32>
    %312 = vector.shape_cast %268 : vector<1x128xf32> to vector<1x1x128xf32>
    %313 = vector.shape_cast %238 : vector<1x128xf32> to vector<1x1x128xf32>
    %314 = vector.shape_cast %208 : vector<1x128xf32> to vector<1x1x128xf32>
    %315 = vector.shape_cast %178 : vector<1x128xf32> to vector<1x1x128xf32>
    %316 = vector.shape_cast %148 : vector<1x128xf32> to vector<1x1x128xf32>
    %317 = vector.shape_cast %118 : vector<1x128xf32> to vector<1x1x128xf32>
    %318 = vector.shape_cast %88 : vector<1x128xf32> to vector<1x1x128xf32>
    %319 = tpu.concatenate %311, %312, %313, %314, %315, %316, %317, %318 in 1 : vector<1x1x128xf32>, vector<1x1x128xf32>, vector<1x1x128xf32>, vector<1x1x128xf32>, vector<1x1x128xf32>, vector<1x1x128xf32>, vector<1x1x128xf32>, vector<1x1x128xf32> -> vector<1x8x128xf32>
    %320 = vector.shape_cast %301 : vector<1x1x128xi1> to vector<1x1x128xi1>
    %321 = vector.broadcast %320 : vector<1x1x128xi1> to vector<1x8x128xi1>
    %322 = arith.select %321, %310, %319 : vector<1x8x128xi1>, vector<1x8x128xf32>
    %323 = vector.shape_cast %322 : vector<1x8x128xf32> to vector<8x128xf32>
    %324 = arith.truncf %323 : vector<8x128xf32> to vector<8x128xbf16>
    %c0_46 = arith.constant 0 : index
    %c0_47 = arith.constant 0 : index
    %325 = vector.load %arg5[%c0_46, %c0_47] : memref<128x128xbf16, #tpu.memory_space<vmem>>, vector<128x128xbf16>
    %cst_48 = arith.constant dense<0.000000e+00> : vector<8x128xf32>
    %326 = tpu.matmul %324, %325, %cst_48 {dimension_numbers = #tpu.dot_dimension_numbers<[1], [0], [0], [1], [0, 0, 1, 1], [], []>} : vector<8x128xbf16>, vector<128x128xbf16>, vector<8x128xf32> -> vector<8x128xf32>
    %c0_49 = arith.constant 0 : index
    %c0_50 = arith.constant 0 : index
    %327 = vector.load %arg6[%c0_49, %c0_50] : memref<1x128xf32, #tpu.memory_space<vmem>>, vector<1x128xf32>
    %328 = vector.broadcast %327 : vector<1x128xf32> to vector<8x128xf32>
    %329 = arith.addf %326, %328 : vector<8x128xf32>
    %c0_51 = arith.constant 0 : index
    %c0_52 = arith.constant 0 : index
    %330 = vector.load %arg7[%c0_51, %c0_52] : memref<128x384xbf16, #tpu.memory_space<vmem>>, vector<128x384xbf16>
    %c0_53 = arith.constant 0 : index
    %c0_54 = arith.constant 0 : index
    %331 = vector.load %arg8[%c0_53, %c0_54] : memref<1x384xf32, #tpu.memory_space<vmem>>, vector<1x384xf32>
    %c0_55 = arith.constant 0 : index
    %c0_56 = arith.constant 0 : index
    %332 = vector.load %arg9[%c0_55, %c0_56] : memref<128x128xbf16, #tpu.memory_space<vmem>>, vector<128x128xbf16>
    %c0_57 = arith.constant 0 : index
    %c0_58 = arith.constant 0 : index
    %333 = vector.load %arg10[%c0_57, %c0_58] : memref<1x128xf32, #tpu.memory_space<vmem>>, vector<1x128xf32>
    %c0_59 = arith.constant 0 : index
    %c0_60 = arith.constant 0 : index
    %334 = vector.load %arg11[%c0_59, %c0_60] : memref<1x128xf32, #tpu.memory_space<vmem>>, vector<1x128xf32>
    %c0_61 = arith.constant 0 : index
    %c0_62 = arith.constant 0 : index
    %335 = vector.load %arg12[%c0_61, %c0_62] : memref<1x128xf32, #tpu.memory_space<vmem>>, vector<1x128xf32>
    %c0_63 = arith.constant 0 : index
    %c0_64 = arith.constant 0 : index
    %336 = vector.load %arg13[%c0_63, %c0_64] : memref<128x512xbf16, #tpu.memory_space<vmem>>, vector<128x512xbf16>
    %c0_65 = arith.constant 0 : index
    %c0_66 = arith.constant 0 : index
    %337 = vector.load %arg14[%c0_65, %c0_66] : memref<1x512xf32, #tpu.memory_space<vmem>>, vector<1x512xf32>
    %c0_67 = arith.constant 0 : index
    %c0_68 = arith.constant 0 : index
    %338 = vector.load %arg15[%c0_67, %c0_68] : memref<512x128xbf16, #tpu.memory_space<vmem>>, vector<512x128xbf16>
    %c0_69 = arith.constant 0 : index
    %c0_70 = arith.constant 0 : index
    %339 = vector.load %arg16[%c0_69, %c0_70] : memref<1x128xf32, #tpu.memory_space<vmem>>, vector<1x128xf32>
    %c0_71 = arith.constant 0 : index
    %c0_72 = arith.constant 0 : index
    %340 = vector.load %arg17[%c0_71, %c0_72] : memref<1x128xf32, #tpu.memory_space<vmem>>, vector<1x128xf32>
    %c0_73 = arith.constant 0 : index
    %c0_74 = arith.constant 0 : index
    %341 = vector.load %arg18[%c0_73, %c0_74] : memref<1x128xf32, #tpu.memory_space<vmem>>, vector<1x128xf32>
    %342 = arith.truncf %329 : vector<8x128xf32> to vector<8x128xbf16>
    %cst_75 = arith.constant dense<0.000000e+00> : vector<8x384xf32>
    %343 = tpu.matmul %342, %330, %cst_75 {dimension_numbers = #tpu.dot_dimension_numbers<[1], [0], [0], [1], [0, 0, 1, 1], [], []>} : vector<8x128xbf16>, vector<128x384xbf16>, vector<8x384xf32> -> vector<8x384xf32>
    %344 = vector.broadcast %331 : vector<1x384xf32> to vector<8x384xf32>
    %345 = arith.addf %343, %344 : vector<8x384xf32>
    %346 = vector.extract_strided_slice %345 {offsets = [0, 0], sizes = [8, 128], strides = [1, 1]} : vector<8x384xf32> to vector<8x128xf32>
    %347 = vector.shape_cast %346 : vector<8x128xf32> to vector<1x8x128xf32>
    %348 = vector.extract_strided_slice %345 {offsets = [0, 128], sizes = [8, 128], strides = [1, 1]} : vector<8x384xf32> to vector<8x128xf32>
    %349 = vector.shape_cast %348 : vector<8x128xf32> to vector<1x8x128xf32>
    %350 = vector.extract_strided_slice %345 {offsets = [0, 256], sizes = [8, 128], strides = [1, 1]} : vector<8x384xf32> to vector<8x128xf32>
    %351 = vector.shape_cast %350 : vector<8x128xf32> to vector<1x8x128xf32>
    %352 = vector.extract_strided_slice %347 {offsets = [0, 0, 0], sizes = [1, 8, 32], strides = [1, 1, 1]} : vector<1x8x128xf32> to vector<1x8x32xf32>
    %353 = arith.truncf %352 : vector<1x8x32xf32> to vector<1x8x32xbf16>
    %354 = vector.extract_strided_slice %349 {offsets = [0, 0, 0], sizes = [1, 8, 32], strides = [1, 1, 1]} : vector<1x8x128xf32> to vector<1x8x32xf32>
    %355 = arith.truncf %354 : vector<1x8x32xf32> to vector<1x8x32xbf16>
    %356 = vector.extract_strided_slice %351 {offsets = [0, 0, 0], sizes = [1, 8, 32], strides = [1, 1, 1]} : vector<1x8x128xf32> to vector<1x8x32xf32>
    %357 = arith.truncf %356 : vector<1x8x32xf32> to vector<1x8x32xbf16>
    "tpu.trace_start"() <{level = 10 : i32, message = "bqd,bkd->bqk"}> : () -> ()
    %cst_76 = arith.constant dense<0.000000e+00> : vector<1x8x8xf32>
    %358 = tpu.matmul %353, %355, %cst_76 {dimension_numbers = #tpu.dot_dimension_numbers<[2], [2], [1], [1], [0, 0, 0, 1, 1, 1], [0], [0]>} : vector<1x8x32xbf16>, vector<1x8x32xbf16>, vector<1x8x8xf32> -> vector<1x8x8xf32>
    "tpu.trace_stop"() : () -> ()
    %cst_77 = arith.constant 0.176776692 : f32
    %359 = vector.broadcast %cst_77 : f32 to vector<1x8x8xf32>
    %360 = arith.mulf %358, %359 : vector<1x8x8xf32>
    %cst_78 = arith.constant dense<0xFF800000> : vector<1x8xf32>
    %361 = vector.multi_reduction <maximumf>, %360, %cst_78 [2] : vector<1x8x8xf32> to vector<1x8xf32>
    %362 = vector.shape_cast %361 : vector<1x8xf32> to vector<1x8x1xf32>
    %363 = vector.broadcast %362 : vector<1x8x1xf32> to vector<1x8x8xf32>
    %364 = arith.subf %360, %363 : vector<1x8x8xf32>
    %365 = math.exp %364 : vector<1x8x8xf32>
    %cst_79 = arith.constant dense<0.000000e+00> : vector<1x8xf32>
    %366 = vector.multi_reduction <add>, %365, %cst_79 [2] : vector<1x8x8xf32> to vector<1x8xf32>
    %367 = vector.shape_cast %366 : vector<1x8xf32> to vector<1x8x1xf32>
    %368 = tpu.reciprocal %367 {approx = true} : vector<1x8x1xf32> -> vector<1x8x1xf32>
    %369 = vector.broadcast %368 : vector<1x8x1xf32> to vector<1x8x8xf32>
    %370 = arith.mulf %365, %369 : vector<1x8x8xf32>
    %371 = arith.truncf %370 : vector<1x8x8xf32> to vector<1x8x8xbf16>
    "tpu.trace_start"() <{level = 10 : i32, message = "bqk,bkd->bqd"}> : () -> ()
    %cst_80 = arith.constant dense<0.000000e+00> : vector<1x8x32xf32>
    %372 = tpu.matmul %371, %357, %cst_80 {dimension_numbers = #tpu.dot_dimension_numbers<[2], [1], [1], [2], [0, 0, 0, 1, 1, 2], [0], [0]>} : vector<1x8x8xbf16>, vector<1x8x32xbf16>, vector<1x8x32xf32> -> vector<1x8x32xf32>
    "tpu.trace_stop"() : () -> ()
    %373 = vector.extract_strided_slice %347 {offsets = [0, 0, 32], sizes = [1, 8, 32], strides = [1, 1, 1]} : vector<1x8x128xf32> to vector<1x8x32xf32>
    %374 = arith.truncf %373 : vector<1x8x32xf32> to vector<1x8x32xbf16>
    %375 = vector.extract_strided_slice %349 {offsets = [0, 0, 32], sizes = [1, 8, 32], strides = [1, 1, 1]} : vector<1x8x128xf32> to vector<1x8x32xf32>
    %376 = arith.truncf %375 : vector<1x8x32xf32> to vector<1x8x32xbf16>
    %377 = vector.extract_strided_slice %351 {offsets = [0, 0, 32], sizes = [1, 8, 32], strides = [1, 1, 1]} : vector<1x8x128xf32> to vector<1x8x32xf32>
    %378 = arith.truncf %377 : vector<1x8x32xf32> to vector<1x8x32xbf16>
    "tpu.trace_start"() <{level = 10 : i32, message = "bqd,bkd->bqk"}> : () -> ()
    %cst_81 = arith.constant dense<0.000000e+00> : vector<1x8x8xf32>
    %379 = tpu.matmul %374, %376, %cst_81 {dimension_numbers = #tpu.dot_dimension_numbers<[2], [2], [1], [1], [0, 0, 0, 1, 1, 1], [0], [0]>} : vector<1x8x32xbf16>, vector<1x8x32xbf16>, vector<1x8x8xf32> -> vector<1x8x8xf32>
    "tpu.trace_stop"() : () -> ()
    %cst_82 = arith.constant 0.176776692 : f32
    %380 = vector.broadcast %cst_82 : f32 to vector<1x8x8xf32>
    %381 = arith.mulf %379, %380 : vector<1x8x8xf32>
    %cst_83 = arith.constant dense<0xFF800000> : vector<1x8xf32>
    %382 = vector.multi_reduction <maximumf>, %381, %cst_83 [2] : vector<1x8x8xf32> to vector<1x8xf32>
    %383 = vector.shape_cast %382 : vector<1x8xf32> to vector<1x8x1xf32>
    %384 = vector.broadcast %383 : vector<1x8x1xf32> to vector<1x8x8xf32>
    %385 = arith.subf %381, %384 : vector<1x8x8xf32>
    %386 = math.exp %385 : vector<1x8x8xf32>
    %cst_84 = arith.constant dense<0.000000e+00> : vector<1x8xf32>
    %387 = vector.multi_reduction <add>, %386, %cst_84 [2] : vector<1x8x8xf32> to vector<1x8xf32>
    %388 = vector.shape_cast %387 : vector<1x8xf32> to vector<1x8x1xf32>
    %389 = tpu.reciprocal %388 {approx = true} : vector<1x8x1xf32> -> vector<1x8x1xf32>
    %390 = vector.broadcast %389 : vector<1x8x1xf32> to vector<1x8x8xf32>
    %391 = arith.mulf %386, %390 : vector<1x8x8xf32>
    %392 = arith.truncf %391 : vector<1x8x8xf32> to vector<1x8x8xbf16>
    "tpu.trace_start"() <{level = 10 : i32, message = "bqk,bkd->bqd"}> : () -> ()
    %cst_85 = arith.constant dense<0.000000e+00> : vector<1x8x32xf32>
    %393 = tpu.matmul %392, %378, %cst_85 {dimension_numbers = #tpu.dot_dimension_numbers<[2], [1], [1], [2], [0, 0, 0, 1, 1, 2], [0], [0]>} : vector<1x8x8xbf16>, vector<1x8x32xbf16>, vector<1x8x32xf32> -> vector<1x8x32xf32>
    "tpu.trace_stop"() : () -> ()
    %394 = vector.extract_strided_slice %347 {offsets = [0, 0, 64], sizes = [1, 8, 32], strides = [1, 1, 1]} : vector<1x8x128xf32> to vector<1x8x32xf32>
    %395 = arith.truncf %394 : vector<1x8x32xf32> to vector<1x8x32xbf16>
    %396 = vector.extract_strided_slice %349 {offsets = [0, 0, 64], sizes = [1, 8, 32], strides = [1, 1, 1]} : vector<1x8x128xf32> to vector<1x8x32xf32>
    %397 = arith.truncf %396 : vector<1x8x32xf32> to vector<1x8x32xbf16>
    %398 = vector.extract_strided_slice %351 {offsets = [0, 0, 64], sizes = [1, 8, 32], strides = [1, 1, 1]} : vector<1x8x128xf32> to vector<1x8x32xf32>
    %399 = arith.truncf %398 : vector<1x8x32xf32> to vector<1x8x32xbf16>
    "tpu.trace_start"() <{level = 10 : i32, message = "bqd,bkd->bqk"}> : () -> ()
    %cst_86 = arith.constant dense<0.000000e+00> : vector<1x8x8xf32>
    %400 = tpu.matmul %395, %397, %cst_86 {dimension_numbers = #tpu.dot_dimension_numbers<[2], [2], [1], [1], [0, 0, 0, 1, 1, 1], [0], [0]>} : vector<1x8x32xbf16>, vector<1x8x32xbf16>, vector<1x8x8xf32> -> vector<1x8x8xf32>
    "tpu.trace_stop"() : () -> ()
    %cst_87 = arith.constant 0.176776692 : f32
    %401 = vector.broadcast %cst_87 : f32 to vector<1x8x8xf32>
    %402 = arith.mulf %400, %401 : vector<1x8x8xf32>
    %cst_88 = arith.constant dense<0xFF800000> : vector<1x8xf32>
    %403 = vector.multi_reduction <maximumf>, %402, %cst_88 [2] : vector<1x8x8xf32> to vector<1x8xf32>
    %404 = vector.shape_cast %403 : vector<1x8xf32> to vector<1x8x1xf32>
    %405 = vector.broadcast %404 : vector<1x8x1xf32> to vector<1x8x8xf32>
    %406 = arith.subf %402, %405 : vector<1x8x8xf32>
    %407 = math.exp %406 : vector<1x8x8xf32>
    %cst_89 = arith.constant dense<0.000000e+00> : vector<1x8xf32>
    %408 = vector.multi_reduction <add>, %407, %cst_89 [2] : vector<1x8x8xf32> to vector<1x8xf32>
    %409 = vector.shape_cast %408 : vector<1x8xf32> to vector<1x8x1xf32>
    %410 = tpu.reciprocal %409 {approx = true} : vector<1x8x1xf32> -> vector<1x8x1xf32>
    %411 = vector.broadcast %410 : vector<1x8x1xf32> to vector<1x8x8xf32>
    %412 = arith.mulf %407, %411 : vector<1x8x8xf32>
    %413 = arith.truncf %412 : vector<1x8x8xf32> to vector<1x8x8xbf16>
    "tpu.trace_start"() <{level = 10 : i32, message = "bqk,bkd->bqd"}> : () -> ()
    %cst_90 = arith.constant dense<0.000000e+00> : vector<1x8x32xf32>
    %414 = tpu.matmul %413, %399, %cst_90 {dimension_numbers = #tpu.dot_dimension_numbers<[2], [1], [1], [2], [0, 0, 0, 1, 1, 2], [0], [0]>} : vector<1x8x8xbf16>, vector<1x8x32xbf16>, vector<1x8x32xf32> -> vector<1x8x32xf32>
    "tpu.trace_stop"() : () -> ()
    %415 = vector.extract_strided_slice %347 {offsets = [0, 0, 96], sizes = [1, 8, 32], strides = [1, 1, 1]} : vector<1x8x128xf32> to vector<1x8x32xf32>
    %416 = arith.truncf %415 : vector<1x8x32xf32> to vector<1x8x32xbf16>
    %417 = vector.extract_strided_slice %349 {offsets = [0, 0, 96], sizes = [1, 8, 32], strides = [1, 1, 1]} : vector<1x8x128xf32> to vector<1x8x32xf32>
    %418 = arith.truncf %417 : vector<1x8x32xf32> to vector<1x8x32xbf16>
    %419 = vector.extract_strided_slice %351 {offsets = [0, 0, 96], sizes = [1, 8, 32], strides = [1, 1, 1]} : vector<1x8x128xf32> to vector<1x8x32xf32>
    %420 = arith.truncf %419 : vector<1x8x32xf32> to vector<1x8x32xbf16>
    "tpu.trace_start"() <{level = 10 : i32, message = "bqd,bkd->bqk"}> : () -> ()
    %cst_91 = arith.constant dense<0.000000e+00> : vector<1x8x8xf32>
    %421 = tpu.matmul %416, %418, %cst_91 {dimension_numbers = #tpu.dot_dimension_numbers<[2], [2], [1], [1], [0, 0, 0, 1, 1, 1], [0], [0]>} : vector<1x8x32xbf16>, vector<1x8x32xbf16>, vector<1x8x8xf32> -> vector<1x8x8xf32>
    "tpu.trace_stop"() : () -> ()
    %cst_92 = arith.constant 0.176776692 : f32
    %422 = vector.broadcast %cst_92 : f32 to vector<1x8x8xf32>
    %423 = arith.mulf %421, %422 : vector<1x8x8xf32>
    %cst_93 = arith.constant dense<0xFF800000> : vector<1x8xf32>
    %424 = vector.multi_reduction <maximumf>, %423, %cst_93 [2] : vector<1x8x8xf32> to vector<1x8xf32>
    %425 = vector.shape_cast %424 : vector<1x8xf32> to vector<1x8x1xf32>
    %426 = vector.broadcast %425 : vector<1x8x1xf32> to vector<1x8x8xf32>
    %427 = arith.subf %423, %426 : vector<1x8x8xf32>
    %428 = math.exp %427 : vector<1x8x8xf32>
    %cst_94 = arith.constant dense<0.000000e+00> : vector<1x8xf32>
    %429 = vector.multi_reduction <add>, %428, %cst_94 [2] : vector<1x8x8xf32> to vector<1x8xf32>
    %430 = vector.shape_cast %429 : vector<1x8xf32> to vector<1x8x1xf32>
    %431 = tpu.reciprocal %430 {approx = true} : vector<1x8x1xf32> -> vector<1x8x1xf32>
    %432 = vector.broadcast %431 : vector<1x8x1xf32> to vector<1x8x8xf32>
    %433 = arith.mulf %428, %432 : vector<1x8x8xf32>
    %434 = arith.truncf %433 : vector<1x8x8xf32> to vector<1x8x8xbf16>
    "tpu.trace_start"() <{level = 10 : i32, message = "bqk,bkd->bqd"}> : () -> ()
    %cst_95 = arith.constant dense<0.000000e+00> : vector<1x8x32xf32>
    %435 = tpu.matmul %434, %420, %cst_95 {dimension_numbers = #tpu.dot_dimension_numbers<[2], [1], [1], [2], [0, 0, 0, 1, 1, 2], [0], [0]>} : vector<1x8x8xbf16>, vector<1x8x32xbf16>, vector<1x8x32xf32> -> vector<1x8x32xf32>
    "tpu.trace_stop"() : () -> ()
    %436 = tpu.concatenate %372, %393, %414, %435 in 2 : vector<1x8x32xf32>, vector<1x8x32xf32>, vector<1x8x32xf32>, vector<1x8x32xf32> -> vector<1x8x128xf32>
    %437 = vector.shape_cast %436 : vector<1x8x128xf32> to vector<8x128xf32>
    %438 = arith.truncf %437 : vector<8x128xf32> to vector<8x128xbf16>
    %cst_96 = arith.constant dense<0.000000e+00> : vector<8x128xf32>
    %439 = tpu.matmul %438, %332, %cst_96 {dimension_numbers = #tpu.dot_dimension_numbers<[1], [0], [0], [1], [0, 0, 1, 1], [], []>} : vector<8x128xbf16>, vector<128x128xbf16>, vector<8x128xf32> -> vector<8x128xf32>
    %440 = vector.broadcast %333 : vector<1x128xf32> to vector<8x128xf32>
    %441 = arith.addf %439, %440 : vector<8x128xf32>
    %442 = arith.addf %329, %441 : vector<8x128xf32>
    %cst_97 = arith.constant dense<0.000000e+00> : vector<8xf32>
    %443 = vector.multi_reduction <add>, %442, %cst_97 [1] : vector<8x128xf32> to vector<8xf32>
    %444 = vector.shape_cast %443 : vector<8xf32> to vector<8x1xf32>
    %cst_98 = arith.constant 1.280000e+02 : f32
    %445 = vector.broadcast %cst_98 : f32 to vector<8x1xf32>
    %446 = arith.divf %444, %445 : vector<8x1xf32>
    %447 = vector.broadcast %446 : vector<8x1xf32> to vector<8x128xf32>
    %448 = arith.subf %442, %447 : vector<8x128xf32>
    %449 = arith.mulf %448, %448 : vector<8x128xf32>
    %cst_99 = arith.constant dense<0.000000e+00> : vector<8xf32>
    %450 = vector.multi_reduction <add>, %449, %cst_99 [1] : vector<8x128xf32> to vector<8xf32>
    %451 = vector.shape_cast %450 : vector<8xf32> to vector<8x1xf32>
    %cst_100 = arith.constant 1.280000e+02 : f32
    %452 = vector.broadcast %cst_100 : f32 to vector<8x1xf32>
    %453 = arith.divf %451, %452 : vector<8x1xf32>
    %454 = vector.broadcast %446 : vector<8x1xf32> to vector<8x128xf32>
    %455 = arith.subf %442, %454 : vector<8x128xf32>
    %cst_101 = arith.constant 9.99999974E-6 : f32
    %456 = vector.broadcast %cst_101 : f32 to vector<8x1xf32>
    %457 = arith.addf %453, %456 : vector<8x1xf32>
    %458 = math.rsqrt %457 : vector<8x1xf32>
    %459 = vector.broadcast %458 : vector<8x1xf32> to vector<8x128xf32>
    %460 = arith.mulf %455, %459 : vector<8x128xf32>
    %461 = vector.broadcast %334 : vector<1x128xf32> to vector<8x128xf32>
    %462 = arith.mulf %460, %461 : vector<8x128xf32>
    %463 = vector.broadcast %335 : vector<1x128xf32> to vector<8x128xf32>
    %464 = arith.addf %462, %463 : vector<8x128xf32>
    %465 = arith.truncf %464 : vector<8x128xf32> to vector<8x128xbf16>
    %cst_102 = arith.constant dense<0.000000e+00> : vector<8x512xf32>
    %466 = tpu.matmul %465, %336, %cst_102 {dimension_numbers = #tpu.dot_dimension_numbers<[1], [0], [0], [1], [0, 0, 1, 1], [], []>} : vector<8x128xbf16>, vector<128x512xbf16>, vector<8x512xf32> -> vector<8x512xf32>
    %467 = vector.broadcast %337 : vector<1x512xf32> to vector<8x512xf32>
    %468 = arith.addf %466, %467 : vector<8x512xf32>
    %cst_103 = arith.constant 5.000000e-01 : f32
    %469 = vector.broadcast %cst_103 : f32 to vector<8x512xf32>
    %470 = arith.mulf %469, %468 : vector<8x512xf32>
    %cst_104 = arith.constant 0.707106769 : f32
    %471 = vector.broadcast %cst_104 : f32 to vector<8x512xf32>
    %472 = arith.mulf %468, %471 : vector<8x512xf32>
    %473 = math.absf %472 : vector<8x512xf32>
    %cst_105 = arith.constant 0.327591091 : f32
    %474 = vector.broadcast %cst_105 : f32 to vector<8x512xf32>
    %475 = arith.mulf %474, %473 : vector<8x512xf32>
    %cst_106 = arith.constant 1.000000e+00 : f32
    %476 = vector.broadcast %cst_106 : f32 to vector<8x512xf32>
    %477 = arith.addf %476, %475 : vector<8x512xf32>
    %cst_107 = arith.constant 1.000000e+00 : f32
    %478 = vector.broadcast %cst_107 : f32 to vector<8x512xf32>
    %479 = arith.divf %478, %477 : vector<8x512xf32>
    %cst_108 = arith.constant 1.06140542 : f32
    %480 = vector.broadcast %cst_108 : f32 to vector<8x512xf32>
    %481 = arith.mulf %480, %479 : vector<8x512xf32>
    %cst_109 = arith.constant -1.45315206 : f32
    %482 = vector.broadcast %cst_109 : f32 to vector<8x512xf32>
    %483 = arith.addf %481, %482 : vector<8x512xf32>
    %484 = arith.mulf %483, %479 : vector<8x512xf32>
    %cst_110 = arith.constant 1.42141378 : f32
    %485 = vector.broadcast %cst_110 : f32 to vector<8x512xf32>
    %486 = arith.addf %484, %485 : vector<8x512xf32>
    %487 = arith.mulf %486, %479 : vector<8x512xf32>
    %cst_111 = arith.constant -0.284496725 : f32
    %488 = vector.broadcast %cst_111 : f32 to vector<8x512xf32>
    %489 = arith.addf %487, %488 : vector<8x512xf32>
    %490 = arith.mulf %489, %479 : vector<8x512xf32>
    %cst_112 = arith.constant 0.254829586 : f32
    %491 = vector.broadcast %cst_112 : f32 to vector<8x512xf32>
    %492 = arith.addf %490, %491 : vector<8x512xf32>
    %493 = arith.mulf %492, %479 : vector<8x512xf32>
    %cst_113 = arith.constant 0.000000e+00 : f32
    %494 = vector.broadcast %cst_113 : f32 to vector<8x512xf32>
    %495 = arith.subf %494, %473 : vector<8x512xf32>
    %496 = arith.mulf %495, %473 : vector<8x512xf32>
    %497 = math.exp %496 : vector<8x512xf32>
    %498 = arith.mulf %493, %497 : vector<8x512xf32>
    %cst_114 = arith.constant 1.000000e+00 : f32
    %499 = vector.broadcast %cst_114 : f32 to vector<8x512xf32>
    %500 = arith.subf %499, %498 : vector<8x512xf32>
    %cst_115 = arith.constant 0.000000e+00 : f32
    %501 = vector.broadcast %cst_115 : f32 to vector<8x512xf32>
    %502 = arith.cmpf oge, %472, %501 : vector<8x512xf32>
    %cst_116 = arith.constant 0.000000e+00 : f32
    %503 = vector.broadcast %cst_116 : f32 to vector<8x512xf32>
    %504 = arith.subf %503, %500 : vector<8x512xf32>
    %505 = arith.select %502, %500, %504 : vector<8x512xi1>, vector<8x512xf32>
    %cst_117 = arith.constant 1.000000e+00 : f32
    %506 = vector.broadcast %cst_117 : f32 to vector<8x512xf32>
    %507 = arith.addf %506, %505 : vector<8x512xf32>
    %508 = arith.mulf %470, %507 : vector<8x512xf32>
    %509 = arith.truncf %508 : vector<8x512xf32> to vector<8x512xbf16>
    %cst_118 = arith.constant dense<0.000000e+00> : vector<8x128xf32>
    %510 = tpu.matmul %509, %338, %cst_118 {dimension_numbers = #tpu.dot_dimension_numbers<[1], [0], [0], [1], [0, 0, 1, 1], [], []>} : vector<8x512xbf16>, vector<512x128xbf16>, vector<8x128xf32> -> vector<8x128xf32>
    %511 = vector.broadcast %339 : vector<1x128xf32> to vector<8x128xf32>
    %512 = arith.addf %510, %511 : vector<8x128xf32>
    %513 = arith.addf %464, %512 : vector<8x128xf32>
    %cst_119 = arith.constant dense<0.000000e+00> : vector<8xf32>
    %514 = vector.multi_reduction <add>, %513, %cst_119 [1] : vector<8x128xf32> to vector<8xf32>
    %515 = vector.shape_cast %514 : vector<8xf32> to vector<8x1xf32>
    %cst_120 = arith.constant 1.280000e+02 : f32
    %516 = vector.broadcast %cst_120 : f32 to vector<8x1xf32>
    %517 = arith.divf %515, %516 : vector<8x1xf32>
    %518 = vector.broadcast %517 : vector<8x1xf32> to vector<8x128xf32>
    %519 = arith.subf %513, %518 : vector<8x128xf32>
    %520 = arith.mulf %519, %519 : vector<8x128xf32>
    %cst_121 = arith.constant dense<0.000000e+00> : vector<8xf32>
    %521 = vector.multi_reduction <add>, %520, %cst_121 [1] : vector<8x128xf32> to vector<8xf32>
    %522 = vector.shape_cast %521 : vector<8xf32> to vector<8x1xf32>
    %cst_122 = arith.constant 1.280000e+02 : f32
    %523 = vector.broadcast %cst_122 : f32 to vector<8x1xf32>
    %524 = arith.divf %522, %523 : vector<8x1xf32>
    %525 = vector.broadcast %517 : vector<8x1xf32> to vector<8x128xf32>
    %526 = arith.subf %513, %525 : vector<8x128xf32>
    %cst_123 = arith.constant 9.99999974E-6 : f32
    %527 = vector.broadcast %cst_123 : f32 to vector<8x1xf32>
    %528 = arith.addf %524, %527 : vector<8x1xf32>
    %529 = math.rsqrt %528 : vector<8x1xf32>
    %530 = vector.broadcast %529 : vector<8x1xf32> to vector<8x128xf32>
    %531 = arith.mulf %526, %530 : vector<8x128xf32>
    %532 = vector.broadcast %340 : vector<1x128xf32> to vector<8x128xf32>
    %533 = arith.mulf %531, %532 : vector<8x128xf32>
    %534 = vector.broadcast %341 : vector<1x128xf32> to vector<8x128xf32>
    %535 = arith.addf %533, %534 : vector<8x128xf32>
    %c0_124 = arith.constant 0 : index
    %c0_125 = arith.constant 0 : index
    %536 = vector.load %arg19[%c0_124, %c0_125] : memref<128x384xbf16, #tpu.memory_space<vmem>>, vector<128x384xbf16>
    %c0_126 = arith.constant 0 : index
    %c0_127 = arith.constant 0 : index
    %537 = vector.load %arg20[%c0_126, %c0_127] : memref<1x384xf32, #tpu.memory_space<vmem>>, vector<1x384xf32>
    %c0_128 = arith.constant 0 : index
    %c0_129 = arith.constant 0 : index
    %538 = vector.load %arg21[%c0_128, %c0_129] : memref<128x128xbf16, #tpu.memory_space<vmem>>, vector<128x128xbf16>
    %c0_130 = arith.constant 0 : index
    %c0_131 = arith.constant 0 : index
    %539 = vector.load %arg22[%c0_130, %c0_131] : memref<1x128xf32, #tpu.memory_space<vmem>>, vector<1x128xf32>
    %c0_132 = arith.constant 0 : index
    %c0_133 = arith.constant 0 : index
    %540 = vector.load %arg23[%c0_132, %c0_133] : memref<1x128xf32, #tpu.memory_space<vmem>>, vector<1x128xf32>
    %c0_134 = arith.constant 0 : index
    %c0_135 = arith.constant 0 : index
    %541 = vector.load %arg24[%c0_134, %c0_135] : memref<1x128xf32, #tpu.memory_space<vmem>>, vector<1x128xf32>
    %c0_136 = arith.constant 0 : index
    %c0_137 = arith.constant 0 : index
    %542 = vector.load %arg25[%c0_136, %c0_137] : memref<128x512xbf16, #tpu.memory_space<vmem>>, vector<128x512xbf16>
    %c0_138 = arith.constant 0 : index
    %c0_139 = arith.constant 0 : index
    %543 = vector.load %arg26[%c0_138, %c0_139] : memref<1x512xf32, #tpu.memory_space<vmem>>, vector<1x512xf32>
    %c0_140 = arith.constant 0 : index
    %c0_141 = arith.constant 0 : index
    %544 = vector.load %arg27[%c0_140, %c0_141] : memref<512x128xbf16, #tpu.memory_space<vmem>>, vector<512x128xbf16>
    %c0_142 = arith.constant 0 : index
    %c0_143 = arith.constant 0 : index
    %545 = vector.load %arg28[%c0_142, %c0_143] : memref<1x128xf32, #tpu.memory_space<vmem>>, vector<1x128xf32>
    %c0_144 = arith.constant 0 : index
    %c0_145 = arith.constant 0 : index
    %546 = vector.load %arg29[%c0_144, %c0_145] : memref<1x128xf32, #tpu.memory_space<vmem>>, vector<1x128xf32>
    %c0_146 = arith.constant 0 : index
    %c0_147 = arith.constant 0 : index
    %547 = vector.load %arg30[%c0_146, %c0_147] : memref<1x128xf32, #tpu.memory_space<vmem>>, vector<1x128xf32>
    %548 = arith.truncf %535 : vector<8x128xf32> to vector<8x128xbf16>
    %cst_148 = arith.constant dense<0.000000e+00> : vector<8x384xf32>
    %549 = tpu.matmul %548, %536, %cst_148 {dimension_numbers = #tpu.dot_dimension_numbers<[1], [0], [0], [1], [0, 0, 1, 1], [], []>} : vector<8x128xbf16>, vector<128x384xbf16>, vector<8x384xf32> -> vector<8x384xf32>
    %550 = vector.broadcast %537 : vector<1x384xf32> to vector<8x384xf32>
    %551 = arith.addf %549, %550 : vector<8x384xf32>
    %552 = vector.extract_strided_slice %551 {offsets = [0, 0], sizes = [8, 128], strides = [1, 1]} : vector<8x384xf32> to vector<8x128xf32>
    %553 = vector.shape_cast %552 : vector<8x128xf32> to vector<1x8x128xf32>
    %554 = vector.extract_strided_slice %551 {offsets = [0, 128], sizes = [8, 128], strides = [1, 1]} : vector<8x384xf32> to vector<8x128xf32>
    %555 = vector.shape_cast %554 : vector<8x128xf32> to vector<1x8x128xf32>
    %556 = vector.extract_strided_slice %551 {offsets = [0, 256], sizes = [8, 128], strides = [1, 1]} : vector<8x384xf32> to vector<8x128xf32>
    %557 = vector.shape_cast %556 : vector<8x128xf32> to vector<1x8x128xf32>
    %558 = vector.extract_strided_slice %553 {offsets = [0, 7, 0], sizes = [1, 1, 128], strides = [1, 1, 1]} : vector<1x8x128xf32> to vector<1x1x128xf32>
    %559 = vector.shape_cast %535 : vector<8x128xf32> to vector<1x8x128xf32>
    %560 = vector.extract_strided_slice %559 {offsets = [0, 7, 0], sizes = [1, 1, 128], strides = [1, 1, 1]} : vector<1x8x128xf32> to vector<1x1x128xf32>
    %561 = vector.shape_cast %560 : vector<1x1x128xf32> to vector<1x128xf32>
    %562 = vector.extract_strided_slice %558 {offsets = [0, 0, 0], sizes = [1, 1, 32], strides = [1, 1, 1]} : vector<1x1x128xf32> to vector<1x1x32xf32>
    %563 = arith.truncf %562 : vector<1x1x32xf32> to vector<1x1x32xbf16>
    %564 = vector.extract_strided_slice %555 {offsets = [0, 0, 0], sizes = [1, 8, 32], strides = [1, 1, 1]} : vector<1x8x128xf32> to vector<1x8x32xf32>
    %565 = arith.truncf %564 : vector<1x8x32xf32> to vector<1x8x32xbf16>
    %566 = vector.extract_strided_slice %557 {offsets = [0, 0, 0], sizes = [1, 8, 32], strides = [1, 1, 1]} : vector<1x8x128xf32> to vector<1x8x32xf32>
    %567 = arith.truncf %566 : vector<1x8x32xf32> to vector<1x8x32xbf16>
    "tpu.trace_start"() <{level = 10 : i32, message = "bqd,bkd->bqk"}> : () -> ()
    %cst_149 = arith.constant dense<0.000000e+00> : vector<1x1x8xf32>
    %568 = tpu.matmul %563, %565, %cst_149 {dimension_numbers = #tpu.dot_dimension_numbers<[2], [2], [1], [1], [0, 0, 0, 1, 1, 1], [0], [0]>} : vector<1x1x32xbf16>, vector<1x8x32xbf16>, vector<1x1x8xf32> -> vector<1x1x8xf32>
    "tpu.trace_stop"() : () -> ()
    %cst_150 = arith.constant 0.176776692 : f32
    %569 = vector.broadcast %cst_150 : f32 to vector<1x1x8xf32>
    %570 = arith.mulf %568, %569 : vector<1x1x8xf32>
    %cst_151 = arith.constant dense<0xFF800000> : vector<1x1xf32>
    %571 = vector.multi_reduction <maximumf>, %570, %cst_151 [2] : vector<1x1x8xf32> to vector<1x1xf32>
    %572 = vector.shape_cast %571 : vector<1x1xf32> to vector<1x1x1xf32>
    %573 = vector.broadcast %572 : vector<1x1x1xf32> to vector<1x1x8xf32>
    %574 = arith.subf %570, %573 : vector<1x1x8xf32>
    %575 = math.exp %574 : vector<1x1x8xf32>
    %cst_152 = arith.constant dense<0.000000e+00> : vector<1x1xf32>
    %576 = vector.multi_reduction <add>, %575, %cst_152 [2] : vector<1x1x8xf32> to vector<1x1xf32>
    %577 = vector.shape_cast %576 : vector<1x1xf32> to vector<1x1x1xf32>
    %578 = tpu.reciprocal %577 {approx = true} : vector<1x1x1xf32> -> vector<1x1x1xf32>
    %579 = vector.broadcast %578 : vector<1x1x1xf32> to vector<1x1x8xf32>
    %580 = arith.mulf %575, %579 : vector<1x1x8xf32>
    %581 = arith.truncf %580 : vector<1x1x8xf32> to vector<1x1x8xbf16>
    "tpu.trace_start"() <{level = 10 : i32, message = "bqk,bkd->bqd"}> : () -> ()
    %cst_153 = arith.constant dense<0.000000e+00> : vector<1x1x32xf32>
    %582 = tpu.matmul %581, %567, %cst_153 {dimension_numbers = #tpu.dot_dimension_numbers<[2], [1], [1], [2], [0, 0, 0, 1, 1, 2], [0], [0]>} : vector<1x1x8xbf16>, vector<1x8x32xbf16>, vector<1x1x32xf32> -> vector<1x1x32xf32>
    "tpu.trace_stop"() : () -> ()
    %583 = vector.extract_strided_slice %558 {offsets = [0, 0, 32], sizes = [1, 1, 32], strides = [1, 1, 1]} : vector<1x1x128xf32> to vector<1x1x32xf32>
    %584 = arith.truncf %583 : vector<1x1x32xf32> to vector<1x1x32xbf16>
    %585 = vector.extract_strided_slice %555 {offsets = [0, 0, 32], sizes = [1, 8, 32], strides = [1, 1, 1]} : vector<1x8x128xf32> to vector<1x8x32xf32>
    %586 = arith.truncf %585 : vector<1x8x32xf32> to vector<1x8x32xbf16>
    %587 = vector.extract_strided_slice %557 {offsets = [0, 0, 32], sizes = [1, 8, 32], strides = [1, 1, 1]} : vector<1x8x128xf32> to vector<1x8x32xf32>
    %588 = arith.truncf %587 : vector<1x8x32xf32> to vector<1x8x32xbf16>
    "tpu.trace_start"() <{level = 10 : i32, message = "bqd,bkd->bqk"}> : () -> ()
    %cst_154 = arith.constant dense<0.000000e+00> : vector<1x1x8xf32>
    %589 = tpu.matmul %584, %586, %cst_154 {dimension_numbers = #tpu.dot_dimension_numbers<[2], [2], [1], [1], [0, 0, 0, 1, 1, 1], [0], [0]>} : vector<1x1x32xbf16>, vector<1x8x32xbf16>, vector<1x1x8xf32> -> vector<1x1x8xf32>
    "tpu.trace_stop"() : () -> ()
    %cst_155 = arith.constant 0.176776692 : f32
    %590 = vector.broadcast %cst_155 : f32 to vector<1x1x8xf32>
    %591 = arith.mulf %589, %590 : vector<1x1x8xf32>
    %cst_156 = arith.constant dense<0xFF800000> : vector<1x1xf32>
    %592 = vector.multi_reduction <maximumf>, %591, %cst_156 [2] : vector<1x1x8xf32> to vector<1x1xf32>
    %593 = vector.shape_cast %592 : vector<1x1xf32> to vector<1x1x1xf32>
    %594 = vector.broadcast %593 : vector<1x1x1xf32> to vector<1x1x8xf32>
    %595 = arith.subf %591, %594 : vector<1x1x8xf32>
    %596 = math.exp %595 : vector<1x1x8xf32>
    %cst_157 = arith.constant dense<0.000000e+00> : vector<1x1xf32>
    %597 = vector.multi_reduction <add>, %596, %cst_157 [2] : vector<1x1x8xf32> to vector<1x1xf32>
    %598 = vector.shape_cast %597 : vector<1x1xf32> to vector<1x1x1xf32>
    %599 = tpu.reciprocal %598 {approx = true} : vector<1x1x1xf32> -> vector<1x1x1xf32>
    %600 = vector.broadcast %599 : vector<1x1x1xf32> to vector<1x1x8xf32>
    %601 = arith.mulf %596, %600 : vector<1x1x8xf32>
    %602 = arith.truncf %601 : vector<1x1x8xf32> to vector<1x1x8xbf16>
    "tpu.trace_start"() <{level = 10 : i32, message = "bqk,bkd->bqd"}> : () -> ()
    %cst_158 = arith.constant dense<0.000000e+00> : vector<1x1x32xf32>
    %603 = tpu.matmul %602, %588, %cst_158 {dimension_numbers = #tpu.dot_dimension_numbers<[2], [1], [1], [2], [0, 0, 0, 1, 1, 2], [0], [0]>} : vector<1x1x8xbf16>, vector<1x8x32xbf16>, vector<1x1x32xf32> -> vector<1x1x32xf32>
    "tpu.trace_stop"() : () -> ()
    %604 = vector.extract_strided_slice %558 {offsets = [0, 0, 64], sizes = [1, 1, 32], strides = [1, 1, 1]} : vector<1x1x128xf32> to vector<1x1x32xf32>
    %605 = arith.truncf %604 : vector<1x1x32xf32> to vector<1x1x32xbf16>
    %606 = vector.extract_strided_slice %555 {offsets = [0, 0, 64], sizes = [1, 8, 32], strides = [1, 1, 1]} : vector<1x8x128xf32> to vector<1x8x32xf32>
    %607 = arith.truncf %606 : vector<1x8x32xf32> to vector<1x8x32xbf16>
    %608 = vector.extract_strided_slice %557 {offsets = [0, 0, 64], sizes = [1, 8, 32], strides = [1, 1, 1]} : vector<1x8x128xf32> to vector<1x8x32xf32>
    %609 = arith.truncf %608 : vector<1x8x32xf32> to vector<1x8x32xbf16>
    "tpu.trace_start"() <{level = 10 : i32, message = "bqd,bkd->bqk"}> : () -> ()
    %cst_159 = arith.constant dense<0.000000e+00> : vector<1x1x8xf32>
    %610 = tpu.matmul %605, %607, %cst_159 {dimension_numbers = #tpu.dot_dimension_numbers<[2], [2], [1], [1], [0, 0, 0, 1, 1, 1], [0], [0]>} : vector<1x1x32xbf16>, vector<1x8x32xbf16>, vector<1x1x8xf32> -> vector<1x1x8xf32>
    "tpu.trace_stop"() : () -> ()
    %cst_160 = arith.constant 0.176776692 : f32
    %611 = vector.broadcast %cst_160 : f32 to vector<1x1x8xf32>
    %612 = arith.mulf %610, %611 : vector<1x1x8xf32>
    %cst_161 = arith.constant dense<0xFF800000> : vector<1x1xf32>
    %613 = vector.multi_reduction <maximumf>, %612, %cst_161 [2] : vector<1x1x8xf32> to vector<1x1xf32>
    %614 = vector.shape_cast %613 : vector<1x1xf32> to vector<1x1x1xf32>
    %615 = vector.broadcast %614 : vector<1x1x1xf32> to vector<1x1x8xf32>
    %616 = arith.subf %612, %615 : vector<1x1x8xf32>
    %617 = math.exp %616 : vector<1x1x8xf32>
    %cst_162 = arith.constant dense<0.000000e+00> : vector<1x1xf32>
    %618 = vector.multi_reduction <add>, %617, %cst_162 [2] : vector<1x1x8xf32> to vector<1x1xf32>
    %619 = vector.shape_cast %618 : vector<1x1xf32> to vector<1x1x1xf32>
    %620 = tpu.reciprocal %619 {approx = true} : vector<1x1x1xf32> -> vector<1x1x1xf32>
    %621 = vector.broadcast %620 : vector<1x1x1xf32> to vector<1x1x8xf32>
    %622 = arith.mulf %617, %621 : vector<1x1x8xf32>
    %623 = arith.truncf %622 : vector<1x1x8xf32> to vector<1x1x8xbf16>
    "tpu.trace_start"() <{level = 10 : i32, message = "bqk,bkd->bqd"}> : () -> ()
    %cst_163 = arith.constant dense<0.000000e+00> : vector<1x1x32xf32>
    %624 = tpu.matmul %623, %609, %cst_163 {dimension_numbers = #tpu.dot_dimension_numbers<[2], [1], [1], [2], [0, 0, 0, 1, 1, 2], [0], [0]>} : vector<1x1x8xbf16>, vector<1x8x32xbf16>, vector<1x1x32xf32> -> vector<1x1x32xf32>
    "tpu.trace_stop"() : () -> ()
    %625 = vector.extract_strided_slice %558 {offsets = [0, 0, 96], sizes = [1, 1, 32], strides = [1, 1, 1]} : vector<1x1x128xf32> to vector<1x1x32xf32>
    %626 = arith.truncf %625 : vector<1x1x32xf32> to vector<1x1x32xbf16>
    %627 = vector.extract_strided_slice %555 {offsets = [0, 0, 96], sizes = [1, 8, 32], strides = [1, 1, 1]} : vector<1x8x128xf32> to vector<1x8x32xf32>
    %628 = arith.truncf %627 : vector<1x8x32xf32> to vector<1x8x32xbf16>
    %629 = vector.extract_strided_slice %557 {offsets = [0, 0, 96], sizes = [1, 8, 32], strides = [1, 1, 1]} : vector<1x8x128xf32> to vector<1x8x32xf32>
    %630 = arith.truncf %629 : vector<1x8x32xf32> to vector<1x8x32xbf16>
    "tpu.trace_start"() <{level = 10 : i32, message = "bqd,bkd->bqk"}> : () -> ()
    %cst_164 = arith.constant dense<0.000000e+00> : vector<1x1x8xf32>
    %631 = tpu.matmul %626, %628, %cst_164 {dimension_numbers = #tpu.dot_dimension_numbers<[2], [2], [1], [1], [0, 0, 0, 1, 1, 1], [0], [0]>} : vector<1x1x32xbf16>, vector<1x8x32xbf16>, vector<1x1x8xf32> -> vector<1x1x8xf32>
    "tpu.trace_stop"() : () -> ()
    %cst_165 = arith.constant 0.176776692 : f32
    %632 = vector.broadcast %cst_165 : f32 to vector<1x1x8xf32>
    %633 = arith.mulf %631, %632 : vector<1x1x8xf32>
    %cst_166 = arith.constant dense<0xFF800000> : vector<1x1xf32>
    %634 = vector.multi_reduction <maximumf>, %633, %cst_166 [2] : vector<1x1x8xf32> to vector<1x1xf32>
    %635 = vector.shape_cast %634 : vector<1x1xf32> to vector<1x1x1xf32>
    %636 = vector.broadcast %635 : vector<1x1x1xf32> to vector<1x1x8xf32>
    %637 = arith.subf %633, %636 : vector<1x1x8xf32>
    %638 = math.exp %637 : vector<1x1x8xf32>
    %cst_167 = arith.constant dense<0.000000e+00> : vector<1x1xf32>
    %639 = vector.multi_reduction <add>, %638, %cst_167 [2] : vector<1x1x8xf32> to vector<1x1xf32>
    %640 = vector.shape_cast %639 : vector<1x1xf32> to vector<1x1x1xf32>
    %641 = tpu.reciprocal %640 {approx = true} : vector<1x1x1xf32> -> vector<1x1x1xf32>
    %642 = vector.broadcast %641 : vector<1x1x1xf32> to vector<1x1x8xf32>
    %643 = arith.mulf %638, %642 : vector<1x1x8xf32>
    %644 = arith.truncf %643 : vector<1x1x8xf32> to vector<1x1x8xbf16>
    "tpu.trace_start"() <{level = 10 : i32, message = "bqk,bkd->bqd"}> : () -> ()
    %cst_168 = arith.constant dense<0.000000e+00> : vector<1x1x32xf32>
    %645 = tpu.matmul %644, %630, %cst_168 {dimension_numbers = #tpu.dot_dimension_numbers<[2], [1], [1], [2], [0, 0, 0, 1, 1, 2], [0], [0]>} : vector<1x1x8xbf16>, vector<1x8x32xbf16>, vector<1x1x32xf32> -> vector<1x1x32xf32>
    "tpu.trace_stop"() : () -> ()
    %646 = tpu.concatenate %582, %603, %624, %645 in 2 : vector<1x1x32xf32>, vector<1x1x32xf32>, vector<1x1x32xf32>, vector<1x1x32xf32> -> vector<1x1x128xf32>
    %647 = vector.shape_cast %646 : vector<1x1x128xf32> to vector<1x128xf32>
    %648 = arith.truncf %647 : vector<1x128xf32> to vector<1x128xbf16>
    %cst_169 = arith.constant dense<0.000000e+00> : vector<1x128xf32>
    %649 = tpu.matmul %648, %538, %cst_169 {dimension_numbers = #tpu.dot_dimension_numbers<[1], [0], [0], [1], [0, 0, 1, 1], [], []>} : vector<1x128xbf16>, vector<128x128xbf16>, vector<1x128xf32> -> vector<1x128xf32>
    %650 = arith.addf %649, %539 : vector<1x128xf32>
    %651 = arith.addf %561, %650 : vector<1x128xf32>
    %cst_170 = arith.constant dense<0.000000e+00> : vector<1xf32>
    %652 = vector.multi_reduction <add>, %651, %cst_170 [1] : vector<1x128xf32> to vector<1xf32>
    %653 = vector.shape_cast %652 : vector<1xf32> to vector<1x1xf32>
    %cst_171 = arith.constant 1.280000e+02 : f32
    %654 = vector.broadcast %cst_171 : f32 to vector<1x1xf32>
    %655 = arith.divf %653, %654 : vector<1x1xf32>
    %656 = vector.broadcast %655 : vector<1x1xf32> to vector<1x128xf32>
    %657 = arith.subf %651, %656 : vector<1x128xf32>
    %658 = arith.mulf %657, %657 : vector<1x128xf32>
    %cst_172 = arith.constant dense<0.000000e+00> : vector<1xf32>
    %659 = vector.multi_reduction <add>, %658, %cst_172 [1] : vector<1x128xf32> to vector<1xf32>
    %660 = vector.shape_cast %659 : vector<1xf32> to vector<1x1xf32>
    %cst_173 = arith.constant 1.280000e+02 : f32
    %661 = vector.broadcast %cst_173 : f32 to vector<1x1xf32>
    %662 = arith.divf %660, %661 : vector<1x1xf32>
    %663 = vector.broadcast %655 : vector<1x1xf32> to vector<1x128xf32>
    %664 = arith.subf %651, %663 : vector<1x128xf32>
    %cst_174 = arith.constant 9.99999974E-6 : f32
    %665 = vector.broadcast %cst_174 : f32 to vector<1x1xf32>
    %666 = arith.addf %662, %665 : vector<1x1xf32>
    %667 = math.rsqrt %666 : vector<1x1xf32>
    %668 = vector.broadcast %667 : vector<1x1xf32> to vector<1x128xf32>
    %669 = arith.mulf %664, %668 : vector<1x128xf32>
    %670 = arith.mulf %669, %540 : vector<1x128xf32>
    %671 = arith.addf %670, %541 : vector<1x128xf32>
    %672 = arith.truncf %671 : vector<1x128xf32> to vector<1x128xbf16>
    %cst_175 = arith.constant dense<0.000000e+00> : vector<1x512xf32>
    %673 = tpu.matmul %672, %542, %cst_175 {dimension_numbers = #tpu.dot_dimension_numbers<[1], [0], [0], [1], [0, 0, 1, 1], [], []>} : vector<1x128xbf16>, vector<128x512xbf16>, vector<1x512xf32> -> vector<1x512xf32>
    %674 = arith.addf %673, %543 : vector<1x512xf32>
    %cst_176 = arith.constant 5.000000e-01 : f32
    %675 = vector.broadcast %cst_176 : f32 to vector<1x512xf32>
    %676 = arith.mulf %675, %674 : vector<1x512xf32>
    %cst_177 = arith.constant 0.707106769 : f32
    %677 = vector.broadcast %cst_177 : f32 to vector<1x512xf32>
    %678 = arith.mulf %674, %677 : vector<1x512xf32>
    %679 = math.absf %678 : vector<1x512xf32>
    %cst_178 = arith.constant 0.327591091 : f32
    %680 = vector.broadcast %cst_178 : f32 to vector<1x512xf32>
    %681 = arith.mulf %680, %679 : vector<1x512xf32>
    %cst_179 = arith.constant 1.000000e+00 : f32
    %682 = vector.broadcast %cst_179 : f32 to vector<1x512xf32>
    %683 = arith.addf %682, %681 : vector<1x512xf32>
    %cst_180 = arith.constant 1.000000e+00 : f32
    %684 = vector.broadcast %cst_180 : f32 to vector<1x512xf32>
    %685 = arith.divf %684, %683 : vector<1x512xf32>
    %cst_181 = arith.constant 1.06140542 : f32
    %686 = vector.broadcast %cst_181 : f32 to vector<1x512xf32>
    %687 = arith.mulf %686, %685 : vector<1x512xf32>
    %cst_182 = arith.constant -1.45315206 : f32
    %688 = vector.broadcast %cst_182 : f32 to vector<1x512xf32>
    %689 = arith.addf %687, %688 : vector<1x512xf32>
    %690 = arith.mulf %689, %685 : vector<1x512xf32>
    %cst_183 = arith.constant 1.42141378 : f32
    %691 = vector.broadcast %cst_183 : f32 to vector<1x512xf32>
    %692 = arith.addf %690, %691 : vector<1x512xf32>
    %693 = arith.mulf %692, %685 : vector<1x512xf32>
    %cst_184 = arith.constant -0.284496725 : f32
    %694 = vector.broadcast %cst_184 : f32 to vector<1x512xf32>
    %695 = arith.addf %693, %694 : vector<1x512xf32>
    %696 = arith.mulf %695, %685 : vector<1x512xf32>
    %cst_185 = arith.constant 0.254829586 : f32
    %697 = vector.broadcast %cst_185 : f32 to vector<1x512xf32>
    %698 = arith.addf %696, %697 : vector<1x512xf32>
    %699 = arith.mulf %698, %685 : vector<1x512xf32>
    %cst_186 = arith.constant 0.000000e+00 : f32
    %700 = vector.broadcast %cst_186 : f32 to vector<1x512xf32>
    %701 = arith.subf %700, %679 : vector<1x512xf32>
    %702 = arith.mulf %701, %679 : vector<1x512xf32>
    %703 = math.exp %702 : vector<1x512xf32>
    %704 = arith.mulf %699, %703 : vector<1x512xf32>
    %cst_187 = arith.constant 1.000000e+00 : f32
    %705 = vector.broadcast %cst_187 : f32 to vector<1x512xf32>
    %706 = arith.subf %705, %704 : vector<1x512xf32>
    %cst_188 = arith.constant 0.000000e+00 : f32
    %707 = vector.broadcast %cst_188 : f32 to vector<1x512xf32>
    %708 = arith.cmpf oge, %678, %707 : vector<1x512xf32>
    %cst_189 = arith.constant 0.000000e+00 : f32
    %709 = vector.broadcast %cst_189 : f32 to vector<1x512xf32>
    %710 = arith.subf %709, %706 : vector<1x512xf32>
    %711 = arith.select %708, %706, %710 : vector<1x512xi1>, vector<1x512xf32>
    %cst_190 = arith.constant 1.000000e+00 : f32
    %712 = vector.broadcast %cst_190 : f32 to vector<1x512xf32>
    %713 = arith.addf %712, %711 : vector<1x512xf32>
    %714 = arith.mulf %676, %713 : vector<1x512xf32>
    %715 = arith.truncf %714 : vector<1x512xf32> to vector<1x512xbf16>
    %cst_191 = arith.constant dense<0.000000e+00> : vector<1x128xf32>
    %716 = tpu.matmul %715, %544, %cst_191 {dimension_numbers = #tpu.dot_dimension_numbers<[1], [0], [0], [1], [0, 0, 1, 1], [], []>} : vector<1x512xbf16>, vector<512x128xbf16>, vector<1x128xf32> -> vector<1x128xf32>
    %717 = arith.addf %716, %545 : vector<1x128xf32>
    %718 = arith.addf %671, %717 : vector<1x128xf32>
    %cst_192 = arith.constant dense<0.000000e+00> : vector<1xf32>
    %719 = vector.multi_reduction <add>, %718, %cst_192 [1] : vector<1x128xf32> to vector<1xf32>
    %720 = vector.shape_cast %719 : vector<1xf32> to vector<1x1xf32>
    %cst_193 = arith.constant 1.280000e+02 : f32
    %721 = vector.broadcast %cst_193 : f32 to vector<1x1xf32>
    %722 = arith.divf %720, %721 : vector<1x1xf32>
    %723 = vector.broadcast %722 : vector<1x1xf32> to vector<1x128xf32>
    %724 = arith.subf %718, %723 : vector<1x128xf32>
    %725 = arith.mulf %724, %724 : vector<1x128xf32>
    %cst_194 = arith.constant dense<0.000000e+00> : vector<1xf32>
    %726 = vector.multi_reduction <add>, %725, %cst_194 [1] : vector<1x128xf32> to vector<1xf32>
    %727 = vector.shape_cast %726 : vector<1xf32> to vector<1x1xf32>
    %cst_195 = arith.constant 1.280000e+02 : f32
    %728 = vector.broadcast %cst_195 : f32 to vector<1x1xf32>
    %729 = arith.divf %727, %728 : vector<1x1xf32>
    %730 = vector.broadcast %722 : vector<1x1xf32> to vector<1x128xf32>
    %731 = arith.subf %718, %730 : vector<1x128xf32>
    %cst_196 = arith.constant 9.99999974E-6 : f32
    %732 = vector.broadcast %cst_196 : f32 to vector<1x1xf32>
    %733 = arith.addf %729, %732 : vector<1x1xf32>
    %734 = math.rsqrt %733 : vector<1x1xf32>
    %735 = vector.broadcast %734 : vector<1x1xf32> to vector<1x128xf32>
    %736 = arith.mulf %731, %735 : vector<1x128xf32>
    %737 = arith.mulf %736, %546 : vector<1x128xf32>
    %738 = arith.addf %737, %547 : vector<1x128xf32>
    %739 = arith.truncf %738 : vector<1x128xf32> to vector<1x128xbf16>
    %c0_197 = arith.constant 0 : index
    %c0_198 = arith.constant 0 : index
    %740 = vector.load %arg31[%c0_197, %c0_198] : memref<128x128xbf16, #tpu.memory_space<vmem>>, vector<128x128xbf16>
    %cst_199 = arith.constant dense<0.000000e+00> : vector<1x128xf32>
    %741 = tpu.matmul %739, %740, %cst_199 {dimension_numbers = #tpu.dot_dimension_numbers<[1], [0], [0], [1], [0, 0, 1, 1], [], []>} : vector<1x128xbf16>, vector<128x128xbf16>, vector<1x128xf32> -> vector<1x128xf32>
    %c0_200 = arith.constant 0 : index
    %c0_201 = arith.constant 0 : index
    %742 = vector.load %arg32[%c0_200, %c0_201] : memref<1x128xf32, #tpu.memory_space<vmem>>, vector<1x128xf32>
    %743 = arith.addf %741, %742 : vector<1x128xf32>
    %744 = vector.shape_cast %743 : vector<1x128xf32> to vector<1x1x128xf32>
    %c0_202 = arith.constant 0 : index
    %c0_203 = arith.constant 0 : index
    %c0_204 = arith.constant 0 : index
    %745 = vector.load %arg33[%c0_202, %c0_203, %c0_204] : memref<1x1x128xf32, #tpu.memory_space<vmem>>, vector<1x1x128xf32>
    tpu.vector_store %arg33[%c0_202, %c0_203, %c0_204], %744 {strides = array<i32>} : memref<1x1x128xf32, #tpu.memory_space<vmem>>, vector<1x1x128xf32>,
    return
  }
  func.func @transform_0(%arg0: i32) -> (i32, i32, i32) {
    %c0_i32 = arith.constant 0 : i32
    %c0_i32_0 = arith.constant 0 : i32
    %c0_i32_1 = arith.constant 0 : i32
    return %arg0, %c0_i32, %c0_i32_0 : i32, i32, i32
  }
  func.func @transform_1(%arg0: i32) -> (i32, i32) {
    %c0_i32 = arith.constant 0 : i32
    %c0_i32_0 = arith.constant 0 : i32
    %c0_i32_1 = arith.constant 0 : i32
    return %c0_i32, %c0_i32_0 : i32, i32
  }
  func.func @transform_2(%arg0: i32) -> (i32, i32) {
    %c0_i32 = arith.constant 0 : i32
    %c0_i32_0 = arith.constant 0 : i32
    %c0_i32_1 = arith.constant 0 : i32
    return %c0_i32, %c0_i32_0 : i32, i32
  }
  func.func @transform_3(%arg0: i32) -> (i32, i32) {
    %c0_i32 = arith.constant 0 : i32
    %c0_i32_0 = arith.constant 0 : i32
    %c0_i32_1 = arith.constant 0 : i32
    return %c0_i32, %c0_i32_0 : i32, i32
  }
  func.func @transform_4(%arg0: i32) -> (i32, i32) {
    %c0_i32 = arith.constant 0 : i32
    %c0_i32_0 = arith.constant 0 : i32
    %c0_i32_1 = arith.constant 0 : i32
    return %c0_i32, %c0_i32_0 : i32, i32
  }
  func.func @transform_5(%arg0: i32) -> (i32, i32) {
    %c0_i32 = arith.constant 0 : i32
    %c0_i32_0 = arith.constant 0 : i32
    %c0_i32_1 = arith.constant 0 : i32
    return %c0_i32, %c0_i32_0 : i32, i32
  }
  func.func @transform_6(%arg0: i32) -> (i32, i32) {
    %c0_i32 = arith.constant 0 : i32
    %c0_i32_0 = arith.constant 0 : i32
    %c0_i32_1 = arith.constant 0 : i32
    return %c0_i32, %c0_i32_0 : i32, i32
  }
  func.func @transform_7(%arg0: i32) -> (i32, i32) {
    %c0_i32 = arith.constant 0 : i32
    %c0_i32_0 = arith.constant 0 : i32
    %c0_i32_1 = arith.constant 0 : i32
    return %c0_i32, %c0_i32_0 : i32, i32
  }
  func.func @transform_8(%arg0: i32) -> (i32, i32) {
    %c0_i32 = arith.constant 0 : i32
    %c0_i32_0 = arith.constant 0 : i32
    %c0_i32_1 = arith.constant 0 : i32
    return %c0_i32, %c0_i32_0 : i32, i32
  }
  func.func @transform_9(%arg0: i32) -> (i32, i32) {
    %c0_i32 = arith.constant 0 : i32
    %c0_i32_0 = arith.constant 0 : i32
    %c0_i32_1 = arith.constant 0 : i32
    return %c0_i32, %c0_i32_0 : i32, i32
  }
  func.func @transform_10(%arg0: i32) -> (i32, i32) {
    %c0_i32 = arith.constant 0 : i32
    %c0_i32_0 = arith.constant 0 : i32
    %c0_i32_1 = arith.constant 0 : i32
    return %c0_i32, %c0_i32_0 : i32, i32
  }
  func.func @transform_11(%arg0: i32) -> (i32, i32) {
    %c0_i32 = arith.constant 0 : i32
    %c0_i32_0 = arith.constant 0 : i32
    %c0_i32_1 = arith.constant 0 : i32
    return %c0_i32, %c0_i32_0 : i32, i32
  }
  func.func @transform_12(%arg0: i32) -> (i32, i32) {
    %c0_i32 = arith.constant 0 : i32
    %c0_i32_0 = arith.constant 0 : i32
    %c0_i32_1 = arith.constant 0 : i32
    return %c0_i32, %c0_i32_0 : i32, i32
  }
  func.func @transform_13(%arg0: i32) -> (i32, i32) {
    %c0_i32 = arith.constant 0 : i32
    %c0_i32_0 = arith.constant 0 : i32
    %c0_i32_1 = arith.constant 0 : i32
    return %c0_i32, %c0_i32_0 : i32, i32
  }
  func.func @transform_14(%arg0: i32) -> (i32, i32) {
    %c0_i32 = arith.constant 0 : i32
    %c0_i32_0 = arith.constant 0 : i32
    %c0_i32_1 = arith.constant 0 : i32
    return %c0_i32, %c0_i32_0 : i32, i32
  }
  func.func @transform_15(%arg0: i32) -> (i32, i32) {
    %c0_i32 = arith.constant 0 : i32
    %c0_i32_0 = arith.constant 0 : i32
    %c0_i32_1 = arith.constant 0 : i32
    return %c0_i32, %c0_i32_0 : i32, i32
  }
  func.func @transform_16(%arg0: i32) -> (i32, i32) {
    %c0_i32 = arith.constant 0 : i32
    %c0_i32_0 = arith.constant 0 : i32
    %c0_i32_1 = arith.constant 0 : i32
    return %c0_i32, %c0_i32_0 : i32, i32
  }
  func.func @transform_17(%arg0: i32) -> (i32, i32) {
    %c0_i32 = arith.constant 0 : i32
    %c0_i32_0 = arith.constant 0 : i32
    %c0_i32_1 = arith.constant 0 : i32
    return %c0_i32, %c0_i32_0 : i32, i32
  }
  func.func @transform_18(%arg0: i32) -> (i32, i32) {
    %c0_i32 = arith.constant 0 : i32
    %c0_i32_0 = arith.constant 0 : i32
    %c0_i32_1 = arith.constant 0 : i32
    return %c0_i32, %c0_i32_0 : i32, i32
  }
  func.func @transform_19(%arg0: i32) -> (i32, i32) {
    %c0_i32 = arith.constant 0 : i32
    %c0_i32_0 = arith.constant 0 : i32
    %c0_i32_1 = arith.constant 0 : i32
    return %c0_i32, %c0_i32_0 : i32, i32
  }
  func.func @transform_20(%arg0: i32) -> (i32, i32) {
    %c0_i32 = arith.constant 0 : i32
    %c0_i32_0 = arith.constant 0 : i32
    %c0_i32_1 = arith.constant 0 : i32
    return %c0_i32, %c0_i32_0 : i32, i32
  }
  func.func @transform_21(%arg0: i32) -> (i32, i32) {
    %c0_i32 = arith.constant 0 : i32
    %c0_i32_0 = arith.constant 0 : i32
    %c0_i32_1 = arith.constant 0 : i32
    return %c0_i32, %c0_i32_0 : i32, i32
  }
  func.func @transform_22(%arg0: i32) -> (i32, i32) {
    %c0_i32 = arith.constant 0 : i32
    %c0_i32_0 = arith.constant 0 : i32
    %c0_i32_1 = arith.constant 0 : i32
    return %c0_i32, %c0_i32_0 : i32, i32
  }
  func.func @transform_23(%arg0: i32) -> (i32, i32) {
    %c0_i32 = arith.constant 0 : i32
    %c0_i32_0 = arith.constant 0 : i32
    %c0_i32_1 = arith.constant 0 : i32
    return %c0_i32, %c0_i32_0 : i32, i32
  }
  func.func @transform_24(%arg0: i32) -> (i32, i32) {
    %c0_i32 = arith.constant 0 : i32
    %c0_i32_0 = arith.constant 0 : i32
    %c0_i32_1 = arith.constant 0 : i32
    return %c0_i32, %c0_i32_0 : i32, i32
  }
  func.func @transform_25(%arg0: i32) -> (i32, i32) {
    %c0_i32 = arith.constant 0 : i32
    %c0_i32_0 = arith.constant 0 : i32
    %c0_i32_1 = arith.constant 0 : i32
    return %c0_i32, %c0_i32_0 : i32, i32
  }
  func.func @transform_26(%arg0: i32) -> (i32, i32) {
    %c0_i32 = arith.constant 0 : i32
    %c0_i32_0 = arith.constant 0 : i32
    %c0_i32_1 = arith.constant 0 : i32
    return %c0_i32, %c0_i32_0 : i32, i32
  }
  func.func @transform_27(%arg0: i32) -> (i32, i32) {
    %c0_i32 = arith.constant 0 : i32
    %c0_i32_0 = arith.constant 0 : i32
    %c0_i32_1 = arith.constant 0 : i32
    return %c0_i32, %c0_i32_0 : i32, i32
  }
  func.func @transform_28(%arg0: i32) -> (i32, i32) {
    %c0_i32 = arith.constant 0 : i32
    %c0_i32_0 = arith.constant 0 : i32
    %c0_i32_1 = arith.constant 0 : i32
    return %c0_i32, %c0_i32_0 : i32, i32
  }
  func.func @transform_29(%arg0: i32) -> (i32, i32) {
    %c0_i32 = arith.constant 0 : i32
    %c0_i32_0 = arith.constant 0 : i32
    %c0_i32_1 = arith.constant 0 : i32
    return %c0_i32, %c0_i32_0 : i32, i32
  }
  func.func @transform_30(%arg0: i32) -> (i32, i32) {
    %c0_i32 = arith.constant 0 : i32
    %c0_i32_0 = arith.constant 0 : i32
    %c0_i32_1 = arith.constant 0 : i32
    return %c0_i32, %c0_i32_0 : i32, i32
  }
  func.func @transform_31(%arg0: i32) -> (i32, i32) {
    %c0_i32 = arith.constant 0 : i32
    %c0_i32_0 = arith.constant 0 : i32
    %c0_i32_1 = arith.constant 0 : i32
    return %c0_i32, %c0_i32_0 : i32, i32
  }
  func.func @transform_32(%arg0: i32) -> (i32, i32, i32) {
    %c0_i32 = arith.constant 0 : i32
    %c0_i32_0 = arith.constant 0 : i32
    %c0_i32_1 = arith.constant 0 : i32
    return %arg0, %c0_i32, %c0_i32_0 : i32, i32, i32
  }
}

</mosaic_0001>

<llo_original>
// kernel: lstm_tft_forward.1
$region0: #{lstm_tft_forward.1}
  #allocation0 [shape = 'u32[]', space=smem, size = 0x4, offset = 0x4, fixed_abs, tag = 'smem constant byte address 0x4 - core index']
  #allocation1 [shape = 'u32[72,128]{1,0:T(1,128)}', space=vmem, size = 0x9000, scoped, tag = 'internal scratch']
  %s0 = inlined_call_operand.smem [shape: u32[33], index: -1, kind: input, shape index: {}]
  %s1 = sld [smem:[%s0]]
  %s2 = scalar_lea.smem %s0, 1
  %s3 = sld [smem:[%s2]]
  %s4 = scalar_lea.smem %s0, 2
  %s5 = sld [smem:[%s4]]
  %s6 = scalar_lea.smem %s0, 3
  %s7 = sld [smem:[%s6]]
  %s8 = scalar_lea.smem %s0, 4
  %s9 = sld [smem:[%s8]]
  %s10 = scalar_lea.smem %s0, 5
  %s11 = sld [smem:[%s10]]
  %s12 = scalar_lea.smem %s0, 6
  %s13 = sld [smem:[%s12]]
  %s14 = scalar_lea.smem %s0, 7
  %s15 = sld [smem:[%s14]]
  %s16 = scalar_lea.smem %s0, 8
  %s17 = sld [smem:[%s16]]
  %s18 = scalar_lea.smem %s0, 9
  %s19 = sld [smem:[%s18]]
  %s20 = scalar_lea.smem %s0, 10
  %s21 = sld [smem:[%s20]]
  %s22 = scalar_lea.smem %s0, 11
  %s23 = sld [smem:[%s22]]
  %s24 = scalar_lea.smem %s0, 12
  %s25 = sld [smem:[%s24]]
  %s26 = scalar_lea.smem %s0, 13
  %s27 = sld [smem:[%s26]]
  %s28 = scalar_lea.smem %s0, 14
  %s29 = sld [smem:[%s28]]
  %s30 = scalar_lea.smem %s0, 15
  %s31 = sld [smem:[%s30]]
  %s32 = scalar_lea.smem %s0, 16
  %s33 = sld [smem:[%s32]]
  %s34 = scalar_lea.smem %s0, 17
  %s35 = sld [smem:[%s34]]
  %s36 = scalar_lea.smem %s0, 18
  %s37 = sld [smem:[%s36]]
  %s38 = scalar_lea.smem %s0, 19
  %s39 = sld [smem:[%s38]]
  %s40 = scalar_lea.smem %s0, 20
  %s41 = sld [smem:[%s40]]
  %s42 = scalar_lea.smem %s0, 21
  %s43 = sld [smem:[%s42]]
  %s44 = scalar_lea.smem %s0, 22
  %s45 = sld [smem:[%s44]]
  %s46 = scalar_lea.smem %s0, 23
  %s47 = sld [smem:[%s46]]
  %s48 = scalar_lea.smem %s0, 24
  %s49 = sld [smem:[%s48]]
  %s50 = scalar_lea.smem %s0, 25
  %s51 = sld [smem:[%s50]]
  %s52 = scalar_lea.smem %s0, 26
  %s53 = sld [smem:[%s52]]
  %s54 = scalar_lea.smem %s0, 27
  %s55 = sld [smem:[%s54]]
  %s56 = scalar_lea.smem %s0, 28
  %s57 = sld [smem:[%s56]]
  %s58 = scalar_lea.smem %s0, 29
  %s59 = sld [smem:[%s58]]
  %s60 = scalar_lea.smem %s0, 30
  %s61 = sld [smem:[%s60]]
  %s62 = scalar_lea.smem %s0, 31
  %s63 = sld [smem:[%s62]]
  %s64 = scalar_lea.smem %s0, 32
  %s65 = sld [smem:[%s64]]
  %s66 = sld [smem:[#allocation0]]
  $region217: #{lstm_tft_forward.1} parent=0
    _
  %s68 = ssub.s32 1, %s66
  %s69 = scalar_select 0, %s68, %s66
  $region1: #{lstm_tft_forward.1} parent=0
    #allocation2 [shape = 'u8[131072]{0}', space=vmem, size = 0x20000, scoped, tag = 'input window, operand 2, single buffered']
    #allocation3 [shape = 's32[2]{0}', space=sflag, size = 0x8, scoped, tag = 'scoped memory for lstm_tft_forward.1']
    #allocation4 [shape = 'u8[32768]{0}', space=vmem, size = 0x8000, scoped, tag = 'input window, operand 4, single buffered']
    #allocation5 [shape = 's32[1]{0}', space=sflag, size = 0x4, scoped, tag = 'scoped memory for lstm_tft_forward.1']
    #allocation6 [shape = 'u8[512]{0}', space=vmem, size = 0x400, scoped, tag = 'input window, operand 5, single buffered']
    #allocation7 [shape = 'u8[98304]{0}', space=vmem, size = 0x18000, scoped, tag = 'input window, operand 6, single buffered']
    #allocation8 [shape = 's32[1]{0}', space=sflag, size = 0x4, scoped, tag = 'scoped memory for lstm_tft_forward.1']
    #allocation9 [shape = 'u8[32768]{0}', space=vmem, size = 0x8000, scoped, tag = 'input window, operand 8, single buffered']
    #allocation10 [shape = 'u8[131072]{0}', space=vmem, size = 0x20000, scoped, tag = 'input window, operand 12, single buffered']
    #allocation11 [shape = 's32[1]{0}', space=sflag, size = 0x4, scoped, tag = 'scoped memory for lstm_tft_forward.1']
    #allocation12 [shape = 'u8[131072]{0}', space=vmem, size = 0x20000, scoped, tag = 'input window, operand 14, single buffered']
    #allocation13 [shape = 'u8[512]{0}', space=vmem, size = 0x400, scoped, tag = 'input window, operand 15, single buffered']
    #allocation14 [shape = 's32[1]{0}', space=sflag, size = 0x4, scoped, tag = 'scoped memory for lstm_tft_forward.1']
    #allocation15 [shape = 'u8[98304]{0}', space=vmem, size = 0x18000, scoped, tag = 'input window, operand 18, single buffered']
    #allocation16 [shape = 'u8[32768]{0}', space=vmem, size = 0x8000, scoped, tag = 'input window, operand 20, single buffered']
    #allocation17 [shape = 's32[1]{0}', space=sflag, size = 0x4, scoped, tag = 'scoped memory for lstm_tft_forward.1']
    #allocation18 [shape = 'u8[131072]{0}', space=vmem, size = 0x20000, scoped, tag = 'input window, operand 24, single buffered']
    #allocation19 [shape = 'u8[131072]{0}', space=vmem, size = 0x20000, scoped, tag = 'input window, operand 26, single buffered']
    #allocation20 [shape = 's32[1]{0}', space=sflag, size = 0x4, scoped, tag = 'scoped memory for lstm_tft_forward.1']
    #allocation21 [shape = 'u8[32768]{0}', space=vmem, size = 0x8000, scoped, tag = 'input window, operand 30, single buffered']
    #allocation22 [shape = 'u8[512]{0}', space=vmem, size = 0x400, scoped, tag = 'input window, operand 31, single buffered']
    #allocation23 [shape = 's32[1]{0}', space=sflag, size = 0x4, scoped, tag = 'scoped memory for lstm_tft_forward.1']
    %70 = vsyncpa [#allocation3], 0
    %71 = vsyncpa [#allocation5], 0
    %72 = vsyncpa [#allocation8], 0
    %73 = vsyncpa [#allocation11], 0
    %74 = vsyncpa [#allocation14], 0
    %75 = vsyncpa [#allocation17], 0
    %76 = vsyncpa [#allocation20], 0
    %77 = vsyncpa [#allocation23], 0
    loop: start=0, step=1, limit=4
    $region2: #{lstm_tft_forward.1} parent=1 // loop_pre_header
      _
    $region3: #{lstm_tft_forward.1} parent=1 // loop_header
      %s79 = sphi 0, %s83
      %p80 = scmp.ge.s32.totalorder %s79, 4
      %s89 = sphi 0, %s91
      %s92 = sphi 0, %s89
      %s93 = sphi 0, %s92
      %s109 = sphi 0, %s93
      %s113 = sphi 0, %s113
      %s115 = sphi 0, %s113
      %s116 = sphi 0, %s115
      %s130 = sphi 0, %s116
      %s134 = sphi 0, %s134
      %s136 = sphi 0, %s134
      %s137 = sphi 0, %s136
      %s151 = sphi 0, %s137
      %s155 = sphi 0, %s155
      %s157 = sphi 0, %s155
      %s158 = sphi 0, %s157
      %s172 = sphi 0, %s158
      %s176 = sphi 0, %s176
      %s178 = sphi 0, %s176
      %s179 = sphi 0, %s178
      %s193 = sphi 0, %s179
      %s197 = sphi 0, %s197
      %s199 = sphi 0, %s197
      %s200 = sphi 0, %s199
      %s214 = sphi 0, %s200
      %s218 = sphi 0, %s218
      %s220 = sphi 0, %s218
      %s221 = sphi 0, %s220
      %s235 = sphi 0, %s221
      %s239 = sphi 0, %s239
      %s241 = sphi 0, %s239
      %s242 = sphi 0, %s241
      %s256 = sphi 0, %s242
      %s260 = sphi 0, %s260
      %s262 = sphi 0, %s260
      %s263 = sphi 0, %s262
      %s277 = sphi 0, %s263
      %s281 = sphi 0, %s281
      %s283 = sphi 0, %s281
      %s284 = sphi 0, %s283
      %s298 = sphi 0, %s284
      %s302 = sphi 0, %s302
      %s304 = sphi 0, %s302
      %s305 = sphi 0, %s304
      %s319 = sphi 0, %s305
      %s323 = sphi 0, %s323
      %s325 = sphi 0, %s323
      %s326 = sphi 0, %s325
      %s340 = sphi 0, %s326
      %s344 = sphi 0, %s344
      %s346 = sphi 0, %s344
      %s347 = sphi 0, %s346
      %s361 = sphi 0, %s347
      %s365 = sphi 0, %s365
      %s367 = sphi 0, %s365
      %s368 = sphi 0, %s367
      %s382 = sphi 0, %s368
      %s386 = sphi 0, %s386
      %s388 = sphi 0, %s386
      %s389 = sphi 0, %s388
      %s403 = sphi 0, %s389
      %s407 = sphi 0, %s407
      %s409 = sphi 0, %s407
      %s410 = sphi 0, %s409
      %s424 = sphi 0, %s410
      %s428 = sphi 0, %s428
      %s430 = sphi 0, %s428
      %s431 = sphi 0, %s430
      %s445 = sphi 0, %s431
      %s449 = sphi 0, %s449
      %s451 = sphi 0, %s449
      %s452 = sphi 0, %s451
      %s466 = sphi 0, %s452
      %s470 = sphi 0, %s470
      %s472 = sphi 0, %s470
      %s473 = sphi 0, %s472
      %s487 = sphi 0, %s473
      %s491 = sphi 0, %s491
      %s493 = sphi 0, %s491
      %s494 = sphi 0, %s493
      %s508 = sphi 0, %s494
      %s512 = sphi 0, %s512
      %s514 = sphi 0, %s512
      %s515 = sphi 0, %s514
      %s529 = sphi 0, %s515
      %s533 = sphi 0, %s533
      %s535 = sphi 0, %s533
      %s536 = sphi 0, %s535
      %s550 = sphi 0, %s536
      %s554 = sphi 0, %s554
      %s556 = sphi 0, %s554
      %s557 = sphi 0, %s556
      %s571 = sphi 0, %s557
      %s575 = sphi 0, %s575
      %s577 = sphi 0, %s575
      %s578 = sphi 0, %s577
      %s592 = sphi 0, %s578
      %s596 = sphi 0, %s596
      %s598 = sphi 0, %s596
      %s599 = sphi 0, %s598
      %s613 = sphi 0, %s599
      %s617 = sphi 0, %s617
      %s619 = sphi 0, %s617
      %s620 = sphi 0, %s619
      %s634 = sphi 0, %s620
      %s638 = sphi 0, %s638
      %s640 = sphi 0, %s638
      %s641 = sphi 0, %s640
      %s655 = sphi 0, %s641
      %s659 = sphi 0, %s659
      %s661 = sphi 0, %s659
      %s662 = sphi 0, %s661
      %s676 = sphi 0, %s662
      %s680 = sphi 0, %s680
      %s682 = sphi 0, %s680
      %s683 = sphi 0, %s682
      %s697 = sphi 0, %s683
      %s701 = sphi 0, %s701
      %s703 = sphi 0, %s701
      %s704 = sphi 0, %s703
      %s718 = sphi 0, %s704
      %s722 = sphi 0, %s722
      %s724 = sphi 0, %s722
      %s725 = sphi 0, %s724
      %s739 = sphi 0, %s725
      %s743 = sphi 0, %s743
      %s745 = sphi 0, %s743
      %s746 = sphi 0, %s745
      %s760 = sphi 0, %s746
      %s766 = sphi 0, %s768
      %s769 = sphi 0, %s766
      %s770 = sphi 0, %s769
      %s786 = sphi 0, %s770
    $region4: #{lstm_tft_forward.1} parent=1 // loop_header_branch
      %82 = sbr.rel (%p80) target = $region8
    $region5: #{lstm_tft_forward.1} parent=1 // loop_body
      %s84 = ssub.s32 %s79, 1
      %s85 = ssub.s32 %s79, 2
      %s86 = sadd.s32 %s79, 1
      %s87 = ssub.s32 %s79, %s86
      %p88 = scmp.eq.s32.totalorder %s87, 0
      %s90 = sadd.s32 %s89, 1
      %s91 = scalar_select %p88, %s89, %s90
      %p94 = pneg %p88
      %p95 = scmp.eq.s32.totalorder %s79, 1
      %p96 = por %p94, %p95
      %p97 = scmp.ne.s32.totalorder %s89, %s92
      %p98 = scmp.eq.s32.totalorder %s79, 0
      %p99 = por %p97, %p98
      %p100 = scmp.ne.s32.totalorder %s89, %s92
      %p101 = scmp.eq.s32.totalorder %s84, 1
      %p102 = por %p100, %p101
      %p103 = scmp.ne.s32.totalorder %s92, %s93
      %p104 = scmp.eq.s32.totalorder %s84, 0
      %p105 = por %p103, %p104
      %p106 = scmp.ne.s32.totalorder %s92, %s93
      %p107 = scmp.eq.s32.totalorder %s85, 1
      %p108 = por %p106, %p107
      %p110 = scmp.ne.s32.totalorder %s93, %s109
      %p111 = scmp.eq.s32.totalorder %s85, 0
      %p112 = por %p110, %p111
      %s114 = sadd.s32 %s113, 1
      %p117 = scmp.eq.s32.totalorder %s79, 1
      %p118 = scmp.ne.s32.totalorder %s113, %s115
      %p119 = scmp.eq.s32.totalorder %s79, 0
      %p120 = por %p118, %p119
      %p121 = scmp.ne.s32.totalorder %s113, %s115
      %p122 = scmp.eq.s32.totalorder %s84, 1
      %p123 = por %p121, %p122
      %p124 = scmp.ne.s32.totalorder %s115, %s116
      %p125 = scmp.eq.s32.totalorder %s84, 0
      %p126 = por %p124, %p125
      %p127 = scmp.ne.s32.totalorder %s115, %s116
      %p128 = scmp.eq.s32.totalorder %s85, 1
      %p129 = por %p127, %p128
      %p131 = scmp.ne.s32.totalorder %s116, %s130
      %p132 = scmp.eq.s32.totalorder %s85, 0
      %p133 = por %p131, %p132
      %s135 = sadd.s32 %s134, 1
      %p138 = scmp.eq.s32.totalorder %s79, 1
      %p139 = scmp.ne.s32.totalorder %s134, %s136
      %p140 = scmp.eq.s32.totalorder %s79, 0
      %p141 = por %p139, %p140
      %p142 = scmp.ne.s32.totalorder %s134, %s136
      %p143 = scmp.eq.s32.totalorder %s84, 1
      %p144 = por %p142, %p143
      %p145 = scmp.ne.s32.totalorder %s136, %s137
      %p146 = scmp.eq.s32.totalorder %s84, 0
      %p147 = por %p145, %p146
      %p148 = scmp.ne.s32.totalorder %s136, %s137
      %p149 = scmp.eq.s32.totalorder %s85, 1
      %p150 = por %p148, %p149
      %p152 = scmp.ne.s32.totalorder %s137, %s151
      %p153 = scmp.eq.s32.totalorder %s85, 0
      %p154 = por %p152, %p153
      %s156 = sadd.s32 %s155, 1
      %p159 = scmp.eq.s32.totalorder %s79, 1
      %p160 = scmp.ne.s32.totalorder %s155, %s157
      %p161 = scmp.eq.s32.totalorder %s79, 0
      %p162 = por %p160, %p161
      %p163 = scmp.ne.s32.totalorder %s155, %s157
      %p164 = scmp.eq.s32.totalorder %s84, 1
      %p165 = por %p163, %p164
      %p166 = scmp.ne.s32.totalorder %s157, %s158
      %p167 = scmp.eq.s32.totalorder %s84, 0
      %p168 = por %p166, %p167
      %p169 = scmp.ne.s32.totalorder %s157, %s158
      %p170 = scmp.eq.s32.totalorder %s85, 1
      %p171 = por %p169, %p170
      %p173 = scmp.ne.s32.totalorder %s158, %s172
      %p174 = scmp.eq.s32.totalorder %s85, 0
      %p175 = por %p173, %p174
      %s177 = sadd.s32 %s176, 1
      %p180 = scmp.eq.s32.totalorder %s79, 1
      %p181 = scmp.ne.s32.totalorder %s176, %s178
      %p182 = scmp.eq.s32.totalorder %s79, 0
      %p183 = por %p181, %p182
      %p184 = scmp.ne.s32.totalorder %s176, %s178
      %p185 = scmp.eq.s32.totalorder %s84, 1
      %p186 = por %p184, %p185
      %p187 = scmp.ne.s32.totalorder %s178, %s179
      %p188 = scmp.eq.s32.totalorder %s84, 0
      %p189 = por %p187, %p188
      %p190 = scmp.ne.s32.totalorder %s178, %s179
      %p191 = scmp.eq.s32.totalorder %s85, 1
      %p192 = por %p190, %p191
      %p194 = scmp.ne.s32.totalorder %s179, %s193
      %p195 = scmp.eq.s32.totalorder %s85, 0
      %p196 = por %p194, %p195
      %s198 = sadd.s32 %s197, 1
      %p201 = scmp.eq.s32.totalorder %s79, 1
      %p202 = scmp.ne.s32.totalorder %s197, %s199
      %p203 = scmp.eq.s32.totalorder %s79, 0
      %p204 = por %p202, %p203
      %p205 = scmp.ne.s32.totalorder %s197, %s199
      %p206 = scmp.eq.s32.totalorder %s84, 1
      %p207 = por %p205, %p206
      %p208 = scmp.ne.s32.totalorder %s199, %s200
      %p209 = scmp.eq.s32.totalorder %s84, 0
      %p210 = por %p208, %p209
      %p211 = scmp.ne.s32.totalorder %s199, %s200
      %p212 = scmp.eq.s32.totalorder %s85, 1
      %p213 = por %p211, %p212
      %p215 = scmp.ne.s32.totalorder %s200, %s214
      %p216 = scmp.eq.s32.totalorder %s85, 0
      %p217 = por %p215, %p216
      %s219 = sadd.s32 %s218, 1
      %p222 = scmp.eq.s32.totalorder %s79, 1
      %p223 = scmp.ne.s32.totalorder %s218, %s220
      %p224 = scmp.eq.s32.totalorder %s79, 0
      %p225 = por %p223, %p224
      %p226 = scmp.ne.s32.totalorder %s218, %s220
      %p227 = scmp.eq.s32.totalorder %s84, 1
      %p228 = por %p226, %p227
      %p229 = scmp.ne.s32.totalorder %s220, %s221
      %p230 = scmp.eq.s32.totalorder %s84, 0
      %p231 = por %p229, %p230
      %p232 = scmp.ne.s32.totalorder %s220, %s221
      %p233 = scmp.eq.s32.totalorder %s85, 1
      %p234 = por %p232, %p233
      %p236 = scmp.ne.s32.totalorder %s221, %s235
      %p237 = scmp.eq.s32.totalorder %s85, 0
      %p238 = por %p236, %p237
      %s240 = sadd.s32 %s239, 1
      %p243 = scmp.eq.s32.totalorder %s79, 1
      %p244 = scmp.ne.s32.totalorder %s239, %s241
      %p245 = scmp.eq.s32.totalorder %s79, 0
      %p246 = por %p244, %p245
      %p247 = scmp.ne.s32.totalorder %s239, %s241
      %p248 = scmp.eq.s32.totalorder %s84, 1
      %p249 = por %p247, %p248
      %p250 = scmp.ne.s32.totalorder %s241, %s242
      %p251 = scmp.eq.s32.totalorder %s84, 0
      %p252 = por %p250, %p251
      %p253 = scmp.ne.s32.totalorder %s241, %s242
      %p254 = scmp.eq.s32.totalorder %s85, 1
      %p255 = por %p253, %p254
      %p257 = scmp.ne.s32.totalorder %s242, %s256
      %p258 = scmp.eq.s32.totalorder %s85, 0
      %p259 = por %p257, %p258
      %s261 = sadd.s32 %s260, 1
      %p264 = scmp.eq.s32.totalorder %s79, 1
      %p265 = scmp.ne.s32.totalorder %s260, %s262
      %p266 = scmp.eq.s32.totalorder %s79, 0
      %p267 = por %p265, %p266
      %p268 = scmp.ne.s32.totalorder %s260, %s262
      %p269 = scmp.eq.s32.totalorder %s84, 1
      %p270 = por %p268, %p269
      %p271 = scmp.ne.s32.totalorder %s262, %s263
      %p272 = scmp.eq.s32.totalorder %s84, 0
      %p273 = por %p271, %p272
      %p274 = scmp.ne.s32.totalorder %s262, %s263
      %p275 = scmp.eq.s32.totalorder %s85, 1
      %p276 = por %p274, %p275
      %p278 = scmp.ne.s32.totalorder %s263, %s277
      %p279 = scmp.eq.s32.totalorder %s85, 0
      %p280 = por %p278, %p279
      %s282 = sadd.s32 %s281, 1
      %p285 = scmp.eq.s32.totalorder %s79, 1
      %p286 = scmp.ne.s32.totalorder %s281, %s283
      %p287 = scmp.eq.s32.totalorder %s79, 0
      %p288 = por %p286, %p287
      %p289 = scmp.ne.s32.totalorder %s281, %s283
      %p290 = scmp.eq.s32.totalorder %s84, 1
      %p291 = por %p289, %p290
      %p292 = scmp.ne.s32.totalorder %s283, %s284
      %p293 = scmp.eq.s32.totalorder %s84, 0
      %p294 = por %p292, %p293
      %p295 = scmp.ne.s32.totalorder %s283, %s284
      %p296 = scmp.eq.s32.totalorder %s85, 1
      %p297 = por %p295, %p296
      %p299 = scmp.ne.s32.totalorder %s284, %s298
      %p300 = scmp.eq.s32.totalorder %s85, 0
      %p301 = por %p299, %p300
      %s303 = sadd.s32 %s302, 1
      %p306 = scmp.eq.s32.totalorder %s79, 1
      %p307 = scmp.ne.s32.totalorder %s302, %s304
      %p308 = scmp.eq.s32.totalorder %s79, 0
      %p309 = por %p307, %p308
      %p310 = scmp.ne.s32.totalorder %s302, %s304
      %p311 = scmp.eq.s32.totalorder %s84, 1
      %p312 = por %p310, %p311
      %p313 = scmp.ne.s32.totalorder %s304, %s305
      %p314 = scmp.eq.s32.totalorder %s84, 0
      %p315 = por %p313, %p314
      %p316 = scmp.ne.s32.totalorder %s304, %s305
      %p317 = scmp.eq.s32.totalorder %s85, 1
      %p318 = por %p316, %p317
      %p320 = scmp.ne.s32.totalorder %s305, %s319
      %p321 = scmp.eq.s32.totalorder %s85, 0
      %p322 = por %p320, %p321
      %s324 = sadd.s32 %s323, 1
      %p327 = scmp.eq.s32.totalorder %s79, 1
      %p328 = scmp.ne.s32.totalorder %s323, %s325
      %p329 = scmp.eq.s32.totalorder %s79, 0
      %p330 = por %p328, %p329
      %p331 = scmp.ne.s32.totalorder %s323, %s325
      %p332 = scmp.eq.s32.totalorder %s84, 1
      %p333 = por %p331, %p332
      %p334 = scmp.ne.s32.totalorder %s325, %s326
      %p335 = scmp.eq.s32.totalorder %s84, 0
      %p336 = por %p334, %p335
      %p337 = scmp.ne.s32.totalorder %s325, %s326
      %p338 = scmp.eq.s32.totalorder %s85, 1
      %p339 = por %p337, %p338
      %p341 = scmp.ne.s32.totalorder %s326, %s340
      %p342 = scmp.eq.s32.totalorder %s85, 0
      %p343 = por %p341, %p342
      %s345 = sadd.s32 %s344, 1
      %p348 = scmp.eq.s32.totalorder %s79, 1
      %p349 = scmp.ne.s32.totalorder %s344, %s346
      %p350 = scmp.eq.s32.totalorder %s79, 0
      %p351 = por %p349, %p350
      %p352 = scmp.ne.s32.totalorder %s344, %s346
      %p353 = scmp.eq.s32.totalorder %s84, 1
      %p354 = por %p352, %p353
      %p355 = scmp.ne.s32.totalorder %s346, %s347
      %p356 = scmp.eq.s32.totalorder %s84, 0
      %p357 = por %p355, %p356
      %p358 = scmp.ne.s32.totalorder %s346, %s347
      %p359 = scmp.eq.s32.totalorder %s85, 1
      %p360 = por %p358, %p359
      %p362 = scmp.ne.s32.totalorder %s347, %s361
      %p363 = scmp.eq.s32.totalorder %s85, 0
      %p364 = por %p362, %p363
      %s366 = sadd.s32 %s365, 1
      %p369 = scmp.eq.s32.totalorder %s79, 1
      %p370 = scmp.ne.s32.totalorder %s365, %s367
      %p371 = scmp.eq.s32.totalorder %s79, 0
      %p372 = por %p370, %p371
      %p373 = scmp.ne.s32.totalorder %s365, %s367
      %p374 = scmp.eq.s32.totalorder %s84, 1
      %p375 = por %p373, %p374
      %p376 = scmp.ne.s32.totalorder %s367, %s368
      %p377 = scmp.eq.s32.totalorder %s84, 0
      %p378 = por %p376, %p377
      %p379 = scmp.ne.s32.totalorder %s367, %s368
      %p380 = scmp.eq.s32.totalorder %s85, 1
      %p381 = por %p379, %p380
      %p383 = scmp.ne.s32.totalorder %s368, %s382
      %p384 = scmp.eq.s32.totalorder %s85, 0
      %p385 = por %p383, %p384
      %s387 = sadd.s32 %s386, 1
      %p390 = scmp.eq.s32.totalorder %s79, 1
      %p391 = scmp.ne.s32.totalorder %s386, %s388
      %p392 = scmp.eq.s32.totalorder %s79, 0
      %p393 = por %p391, %p392
      %p394 = scmp.ne.s32.totalorder %s386, %s388
      %p395 = scmp.eq.s32.totalorder %s84, 1
      %p396 = por %p394, %p395
      %p397 = scmp.ne.s32.totalorder %s388, %s389
      %p398 = scmp.eq.s32.totalorder %s84, 0
      %p399 = por %p397, %p398
      %p400 = scmp.ne.s32.totalorder %s388, %s389
      %p401 = scmp.eq.s32.totalorder %s85, 1
      %p402 = por %p400, %p401
      %p404 = scmp.ne.s32.totalorder %s389, %s403
      %p405 = scmp.eq.s32.totalorder %s85, 0
      %p406 = por %p404, %p405
      %s408 = sadd.s32 %s407, 1
      %p411 = scmp.eq.s32.totalorder %s79, 1
      %p412 = scmp.ne.s32.totalorder %s407, %s409
      %p413 = scmp.eq.s32.totalorder %s79, 0
      %p414 = por %p412, %p413
      %p415 = scmp.ne.s32.totalorder %s407, %s409
      %p416 = scmp.eq.s32.totalorder %s84, 1
      %p417 = por %p415, %p416
      %p418 = scmp.ne.s32.totalorder %s409, %s410
      %p419 = scmp.eq.s32.totalorder %s84, 0
      %p420 = por %p418, %p419
      %p421 = scmp.ne.s32.totalorder %s409, %s410
      %p422 = scmp.eq.s32.totalorder %s85, 1
      %p423 = por %p421, %p422
      %p425 = scmp.ne.s32.totalorder %s410, %s424
      %p426 = scmp.eq.s32.totalorder %s85, 0
      %p427 = por %p425, %p426
      %s429 = sadd.s32 %s428, 1
      %p432 = scmp.eq.s32.totalorder %s79, 1
      %p433 = scmp.ne.s32.totalorder %s428, %s430
      %p434 = scmp.eq.s32.totalorder %s79, 0
      %p435 = por %p433, %p434
      %p436 = scmp.ne.s32.totalorder %s428, %s430
      %p437 = scmp.eq.s32.totalorder %s84, 1
      %p438 = por %p436, %p437
      %p439 = scmp.ne.s32.totalorder %s430, %s431
      %p440 = scmp.eq.s32.totalorder %s84, 0
      %p441 = por %p439, %p440
      %p442 = scmp.ne.s32.totalorder %s430, %s431
      %p443 = scmp.eq.s32.totalorder %s85, 1
      %p444 = por %p442, %p443
      %p446 = scmp.ne.s32.totalorder %s431, %s445
      %p447 = scmp.eq.s32.totalorder %s85, 0
      %p448 = por %p446, %p447
      %s450 = sadd.s32 %s449, 1
      %p453 = scmp.eq.s32.totalorder %s79, 1
      %p454 = scmp.ne.s32.totalorder %s449, %s451
      %p455 = scmp.eq.s32.totalorder %s79, 0
      %p456 = por %p454, %p455
      %p457 = scmp.ne.s32.totalorder %s449, %s451
      %p458 = scmp.eq.s32.totalorder %s84, 1
      %p459 = por %p457, %p458
      %p460 = scmp.ne.s32.totalorder %s451, %s452
      %p461 = scmp.eq.s32.totalorder %s84, 0
      %p462 = por %p460, %p461
      %p463 = scmp.ne.s32.totalorder %s451, %s452
      %p464 = scmp.eq.s32.totalorder %s85, 1
      %p465 = por %p463, %p464
      %p467 = scmp.ne.s32.totalorder %s452, %s466
      %p468 = scmp.eq.s32.totalorder %s85, 0
      %p469 = por %p467, %p468
      %s471 = sadd.s32 %s470, 1
      %p474 = scmp.eq.s32.totalorder %s79, 1
      %p475 = scmp.ne.s32.totalorder %s470, %s472
      %p476 = scmp.eq.s32.totalorder %s79, 0
      %p477 = por %p475, %p476
      %p478 = scmp.ne.s32.totalorder %s470, %s472
      %p479 = scmp.eq.s32.totalorder %s84, 1
      %p480 = por %p478, %p479
      %p481 = scmp.ne.s32.totalorder %s472, %s473
      %p482 = scmp.eq.s32.totalorder %s84, 0
      %p483 = por %p481, %p482
      %p484 = scmp.ne.s32.totalorder %s472, %s473
      %p485 = scmp.eq.s32.totalorder %s85, 1
      %p486 = por %p484, %p485
      %p488 = scmp.ne.s32.totalorder %s473, %s487
      %p489 = scmp.eq.s32.totalorder %s85, 0
      %p490 = por %p488, %p489
      %s492 = sadd.s32 %s491, 1
      %p495 = scmp.eq.s32.totalorder %s79, 1
      %p496 = scmp.ne.s32.totalorder %s491, %s493
      %p497 = scmp.eq.s32.totalorder %s79, 0
      %p498 = por %p496, %p497
      %p499 = scmp.ne.s32.totalorder %s491, %s493
      %p500 = scmp.eq.s32.totalorder %s84, 1
      %p501 = por %p499, %p500
      %p502 = scmp.ne.s32.totalorder %s493, %s494
      %p503 = scmp.eq.s32.totalorder %s84, 0
      %p504 = por %p502, %p503
      %p505 = scmp.ne.s32.totalorder %s493, %s494
      %p506 = scmp.eq.s32.totalorder %s85, 1
      %p507 = por %p505, %p506
      %p509 = scmp.ne.s32.totalorder %s494, %s508
      %p510 = scmp.eq.s32.totalorder %s85, 0
      %p511 = por %p509, %p510
      %s513 = sadd.s32 %s512, 1
      %p516 = scmp.eq.s32.totalorder %s79, 1
      %p517 = scmp.ne.s32.totalorder %s512, %s514
      %p518 = scmp.eq.s32.totalorder %s79, 0
      %p519 = por %p517, %p518
      %p520 = scmp.ne.s32.totalorder %s512, %s514
      %p521 = scmp.eq.s32.totalorder %s84, 1
      %p522 = por %p520, %p521
      %p523 = scmp.ne.s32.totalorder %s514, %s515
      %p524 = scmp.eq.s32.totalorder %s84, 0
      %p525 = por %p523, %p524
      %p526 = scmp.ne.s32.totalorder %s514, %s515
      %p527 = scmp.eq.s32.totalorder %s85, 1
      %p528 = por %p526, %p527
      %p530 = scmp.ne.s32.totalorder %s515, %s529
      %p531 = scmp.eq.s32.totalorder %s85, 0
      %p532 = por %p530, %p531
      %s534 = sadd.s32 %s533, 1
      %p537 = scmp.eq.s32.totalorder %s79, 1
      %p538 = scmp.ne.s32.totalorder %s533, %s535
      %p539 = scmp.eq.s32.totalorder %s79, 0
      %p540 = por %p538, %p539
      %p541 = scmp.ne.s32.totalorder %s533, %s535
      %p542 = scmp.eq.s32.totalorder %s84, 1
      %p543 = por %p541, %p542
      %p544 = scmp.ne.s32.totalorder %s535, %s536
      %p545 = scmp.eq.s32.totalorder %s84, 0
      %p546 = por %p544, %p545
      %p547 = scmp.ne.s32.totalorder %s535, %s536
      %p548 = scmp.eq.s32.totalorder %s85, 1
      %p549 = por %p547, %p548
      %p551 = scmp.ne.s32.totalorder %s536, %s550
      %p552 = scmp.eq.s32.totalorder %s85, 0
      %p553 = por %p551, %p552
      %s555 = sadd.s32 %s554, 1
      %p558 = scmp.eq.s32.totalorder %s79, 1
      %p559 = scmp.ne.s32.totalorder %s554, %s556
      %p560 = scmp.eq.s32.totalorder %s79, 0
      %p561 = por %p559, %p560
      %p562 = scmp.ne.s32.totalorder %s554, %s556
      %p563 = scmp.eq.s32.totalorder %s84, 1
      %p564 = por %p562, %p563
      %p565 = scmp.ne.s32.totalorder %s556, %s557
      %p566 = scmp.eq.s32.totalorder %s84, 0
      %p567 = por %p565, %p566
      %p568 = scmp.ne.s32.totalorder %s556, %s557
      %p569 = scmp.eq.s32.totalorder %s85, 1
      %p570 = por %p568, %p569
      %p572 = scmp.ne.s32.totalorder %s557, %s571
      %p573 = scmp.eq.s32.totalorder %s85, 0
      %p574 = por %p572, %p573
      %s576 = sadd.s32 %s575, 1
      %p579 = scmp.eq.s32.totalorder %s79, 1
      %p580 = scmp.ne.s32.totalorder %s575, %s577
      %p581 = scmp.eq.s32.totalorder %s79, 0
      %p582 = por %p580, %p581
      %p583 = scmp.ne.s32.totalorder %s575, %s577
      %p584 = scmp.eq.s32.totalorder %s84, 1
      %p585 = por %p583, %p584
      %p586 = scmp.ne.s32.totalorder %s577, %s578
      %p587 = scmp.eq.s32.totalorder %s84, 0
      %p588 = por %p586, %p587
      %p589 = scmp.ne.s32.totalorder %s577, %s578
      %p590 = scmp.eq.s32.totalorder %s85, 1
      %p591 = por %p589, %p590
      %p593 = scmp.ne.s32.totalorder %s578, %s592
      %p594 = scmp.eq.s32.totalorder %s85, 0
      %p595 = por %p593, %p594
      %s597 = sadd.s32 %s596, 1
      %p600 = scmp.eq.s32.totalorder %s79, 1
      %p601 = scmp.ne.s32.totalorder %s596, %s598
      %p602 = scmp.eq.s32.totalorder %s79, 0
      %p603 = por %p601, %p602
      %p604 = scmp.ne.s32.totalorder %s596, %s598
      %p605 = scmp.eq.s32.totalorder %s84, 1
      %p606 = por %p604, %p605
      %p607 = scmp.ne.s32.totalorder %s598, %s599
      %p608 = scmp.eq.s32.totalorder %s84, 0
      %p609 = por %p607, %p608
      %p610 = scmp.ne.s32.totalorder %s598, %s599
      %p611 = scmp.eq.s32.totalorder %s85, 1
      %p612 = por %p610, %p611
      %p614 = scmp.ne.s32.totalorder %s599, %s613
      %p615 = scmp.eq.s32.totalorder %s85, 0
      %p616 = por %p614, %p615
      %s618 = sadd.s32 %s617, 1
      %p621 = scmp.eq.s32.totalorder %s79, 1
      %p622 = scmp.ne.s32.totalorder %s617, %s619
      %p623 = scmp.eq.s32.totalorder %s79, 0
      %p624 = por %p622, %p623
      %p625 = scmp.ne.s32.totalorder %s617, %s619
      %p626 = scmp.eq.s32.totalorder %s84, 1
      %p627 = por %p625, %p626
      %p628 = scmp.ne.s32.totalorder %s619, %s620
      %p629 = scmp.eq.s32.totalorder %s84, 0
      %p630 = por %p628, %p629
      %p631 = scmp.ne.s32.totalorder %s619, %s620
      %p632 = scmp.eq.s32.totalorder %s85, 1
      %p633 = por %p631, %p632
      %p635 = scmp.ne.s32.totalorder %s620, %s634
      %p636 = scmp.eq.s32.totalorder %s85, 0
      %p637 = por %p635, %p636
      %s639 = sadd.s32 %s638, 1
      %p642 = scmp.eq.s32.totalorder %s79, 1
      %p643 = scmp.ne.s32.totalorder %s638, %s640
      %p644 = scmp.eq.s32.totalorder %s79, 0
      %p645 = por %p643, %p644
      %p646 = scmp.ne.s32.totalorder %s638, %s640
      %p647 = scmp.eq.s32.totalorder %s84, 1
      %p648 = por %p646, %p647
      %p649 = scmp.ne.s32.totalorder %s640, %s641
      %p650 = scmp.eq.s32.totalorder %s84, 0
      %p651 = por %p649, %p650
      %p652 = scmp.ne.s32.totalorder %s640, %s641
      %p653 = scmp.eq.s32.totalorder %s85, 1
      %p654 = por %p652, %p653
      %p656 = scmp.ne.s32.totalorder %s641, %s655
      %p657 = scmp.eq.s32.totalorder %s85, 0
      %p658 = por %p656, %p657
      %s660 = sadd.s32 %s659, 1
      %p663 = scmp.eq.s32.totalorder %s79, 1
      %p664 = scmp.ne.s32.totalorder %s659, %s661
      %p665 = scmp.eq.s32.totalorder %s79, 0
      %p666 = por %p664, %p665
      %p667 = scmp.ne.s32.totalorder %s659, %s661
      %p668 = scmp.eq.s32.totalorder %s84, 1
      %p669 = por %p667, %p668
      %p670 = scmp.ne.s32.totalorder %s661, %s662
      %p671 = scmp.eq.s32.totalorder %s84, 0
      %p672 = por %p670, %p671
      %p673 = scmp.ne.s32.totalorder %s661, %s662
      %p674 = scmp.eq.s32.totalorder %s85, 1
      %p675 = por %p673, %p674
      %p677 = scmp.ne.s32.totalorder %s662, %s676
      %p678 = scmp.eq.s32.totalorder %s85, 0
      %p679 = por %p677, %p678
      %s681 = sadd.s32 %s680, 1
      %p684 = scmp.eq.s32.totalorder %s79, 1
      %p685 = scmp.ne.s32.totalorder %s680, %s682
      %p686 = scmp.eq.s32.totalorder %s79, 0
      %p687 = por %p685, %p686
      %p688 = scmp.ne.s32.totalorder %s680, %s682
      %p689 = scmp.eq.s32.totalorder %s84, 1
      %p690 = por %p688, %p689
      %p691 = scmp.ne.s32.totalorder %s682, %s683
      %p692 = scmp.eq.s32.totalorder %s84, 0
      %p693 = por %p691, %p692
      %p694 = scmp.ne.s32.totalorder %s682, %s683
      %p695 = scmp.eq.s32.totalorder %s85, 1
      %p696 = por %p694, %p695
      %p698 = scmp.ne.s32.totalorder %s683, %s697
      %p699 = scmp.eq.s32.totalorder %s85, 0
      %p700 = por %p698, %p699
      %s702 = sadd.s32 %s701, 1
      %p705 = scmp.eq.s32.totalorder %s79, 1
      %p706 = scmp.ne.s32.totalorder %s701, %s703
      %p707 = scmp.eq.s32.totalorder %s79, 0
      %p708 = por %p706, %p707
      %p709 = scmp.ne.s32.totalorder %s701, %s703
      %p710 = scmp.eq.s32.totalorder %s84, 1
      %p711 = por %p709, %p710
      %p712 = scmp.ne.s32.totalorder %s703, %s704
      %p713 = scmp.eq.s32.totalorder %s84, 0
      %p714 = por %p712, %p713
      %p715 = scmp.ne.s32.totalorder %s703, %s704
      %p716 = scmp.eq.s32.totalorder %s85, 1
      %p717 = por %p715, %p716
      %p719 = scmp.ne.s32.totalorder %s704, %s718
      %p720 = scmp.eq.s32.totalorder %s85, 0
      %p721 = por %p719, %p720
      %s723 = sadd.s32 %s722, 1
      %p726 = scmp.eq.s32.totalorder %s79, 1
      %p727 = scmp.ne.s32.totalorder %s722, %s724
      %p728 = scmp.eq.s32.totalorder %s79, 0
      %p729 = por %p727, %p728
      %p730 = scmp.ne.s32.totalorder %s722, %s724
      %p731 = scmp.eq.s32.totalorder %s84, 1
      %p732 = por %p730, %p731
      %p733 = scmp.ne.s32.totalorder %s724, %s725
      %p734 = scmp.eq.s32.totalorder %s84, 0
      %p735 = por %p733, %p734
      %p736 = scmp.ne.s32.totalorder %s724, %s725
      %p737 = scmp.eq.s32.totalorder %s85, 1
      %p738 = por %p736, %p737
      %p740 = scmp.ne.s32.totalorder %s725, %s739
      %p741 = scmp.eq.s32.totalorder %s85, 0
      %p742 = por %p740, %p741
      %s744 = sadd.s32 %s743, 1
      %p747 = scmp.eq.s32.totalorder %s79, 1
      %p748 = scmp.ne.s32.totalorder %s743, %s745
      %p749 = scmp.eq.s32.totalorder %s79, 0
      %p750 = por %p748, %p749
      %p751 = scmp.ne.s32.totalorder %s743, %s745
      %p752 = scmp.eq.s32.totalorder %s84, 1
      %p753 = por %p751, %p752
      %p754 = scmp.ne.s32.totalorder %s745, %s746
      %p755 = scmp.eq.s32.totalorder %s84, 0
      %p756 = por %p754, %p755
      %p757 = scmp.ne.s32.totalorder %s745, %s746
      %p758 = scmp.eq.s32.totalorder %s85, 1
      %p759 = por %p757, %p758
      %p761 = scmp.ne.s32.totalorder %s746, %s760
      %p762 = scmp.eq.s32.totalorder %s85, 0
      %p763 = por %p761, %p762
      %s764 = ssub.s32 %s79, %s86
      %p765 = scmp.eq.s32.totalorder %s764, 0
      %s767 = sadd.s32 %s766, 1
      %s768 = scalar_select %p765, %s766, %s767
      %p771 = pneg %p765
      %p772 = scmp.eq.s32.totalorder %s79, 1
      %p773 = por %p771, %p772
      %p774 = scmp.ne.s32.totalorder %s766, %s769
      %p775 = scmp.eq.s32.totalorder %s79, 0
      %p776 = por %p774, %p775
      %p777 = scmp.ne.s32.totalorder %s766, %s769
      %p778 = scmp.eq.s32.totalorder %s84, 1
      %p779 = por %p777, %p778
      %p780 = scmp.ne.s32.totalorder %s769, %s770
      %p781 = scmp.eq.s32.totalorder %s84, 0
      %p782 = por %p780, %p781
      %p783 = scmp.ne.s32.totalorder %s769, %s770
      %p784 = scmp.eq.s32.totalorder %s85, 1
      %p785 = por %p783, %p784
      %p787 = scmp.ne.s32.totalorder %s770, %s786
      %p788 = scmp.eq.s32.totalorder %s85, 0
      %p789 = por %p787, %p788
      %p790 = scmp.le.s32.totalorder 1, %s79
      %p791 = scmp.lt.s32.totalorder %s79, 3
      %p792 = pnand %p790, %p791
      %p793 = pneg %p792
      // Predicated region
      $region9: #{lstm_tft_forward.1} parent=5 // pred_check
        _
      $region10: #{lstm_tft_forward.1} parent=5 // pred_check_branch
        %795 = sbr.rel (%p792) target = $region12
      $region11: #{lstm_tft_forward.1} parent=5 // pred_region
        %s796 = ssub.s32 %s79, 1
        // Predicated region
        $region13: #{lstm_tft_forward.1} parent=11 // pred_check
          %p797 = pneg %p126
        $region14: #{lstm_tft_forward.1} parent=11 // pred_check_branch
          %799 = sbr.rel (%p797) target = $region16
        $region15: #{lstm_tft_forward.1} parent=11 // pred_region
          _
        $region16: #{lstm_tft_forward.1} parent=11 // pred_fallthru
          _
        // Predicated region
        $region17: #{lstm_tft_forward.1} parent=11 // pred_check
          %p800 = pneg %p147
        $region18: #{lstm_tft_forward.1} parent=11 // pred_check_branch
          %802 = sbr.rel (%p800) target = $region20
        $region19: #{lstm_tft_forward.1} parent=11 // pred_region
          %804 = vsyncadd [#allocation3], 0
          %s805 = sshll.u32 %s5, 4
          %s806 = int_to_ptr.hbm [resolvable:$true] %s805
          %s807 = sshll.u32 [#allocation2], 4
          %s808 = int_to_ptr.vmem [resolvable:$true] %s807
          %813 = dma.hbm_to_vmem [thread:$0]  %s806, 4096, %s808, [#allocation3], 256, 256, 16
        $region20: #{lstm_tft_forward.1} parent=11 // pred_fallthru
          _
        // Predicated region
        $region21: #{lstm_tft_forward.1} parent=11 // pred_check
          %p814 = pneg %p168
        $region22: #{lstm_tft_forward.1} parent=11 // pred_check_branch
          %816 = sbr.rel (%p814) target = $region24
        $region23: #{lstm_tft_forward.1} parent=11 // pred_region
          _
        $region24: #{lstm_tft_forward.1} parent=11 // pred_fallthru
          _
        // Predicated region
        $region25: #{lstm_tft_forward.1} parent=11 // pred_check
          %p817 = pneg %p189
        $region26: #{lstm_tft_forward.1} parent=11 // pred_check_branch
          %819 = sbr.rel (%p817) target = $region28
        $region27: #{lstm_tft_forward.1} parent=11 // pred_region
          %821 = vsyncadd [#allocation5], 0
          %s822 = sshll.u32 %s9, 4
          %s823 = int_to_ptr.hbm [resolvable:$true] %s822
          %s824 = sshll.u32 [#allocation4], 4
          %s825 = int_to_ptr.vmem [resolvable:$true] %s824
          %830 = dma.hbm_to_vmem [thread:$0]  %s823, 1024, %s825, [#allocation5], 64, 64, 4
        $region28: #{lstm_tft_forward.1} parent=11 // pred_fallthru
          _
        // Predicated region
        $region29: #{lstm_tft_forward.1} parent=11 // pred_check
          %p831 = pneg %p210
        $region30: #{lstm_tft_forward.1} parent=11 // pred_check_branch
          %833 = sbr.rel (%p831) target = $region32
        $region31: #{lstm_tft_forward.1} parent=11 // pred_region
          %835 = vsyncadd [#allocation5], 0
          %s837 = sshll.u32 %s11, 4
          %s838 = int_to_ptr.hbm [resolvable:$true] %s837
          %s839 = sshll.u32 [#allocation6], 4
          %s840 = int_to_ptr.vmem [resolvable:$true] %s839
          %842 = dma.hbm_to_vmem [thread:$0]  %s838, 16, %s840, [#allocation5]
        $region32: #{lstm_tft_forward.1} parent=11 // pred_fallthru
          _
        // Predicated region
        $region33: #{lstm_tft_forward.1} parent=11 // pred_check
          %p843 = pneg %p231
        $region34: #{lstm_tft_forward.1} parent=11 // pred_check_branch
          %845 = sbr.rel (%p843) target = $region36
        $region35: #{lstm_tft_forward.1} parent=11 // pred_region
          %847 = vsyncadd [#allocation8], 0
          %s848 = sshll.u32 %s13, 4
          %s849 = int_to_ptr.hbm [resolvable:$true] %s848
          %s850 = sshll.u32 [#allocation7], 4
          %s851 = int_to_ptr.vmem [resolvable:$true] %s850
          %856 = dma.hbm_to_vmem [thread:$0]  %s849, 3072, %s851, [#allocation8], 192, 192, 12
        $region36: #{lstm_tft_forward.1} parent=11 // pred_fallthru
          _
        // Predicated region
        $region37: #{lstm_tft_forward.1} parent=11 // pred_check
          %p857 = pneg %p252
        $region38: #{lstm_tft_forward.1} parent=11 // pred_check_branch
          %859 = sbr.rel (%p857) target = $region40
        $region39: #{lstm_tft_forward.1} parent=11 // pred_region
          _
        $region40: #{lstm_tft_forward.1} parent=11 // pred_fallthru
          _
        // Predicated region
        $region41: #{lstm_tft_forward.1} parent=11 // pred_check
          %p860 = pneg %p273
        $region42: #{lstm_tft_forward.1} parent=11 // pred_check_branch
          %862 = sbr.rel (%p860) target = $region44
        $region43: #{lstm_tft_forward.1} parent=11 // pred_region
          %864 = vsyncadd [#allocation8], 0
          %s865 = sshll.u32 %s17, 4
          %s866 = int_to_ptr.hbm [resolvable:$true] %s865
          %s867 = sshll.u32 [#allocation9], 4
          %s868 = int_to_ptr.vmem [resolvable:$true] %s867
          %873 = dma.hbm_to_vmem [thread:$0]  %s866, 1024, %s868, [#allocation8], 64, 64, 4
        $region44: #{lstm_tft_forward.1} parent=11 // pred_fallthru
          _
        // Predicated region
        $region45: #{lstm_tft_forward.1} parent=11 // pred_check
          %p874 = pneg %p294
        $region46: #{lstm_tft_forward.1} parent=11 // pred_check_branch
          %876 = sbr.rel (%p874) target = $region48
        $region47: #{lstm_tft_forward.1} parent=11 // pred_region
          _
        $region48: #{lstm_tft_forward.1} parent=11 // pred_fallthru
          _
        // Predicated region
        $region49: #{lstm_tft_forward.1} parent=11 // pred_check
          %p877 = pneg %p315
        $region50: #{lstm_tft_forward.1} parent=11 // pred_check_branch
          %879 = sbr.rel (%p877) target = $region52
        $region51: #{lstm_tft_forward.1} parent=11 // pred_region
          _
        $region52: #{lstm_tft_forward.1} parent=11 // pred_fallthru
          _
        // Predicated region
        $region53: #{lstm_tft_forward.1} parent=11 // pred_check
          %p880 = pneg %p336
        $region54: #{lstm_tft_forward.1} parent=11 // pred_check_branch
          %882 = sbr.rel (%p880) target = $region56
        $region55: #{lstm_tft_forward.1} parent=11 // pred_region
          _
        $region56: #{lstm_tft_forward.1} parent=11 // pred_fallthru
          _
        // Predicated region
        $region57: #{lstm_tft_forward.1} parent=11 // pred_check
          %p883 = pneg %p357
        $region58: #{lstm_tft_forward.1} parent=11 // pred_check_branch
          %885 = sbr.rel (%p883) target = $region60
        $region59: #{lstm_tft_forward.1} parent=11 // pred_region
          %887 = vsyncadd [#allocation11], 0
          %s888 = sshll.u32 %s25, 4
          %s889 = int_to_ptr.hbm [resolvable:$true] %s888
          %s890 = sshll.u32 [#allocation10], 4
          %s891 = int_to_ptr.vmem [resolvable:$true] %s890
          %896 = dma.hbm_to_vmem [thread:$0]  %s889, 4096, %s891, [#allocation11], 256, 256, 16
        $region60: #{lstm_tft_forward.1} parent=11 // pred_fallthru
          _
        // Predicated region
        $region61: #{lstm_tft_forward.1} parent=11 // pred_check
          %p897 = pneg %p378
        $region62: #{lstm_tft_forward.1} parent=11 // pred_check_branch
          %899 = sbr.rel (%p897) target = $region64
        $region63: #{lstm_tft_forward.1} parent=11 // pred_region
          _
        $region64: #{lstm_tft_forward.1} parent=11 // pred_fallthru
          _
        // Predicated region
        $region65: #{lstm_tft_forward.1} parent=11 // pred_check
          %p900 = pneg %p399
        $region66: #{lstm_tft_forward.1} parent=11 // pred_check_branch
          %902 = sbr.rel (%p900) target = $region68
        $region67: #{lstm_tft_forward.1} parent=11 // pred_region
          %904 = vsyncadd [#allocation11], 0
          %s905 = sshll.u32 %s29, 4
          %s906 = int_to_ptr.hbm [resolvable:$true] %s905
          %s907 = sshll.u32 [#allocation12], 4
          %s908 = int_to_ptr.vmem [resolvable:$true] %s907
          %913 = dma.hbm_to_vmem [thread:$0]  %s906, 4096, %s908, [#allocation11], 64, 64, 4
        $region68: #{lstm_tft_forward.1} parent=11 // pred_fallthru
          _
        // Predicated region
        $region69: #{lstm_tft_forward.1} parent=11 // pred_check
          %p914 = pneg %p420
        $region70: #{lstm_tft_forward.1} parent=11 // pred_check_branch
          %916 = sbr.rel (%p914) target = $region72
        $region71: #{lstm_tft_forward.1} parent=11 // pred_region
          %918 = vsyncadd [#allocation14], 0
          %s920 = sshll.u32 %s31, 4
          %s921 = int_to_ptr.hbm [resolvable:$true] %s920
          %s922 = sshll.u32 [#allocation13], 4
          %s923 = int_to_ptr.vmem [resolvable:$true] %s922
          %925 = dma.hbm_to_vmem [thread:$0]  %s921, 16, %s923, [#allocation14]
        $region72: #{lstm_tft_forward.1} parent=11 // pred_fallthru
          _
        // Predicated region
        $region73: #{lstm_tft_forward.1} parent=11 // pred_check
          %p926 = pneg %p441
        $region74: #{lstm_tft_forward.1} parent=11 // pred_check_branch
          %928 = sbr.rel (%p926) target = $region76
        $region75: #{lstm_tft_forward.1} parent=11 // pred_region
          _
        $region76: #{lstm_tft_forward.1} parent=11 // pred_fallthru
          _
        // Predicated region
        $region77: #{lstm_tft_forward.1} parent=11 // pred_check
          %p929 = pneg %p462
        $region78: #{lstm_tft_forward.1} parent=11 // pred_check_branch
          %931 = sbr.rel (%p929) target = $region80
        $region79: #{lstm_tft_forward.1} parent=11 // pred_region
          _
        $region80: #{lstm_tft_forward.1} parent=11 // pred_fallthru
          _
        // Predicated region
        $region81: #{lstm_tft_forward.1} parent=11 // pred_check
          %p932 = pneg %p483
        $region82: #{lstm_tft_forward.1} parent=11 // pred_check_branch
          %934 = sbr.rel (%p932) target = $region84
        $region83: #{lstm_tft_forward.1} parent=11 // pred_region
          %936 = vsyncadd [#allocation14], 0
          %s937 = sshll.u32 %s37, 4
          %s938 = int_to_ptr.hbm [resolvable:$true] %s937
          %s939 = sshll.u32 [#allocation15], 4
          %s940 = int_to_ptr.vmem [resolvable:$true] %s939
          %945 = dma.hbm_to_vmem [thread:$0]  %s938, 3072, %s940, [#allocation14], 192, 192, 12
        $region84: #{lstm_tft_forward.1} parent=11 // pred_fallthru
          _
        // Predicated region
        $region85: #{lstm_tft_forward.1} parent=11 // pred_check
          %p946 = pneg %p504
        $region86: #{lstm_tft_forward.1} parent=11 // pred_check_branch
          %948 = sbr.rel (%p946) target = $region88
        $region87: #{lstm_tft_forward.1} parent=11 // pred_region
          _
        $region88: #{lstm_tft_forward.1} parent=11 // pred_fallthru
          _
        // Predicated region
        $region89: #{lstm_tft_forward.1} parent=11 // pred_check
          %p949 = pneg %p525
        $region90: #{lstm_tft_forward.1} parent=11 // pred_check_branch
          %951 = sbr.rel (%p949) target = $region92
        $region91: #{lstm_tft_forward.1} parent=11 // pred_region
          %953 = vsyncadd [#allocation17], 0
          %s954 = sshll.u32 %s41, 4
          %s955 = int_to_ptr.hbm [resolvable:$true] %s954
          %s956 = sshll.u32 [#allocation16], 4
          %s957 = int_to_ptr.vmem [resolvable:$true] %s956
          %962 = dma.hbm_to_vmem [thread:$0]  %s955, 1024, %s957, [#allocation17], 64, 64, 4
        $region92: #{lstm_tft_forward.1} parent=11 // pred_fallthru
          _
        // Predicated region
        $region93: #{lstm_tft_forward.1} parent=11 // pred_check
          %p963 = pneg %p546
        $region94: #{lstm_tft_forward.1} parent=11 // pred_check_branch
          %965 = sbr.rel (%p963) target = $region96
        $region95: #{lstm_tft_forward.1} parent=11 // pred_region
          _
        $region96: #{lstm_tft_forward.1} parent=11 // pred_fallthru
          _
        // Predicated region
        $region97: #{lstm_tft_forward.1} parent=11 // pred_check
          %p966 = pneg %p567
        $region98: #{lstm_tft_forward.1} parent=11 // pred_check_branch
          %968 = sbr.rel (%p966) target = $region100
        $region99: #{lstm_tft_forward.1} parent=11 // pred_region
          _
        $region100: #{lstm_tft_forward.1} parent=11 // pred_fallthru
          _
        // Predicated region
        $region101: #{lstm_tft_forward.1} parent=11 // pred_check
          %p969 = pneg %p588
        $region102: #{lstm_tft_forward.1} parent=11 // pred_check_branch
          %971 = sbr.rel (%p969) target = $region104
        $region103: #{lstm_tft_forward.1} parent=11 // pred_region
          _
        $region104: #{lstm_tft_forward.1} parent=11 // pred_fallthru
          _
        // Predicated region
        $region105: #{lstm_tft_forward.1} parent=11 // pred_check
          %p972 = pneg %p609
        $region106: #{lstm_tft_forward.1} parent=11 // pred_check_branch
          %974 = sbr.rel (%p972) target = $region108
        $region107: #{lstm_tft_forward.1} parent=11 // pred_region
          %976 = vsyncadd [#allocation17], 0
          %s977 = sshll.u32 %s49, 4
          %s978 = int_to_ptr.hbm [resolvable:$true] %s977
          %s979 = sshll.u32 [#allocation18], 4
          %s980 = int_to_ptr.vmem [resolvable:$true] %s979
          %985 = dma.hbm_to_vmem [thread:$0]  %s978, 4096, %s980, [#allocation17], 256, 256, 16
        $region108: #{lstm_tft_forward.1} parent=11 // pred_fallthru
          _
        // Predicated region
        $region109: #{lstm_tft_forward.1} parent=11 // pred_check
          %p986 = pneg %p630
        $region110: #{lstm_tft_forward.1} parent=11 // pred_check_branch
          %988 = sbr.rel (%p986) target = $region112
        $region111: #{lstm_tft_forward.1} parent=11 // pred_region
          _
        $region112: #{lstm_tft_forward.1} parent=11 // pred_fallthru
          _
        // Predicated region
        $region113: #{lstm_tft_forward.1} parent=11 // pred_check
          %p989 = pneg %p651
        $region114: #{lstm_tft_forward.1} parent=11 // pred_check_branch
          %991 = sbr.rel (%p989) target = $region116
        $region115: #{lstm_tft_forward.1} parent=11 // pred_region
          %993 = vsyncadd [#allocation20], 0
          %s994 = sshll.u32 %s53, 4
          %s995 = int_to_ptr.hbm [resolvable:$true] %s994
          %s996 = sshll.u32 [#allocation19], 4
          %s997 = int_to_ptr.vmem [resolvable:$true] %s996
          %1002 = dma.hbm_to_vmem [thread:$0]  %s995, 4096, %s997, [#allocation20], 64, 64, 4
        $region116: #{lstm_tft_forward.1} parent=11 // pred_fallthru
          _
        // Predicated region
        $region117: #{lstm_tft_forward.1} parent=11 // pred_check
          %p1003 = pneg %p672
        $region118: #{lstm_tft_forward.1} parent=11 // pred_check_branch
          %1005 = sbr.rel (%p1003) target = $region120
        $region119: #{lstm_tft_forward.1} parent=11 // pred_region
          _
        $region120: #{lstm_tft_forward.1} parent=11 // pred_fallthru
          _
        // Predicated region
        $region121: #{lstm_tft_forward.1} parent=11 // pred_check
          %p1006 = pneg %p693
        $region122: #{lstm_tft_forward.1} parent=11 // pred_check_branch
          %1008 = sbr.rel (%p1006) target = $region124
        $region123: #{lstm_tft_forward.1} parent=11 // pred_region
          _
        $region124: #{lstm_tft_forward.1} parent=11 // pred_fallthru
          _
        // Predicated region
        $region125: #{lstm_tft_forward.1} parent=11 // pred_check
          %p1009 = pneg %p714
        $region126: #{lstm_tft_forward.1} parent=11 // pred_check_branch
          %1011 = sbr.rel (%p1009) target = $region128
        $region127: #{lstm_tft_forward.1} parent=11 // pred_region
          _
        $region128: #{lstm_tft_forward.1} parent=11 // pred_fallthru
          _
        // Predicated region
        $region129: #{lstm_tft_forward.1} parent=11 // pred_check
          %p1012 = pneg %p735
        $region130: #{lstm_tft_forward.1} parent=11 // pred_check_branch
          %1014 = sbr.rel (%p1012) target = $region132
        $region131: #{lstm_tft_forward.1} parent=11 // pred_region
          %1016 = vsyncadd [#allocation20], 0
          %s1017 = sshll.u32 %s61, 4
          %s1018 = int_to_ptr.hbm [resolvable:$true] %s1017
          %s1019 = sshll.u32 [#allocation21], 4
          %s1020 = int_to_ptr.vmem [resolvable:$true] %s1019
          %1025 = dma.hbm_to_vmem [thread:$0]  %s1018, 1024, %s1020, [#allocation20], 64, 64, 4
        $region132: #{lstm_tft_forward.1} parent=11 // pred_fallthru
          _
        // Predicated region
        $region133: #{lstm_tft_forward.1} parent=11 // pred_check
          %p1026 = pneg %p756
        $region134: #{lstm_tft_forward.1} parent=11 // pred_check_branch
          %1028 = sbr.rel (%p1026) target = $region136
        $region135: #{lstm_tft_forward.1} parent=11 // pred_region
          %1030 = vsyncadd [#allocation23], 0
          %s1032 = sshll.u32 %s63, 4
          %s1033 = int_to_ptr.hbm [resolvable:$true] %s1032
          %s1034 = sshll.u32 [#allocation22], 4
          %s1035 = int_to_ptr.vmem [resolvable:$true] %s1034
          %1037 = dma.hbm_to_vmem [thread:$0]  %s1033, 16, %s1035, [#allocation23]
        $region136: #{lstm_tft_forward.1} parent=11 // pred_fallthru
          _
      $region12: #{lstm_tft_forward.1} parent=5 // pred_fallthru
        _
      %p1038 = scmp.lt.s32.totalorder %s79, 2
      // Predicated region
      $region137: #{lstm_tft_forward.1} parent=5 // pred_check
        %p1039 = pneg %p1038
      $region138: #{lstm_tft_forward.1} parent=5 // pred_check_branch
        %1041 = sbr.rel (%p1039) target = $region140
      $region139: #{lstm_tft_forward.1} parent=5 // pred_region
        // Predicated region
        $region141: #{lstm_tft_forward.1} parent=139 // pred_check
          %p1042 = pneg %p99
        $region142: #{lstm_tft_forward.1} parent=139 // pred_check_branch
          %1044 = sbr.rel (%p1042) target = $region144
        $region143: #{lstm_tft_forward.1} parent=139 // pred_region
          %p1045 = scmp.lt.s32.totalorder %s79, 1
          %s1046 = scalar_select %p1045, %s79, 1
          %s1047 = smul.addr %s1046, 8
          %s1048 = scalar_lea.vmem %s1, %s1047
        $region144: #{lstm_tft_forward.1} parent=139 // pred_fallthru
          _
      $region140: #{lstm_tft_forward.1} parent=5 // pred_fallthru
        _
      %p1049 = scmp.le.s32.totalorder 1, %s79
      %p1050 = scmp.lt.s32.totalorder %s79, 3
      %p1051 = pnand %p1049, %p1050
      %p1052 = pneg %p1051
      // Predicated region
      $region145: #{lstm_tft_forward.1} parent=5 // pred_check
        _
      $region146: #{lstm_tft_forward.1} parent=5 // pred_check_branch
        %1054 = sbr.rel (%p1051) target = $region148
      $region147: #{lstm_tft_forward.1} parent=5 // pred_region
        %s1055 = ssub.s32 %s79, 1
        // Predicated region
        $region149: #{lstm_tft_forward.1} parent=147 // pred_check
          %p1056 = pneg %p147
        $region150: #{lstm_tft_forward.1} parent=147 // pred_check_branch
          %1058 = sbr.rel (%p1056) target = $region152
        $region151: #{lstm_tft_forward.1} parent=147 // pred_region
          %1060 = dma.done [#allocation3], 4096
        $region152: #{lstm_tft_forward.1} parent=147 // pred_fallthru
          _
        // Predicated region
        $region153: #{lstm_tft_forward.1} parent=147 // pred_check
          %p1061 = pneg %p189
        $region154: #{lstm_tft_forward.1} parent=147 // pred_check_branch
          %1063 = sbr.rel (%p1061) target = $region156
        $region155: #{lstm_tft_forward.1} parent=147 // pred_region
          %1065 = dma.done [#allocation5], 1024
        $region156: #{lstm_tft_forward.1} parent=147 // pred_fallthru
          _
        // Predicated region
        $region157: #{lstm_tft_forward.1} parent=147 // pred_check
          %p1066 = pneg %p210
        $region158: #{lstm_tft_forward.1} parent=147 // pred_check_branch
          %1068 = sbr.rel (%p1066) target = $region160
        $region159: #{lstm_tft_forward.1} parent=147 // pred_region
          %1070 = dma.done [#allocation5], 16
        $region160: #{lstm_tft_forward.1} parent=147 // pred_fallthru
          _
        // Predicated region
        $region161: #{lstm_tft_forward.1} parent=147 // pred_check
          %p1071 = pneg %p231
        $region162: #{lstm_tft_forward.1} parent=147 // pred_check_branch
          %1073 = sbr.rel (%p1071) target = $region164
        $region163: #{lstm_tft_forward.1} parent=147 // pred_region
          %1075 = dma.done [#allocation8], 3072
        $region164: #{lstm_tft_forward.1} parent=147 // pred_fallthru
          _
        // Predicated region
        $region165: #{lstm_tft_forward.1} parent=147 // pred_check
          %p1076 = pneg %p273
        $region166: #{lstm_tft_forward.1} parent=147 // pred_check_branch
          %1078 = sbr.rel (%p1076) target = $region168
        $region167: #{lstm_tft_forward.1} parent=147 // pred_region
          %1080 = dma.done [#allocation8], 1024
        $region168: #{lstm_tft_forward.1} parent=147 // pred_fallthru
          _
        // Predicated region
        $region169: #{lstm_tft_forward.1} parent=147 // pred_check
          %p1081 = pneg %p357
        $region170: #{lstm_tft_forward.1} parent=147 // pred_check_branch
          %1083 = sbr.rel (%p1081) target = $region172
        $region171: #{lstm_tft_forward.1} parent=147 // pred_region
          %1085 = dma.done [#allocation11], 4096
        $region172: #{lstm_tft_forward.1} parent=147 // pred_fallthru
          _
        // Predicated region
        $region173: #{lstm_tft_forward.1} parent=147 // pred_check
          %p1086 = pneg %p399
        $region174: #{lstm_tft_forward.1} parent=147 // pred_check_branch
          %1088 = sbr.rel (%p1086) target = $region176
        $region175: #{lstm_tft_forward.1} parent=147 // pred_region
          %1090 = dma.done [#allocation11], 4096
        $region176: #{lstm_tft_forward.1} parent=147 // pred_fallthru
          _
        // Predicated region
        $region177: #{lstm_tft_forward.1} parent=147 // pred_check
          %p1091 = pneg %p420
        $region178: #{lstm_tft_forward.1} parent=147 // pred_check_branch
          %1093 = sbr.rel (%p1091) target = $region180
        $region179: #{lstm_tft_forward.1} parent=147 // pred_region
          %1095 = dma.done [#allocation14], 16
        $region180: #{lstm_tft_forward.1} parent=147 // pred_fallthru
          _
        // Predicated region
        $region181: #{lstm_tft_forward.1} parent=147 // pred_check
          %p1096 = pneg %p483
        $region182: #{lstm_tft_forward.1} parent=147 // pred_check_branch
          %1098 = sbr.rel (%p1096) target = $region184
        $region183: #{lstm_tft_forward.1} parent=147 // pred_region
          %1100 = dma.done [#allocation14], 3072
        $region184: #{lstm_tft_forward.1} parent=147 // pred_fallthru
          _
        // Predicated region
        $region185: #{lstm_tft_forward.1} parent=147 // pred_check
          %p1101 = pneg %p525
        $region186: #{lstm_tft_forward.1} parent=147 // pred_check_branch
          %1103 = sbr.rel (%p1101) target = $region188
        $region187: #{lstm_tft_forward.1} parent=147 // pred_region
          %1105 = dma.done [#allocation17], 1024
        $region188: #{lstm_tft_forward.1} parent=147 // pred_fallthru
          _
        // Predicated region
        $region189: #{lstm_tft_forward.1} parent=147 // pred_check
          %p1106 = pneg %p609
        $region190: #{lstm_tft_forward.1} parent=147 // pred_check_branch
          %1108 = sbr.rel (%p1106) target = $region192
        $region191: #{lstm_tft_forward.1} parent=147 // pred_region
          %1110 = dma.done [#allocation17], 4096
        $region192: #{lstm_tft_forward.1} parent=147 // pred_fallthru
          _
        // Predicated region
        $region193: #{lstm_tft_forward.1} parent=147 // pred_check
          %p1111 = pneg %p651
        $region194: #{lstm_tft_forward.1} parent=147 // pred_check_branch
          %1113 = sbr.rel (%p1111) target = $region196
        $region195: #{lstm_tft_forward.1} parent=147 // pred_region
          %1115 = dma.done [#allocation20], 4096
        $region196: #{lstm_tft_forward.1} parent=147 // pred_fallthru
          _
        // Predicated region
        $region197: #{lstm_tft_forward.1} parent=147 // pred_check
          %p1116 = pneg %p735
        $region198: #{lstm_tft_forward.1} parent=147 // pred_check_branch
          %1118 = sbr.rel (%p1116) target = $region200
        $region199: #{lstm_tft_forward.1} parent=147 // pred_region
          %1120 = dma.done [#allocation20], 1024
        $region200: #{lstm_tft_forward.1} parent=147 // pred_fallthru
          _
        // Predicated region
        $region201: #{lstm_tft_forward.1} parent=147 // pred_check
          %p1121 = pneg %p756
        $region202: #{lstm_tft_forward.1} parent=147 // pred_check_branch
          %1123 = sbr.rel (%p1121) target = $region204
        $region203: #{lstm_tft_forward.1} parent=147 // pred_region
          %1125 = dma.done [#allocation23], 16
        $region204: #{lstm_tft_forward.1} parent=147 // pred_fallthru
          _
        %p1126 = scmp.lt.s32.totalorder %s84, 1
        %s1127 = scalar_select %p1126, %s84, 1
        %s1128 = smul.addr %s1127, 8
        %s1129 = scalar_lea.vmem %s1, %s1128
        %p1130 = pneg %p105
        %p1131 = pneg %p102
        %p1132 = pneg %p126
        %p1133 = pneg %p123
        %p1134 = pneg %p147
        %p1135 = pneg %p144
        %p1136 = pneg %p168
        %p1137 = pneg %p165
        %p1138 = pneg %p189
        %p1139 = pneg %p186
        %p1140 = pneg %p210
        %p1141 = pneg %p207
        %p1142 = pneg %p231
        %p1143 = pneg %p228
        %p1144 = pneg %p252
        %p1145 = pneg %p249
        %p1146 = pneg %p273
        %p1147 = pneg %p270
        %p1148 = pneg %p294
        %p1149 = pneg %p291
        %p1150 = pneg %p315
        %p1151 = pneg %p312
        %p1152 = pneg %p336
        %p1153 = pneg %p333
        %p1154 = pneg %p357
        %p1155 = pneg %p354
        %p1156 = pneg %p378
        %p1157 = pneg %p375
        %p1158 = pneg %p399
        %p1159 = pneg %p396
        %p1160 = pneg %p420
        %p1161 = pneg %p417
        %p1162 = pneg %p441
        %p1163 = pneg %p438
        %p1164 = pneg %p462
        %p1165 = pneg %p459
        %p1166 = pneg %p483
        %p1167 = pneg %p480
        %p1168 = pneg %p504
        %p1169 = pneg %p501
        %p1170 = pneg %p525
        %p1171 = pneg %p522
        %p1172 = pneg %p546
        %p1173 = pneg %p543
        %p1174 = pneg %p567
        %p1175 = pneg %p564
        %p1176 = pneg %p588
        %p1177 = pneg %p585
        %p1178 = pneg %p609
        %p1179 = pneg %p606
        %p1180 = pneg %p630
        %p1181 = pneg %p627
        %p1182 = pneg %p651
        %p1183 = pneg %p648
        %p1184 = pneg %p672
        %p1185 = pneg %p669
        %p1186 = pneg %p693
        %p1187 = pneg %p690
        %p1188 = pneg %p714
        %p1189 = pneg %p711
        %p1190 = pneg %p735
        %p1191 = pneg %p732
        %p1192 = pneg %p756
        %p1193 = pneg %p753
        %p1194 = pneg %p782
        %p1195 = pneg %p779
        %p1196 = scmp.lt.s32.totalorder %s84, 1
        %s1197 = scalar_select %p1196, %s84, 1
        %s1198 = scalar_lea.vmem %s65, %s1197
        %p1199 = scmp.lt.s32.totalorder %s84, 1
        %s1200 = scalar_select %p1199, %s84, 1
        %s1201 = smul.addr %s1200, 8
        %s1202 = scalar_lea.vmem %s1, %s1201
        %p1203 = scmp.lt.s32.totalorder %s84, 1
        %s1204 = scalar_select %p1203, %s84, 1
        %s1205 = scalar_lea.vmem %s65, %s1204
        %v1207 = vld [vmem:[%s1202] sm:$0xff]
        %v1208 = vpack.c.bf16 %v1207, %v1207
        %v1209 = vld [vmem:[%s3] sm:$0xff]
        %v1210 = vld [vmem:[%s7] sm:$0xf]
        %v1212 = vperm.slane %v1210, 0
        %v1213 = vperm.slane %v1210, 1
        %v1214 = vperm.slane %v1210, 2
        %v1215 = vperm.slane %v1210, 3
        %1221 = vst [vmem:[#allocation1] ss:$4 sm:$0xff] %v1209
        %v1222 = vld.sshfl [vmem:[#allocation1] sm:$0xff pattern:$0x73625140]
        %v1223 = vld.sshfl [vmem:[#allocation1 + $0x8] sm:$0xff pattern:$0x73625140]
        %v1224 = vld.sshfl [vmem:[#allocation1 + $0x10] sm:$0xff pattern:$0x73625140]
        %v1225 = vld.sshfl [vmem:[#allocation1 + $0x18] sm:$0xff pattern:$0x73625140]
        %vm1226 = vcmask 31744
        %v1228 = vsel %vm1226, %v1208, 0
        %vm1230 = vcmask 1041408
        %v1231 = vsel %vm1230, %v1222, 0
        %v1233 = vsel %vm1230, %v1223, 0
        %v1235 = vsel %vm1230, %v1224, 0
        %v1237 = vsel %vm1230, %v1225, 0
        %1239 = vmatpush.bf16.msra.mxu0 0
        %1240 = vmatpush.bf16.msra.mxu0 0
        %1241 = vmatpush.bf16.msra.mxu0 0
        %1242 = vmatpush.bf16.msra.mxu0 0
        %1243 = vmatpush.bf16.msra.mxu0 0
        %1244 = vmatpush.bf16.msra.mxu0 0
        %1245 = vmatpush.bf16.msra.mxu0 0
        %1246 = vmatpush.bf16.msra.mxu0 %v1231
        %1247 = vmatmul.bf16.gmra.mxu0 %v1228
        %v1248 = vpop.f32.mrf.mxu0
        %v1249 = vadd.f32 %v1212, %v1248
        %v1250 = vpop.f32.mrf.mxu0
        %1251 = vdwg.mxu0
        %1252 = vmatpush.bf16.msra.mxu0 0
        %1253 = vmatpush.bf16.msra.mxu0 0
        %1254 = vmatpush.bf16.msra.mxu0 0
        %1255 = vmatpush.bf16.msra.mxu0 0
        %1256 = vmatpush.bf16.msra.mxu0 0
        %1257 = vmatpush.bf16.msra.mxu0 0
        %1258 = vmatpush.bf16.msra.mxu0 0
        %1259 = vmatpush.bf16.msra.mxu0 %v1233
        %1260 = vmatmul.bf16.gmra.mxu0 %v1228
        %v1261 = vpop.f32.mrf.mxu0
        %v1262 = vadd.f32 %v1213, %v1261
        %v1263 = vpop.f32.mrf.mxu0
        %1264 = vdwg.mxu0
        %1265 = vmatpush.bf16.msra.mxu0 0
        %1266 = vmatpush.bf16.msra.mxu0 0
        %1267 = vmatpush.bf16.msra.mxu0 0
        %1268 = vmatpush.bf16.msra.mxu0 0
        %1269 = vmatpush.bf16.msra.mxu0 0
        %1270 = vmatpush.bf16.msra.mxu0 0
        %1271 = vmatpush.bf16.msra.mxu0 0
        %1272 = vmatpush.bf16.msra.mxu0 %v1235
        %1273 = vmatmul.bf16.gmra.mxu0 %v1228
        %v1274 = vpop.f32.mrf.mxu0
        %v1275 = vadd.f32 %v1214, %v1274
        %v1276 = vpop.f32.mrf.mxu0
        %1277 = vdwg.mxu0
        %1278 = vmatpush.bf16.msra.mxu0 0
        %1279 = vmatpush.bf16.msra.mxu0 0
        %1280 = vmatpush.bf16.msra.mxu0 0
        %1281 = vmatpush.bf16.msra.mxu0 0
        %1282 = vmatpush.bf16.msra.mxu0 0
        %1283 = vmatpush.bf16.msra.mxu0 0
        %1284 = vmatpush.bf16.msra.mxu0 0
        %1285 = vmatpush.bf16.msra.mxu0 %v1237
        %1286 = vmatmul.bf16.gmra.mxu0 %v1228
        %v1287 = vpop.f32.mrf.mxu0
        %v1288 = vadd.f32 %v1215, %v1287
        %v1289 = vpop.f32.mrf.mxu0
        %1290 = vdwg.mxu0
        %v1295 = vrot.slane %v1249, 7
        %v1296 = vrot.slane %v1262, 7
        %v1297 = vrot.slane %v1275, 7
        %v1298 = vrot.slane %v1288, 7
        %v1303 = vrot.slane %v1249, 5
        %v1304 = vrot.slane %v1262, 5
        %v1305 = vrot.slane %v1275, 5
        %v1306 = vrot.slane %v1288, 5
        %v1311 = vrot.slane %v1249, 3
        %v1312 = vrot.slane %v1262, 3
        %v1313 = vrot.slane %v1275, 3
        %v1314 = vrot.slane %v1288, 3
        %v1319 = vrot.slane %v1249, 1
        %v1320 = vrot.slane %v1262, 1
        %v1321 = vrot.slane %v1275, 1
        %v1322 = vrot.slane %v1288, 1
        %vm1327 = vcmask 1040384
        %v1328 = vsel %vm1327, %v1295, %v1303
        %v1329 = vsel %vm1327, %v1296, %v1304
        %v1330 = vsel %vm1327, %v1297, %v1305
        %v1331 = vsel %vm1327, %v1298, %v1306
        %v1332 = vsel %vm1230, %v1328, %v1311
        %v1333 = vsel %vm1230, %v1329, %v1312
        %v1334 = vsel %vm1230, %v1330, %v1313
        %v1335 = vsel %vm1230, %v1331, %v1314
        %vm1336 = vcmask 1042432
        %v1337 = vsel %vm1336, %v1332, %v1319
        %v1338 = vsel %vm1336, %v1333, %v1320
        %v1339 = vsel %vm1336, %v1334, %v1321
        %v1340 = vsel %vm1336, %v1335, %v1322
        %vm1341 = vcmask 1043456
        %v1342 = vsel %vm1341, %v1337, %v1295
        %v1343 = vsel %vm1341, %v1338, %v1296
        %v1344 = vsel %vm1341, %v1339, %v1297
        %v1345 = vsel %vm1341, %v1340, %v1298
        %vm1346 = vcmask 1044480
        %v1347 = vsel %vm1346, %v1342, %v1303
        %v1348 = vsel %vm1346, %v1343, %v1304
        %v1349 = vsel %vm1346, %v1344, %v1305
        %v1350 = vsel %vm1346, %v1345, %v1306
        %vm1351 = vcmask 1045504
        %v1352 = vsel %vm1351, %v1347, %v1311
        %v1353 = vsel %vm1351, %v1348, %v1312
        %v1354 = vsel %vm1351, %v1349, %v1313
        %v1355 = vsel %vm1351, %v1350, %v1314
        %vm1356 = vcmask 1046528
        %v1357 = vsel %vm1356, %v1352, %v1319
        %v1358 = vsel %vm1356, %v1353, %v1320
        %v1359 = vsel %vm1356, %v1354, %v1321
        %v1360 = vsel %vm1356, %v1355, %v1322
        %v1361 = vlaneseq
        %v1362 = vand.u32 %v1361, 127
        %v1363 = vadd.s32 %v1362, 128
        %v1364 = vadd.s32 %v1362, 256
        %v1365 = vadd.s32 %v1362, 384
        %vm1366 = vcmp.lt.s32.totalorder %v1362, 0
        %v1367 = vsub.s32 0, %v1362
        %v1368 = vsel %vm1366, %v1367, %v1362
        %v1369 = vshrl.u32 %v1368, 7
        %v1370 = vand.u32 %v1368, 127
        %v1371 = vsub.s32 0, %v1370
        %v1372 = vsel %vm1366, %v1371, %v1370
        %vm1373 = vcmp.lt.s32.totalorder %v1363, 0
        %v1374 = vsub.s32 0, %v1363
        %v1375 = vsel %vm1373, %v1374, %v1363
        %v1376 = vshrl.u32 %v1375, 7
        %v1377 = vand.u32 %v1375, 127
        %v1378 = vsub.s32 0, %v1377
        %v1379 = vsel %vm1373, %v1378, %v1377
        %vm1380 = vcmp.lt.s32.totalorder %v1364, 0
        %v1381 = vsub.s32 0, %v1364
        %v1382 = vsel %vm1380, %v1381, %v1364
        %v1383 = vshrl.u32 %v1382, 7
        %v1384 = vand.u32 %v1382, 127
        %v1385 = vsub.s32 0, %v1384
        %v1386 = vsel %vm1380, %v1385, %v1384
        %vm1387 = vcmp.lt.s32.totalorder %v1365, 0
        %v1388 = vsub.s32 0, %v1365
        %v1389 = vsel %vm1387, %v1388, %v1365
        %v1390 = vshrl.u32 %v1389, 7
        %v1391 = vand.u32 %v1389, 127
        %v1392 = vsub.s32 0, %v1391
        %v1393 = vsel %vm1387, %v1392, %v1391
        %vm1394 = vcmp.ne.s32.totalorder %v1372, 0
        %vm1395 = vcmp.ne.s32.totalorder %v1379, 0
        %vm1396 = vcmp.ne.s32.totalorder %v1386, 0
        %vm1397 = vcmp.ne.s32.totalorder %v1393, 0
        %vm1398 = vcmp.lt.s32.totalorder %v1372, 0
        %vm1399 = vcmp.lt.s32.totalorder %v1379, 0
        %vm1400 = vcmp.lt.s32.totalorder %v1386, 0
        %vm1401 = vcmp.lt.s32.totalorder %v1393, 0
        %vm1402 = vmand %vm1398, %vm1394
        %vm1403 = vmand %vm1399, %vm1395
        %vm1404 = vmand %vm1400, %vm1396
        %vm1405 = vmand %vm1401, %vm1397
        %v1406 = vadd.s32 %v1372, 128
        %v1407 = vadd.s32 %v1379, 128
        %v1408 = vadd.s32 %v1386, 128
        %v1409 = vadd.s32 %v1393, 128
        %v1410 = vsel %vm1402, %v1406, %v1372
        %v1411 = vsel %vm1403, %v1407, %v1379
        %v1412 = vsel %vm1404, %v1408, %v1386
        %v1413 = vsel %vm1405, %v1409, %v1393
        %vm1414 = vcmp.lt.s32.totalorder %v1410, 64
        %vm1415 = vcmp.lt.s32.totalorder %v1411, 64
        %vm1416 = vcmp.lt.s32.totalorder %v1412, 64
        %vm1417 = vcmp.lt.s32.totalorder %v1413, 64
        %v1418 = vsel %vm1414, 1, 0
        %v1419 = vsel %vm1415, 1, 0
        %v1420 = vsel %vm1416, 1, 0
        %v1421 = vsel %vm1417, 1, 0
        %vm1422 = vcmp.eq.s32.totalorder %v1418, 1
        %vm1423 = vcmp.eq.s32.totalorder %v1419, 1
        %vm1424 = vcmp.eq.s32.totalorder %v1420, 1
        %vm1425 = vcmp.eq.s32.totalorder %v1421, 1
        %v1426 = vsel %vm1422, %v1249, %v1357
        %v1427 = vsel %vm1423, %v1262, %v1358
        %v1428 = vsel %vm1424, %v1275, %v1359
        %v1429 = vsel %vm1425, %v1288, %v1360
        %v1430 = vld [vmem:[#allocation2] sm:$0xff]
        %v1431 = vld [vmem:[#allocation2 + $0x8] sm:$0xff]
        %v1432 = vld [vmem:[#allocation2 + $0x10] sm:$0xff]
        %v1433 = vld [vmem:[#allocation2 + $0x18] sm:$0xff]
        %v1434 = vld [vmem:[#allocation2 + $0x20] sm:$0xff]
        %v1435 = vld [vmem:[#allocation2 + $0x28] sm:$0xff]
        %v1436 = vld [vmem:[#allocation2 + $0x30] sm:$0xff]
        %v1437 = vld [vmem:[#allocation2 + $0x38] sm:$0xff]
        %v1438 = vld [vmem:[#allocation2 + $0x40] sm:$0xff]
        %v1439 = vld [vmem:[#allocation2 + $0x48] sm:$0xff]
        %v1440 = vld [vmem:[#allocation2 + $0x50] sm:$0xff]
        %v1441 = vld [vmem:[#allocation2 + $0x58] sm:$0xff]
        %v1442 = vld [vmem:[#allocation2 + $0x60] sm:$0xff]
        %v1443 = vld [vmem:[#allocation2 + $0x68] sm:$0xff]
        %v1444 = vld [vmem:[#allocation2 + $0x70] sm:$0xff]
        %v1445 = vld [vmem:[#allocation2 + $0x78] sm:$0xff]
        %v1446 = vld [vmem:[#allocation2 + $0x80] sm:$0xff]
        %v1447 = vld [vmem:[#allocation2 + $0x88] sm:$0xff]
        %v1448 = vld [vmem:[#allocation2 + $0x90] sm:$0xff]
        %v1449 = vld [vmem:[#allocation2 + $0x98] sm:$0xff]
        %v1450 = vld [vmem:[#allocation2 + $0xa0] sm:$0xff]
        %v1451 = vld [vmem:[#allocation2 + $0xa8] sm:$0xff]
        %v1452 = vld [vmem:[#allocation2 + $0xb0] sm:$0xff]
        %v1453 = vld [vmem:[#allocation2 + $0xb8] sm:$0xff]
        %v1454 = vld [vmem:[#allocation2 + $0xc0] sm:$0xff]
        %v1455 = vld [vmem:[#allocation2 + $0xc8] sm:$0xff]
        %v1456 = vld [vmem:[#allocation2 + $0xd0] sm:$0xff]
        %v1457 = vld [vmem:[#allocation2 + $0xd8] sm:$0xff]
        %v1458 = vld [vmem:[#allocation2 + $0xe0] sm:$0xff]
        %v1459 = vld [vmem:[#allocation2 + $0xe8] sm:$0xff]
        %v1460 = vld [vmem:[#allocation2 + $0xf0] sm:$0xff]
        %v1461 = vld [vmem:[#allocation2 + $0xf8] sm:$0xff]
        %v1494 = vunpack.c.l.b16 %v1430
        %v1495 = vunpack.c.h.b16 %v1430
        %v1496 = vunpack.c.l.b16 %v1431
        %v1497 = vunpack.c.h.b16 %v1431
        %v1498 = vunpack.c.l.b16 %v1432
        %v1499 = vunpack.c.h.b16 %v1432
        %v1500 = vunpack.c.l.b16 %v1433
        %v1501 = vunpack.c.h.b16 %v1433
        %v1502 = vunpack.c.l.b16 %v1434
        %v1503 = vunpack.c.h.b16 %v1434
        %v1504 = vunpack.c.l.b16 %v1435
        %v1505 = vunpack.c.h.b16 %v1435
        %v1506 = vunpack.c.l.b16 %v1436
        %v1507 = vunpack.c.h.b16 %v1436
        %v1508 = vunpack.c.l.b16 %v1437
        %v1509 = vunpack.c.h.b16 %v1437
        %v1510 = vunpack.c.l.b16 %v1438
        %v1511 = vunpack.c.h.b16 %v1438
        %v1512 = vunpack.c.l.b16 %v1439
        %v1513 = vunpack.c.h.b16 %v1439
        %v1514 = vunpack.c.l.b16 %v1440
        %v1515 = vunpack.c.h.b16 %v1440
        %v1516 = vunpack.c.l.b16 %v1441
        %v1517 = vunpack.c.h.b16 %v1441
        %v1518 = vunpack.c.l.b16 %v1442
        %v1519 = vunpack.c.h.b16 %v1442
        %v1520 = vunpack.c.l.b16 %v1443
        %v1521 = vunpack.c.h.b16 %v1443
        %v1522 = vunpack.c.l.b16 %v1444
        %v1523 = vunpack.c.h.b16 %v1444
        %v1524 = vunpack.c.l.b16 %v1445
        %v1525 = vunpack.c.h.b16 %v1445
        %v1526 = vunpack.c.l.b16 %v1446
        %v1527 = vunpack.c.h.b16 %v1446
        %v1528 = vunpack.c.l.b16 %v1447
        %v1529 = vunpack.c.h.b16 %v1447
        %v1530 = vunpack.c.l.b16 %v1448
        %v1531 = vunpack.c.h.b16 %v1448
        %v1532 = vunpack.c.l.b16 %v1449
        %v1533 = vunpack.c.h.b16 %v1449
        %v1534 = vunpack.c.l.b16 %v1450
        %v1535 = vunpack.c.h.b16 %v1450
        %v1536 = vunpack.c.l.b16 %v1451
        %v1537 = vunpack.c.h.b16 %v1451
        %v1538 = vunpack.c.l.b16 %v1452
        %v1539 = vunpack.c.h.b16 %v1452
        %v1540 = vunpack.c.l.b16 %v1453
        %v1541 = vunpack.c.h.b16 %v1453
        %v1542 = vunpack.c.l.b16 %v1454
        %v1543 = vunpack.c.h.b16 %v1454
        %v1544 = vunpack.c.l.b16 %v1455
        %v1545 = vunpack.c.h.b16 %v1455
        %v1546 = vunpack.c.l.b16 %v1456
        %v1547 = vunpack.c.h.b16 %v1456
        %v1548 = vunpack.c.l.b16 %v1457
        %v1549 = vunpack.c.h.b16 %v1457
        %v1550 = vunpack.c.l.b16 %v1458
        %v1551 = vunpack.c.h.b16 %v1458
        %v1552 = vunpack.c.l.b16 %v1459
        %v1553 = vunpack.c.h.b16 %v1459
        %v1554 = vunpack.c.l.b16 %v1460
        %v1555 = vunpack.c.h.b16 %v1460
        %v1556 = vunpack.c.l.b16 %v1461
        %v1557 = vunpack.c.h.b16 %v1461
        %v1558 = vpack.c.b16 %v1498, %v1494
        %v1559 = vpack.c.b16 %v1499, %v1495
        %v1560 = vpack.c.b16 %v1500, %v1496
        %v1561 = vpack.c.b16 %v1501, %v1497
        %v1562 = vpack.c.b16 %v1506, %v1502
        %v1563 = vpack.c.b16 %v1507, %v1503
        %v1564 = vpack.c.b16 %v1508, %v1504
        %v1565 = vpack.c.b16 %v1509, %v1505
        %v1566 = vpack.c.b16 %v1514, %v1510
        %v1567 = vpack.c.b16 %v1515, %v1511
        %v1568 = vpack.c.b16 %v1516, %v1512
        %v1569 = vpack.c.b16 %v1517, %v1513
        %v1570 = vpack.c.b16 %v1522, %v1518
        %v1571 = vpack.c.b16 %v1523, %v1519
        %v1572 = vpack.c.b16 %v1524, %v1520
        %v1573 = vpack.c.b16 %v1525, %v1521
        %v1574 = vpack.c.b16 %v1530, %v1526
        %v1575 = vpack.c.b16 %v1531, %v1527
        %v1576 = vpack.c.b16 %v1532, %v1528
        %v1577 = vpack.c.b16 %v1533, %v1529
        %v1578 = vpack.c.b16 %v1538, %v1534
        %v1579 = vpack.c.b16 %v1539, %v1535
        %v1580 = vpack.c.b16 %v1540, %v1536
        %v1581 = vpack.c.b16 %v1541, %v1537
        %v1582 = vpack.c.b16 %v1546, %v1542
        %v1583 = vpack.c.b16 %v1547, %v1543
        %v1584 = vpack.c.b16 %v1548, %v1544
        %v1585 = vpack.c.b16 %v1549, %v1545
        %v1586 = vpack.c.b16 %v1554, %v1550
        %v1587 = vpack.c.b16 %v1555, %v1551
        %v1588 = vpack.c.b16 %v1556, %v1552
        %v1589 = vpack.c.b16 %v1557, %v1553
        %1622 = vmatpush.bf16.msra.mxu0 %v1586
        %1623 = vmatpush.bf16.msra.mxu0 %v1582
        %1624 = vmatpush.bf16.msra.mxu0 %v1578
        %1625 = vmatpush.bf16.msra.mxu0 %v1574
        %1626 = vmatpush.bf16.msra.mxu0 %v1570
        %1627 = vmatpush.bf16.msra.mxu0 %v1566
        %1628 = vmatpush.bf16.msra.mxu0 %v1562
        %1629 = vmatpush.bf16.msra.mxu0 %v1558
        %1630 = vmatmul.bf16.gmra.mxu0 0
        %v1631 = vpop.f32.mrf.mxu0
        %v1632 = vadd.f32 0.0, %v1631
        %v1633 = vpop.f32.mrf.mxu0
        %1634 = vdwg.mxu0
        %1635 = vmatpush.bf16.msra.mxu0 %v1587
        %1636 = vmatpush.bf16.msra.mxu0 %v1583
        %1637 = vmatpush.bf16.msra.mxu0 %v1579
        %1638 = vmatpush.bf16.msra.mxu0 %v1575
        %1639 = vmatpush.bf16.msra.mxu0 %v1571
        %1640 = vmatpush.bf16.msra.mxu0 %v1567
        %1641 = vmatpush.bf16.msra.mxu0 %v1563
        %1642 = vmatpush.bf16.msra.mxu0 %v1559
        %1643 = vmatmul.bf16.gmra.mxu0 0
        %v1644 = vpop.f32.mrf.mxu0
        %v1645 = vadd.f32 0.0, %v1644
        %v1646 = vpop.f32.mrf.mxu0
        %1647 = vdwg.mxu0
        %1648 = vmatpush.bf16.msra.mxu0 %v1588
        %1649 = vmatpush.bf16.msra.mxu0 %v1584
        %1650 = vmatpush.bf16.msra.mxu0 %v1580
        %1651 = vmatpush.bf16.msra.mxu0 %v1576
        %1652 = vmatpush.bf16.msra.mxu0 %v1572
        %1653 = vmatpush.bf16.msra.mxu0 %v1568
        %1654 = vmatpush.bf16.msra.mxu0 %v1564
        %1655 = vmatpush.bf16.msra.mxu0 %v1560
        %1656 = vmatmul.bf16.gmra.mxu0 0
        %v1657 = vpop.f32.mrf.mxu0
        %v1658 = vadd.f32 0.0, %v1657
        %v1659 = vpop.f32.mrf.mxu0
        %1660 = vdwg.mxu0
        %1661 = vmatpush.bf16.msra.mxu0 %v1589
        %1662 = vmatpush.bf16.msra.mxu0 %v1585
        %1663 = vmatpush.bf16.msra.mxu0 %v1581
        %1664 = vmatpush.bf16.msra.mxu0 %v1577
        %1665 = vmatpush.bf16.msra.mxu0 %v1573
        %1666 = vmatpush.bf16.msra.mxu0 %v1569
        %1667 = vmatpush.bf16.msra.mxu0 %v1565
        %1668 = vmatpush.bf16.msra.mxu0 %v1561
        %1669 = vmatmul.bf16.gmra.mxu0 0
        %v1670 = vpop.f32.mrf.mxu0
        %v1671 = vadd.f32 0.0, %v1670
        %v1672 = vpop.f32.mrf.mxu0
        %1673 = vdwg.mxu0
        %v1674 = vadd.f32 %v1426, %v1632
        %v1675 = vadd.f32 %v1427, %v1645
        %v1676 = vadd.f32 %v1428, %v1658
        %v1677 = vadd.f32 %v1429, %v1671
        %v1678 = vxor.u32 %v1674, 2147483648
        %v1679 = vmul.f32 %v1678, 1.442695
        %v1680 = vpow.pop %v1679
        %v1681 = vadd.f32 %v1680, 1.0
        %v1682 = vrcp.pop %v1681
        %v1683 = vmul.f32 %v1681, %v1682
        %v1684 = vsub.f32 1.0, %v1683
        %v1685 = vmul.f32 %v1682, %v1684
        %v1686 = vadd.f32 %v1682, %v1685
        %vm1687 = vweird.f32 %v1681
        %vm1688 = vweird.f32 %v1682
        %vm1689 = vmor %vm1687, %vm1688
        %v1690 = vsel %vm1689, %v1682, %v1686
        %v1691 = vand.u32 2147483647, %v1681
        %vm1692 = vcmp.eq.f32.partialorder %v1691, 8.507059e+37
        %v1693 = vand.u32 %v1681, 2147483648
        %v1694 = vor.u32 1.1754944e-38, %v1693
        %v1695 = vsel %vm1692, %v1694, %v1690
        %v1696 = vmul.f32 1.0, %v1695
        %v1697 = vxor.u32 %v1675, 2147483648
        %v1698 = vmul.f32 %v1697, 1.442695
        %v1699 = vpow.pop %v1698
        %v1700 = vadd.f32 %v1699, 1.0
        %v1701 = vrcp.pop %v1700
        %v1702 = vmul.f32 %v1700, %v1701
        %v1703 = vsub.f32 1.0, %v1702
        %v1704 = vmul.f32 %v1701, %v1703
        %v1705 = vadd.f32 %v1701, %v1704
        %vm1706 = vweird.f32 %v1700
        %vm1707 = vweird.f32 %v1701
        %vm1708 = vmor %vm1706, %vm1707
        %v1709 = vsel %vm1708, %v1701, %v1705
        %v1710 = vand.u32 2147483647, %v1700
        %vm1711 = vcmp.eq.f32.partialorder %v1710, 8.507059e+37
        %v1712 = vand.u32 %v1700, 2147483648
        %v1713 = vor.u32 1.1754944e-38, %v1712
        %v1714 = vsel %vm1711, %v1713, %v1709
        %v1715 = vmul.f32 1.0, %v1714
        %v1716 = vtanh.pop %v1676
        %v1717 = vxor.u32 %v1677, 2147483648
        %v1718 = vmul.f32 %v1717, 1.442695
        %v1719 = vpow.pop %v1718
        %v1720 = vadd.f32 %v1719, 1.0
        %v1721 = vrcp.pop %v1720
        %v1722 = vmul.f32 %v1720, %v1721
        %v1723 = vsub.f32 1.0, %v1722
        %v1724 = vmul.f32 %v1721, %v1723
        %v1725 = vadd.f32 %v1721, %v1724
        %vm1726 = vweird.f32 %v1720
        %vm1727 = vweird.f32 %v1721
        %vm1728 = vmor %vm1726, %vm1727
        %v1729 = vsel %vm1728, %v1721, %v1725
        %v1730 = vand.u32 2147483647, %v1720
        %vm1731 = vcmp.eq.f32.partialorder %v1730, 8.507059e+37
        %v1732 = vand.u32 %v1720, 2147483648
        %v1733 = vor.u32 1.1754944e-38, %v1732
        %v1734 = vsel %vm1731, %v1733, %v1729
        %v1735 = vmul.f32 1.0, %v1734
        %v1736 = vmul.f32 %v1715, 0.0
        %v1737 = vmul.f32 %v1696, %v1716
        %v1738 = vadd.f32 %v1736, %v1737
        %v1739 = vtanh.pop %v1738
        %v1740 = vmul.f32 %v1735, %v1739
        %v1741 = vpack.c.bf16 %v1740, %v1740
        %1742 = vmatpush.bf16.msra.mxu0 %v1586
        %1743 = vmatpush.bf16.msra.mxu0 %v1582
        %1744 = vmatpush.bf16.msra.mxu0 %v1578
        %1745 = vmatpush.bf16.msra.mxu0 %v1574
        %1746 = vmatpush.bf16.msra.mxu0 %v1570
        %1747 = vmatpush.bf16.msra.mxu0 %v1566
        %1748 = vmatpush.bf16.msra.mxu0 %v1562
        %1749 = vmatpush.bf16.msra.mxu0 %v1558
        %1750 = vmatmul.bf16.gmra.mxu0 %v1741
        %v1751 = vpop.f32.mrf.mxu0
        %v1752 = vadd.f32 0.0, %v1751
        %v1753 = vpop.f32.mrf.mxu0
        %1754 = vdwg.mxu0
        %1755 = vmatpush.bf16.msra.mxu0 %v1587
        %1756 = vmatpush.bf16.msra.mxu0 %v1583
        %1757 = vmatpush.bf16.msra.mxu0 %v1579
        %1758 = vmatpush.bf16.msra.mxu0 %v1575
        %1759 = vmatpush.bf16.msra.mxu0 %v1571
        %1760 = vmatpush.bf16.msra.mxu0 %v1567
        %1761 = vmatpush.bf16.msra.mxu0 %v1563
        %1762 = vmatpush.bf16.msra.mxu0 %v1559
        %1763 = vmatmul.bf16.gmra.mxu0 %v1741
        %v1764 = vpop.f32.mrf.mxu0
        %v1765 = vadd.f32 0.0, %v1764
        %v1766 = vpop.f32.mrf.mxu0
        %1767 = vdwg.mxu0
        %1768 = vmatpush.bf16.msra.mxu0 %v1588
        %1769 = vmatpush.bf16.msra.mxu0 %v1584
        %1770 = vmatpush.bf16.msra.mxu0 %v1580
        %1771 = vmatpush.bf16.msra.mxu0 %v1576
        %1772 = vmatpush.bf16.msra.mxu0 %v1572
        %1773 = vmatpush.bf16.msra.mxu0 %v1568
        %1774 = vmatpush.bf16.msra.mxu0 %v1564
        %1775 = vmatpush.bf16.msra.mxu0 %v1560
        %1776 = vmatmul.bf16.gmra.mxu0 %v1741
        %v1777 = vpop.f32.mrf.mxu0
        %v1778 = vadd.f32 0.0, %v1777
        %v1779 = vpop.f32.mrf.mxu0
        %1780 = vdwg.mxu0
        %1781 = vmatpush.bf16.msra.mxu0 %v1589
        %1782 = vmatpush.bf16.msra.mxu0 %v1585
        %1783 = vmatpush.bf16.msra.mxu0 %v1581
        %1784 = vmatpush.bf16.msra.mxu0 %v1577
        %1785 = vmatpush.bf16.msra.mxu0 %v1573
        %1786 = vmatpush.bf16.msra.mxu0 %v1569
        %1787 = vmatpush.bf16.msra.mxu0 %v1565
        %1788 = vmatpush.bf16.msra.mxu0 %v1561
        %1789 = vmatmul.bf16.gmra.mxu0 %v1741
        %v1790 = vpop.f32.mrf.mxu0
        %v1791 = vadd.f32 0.0, %v1790
        %v1792 = vpop.f32.mrf.mxu0
        %1793 = vdwg.mxu0
        %v1798 = vrot.slane %v1752, 7
        %v1799 = vrot.slane %v1765, 7
        %v1800 = vrot.slane %v1778, 7
        %v1801 = vrot.slane %v1791, 7
        %v1806 = vadd.f32 %v1426, %v1798
        %v1807 = vadd.f32 %v1427, %v1799
        %v1808 = vadd.f32 %v1428, %v1800
        %v1809 = vadd.f32 %v1429, %v1801
        %v1810 = vxor.u32 %v1806, 2147483648
        %v1811 = vmul.f32 %v1810, 1.442695
        %v1812 = vpow.pop %v1811
        %v1813 = vadd.f32 %v1812, 1.0
        %v1814 = vrcp.pop %v1813
        %v1815 = vmul.f32 %v1813, %v1814
        %v1816 = vsub.f32 1.0, %v1815
        %v1817 = vmul.f32 %v1814, %v1816
        %v1818 = vadd.f32 %v1814, %v1817
        %vm1819 = vweird.f32 %v1813
        %vm1820 = vweird.f32 %v1814
        %vm1821 = vmor %vm1819, %vm1820
        %v1822 = vsel %vm1821, %v1814, %v1818
        %v1823 = vand.u32 2147483647, %v1813
        %vm1824 = vcmp.eq.f32.partialorder %v1823, 8.507059e+37
        %v1825 = vand.u32 %v1813, 2147483648
        %v1826 = vor.u32 1.1754944e-38, %v1825
        %v1827 = vsel %vm1824, %v1826, %v1822
        %v1828 = vmul.f32 1.0, %v1827
        %v1829 = vxor.u32 %v1807, 2147483648
        %v1830 = vmul.f32 %v1829, 1.442695
        %v1831 = vpow.pop %v1830
        %v1832 = vadd.f32 %v1831, 1.0
        %v1833 = vrcp.pop %v1832
        %v1834 = vmul.f32 %v1832, %v1833
        %v1835 = vsub.f32 1.0, %v1834
        %v1836 = vmul.f32 %v1833, %v1835
        %v1837 = vadd.f32 %v1833, %v1836
        %vm1838 = vweird.f32 %v1832
        %vm1839 = vweird.f32 %v1833
        %vm1840 = vmor %vm1838, %vm1839
        %v1841 = vsel %vm1840, %v1833, %v1837
        %v1842 = vand.u32 2147483647, %v1832
        %vm1843 = vcmp.eq.f32.partialorder %v1842, 8.507059e+37
        %v1844 = vand.u32 %v1832, 2147483648
        %v1845 = vor.u32 1.1754944e-38, %v1844
        %v1846 = vsel %vm1843, %v1845, %v1841
        %v1847 = vmul.f32 1.0, %v1846
        %v1848 = vtanh.pop %v1808
        %v1849 = vxor.u32 %v1809, 2147483648
        %v1850 = vmul.f32 %v1849, 1.442695
        %v1851 = vpow.pop %v1850
        %v1852 = vadd.f32 %v1851, 1.0
        %v1853 = vrcp.pop %v1852
        %v1854 = vmul.f32 %v1852, %v1853
        %v1855 = vsub.f32 1.0, %v1854
        %v1856 = vmul.f32 %v1853, %v1855
        %v1857 = vadd.f32 %v1853, %v1856
        %vm1858 = vweird.f32 %v1852
        %vm1859 = vweird.f32 %v1853
        %vm1860 = vmor %vm1858, %vm1859
        %v1861 = vsel %vm1860, %v1853, %v1857
        %v1862 = vand.u32 2147483647, %v1852
        %vm1863 = vcmp.eq.f32.partialorder %v1862, 8.507059e+37
        %v1864 = vand.u32 %v1852, 2147483648
        %v1865 = vor.u32 1.1754944e-38, %v1864
        %v1866 = vsel %vm1863, %v1865, %v1861
        %v1867 = vmul.f32 1.0, %v1866
        %v1869 = vrot.slane %v1738, 7
        %v1871 = vmul.f32 %v1847, %v1869
        %v1872 = vmul.f32 %v1828, %v1848
        %v1873 = vadd.f32 %v1871, %v1872
        %v1874 = vtanh.pop %v1873
        %v1875 = vmul.f32 %v1867, %v1874
        %v1876 = vpack.c.bf16 %v1875, %v1875
        %v1878 = vshrl.u32 %v1876, 16
        %1881 = vmatpush.bf16.msra.mxu0 %v1586
        %1882 = vmatpush.bf16.msra.mxu0 %v1582
        %1883 = vmatpush.bf16.msra.mxu0 %v1578
        %1884 = vmatpush.bf16.msra.mxu0 %v1574
        %1885 = vmatpush.bf16.msra.mxu0 %v1570
        %1886 = vmatpush.bf16.msra.mxu0 %v1566
        %1887 = vmatpush.bf16.msra.mxu0 %v1562
        %1888 = vmatpush.bf16.msra.mxu0 %v1558
        %1889 = vmatmul.bf16.gmra.mxu0 %v1878
        %v1890 = vpop.f32.mrf.mxu0
        %v1891 = vadd.f32 0.0, %v1890
        %v1892 = vpop.f32.mrf.mxu0
        %1893 = vdwg.mxu0
        %1894 = vmatpush.bf16.msra.mxu0 %v1587
        %1895 = vmatpush.bf16.msra.mxu0 %v1583
        %1896 = vmatpush.bf16.msra.mxu0 %v1579
        %1897 = vmatpush.bf16.msra.mxu0 %v1575
        %1898 = vmatpush.bf16.msra.mxu0 %v1571
        %1899 = vmatpush.bf16.msra.mxu0 %v1567
        %1900 = vmatpush.bf16.msra.mxu0 %v1563
        %1901 = vmatpush.bf16.msra.mxu0 %v1559
        %1902 = vmatmul.bf16.gmra.mxu0 %v1878
        %v1903 = vpop.f32.mrf.mxu0
        %v1904 = vadd.f32 0.0, %v1903
        %v1905 = vpop.f32.mrf.mxu0
        %1906 = vdwg.mxu0
        %1907 = vmatpush.bf16.msra.mxu0 %v1588
        %1908 = vmatpush.bf16.msra.mxu0 %v1584
        %1909 = vmatpush.bf16.msra.mxu0 %v1580
        %1910 = vmatpush.bf16.msra.mxu0 %v1576
        %1911 = vmatpush.bf16.msra.mxu0 %v1572
        %1912 = vmatpush.bf16.msra.mxu0 %v1568
        %1913 = vmatpush.bf16.msra.mxu0 %v1564
        %1914 = vmatpush.bf16.msra.mxu0 %v1560
        %1915 = vmatmul.bf16.gmra.mxu0 %v1878
        %v1916 = vpop.f32.mrf.mxu0
        %v1917 = vadd.f32 0.0, %v1916
        %v1918 = vpop.f32.mrf.mxu0
        %1919 = vdwg.mxu0
        %1920 = vmatpush.bf16.msra.mxu0 %v1589
        %1921 = vmatpush.bf16.msra.mxu0 %v1585
        %1922 = vmatpush.bf16.msra.mxu0 %v1581
        %1923 = vmatpush.bf16.msra.mxu0 %v1577
        %1924 = vmatpush.bf16.msra.mxu0 %v1573
        %1925 = vmatpush.bf16.msra.mxu0 %v1569
        %1926 = vmatpush.bf16.msra.mxu0 %v1565
        %1927 = vmatpush.bf16.msra.mxu0 %v1561
        %1928 = vmatmul.bf16.gmra.mxu0 %v1878
        %v1929 = vpop.f32.mrf.mxu0
        %v1930 = vadd.f32 0.0, %v1929
        %v1931 = vpop.f32.mrf.mxu0
        %1932 = vdwg.mxu0
        %v1937 = vrot.slane %v1891, 6
        %v1938 = vrot.slane %v1904, 6
        %v1939 = vrot.slane %v1917, 6
        %v1940 = vrot.slane %v1930, 6
        %v1945 = vadd.f32 %v1426, %v1937
        %v1946 = vadd.f32 %v1427, %v1938
        %v1947 = vadd.f32 %v1428, %v1939
        %v1948 = vadd.f32 %v1429, %v1940
        %v1949 = vxor.u32 %v1945, 2147483648
        %v1950 = vmul.f32 %v1949, 1.442695
        %v1951 = vpow.pop %v1950
        %v1952 = vadd.f32 %v1951, 1.0
        %v1953 = vrcp.pop %v1952
        %v1954 = vmul.f32 %v1952, %v1953
        %v1955 = vsub.f32 1.0, %v1954
        %v1956 = vmul.f32 %v1953, %v1955
        %v1957 = vadd.f32 %v1953, %v1956
        %vm1958 = vweird.f32 %v1952
        %vm1959 = vweird.f32 %v1953
        %vm1960 = vmor %vm1958, %vm1959
        %v1961 = vsel %vm1960, %v1953, %v1957
        %v1962 = vand.u32 2147483647, %v1952
        %vm1963 = vcmp.eq.f32.partialorder %v1962, 8.507059e+37
        %v1964 = vand.u32 %v1952, 2147483648
        %v1965 = vor.u32 1.1754944e-38, %v1964
        %v1966 = vsel %vm1963, %v1965, %v1961
        %v1967 = vmul.f32 1.0, %v1966
        %v1968 = vxor.u32 %v1946, 2147483648
        %v1969 = vmul.f32 %v1968, 1.442695
        %v1970 = vpow.pop %v1969
        %v1971 = vadd.f32 %v1970, 1.0
        %v1972 = vrcp.pop %v1971
        %v1973 = vmul.f32 %v1971, %v1972
        %v1974 = vsub.f32 1.0, %v1973
        %v1975 = vmul.f32 %v1972, %v1974
        %v1976 = vadd.f32 %v1972, %v1975
        %vm1977 = vweird.f32 %v1971
        %vm1978 = vweird.f32 %v1972
        %vm1979 = vmor %vm1977, %vm1978
        %v1980 = vsel %vm1979, %v1972, %v1976
        %v1981 = vand.u32 2147483647, %v1971
        %vm1982 = vcmp.eq.f32.partialorder %v1981, 8.507059e+37
        %v1983 = vand.u32 %v1971, 2147483648
        %v1984 = vor.u32 1.1754944e-38, %v1983
        %v1985 = vsel %vm1982, %v1984, %v1980
        %v1986 = vmul.f32 1.0, %v1985
        %v1987 = vtanh.pop %v1947
        %v1988 = vxor.u32 %v1948, 2147483648
        %v1989 = vmul.f32 %v1988, 1.442695
        %v1990 = vpow.pop %v1989
        %v1991 = vadd.f32 %v1990, 1.0
        %v1992 = vrcp.pop %v1991
        %v1993 = vmul.f32 %v1991, %v1992
        %v1994 = vsub.f32 1.0, %v1993
        %v1995 = vmul.f32 %v1992, %v1994
        %v1996 = vadd.f32 %v1992, %v1995
        %vm1997 = vweird.f32 %v1991
        %vm1998 = vweird.f32 %v1992
        %vm1999 = vmor %vm1997, %vm1998
        %v2000 = vsel %vm1999, %v1992, %v1996
        %v2001 = vand.u32 2147483647, %v1991
        %vm2002 = vcmp.eq.f32.partialorder %v2001, 8.507059e+37
        %v2003 = vand.u32 %v1991, 2147483648
        %v2004 = vor.u32 1.1754944e-38, %v2003
        %v2005 = vsel %vm2002, %v2004, %v2000
        %v2006 = vmul.f32 1.0, %v2005
        %v2008 = vrot.slane %v1873, 7
        %v2010 = vmul.f32 %v1986, %v2008
        %v2011 = vmul.f32 %v1967, %v1987
        %v2012 = vadd.f32 %v2010, %v2011
        %v2013 = vtanh.pop %v2012
        %v2014 = vmul.f32 %v2006, %v2013
        %v2015 = vpack.c.bf16 %v2014, %v2014
        %v2017 = vrot.slane %v2015, 1
        %2019 = vmatpush.bf16.msra.mxu0 %v1586
        %2020 = vmatpush.bf16.msra.mxu0 %v1582
        %2021 = vmatpush.bf16.msra.mxu0 %v1578
        %2022 = vmatpush.bf16.msra.mxu0 %v1574
        %2023 = vmatpush.bf16.msra.mxu0 %v1570
        %2024 = vmatpush.bf16.msra.mxu0 %v1566
        %2025 = vmatpush.bf16.msra.mxu0 %v1562
        %2026 = vmatpush.bf16.msra.mxu0 %v1558
        %2027 = vmatmul.bf16.gmra.mxu0 %v2017
        %v2028 = vpop.f32.mrf.mxu0
        %v2029 = vadd.f32 0.0, %v2028
        %v2030 = vpop.f32.mrf.mxu0
        %2031 = vdwg.mxu0
        %2032 = vmatpush.bf16.msra.mxu0 %v1587
        %2033 = vmatpush.bf16.msra.mxu0 %v1583
        %2034 = vmatpush.bf16.msra.mxu0 %v1579
        %2035 = vmatpush.bf16.msra.mxu0 %v1575
        %2036 = vmatpush.bf16.msra.mxu0 %v1571
        %2037 = vmatpush.bf16.msra.mxu0 %v1567
        %2038 = vmatpush.bf16.msra.mxu0 %v1563
        %2039 = vmatpush.bf16.msra.mxu0 %v1559
        %2040 = vmatmul.bf16.gmra.mxu0 %v2017
        %v2041 = vpop.f32.mrf.mxu0
        %v2042 = vadd.f32 0.0, %v2041
        %v2043 = vpop.f32.mrf.mxu0
        %2044 = vdwg.mxu0
        %2045 = vmatpush.bf16.msra.mxu0 %v1588
        %2046 = vmatpush.bf16.msra.mxu0 %v1584
        %2047 = vmatpush.bf16.msra.mxu0 %v1580
        %2048 = vmatpush.bf16.msra.mxu0 %v1576
        %2049 = vmatpush.bf16.msra.mxu0 %v1572
        %2050 = vmatpush.bf16.msra.mxu0 %v1568
        %2051 = vmatpush.bf16.msra.mxu0 %v1564
        %2052 = vmatpush.bf16.msra.mxu0 %v1560
        %2053 = vmatmul.bf16.gmra.mxu0 %v2017
        %v2054 = vpop.f32.mrf.mxu0
        %v2055 = vadd.f32 0.0, %v2054
        %v2056 = vpop.f32.mrf.mxu0
        %2057 = vdwg.mxu0
        %2058 = vmatpush.bf16.msra.mxu0 %v1589
        %2059 = vmatpush.bf16.msra.mxu0 %v1585
        %2060 = vmatpush.bf16.msra.mxu0 %v1581
        %2061 = vmatpush.bf16.msra.mxu0 %v1577
        %2062 = vmatpush.bf16.msra.mxu0 %v1573
        %2063 = vmatpush.bf16.msra.mxu0 %v1569
        %2064 = vmatpush.bf16.msra.mxu0 %v1565
        %2065 = vmatpush.bf16.msra.mxu0 %v1561
        %2066 = vmatmul.bf16.gmra.mxu0 %v2017
        %v2067 = vpop.f32.mrf.mxu0
        %v2068 = vadd.f32 0.0, %v2067
        %v2069 = vpop.f32.mrf.mxu0
        %2070 = vdwg.mxu0
        %v2075 = vrot.slane %v2029, 5
        %v2076 = vrot.slane %v2042, 5
        %v2077 = vrot.slane %v2055, 5
        %v2078 = vrot.slane %v2068, 5
        %v2083 = vadd.f32 %v1426, %v2075
        %v2084 = vadd.f32 %v1427, %v2076
        %v2085 = vadd.f32 %v1428, %v2077
        %v2086 = vadd.f32 %v1429, %v2078
        %v2087 = vxor.u32 %v2083, 2147483648
        %v2088 = vmul.f32 %v2087, 1.442695
        %v2089 = vpow.pop %v2088
        %v2090 = vadd.f32 %v2089, 1.0
        %v2091 = vrcp.pop %v2090
        %v2092 = vmul.f32 %v2090, %v2091
        %v2093 = vsub.f32 1.0, %v2092
        %v2094 = vmul.f32 %v2091, %v2093
        %v2095 = vadd.f32 %v2091, %v2094
        %vm2096 = vweird.f32 %v2090
        %vm2097 = vweird.f32 %v2091
        %vm2098 = vmor %vm2096, %vm2097
        %v2099 = vsel %vm2098, %v2091, %v2095
        %v2100 = vand.u32 2147483647, %v2090
        %vm2101 = vcmp.eq.f32.partialorder %v2100, 8.507059e+37
        %v2102 = vand.u32 %v2090, 2147483648
        %v2103 = vor.u32 1.1754944e-38, %v2102
        %v2104 = vsel %vm2101, %v2103, %v2099
        %v2105 = vmul.f32 1.0, %v2104
        %v2106 = vxor.u32 %v2084, 2147483648
        %v2107 = vmul.f32 %v2106, 1.442695
        %v2108 = vpow.pop %v2107
        %v2109 = vadd.f32 %v2108, 1.0
        %v2110 = vrcp.pop %v2109
        %v2111 = vmul.f32 %v2109, %v2110
        %v2112 = vsub.f32 1.0, %v2111
        %v2113 = vmul.f32 %v2110, %v2112
        %v2114 = vadd.f32 %v2110, %v2113
        %vm2115 = vweird.f32 %v2109
        %vm2116 = vweird.f32 %v2110
        %vm2117 = vmor %vm2115, %vm2116
        %v2118 = vsel %vm2117, %v2110, %v2114
        %v2119 = vand.u32 2147483647, %v2109
        %vm2120 = vcmp.eq.f32.partialorder %v2119, 8.507059e+37
        %v2121 = vand.u32 %v2109, 2147483648
        %v2122 = vor.u32 1.1754944e-38, %v2121
        %v2123 = vsel %vm2120, %v2122, %v2118
        %v2124 = vmul.f32 1.0, %v2123
        %v2125 = vtanh.pop %v2085
        %v2126 = vxor.u32 %v2086, 2147483648
        %v2127 = vmul.f32 %v2126, 1.442695
        %v2128 = vpow.pop %v2127
        %v2129 = vadd.f32 %v2128, 1.0
        %v2130 = vrcp.pop %v2129
        %v2131 = vmul.f32 %v2129, %v2130
        %v2132 = vsub.f32 1.0, %v2131
        %v2133 = vmul.f32 %v2130, %v2132
        %v2134 = vadd.f32 %v2130, %v2133
        %vm2135 = vweird.f32 %v2129
        %vm2136 = vweird.f32 %v2130
        %vm2137 = vmor %vm2135, %vm2136
        %v2138 = vsel %vm2137, %v2130, %v2134
        %v2139 = vand.u32 2147483647, %v2129
        %vm2140 = vcmp.eq.f32.partialorder %v2139, 8.507059e+37
        %v2141 = vand.u32 %v2129, 2147483648
        %v2142 = vor.u32 1.1754944e-38, %v2141
        %v2143 = vsel %vm2140, %v2142, %v2138
        %v2144 = vmul.f32 1.0, %v2143
        %v2146 = vrot.slane %v2012, 7
        %v2148 = vmul.f32 %v2124, %v2146
        %v2149 = vmul.f32 %v2105, %v2125
        %v2150 = vadd.f32 %v2148, %v2149
        %v2151 = vtanh.pop %v2150
        %v2152 = vmul.f32 %v2144, %v2151
        %v2153 = vpack.c.bf16 %v2152, %v2152
        %v2155 = vshrl.u32 %v2153, 16
        %v2157 = vrot.slane %v2155, 1
        %2159 = vmatpush.bf16.msra.mxu0 %v1586
        %2160 = vmatpush.bf16.msra.mxu0 %v1582
        %2161 = vmatpush.bf16.msra.mxu0 %v1578
        %2162 = vmatpush.bf16.msra.mxu0 %v1574
        %2163 = vmatpush.bf16.msra.mxu0 %v1570
        %2164 = vmatpush.bf16.msra.mxu0 %v1566
        %2165 = vmatpush.bf16.msra.mxu0 %v1562
        %2166 = vmatpush.bf16.msra.mxu0 %v1558
        %2167 = vmatmul.bf16.gmra.mxu0 %v2157
        %v2168 = vpop.f32.mrf.mxu0
        %v2169 = vadd.f32 0.0, %v2168
        %v2170 = vpop.f32.mrf.mxu0
        %2171 = vdwg.mxu0
        %2172 = vmatpush.bf16.msra.mxu0 %v1587
        %2173 = vmatpush.bf16.msra.mxu0 %v1583
        %2174 = vmatpush.bf16.msra.mxu0 %v1579
        %2175 = vmatpush.bf16.msra.mxu0 %v1575
        %2176 = vmatpush.bf16.msra.mxu0 %v1571
        %2177 = vmatpush.bf16.msra.mxu0 %v1567
        %2178 = vmatpush.bf16.msra.mxu0 %v1563
        %2179 = vmatpush.bf16.msra.mxu0 %v1559
        %2180 = vmatmul.bf16.gmra.mxu0 %v2157
        %v2181 = vpop.f32.mrf.mxu0
        %v2182 = vadd.f32 0.0, %v2181
        %v2183 = vpop.f32.mrf.mxu0
        %2184 = vdwg.mxu0
        %2185 = vmatpush.bf16.msra.mxu0 %v1588
        %2186 = vmatpush.bf16.msra.mxu0 %v1584
        %2187 = vmatpush.bf16.msra.mxu0 %v1580
        %2188 = vmatpush.bf16.msra.mxu0 %v1576
        %2189 = vmatpush.bf16.msra.mxu0 %v1572
        %2190 = vmatpush.bf16.msra.mxu0 %v1568
        %2191 = vmatpush.bf16.msra.mxu0 %v1564
        %2192 = vmatpush.bf16.msra.mxu0 %v1560
        %2193 = vmatmul.bf16.gmra.mxu0 %v2157
        %v2194 = vpop.f32.mrf.mxu0
        %v2195 = vadd.f32 0.0, %v2194
        %v2196 = vpop.f32.mrf.mxu0
        %2197 = vdwg.mxu0
        %2198 = vmatpush.bf16.msra.mxu0 %v1589
        %2199 = vmatpush.bf16.msra.mxu0 %v1585
        %2200 = vmatpush.bf16.msra.mxu0 %v1581
        %2201 = vmatpush.bf16.msra.mxu0 %v1577
        %2202 = vmatpush.bf16.msra.mxu0 %v1573
        %2203 = vmatpush.bf16.msra.mxu0 %v1569
        %2204 = vmatpush.bf16.msra.mxu0 %v1565
        %2205 = vmatpush.bf16.msra.mxu0 %v1561
        %2206 = vmatmul.bf16.gmra.mxu0 %v2157
        %v2207 = vpop.f32.mrf.mxu0
        %v2208 = vadd.f32 0.0, %v2207
        %v2209 = vpop.f32.mrf.mxu0
        %2210 = vdwg.mxu0
        %v2215 = vrot.slane %v2169, 4
        %v2216 = vrot.slane %v2182, 4
        %v2217 = vrot.slane %v2195, 4
        %v2218 = vrot.slane %v2208, 4
        %v2223 = vadd.f32 %v1426, %v2215
        %v2224 = vadd.f32 %v1427, %v2216
        %v2225 = vadd.f32 %v1428, %v2217
        %v2226 = vadd.f32 %v1429, %v2218
        %v2227 = vxor.u32 %v2223, 2147483648
        %v2228 = vmul.f32 %v2227, 1.442695
        %v2229 = vpow.pop %v2228
        %v2230 = vadd.f32 %v2229, 1.0
        %v2231 = vrcp.pop %v2230
        %v2232 = vmul.f32 %v2230, %v2231
        %v2233 = vsub.f32 1.0, %v2232
        %v2234 = vmul.f32 %v2231, %v2233
        %v2235 = vadd.f32 %v2231, %v2234
        %vm2236 = vweird.f32 %v2230
        %vm2237 = vweird.f32 %v2231
        %vm2238 = vmor %vm2236, %vm2237
        %v2239 = vsel %vm2238, %v2231, %v2235
        %v2240 = vand.u32 2147483647, %v2230
        %vm2241 = vcmp.eq.f32.partialorder %v2240, 8.507059e+37
        %v2242 = vand.u32 %v2230, 2147483648
        %v2243 = vor.u32 1.1754944e-38, %v2242
        %v2244 = vsel %vm2241, %v2243, %v2239
        %v2245 = vmul.f32 1.0, %v2244
        %v2246 = vxor.u32 %v2224, 2147483648
        %v2247 = vmul.f32 %v2246, 1.442695
        %v2248 = vpow.pop %v2247
        %v2249 = vadd.f32 %v2248, 1.0
        %v2250 = vrcp.pop %v2249
        %v2251 = vmul.f32 %v2249, %v2250
        %v2252 = vsub.f32 1.0, %v2251
        %v2253 = vmul.f32 %v2250, %v2252
        %v2254 = vadd.f32 %v2250, %v2253
        %vm2255 = vweird.f32 %v2249
        %vm2256 = vweird.f32 %v2250
        %vm2257 = vmor %vm2255, %vm2256
        %v2258 = vsel %vm2257, %v2250, %v2254
        %v2259 = vand.u32 2147483647, %v2249
        %vm2260 = vcmp.eq.f32.partialorder %v2259, 8.507059e+37
        %v2261 = vand.u32 %v2249, 2147483648
        %v2262 = vor.u32 1.1754944e-38, %v2261
        %v2263 = vsel %vm2260, %v2262, %v2258
        %v2264 = vmul.f32 1.0, %v2263
        %v2265 = vtanh.pop %v2225
        %v2266 = vxor.u32 %v2226, 2147483648
        %v2267 = vmul.f32 %v2266, 1.442695
        %v2268 = vpow.pop %v2267
        %v2269 = vadd.f32 %v2268, 1.0
        %v2270 = vrcp.pop %v2269
        %v2271 = vmul.f32 %v2269, %v2270
        %v2272 = vsub.f32 1.0, %v2271
        %v2273 = vmul.f32 %v2270, %v2272
        %v2274 = vadd.f32 %v2270, %v2273
        %vm2275 = vweird.f32 %v2269
        %vm2276 = vweird.f32 %v2270
        %vm2277 = vmor %vm2275, %vm2276
        %v2278 = vsel %vm2277, %v2270, %v2274
        %v2279 = vand.u32 2147483647, %v2269
        %vm2280 = vcmp.eq.f32.partialorder %v2279, 8.507059e+37
        %v2281 = vand.u32 %v2269, 2147483648
        %v2282 = vor.u32 1.1754944e-38, %v2281
        %v2283 = vsel %vm2280, %v2282, %v2278
        %v2284 = vmul.f32 1.0, %v2283
        %v2286 = vrot.slane %v2150, 7
        %v2288 = vmul.f32 %v2264, %v2286
        %v2289 = vmul.f32 %v2245, %v2265
        %v2290 = vadd.f32 %v2288, %v2289
        %v2291 = vtanh.pop %v2290
        %v2292 = vmul.f32 %v2284, %v2291
        %v2293 = vpack.c.bf16 %v2292, %v2292
        %v2295 = vrot.slane %v2293, 2
        %2297 = vmatpush.bf16.msra.mxu0 %v1586
        %2298 = vmatpush.bf16.msra.mxu0 %v1582
        %2299 = vmatpush.bf16.msra.mxu0 %v1578
        %2300 = vmatpush.bf16.msra.mxu0 %v1574
        %2301 = vmatpush.bf16.msra.mxu0 %v1570
        %2302 = vmatpush.bf16.msra.mxu0 %v1566
        %2303 = vmatpush.bf16.msra.mxu0 %v1562
        %2304 = vmatpush.bf16.msra.mxu0 %v1558
        %2305 = vmatmul.bf16.gmra.mxu0 %v2295
        %v2306 = vpop.f32.mrf.mxu0
        %v2307 = vadd.f32 0.0, %v2306
        %v2308 = vpop.f32.mrf.mxu0
        %2309 = vdwg.mxu0
        %2310 = vmatpush.bf16.msra.mxu0 %v1587
        %2311 = vmatpush.bf16.msra.mxu0 %v1583
        %2312 = vmatpush.bf16.msra.mxu0 %v1579
        %2313 = vmatpush.bf16.msra.mxu0 %v1575
        %2314 = vmatpush.bf16.msra.mxu0 %v1571
        %2315 = vmatpush.bf16.msra.mxu0 %v1567
        %2316 = vmatpush.bf16.msra.mxu0 %v1563
        %2317 = vmatpush.bf16.msra.mxu0 %v1559
        %2318 = vmatmul.bf16.gmra.mxu0 %v2295
        %v2319 = vpop.f32.mrf.mxu0
        %v2320 = vadd.f32 0.0, %v2319
        %v2321 = vpop.f32.mrf.mxu0
        %2322 = vdwg.mxu0
        %2323 = vmatpush.bf16.msra.mxu0 %v1588
        %2324 = vmatpush.bf16.msra.mxu0 %v1584
        %2325 = vmatpush.bf16.msra.mxu0 %v1580
        %2326 = vmatpush.bf16.msra.mxu0 %v1576
        %2327 = vmatpush.bf16.msra.mxu0 %v1572
        %2328 = vmatpush.bf16.msra.mxu0 %v1568
        %2329 = vmatpush.bf16.msra.mxu0 %v1564
        %2330 = vmatpush.bf16.msra.mxu0 %v1560
        %2331 = vmatmul.bf16.gmra.mxu0 %v2295
        %v2332 = vpop.f32.mrf.mxu0
        %v2333 = vadd.f32 0.0, %v2332
        %v2334 = vpop.f32.mrf.mxu0
        %2335 = vdwg.mxu0
        %2336 = vmatpush.bf16.msra.mxu0 %v1589
        %2337 = vmatpush.bf16.msra.mxu0 %v1585
        %2338 = vmatpush.bf16.msra.mxu0 %v1581
        %2339 = vmatpush.bf16.msra.mxu0 %v1577
        %2340 = vmatpush.bf16.msra.mxu0 %v1573
        %2341 = vmatpush.bf16.msra.mxu0 %v1569
        %2342 = vmatpush.bf16.msra.mxu0 %v1565
        %2343 = vmatpush.bf16.msra.mxu0 %v1561
        %2344 = vmatmul.bf16.gmra.mxu0 %v2295
        %v2345 = vpop.f32.mrf.mxu0
        %v2346 = vadd.f32 0.0, %v2345
        %v2347 = vpop.f32.mrf.mxu0
        %2348 = vdwg.mxu0
        %v2353 = vrot.slane %v2307, 3
        %v2354 = vrot.slane %v2320, 3
        %v2355 = vrot.slane %v2333, 3
        %v2356 = vrot.slane %v2346, 3
        %v2361 = vadd.f32 %v1426, %v2353
        %v2362 = vadd.f32 %v1427, %v2354
        %v2363 = vadd.f32 %v1428, %v2355
        %v2364 = vadd.f32 %v1429, %v2356
        %v2365 = vxor.u32 %v2361, 2147483648
        %v2366 = vmul.f32 %v2365, 1.442695
        %v2367 = vpow.pop %v2366
        %v2368 = vadd.f32 %v2367, 1.0
        %v2369 = vrcp.pop %v2368
        %v2370 = vmul.f32 %v2368, %v2369
        %v2371 = vsub.f32 1.0, %v2370
        %v2372 = vmul.f32 %v2369, %v2371
        %v2373 = vadd.f32 %v2369, %v2372
        %vm2374 = vweird.f32 %v2368
        %vm2375 = vweird.f32 %v2369
        %vm2376 = vmor %vm2374, %vm2375
        %v2377 = vsel %vm2376, %v2369, %v2373
        %v2378 = vand.u32 2147483647, %v2368
        %vm2379 = vcmp.eq.f32.partialorder %v2378, 8.507059e+37
        %v2380 = vand.u32 %v2368, 2147483648
        %v2381 = vor.u32 1.1754944e-38, %v2380
        %v2382 = vsel %vm2379, %v2381, %v2377
        %v2383 = vmul.f32 1.0, %v2382
        %v2384 = vxor.u32 %v2362, 2147483648
        %v2385 = vmul.f32 %v2384, 1.442695
        %v2386 = vpow.pop %v2385
        %v2387 = vadd.f32 %v2386, 1.0
        %v2388 = vrcp.pop %v2387
        %v2389 = vmul.f32 %v2387, %v2388
        %v2390 = vsub.f32 1.0, %v2389
        %v2391 = vmul.f32 %v2388, %v2390
        %v2392 = vadd.f32 %v2388, %v2391
        %vm2393 = vweird.f32 %v2387
        %vm2394 = vweird.f32 %v2388
        %vm2395 = vmor %vm2393, %vm2394
        %v2396 = vsel %vm2395, %v2388, %v2392
        %v2397 = vand.u32 2147483647, %v2387
        %vm2398 = vcmp.eq.f32.partialorder %v2397, 8.507059e+37
        %v2399 = vand.u32 %v2387, 2147483648
        %v2400 = vor.u32 1.1754944e-38, %v2399
        %v2401 = vsel %vm2398, %v2400, %v2396
        %v2402 = vmul.f32 1.0, %v2401
        %v2403 = vtanh.pop %v2363
        %v2404 = vxor.u32 %v2364, 2147483648
        %v2405 = vmul.f32 %v2404, 1.442695
        %v2406 = vpow.pop %v2405
        %v2407 = vadd.f32 %v2406, 1.0
        %v2408 = vrcp.pop %v2407
        %v2409 = vmul.f32 %v2407, %v2408
        %v2410 = vsub.f32 1.0, %v2409
        %v2411 = vmul.f32 %v2408, %v2410
        %v2412 = vadd.f32 %v2408, %v2411
        %vm2413 = vweird.f32 %v2407
        %vm2414 = vweird.f32 %v2408
        %vm2415 = vmor %vm2413, %vm2414
        %v2416 = vsel %vm2415, %v2408, %v2412
        %v2417 = vand.u32 2147483647, %v2407
        %vm2418 = vcmp.eq.f32.partialorder %v2417, 8.507059e+37
        %v2419 = vand.u32 %v2407, 2147483648
        %v2420 = vor.u32 1.1754944e-38, %v2419
        %v2421 = vsel %vm2418, %v2420, %v2416
        %v2422 = vmul.f32 1.0, %v2421
        %v2424 = vrot.slane %v2290, 7
        %v2426 = vmul.f32 %v2402, %v2424
        %v2427 = vmul.f32 %v2383, %v2403
        %v2428 = vadd.f32 %v2426, %v2427
        %v2429 = vtanh.pop %v2428
        %v2430 = vmul.f32 %v2422, %v2429
        %v2431 = vpack.c.bf16 %v2430, %v2430
        %v2433 = vshrl.u32 %v2431, 16
        %v2435 = vrot.slane %v2433, 2
        %2437 = vmatpush.bf16.msra.mxu0 %v1586
        %2438 = vmatpush.bf16.msra.mxu0 %v1582
        %2439 = vmatpush.bf16.msra.mxu0 %v1578
        %2440 = vmatpush.bf16.msra.mxu0 %v1574
        %2441 = vmatpush.bf16.msra.mxu0 %v1570
        %2442 = vmatpush.bf16.msra.mxu0 %v1566
        %2443 = vmatpush.bf16.msra.mxu0 %v1562
        %2444 = vmatpush.bf16.msra.mxu0 %v1558
        %2445 = vmatmul.bf16.gmra.mxu0 %v2435
        %v2446 = vpop.f32.mrf.mxu0
        %v2447 = vadd.f32 0.0, %v2446
        %v2448 = vpop.f32.mrf.mxu0
        %2449 = vdwg.mxu0
        %2450 = vmatpush.bf16.msra.mxu0 %v1587
        %2451 = vmatpush.bf16.msra.mxu0 %v1583
        %2452 = vmatpush.bf16.msra.mxu0 %v1579
        %2453 = vmatpush.bf16.msra.mxu0 %v1575
        %2454 = vmatpush.bf16.msra.mxu0 %v1571
        %2455 = vmatpush.bf16.msra.mxu0 %v1567
        %2456 = vmatpush.bf16.msra.mxu0 %v1563
        %2457 = vmatpush.bf16.msra.mxu0 %v1559
        %2458 = vmatmul.bf16.gmra.mxu0 %v2435
        %v2459 = vpop.f32.mrf.mxu0
        %v2460 = vadd.f32 0.0, %v2459
        %v2461 = vpop.f32.mrf.mxu0
        %2462 = vdwg.mxu0
        %2463 = vmatpush.bf16.msra.mxu0 %v1588
        %2464 = vmatpush.bf16.msra.mxu0 %v1584
        %2465 = vmatpush.bf16.msra.mxu0 %v1580
        %2466 = vmatpush.bf16.msra.mxu0 %v1576
        %2467 = vmatpush.bf16.msra.mxu0 %v1572
        %2468 = vmatpush.bf16.msra.mxu0 %v1568
        %2469 = vmatpush.bf16.msra.mxu0 %v1564
        %2470 = vmatpush.bf16.msra.mxu0 %v1560
        %2471 = vmatmul.bf16.gmra.mxu0 %v2435
        %v2472 = vpop.f32.mrf.mxu0
        %v2473 = vadd.f32 0.0, %v2472
        %v2474 = vpop.f32.mrf.mxu0
        %2475 = vdwg.mxu0
        %2476 = vmatpush.bf16.msra.mxu0 %v1589
        %2477 = vmatpush.bf16.msra.mxu0 %v1585
        %2478 = vmatpush.bf16.msra.mxu0 %v1581
        %2479 = vmatpush.bf16.msra.mxu0 %v1577
        %2480 = vmatpush.bf16.msra.mxu0 %v1573
        %2481 = vmatpush.bf16.msra.mxu0 %v1569
        %2482 = vmatpush.bf16.msra.mxu0 %v1565
        %2483 = vmatpush.bf16.msra.mxu0 %v1561
        %2484 = vmatmul.bf16.gmra.mxu0 %v2435
        %v2485 = vpop.f32.mrf.mxu0
        %v2486 = vadd.f32 0.0, %v2485
        %v2487 = vpop.f32.mrf.mxu0
        %2488 = vdwg.mxu0
        %v2493 = vrot.slane %v2447, 2
        %v2494 = vrot.slane %v2460, 2
        %v2495 = vrot.slane %v2473, 2
        %v2496 = vrot.slane %v2486, 2
        %v2501 = vadd.f32 %v1426, %v2493
        %v2502 = vadd.f32 %v1427, %v2494
        %v2503 = vadd.f32 %v1428, %v2495
        %v2504 = vadd.f32 %v1429, %v2496
        %v2505 = vxor.u32 %v2501, 2147483648
        %v2506 = vmul.f32 %v2505, 1.442695
        %v2507 = vpow.pop %v2506
        %v2508 = vadd.f32 %v2507, 1.0
        %v2509 = vrcp.pop %v2508
        %v2510 = vmul.f32 %v2508, %v2509
        %v2511 = vsub.f32 1.0, %v2510
        %v2512 = vmul.f32 %v2509, %v2511
        %v2513 = vadd.f32 %v2509, %v2512
        %vm2514 = vweird.f32 %v2508
        %vm2515 = vweird.f32 %v2509
        %vm2516 = vmor %vm2514, %vm2515
        %v2517 = vsel %vm2516, %v2509, %v2513
        %v2518 = vand.u32 2147483647, %v2508
        %vm2519 = vcmp.eq.f32.partialorder %v2518, 8.507059e+37
        %v2520 = vand.u32 %v2508, 2147483648
        %v2521 = vor.u32 1.1754944e-38, %v2520
        %v2522 = vsel %vm2519, %v2521, %v2517
        %v2523 = vmul.f32 1.0, %v2522
        %v2524 = vxor.u32 %v2502, 2147483648
        %v2525 = vmul.f32 %v2524, 1.442695
        %v2526 = vpow.pop %v2525
        %v2527 = vadd.f32 %v2526, 1.0
        %v2528 = vrcp.pop %v2527
        %v2529 = vmul.f32 %v2527, %v2528
        %v2530 = vsub.f32 1.0, %v2529
        %v2531 = vmul.f32 %v2528, %v2530
        %v2532 = vadd.f32 %v2528, %v2531
        %vm2533 = vweird.f32 %v2527
        %vm2534 = vweird.f32 %v2528
        %vm2535 = vmor %vm2533, %vm2534
        %v2536 = vsel %vm2535, %v2528, %v2532
        %v2537 = vand.u32 2147483647, %v2527
        %vm2538 = vcmp.eq.f32.partialorder %v2537, 8.507059e+37
        %v2539 = vand.u32 %v2527, 2147483648
        %v2540 = vor.u32 1.1754944e-38, %v2539
        %v2541 = vsel %vm2538, %v2540, %v2536
        %v2542 = vmul.f32 1.0, %v2541
        %v2543 = vtanh.pop %v2503
        %v2544 = vxor.u32 %v2504, 2147483648
        %v2545 = vmul.f32 %v2544, 1.442695
        %v2546 = vpow.pop %v2545
        %v2547 = vadd.f32 %v2546, 1.0
        %v2548 = vrcp.pop %v2547
        %v2549 = vmul.f32 %v2547, %v2548
        %v2550 = vsub.f32 1.0, %v2549
        %v2551 = vmul.f32 %v2548, %v2550
        %v2552 = vadd.f32 %v2548, %v2551
        %vm2553 = vweird.f32 %v2547
        %vm2554 = vweird.f32 %v2548
        %vm2555 = vmor %vm2553, %vm2554
        %v2556 = vsel %vm2555, %v2548, %v2552
        %v2557 = vand.u32 2147483647, %v2547
        %vm2558 = vcmp.eq.f32.partialorder %v2557, 8.507059e+37
        %v2559 = vand.u32 %v2547, 2147483648
        %v2560 = vor.u32 1.1754944e-38, %v2559
        %v2561 = vsel %vm2558, %v2560, %v2556
        %v2562 = vmul.f32 1.0, %v2561
        %v2564 = vrot.slane %v2428, 7
        %v2566 = vmul.f32 %v2542, %v2564
        %v2567 = vmul.f32 %v2523, %v2543
        %v2568 = vadd.f32 %v2566, %v2567
        %v2569 = vtanh.pop %v2568
        %v2570 = vmul.f32 %v2562, %v2569
        %v2571 = vpack.c.bf16 %v2570, %v2570
        %v2573 = vrot.slane %v2571, 3
        %2575 = vmatpush.bf16.msra.mxu0 %v1586
        %2576 = vmatpush.bf16.msra.mxu0 %v1582
        %2577 = vmatpush.bf16.msra.mxu0 %v1578
        %2578 = vmatpush.bf16.msra.mxu0 %v1574
        %2579 = vmatpush.bf16.msra.mxu0 %v1570
        %2580 = vmatpush.bf16.msra.mxu0 %v1566
        %2581 = vmatpush.bf16.msra.mxu0 %v1562
        %2582 = vmatpush.bf16.msra.mxu0 %v1558
        %2583 = vmatmul.bf16.gmra.mxu0 %v2573
        %v2584 = vpop.f32.mrf.mxu0
        %v2585 = vadd.f32 0.0, %v2584
        %v2586 = vpop.f32.mrf.mxu0
        %2587 = vdwg.mxu0
        %2588 = vmatpush.bf16.msra.mxu0 %v1587
        %2589 = vmatpush.bf16.msra.mxu0 %v1583
        %2590 = vmatpush.bf16.msra.mxu0 %v1579
        %2591 = vmatpush.bf16.msra.mxu0 %v1575
        %2592 = vmatpush.bf16.msra.mxu0 %v1571
        %2593 = vmatpush.bf16.msra.mxu0 %v1567
        %2594 = vmatpush.bf16.msra.mxu0 %v1563
        %2595 = vmatpush.bf16.msra.mxu0 %v1559
        %2596 = vmatmul.bf16.gmra.mxu0 %v2573
        %v2597 = vpop.f32.mrf.mxu0
        %v2598 = vadd.f32 0.0, %v2597
        %v2599 = vpop.f32.mrf.mxu0
        %2600 = vdwg.mxu0
        %2601 = vmatpush.bf16.msra.mxu0 %v1588
        %2602 = vmatpush.bf16.msra.mxu0 %v1584
        %2603 = vmatpush.bf16.msra.mxu0 %v1580
        %2604 = vmatpush.bf16.msra.mxu0 %v1576
        %2605 = vmatpush.bf16.msra.mxu0 %v1572
        %2606 = vmatpush.bf16.msra.mxu0 %v1568
        %2607 = vmatpush.bf16.msra.mxu0 %v1564
        %2608 = vmatpush.bf16.msra.mxu0 %v1560
        %2609 = vmatmul.bf16.gmra.mxu0 %v2573
        %v2610 = vpop.f32.mrf.mxu0
        %v2611 = vadd.f32 0.0, %v2610
        %v2612 = vpop.f32.mrf.mxu0
        %2613 = vdwg.mxu0
        %2614 = vmatpush.bf16.msra.mxu0 %v1589
        %2615 = vmatpush.bf16.msra.mxu0 %v1585
        %2616 = vmatpush.bf16.msra.mxu0 %v1581
        %2617 = vmatpush.bf16.msra.mxu0 %v1577
        %2618 = vmatpush.bf16.msra.mxu0 %v1573
        %2619 = vmatpush.bf16.msra.mxu0 %v1569
        %2620 = vmatpush.bf16.msra.mxu0 %v1565
        %2621 = vmatpush.bf16.msra.mxu0 %v1561
        %2622 = vmatmul.bf16.gmra.mxu0 %v2573
        %v2623 = vpop.f32.mrf.mxu0
        %v2624 = vadd.f32 0.0, %v2623
        %v2625 = vpop.f32.mrf.mxu0
        %2626 = vdwg.mxu0
        %v2631 = vrot.slane %v2585, 1
        %v2632 = vrot.slane %v2598, 1
        %v2633 = vrot.slane %v2611, 1
        %v2634 = vrot.slane %v2624, 1
        %v2639 = vadd.f32 %v1426, %v2631
        %v2640 = vadd.f32 %v1427, %v2632
        %v2641 = vadd.f32 %v1428, %v2633
        %v2642 = vadd.f32 %v1429, %v2634
        %v2643 = vxor.u32 %v2639, 2147483648
        %v2644 = vmul.f32 %v2643, 1.442695
        %v2645 = vpow.pop %v2644
        %v2646 = vadd.f32 %v2645, 1.0
        %v2647 = vrcp.pop %v2646
        %v2648 = vmul.f32 %v2646, %v2647
        %v2649 = vsub.f32 1.0, %v2648
        %v2650 = vmul.f32 %v2647, %v2649
        %v2651 = vadd.f32 %v2647, %v2650
        %vm2652 = vweird.f32 %v2646
        %vm2653 = vweird.f32 %v2647
        %vm2654 = vmor %vm2652, %vm2653
        %v2655 = vsel %vm2654, %v2647, %v2651
        %v2656 = vand.u32 2147483647, %v2646
        %vm2657 = vcmp.eq.f32.partialorder %v2656, 8.507059e+37
        %v2658 = vand.u32 %v2646, 2147483648
        %v2659 = vor.u32 1.1754944e-38, %v2658
        %v2660 = vsel %vm2657, %v2659, %v2655
        %v2661 = vmul.f32 1.0, %v2660
        %v2662 = vxor.u32 %v2640, 2147483648
        %v2663 = vmul.f32 %v2662, 1.442695
        %v2664 = vpow.pop %v2663
        %v2665 = vadd.f32 %v2664, 1.0
        %v2666 = vrcp.pop %v2665
        %v2667 = vmul.f32 %v2665, %v2666
        %v2668 = vsub.f32 1.0, %v2667
        %v2669 = vmul.f32 %v2666, %v2668
        %v2670 = vadd.f32 %v2666, %v2669
        %vm2671 = vweird.f32 %v2665
        %vm2672 = vweird.f32 %v2666
        %vm2673 = vmor %vm2671, %vm2672
        %v2674 = vsel %vm2673, %v2666, %v2670
        %v2675 = vand.u32 2147483647, %v2665
        %vm2676 = vcmp.eq.f32.partialorder %v2675, 8.507059e+37
        %v2677 = vand.u32 %v2665, 2147483648
        %v2678 = vor.u32 1.1754944e-38, %v2677
        %v2679 = vsel %vm2676, %v2678, %v2674
        %v2680 = vmul.f32 1.0, %v2679
        %v2681 = vtanh.pop %v2641
        %v2682 = vxor.u32 %v2642, 2147483648
        %v2683 = vmul.f32 %v2682, 1.442695
        %v2684 = vpow.pop %v2683
        %v2685 = vadd.f32 %v2684, 1.0
        %v2686 = vrcp.pop %v2685
        %v2687 = vmul.f32 %v2685, %v2686
        %v2688 = vsub.f32 1.0, %v2687
        %v2689 = vmul.f32 %v2686, %v2688
        %v2690 = vadd.f32 %v2686, %v2689
        %vm2691 = vweird.f32 %v2685
        %vm2692 = vweird.f32 %v2686
        %vm2693 = vmor %vm2691, %vm2692
        %v2694 = vsel %vm2693, %v2686, %v2690
        %v2695 = vand.u32 2147483647, %v2685
        %vm2696 = vcmp.eq.f32.partialorder %v2695, 8.507059e+37
        %v2697 = vand.u32 %v2685, 2147483648
        %v2698 = vor.u32 1.1754944e-38, %v2697
        %v2699 = vsel %vm2696, %v2698, %v2694
        %v2700 = vmul.f32 1.0, %v2699
        %v2702 = vrot.slane %v2568, 7
        %v2704 = vmul.f32 %v2680, %v2702
        %v2705 = vmul.f32 %v2661, %v2681
        %v2706 = vadd.f32 %v2704, %v2705
        %v2707 = vtanh.pop %v2706
        %v2708 = vmul.f32 %v2700, %v2707
        %vm2709 = vcmp.lt.s32.totalorder %v1362, 64
        %v2710 = vsel %vm1327, %v1740, %v1875
        %v2711 = vsel %vm1230, %v2710, %v2014
        %v2712 = vsel %vm1336, %v2711, %v2152
        %v2713 = vsel %vm1341, %v2712, %v2292
        %v2714 = vsel %vm1346, %v2713, %v2430
        %v2715 = vsel %vm1351, %v2714, %v2570
        %v2716 = vsel %vm1356, %v2715, %v2708
        %v2718 = vrot.slane %v2708, 7
        %v2721 = vrot.slane %v2570, 5
        %v2724 = vrot.slane %v2430, 3
        %v2727 = vrot.slane %v2292, 1
        %v2730 = vrot.slane %v2152, 7
        %v2733 = vrot.slane %v2014, 5
        %v2736 = vrot.slane %v1875, 3
        %v2739 = vrot.slane %v1740, 1
        %v2741 = vsel %vm1327, %v2718, %v2721
        %v2742 = vsel %vm1230, %v2741, %v2724
        %v2743 = vsel %vm1336, %v2742, %v2727
        %v2744 = vsel %vm1341, %v2743, %v2730
        %v2745 = vsel %vm1346, %v2744, %v2733
        %v2746 = vsel %vm1351, %v2745, %v2736
        %v2747 = vsel %vm1356, %v2746, %v2739
        %v2748 = vsel %vm2709, 1, 0
        %vm2749 = vcmp.eq.s32.totalorder %v2748, 1
        %v2750 = vsel %vm2749, %v2716, %v2747
        %v2751 = vpack.c.bf16 %v2750, %v2750
        %v2752 = vld [vmem:[#allocation4] sm:$0xf]
        %v2753 = vld [vmem:[#allocation4 + $0x4] sm:$0xf]
        %v2754 = vld [vmem:[#allocation4 + $0x8] sm:$0xf]
        %v2755 = vld [vmem:[#allocation4 + $0xc] sm:$0xf]
        %v2756 = vld [vmem:[#allocation4 + $0x10] sm:$0xf]
        %v2757 = vld [vmem:[#allocation4 + $0x14] sm:$0xf]
        %v2758 = vld [vmem:[#allocation4 + $0x18] sm:$0xf]
        %v2759 = vld [vmem:[#allocation4 + $0x1c] sm:$0xf]
        %v2760 = vld [vmem:[#allocation4 + $0x20] sm:$0xf]
        %v2761 = vld [vmem:[#allocation4 + $0x24] sm:$0xf]
        %v2762 = vld [vmem:[#allocation4 + $0x28] sm:$0xf]
        %v2763 = vld [vmem:[#allocation4 + $0x2c] sm:$0xf]
        %v2764 = vld [vmem:[#allocation4 + $0x30] sm:$0xf]
        %v2765 = vld [vmem:[#allocation4 + $0x34] sm:$0xf]
        %v2766 = vld [vmem:[#allocation4 + $0x38] sm:$0xf]
        %v2767 = vld [vmem:[#allocation4 + $0x3c] sm:$0xf]
        %v2768 = vld [vmem:[#allocation6] sm:$0x1]
        %v2770 = vperm.slane %v2768, 0
        %v2788 = vunpack.c.l.b16 %v2752
        %v2789 = vunpack.c.l.b16 %v2753
        %v2790 = vunpack.c.l.b16 %v2754
        %v2791 = vunpack.c.l.b16 %v2755
        %v2792 = vunpack.c.l.b16 %v2756
        %v2793 = vunpack.c.l.b16 %v2757
        %v2794 = vunpack.c.l.b16 %v2758
        %v2795 = vunpack.c.l.b16 %v2759
        %v2796 = vunpack.c.l.b16 %v2760
        %v2797 = vunpack.c.l.b16 %v2761
        %v2798 = vunpack.c.l.b16 %v2762
        %v2799 = vunpack.c.l.b16 %v2763
        %v2800 = vunpack.c.l.b16 %v2764
        %v2801 = vunpack.c.l.b16 %v2765
        %v2802 = vunpack.c.l.b16 %v2766
        %v2803 = vunpack.c.l.b16 %v2767
        %v2804 = vpack.c.b16 %v2789, %v2788
        %v2805 = vpack.c.b16 %v2791, %v2790
        %v2806 = vpack.c.b16 %v2793, %v2792
        %v2807 = vpack.c.b16 %v2795, %v2794
        %v2808 = vpack.c.b16 %v2797, %v2796
        %v2809 = vpack.c.b16 %v2799, %v2798
        %v2810 = vpack.c.b16 %v2801, %v2800
        %v2811 = vpack.c.b16 %v2803, %v2802
        %2820 = vmatpush.bf16.msra.mxu0 %v2811
        %2821 = vmatpush.bf16.msra.mxu0 %v2810
        %2822 = vmatpush.bf16.msra.mxu0 %v2809
        %2823 = vmatpush.bf16.msra.mxu0 %v2808
        %2824 = vmatpush.bf16.msra.mxu0 %v2807
        %2825 = vmatpush.bf16.msra.mxu0 %v2806
        %2826 = vmatpush.bf16.msra.mxu0 %v2805
        %2827 = vmatpush.bf16.msra.mxu0 %v2804
        %2828 = vmatmul.bf16.gmra.mxu0 %v2751
        %v2829 = vpop.f32.mrf.mxu0
        %v2830 = vadd.f32 %v2770, %v2829
        %v2831 = vpop.f32.mrf.mxu0
        %2832 = vdwg.mxu0
        %v2833 = vld [vmem:[#allocation7] sm:$0xff]
        %v2834 = vld [vmem:[#allocation7 + $0x8] sm:$0xf]
        %v2835 = vld [vmem:[#allocation7 + $0xc] sm:$0xff]
        %v2836 = vld [vmem:[#allocation7 + $0x14] sm:$0xf]
        %v2837 = vld [vmem:[#allocation7 + $0x18] sm:$0xff]
        %v2838 = vld [vmem:[#allocation7 + $0x20] sm:$0xf]
        %v2839 = vld [vmem:[#allocation7 + $0x24] sm:$0xff]
        %v2840 = vld [vmem:[#allocation7 + $0x2c] sm:$0xf]
        %v2841 = vld [vmem:[#allocation7 + $0x30] sm:$0xff]
        %v2842 = vld [vmem:[#allocation7 + $0x38] sm:$0xf]
        %v2843 = vld [vmem:[#allocation7 + $0x3c] sm:$0xff]
        %v2844 = vld [vmem:[#allocation7 + $0x44] sm:$0xf]
        %v2845 = vld [vmem:[#allocation7 + $0x48] sm:$0xff]
        %v2846 = vld [vmem:[#allocation7 + $0x50] sm:$0xf]
        %v2847 = vld [vmem:[#allocation7 + $0x54] sm:$0xff]
        %v2848 = vld [vmem:[#allocation7 + $0x5c] sm:$0xf]
        %v2849 = vld [vmem:[#allocation7 + $0x60] sm:$0xff]
        %v2850 = vld [vmem:[#allocation7 + $0x68] sm:$0xf]
        %v2851 = vld [vmem:[#allocation7 + $0x6c] sm:$0xff]
        %v2852 = vld [vmem:[#allocation7 + $0x74] sm:$0xf]
        %v2853 = vld [vmem:[#allocation7 + $0x78] sm:$0xff]
        %v2854 = vld [vmem:[#allocation7 + $0x80] sm:$0xf]
        %v2855 = vld [vmem:[#allocation7 + $0x84] sm:$0xff]
        %v2856 = vld [vmem:[#allocation7 + $0x8c] sm:$0xf]
        %v2857 = vld [vmem:[#allocation7 + $0x90] sm:$0xff]
        %v2858 = vld [vmem:[#allocation7 + $0x98] sm:$0xf]
        %v2859 = vld [vmem:[#allocation7 + $0x9c] sm:$0xff]
        %v2860 = vld [vmem:[#allocation7 + $0xa4] sm:$0xf]
        %v2861 = vld [vmem:[#allocation7 + $0xa8] sm:$0xff]
        %v2862 = vld [vmem:[#allocation7 + $0xb0] sm:$0xf]
        %v2863 = vld [vmem:[#allocation7 + $0xb4] sm:$0xff]
        %v2864 = vld [vmem:[#allocation7 + $0xbc] sm:$0xf]
        %v2865 = vld [vmem:[%s15] sm:$0x7]
        %v2866 = vld [vmem:[#allocation9] sm:$0xf]
        %v2867 = vld [vmem:[#allocation9 + $0x4] sm:$0xf]
        %v2868 = vld [vmem:[#allocation9 + $0x8] sm:$0xf]
        %v2869 = vld [vmem:[#allocation9 + $0xc] sm:$0xf]
        %v2870 = vld [vmem:[#allocation9 + $0x10] sm:$0xf]
        %v2871 = vld [vmem:[#allocation9 + $0x14] sm:$0xf]
        %v2872 = vld [vmem:[#allocation9 + $0x18] sm:$0xf]
        %v2873 = vld [vmem:[#allocation9 + $0x1c] sm:$0xf]
        %v2874 = vld [vmem:[#allocation9 + $0x20] sm:$0xf]
        %v2875 = vld [vmem:[#allocation9 + $0x24] sm:$0xf]
        %v2876 = vld [vmem:[#allocation9 + $0x28] sm:$0xf]
        %v2877 = vld [vmem:[#allocation9 + $0x2c] sm:$0xf]
        %v2878 = vld [vmem:[#allocation9 + $0x30] sm:$0xf]
        %v2879 = vld [vmem:[#allocation9 + $0x34] sm:$0xf]
        %v2880 = vld [vmem:[#allocation9 + $0x38] sm:$0xf]
        %v2881 = vld [vmem:[#allocation9 + $0x3c] sm:$0xf]
        %v2882 = vld [vmem:[%s19] sm:$0x1]
        %v2883 = vld [vmem:[%s21] sm:$0x1]
        %v2884 = vld [vmem:[%s23] sm:$0x1]
        %v2885 = vld [vmem:[#allocation10] sm:$0xff]
        %v2886 = vld [vmem:[#allocation10 + $0x8] sm:$0xff]
        %v2887 = vld [vmem:[#allocation10 + $0x10] sm:$0xff]
        %v2888 = vld [vmem:[#allocation10 + $0x18] sm:$0xff]
        %v2889 = vld [vmem:[#allocation10 + $0x20] sm:$0xff]
        %v2890 = vld [vmem:[#allocation10 + $0x28] sm:$0xff]
        %v2891 = vld [vmem:[#allocation10 + $0x30] sm:$0xff]
        %v2892 = vld [vmem:[#allocation10 + $0x38] sm:$0xff]
        %v2893 = vld [vmem:[#allocation10 + $0x40] sm:$0xff]
        %v2894 = vld [vmem:[#allocation10 + $0x48] sm:$0xff]
        %v2895 = vld [vmem:[#allocation10 + $0x50] sm:$0xff]
        %v2896 = vld [vmem:[#allocation10 + $0x58] sm:$0xff]
        %v2897 = vld [vmem:[#allocation10 + $0x60] sm:$0xff]
        %v2898 = vld [vmem:[#allocation10 + $0x68] sm:$0xff]
        %v2899 = vld [vmem:[#allocation10 + $0x70] sm:$0xff]
        %v2900 = vld [vmem:[#allocation10 + $0x78] sm:$0xff]
        %v2901 = vld [vmem:[#allocation10 + $0x80] sm:$0xff]
        %v2902 = vld [vmem:[#allocation10 + $0x88] sm:$0xff]
        %v2903 = vld [vmem:[#allocation10 + $0x90] sm:$0xff]
        %v2904 = vld [vmem:[#allocation10 + $0x98] sm:$0xff]
        %v2905 = vld [vmem:[#allocation10 + $0xa0] sm:$0xff]
        %v2906 = vld [vmem:[#allocation10 + $0xa8] sm:$0xff]
        %v2907 = vld [vmem:[#allocation10 + $0xb0] sm:$0xff]
        %v2908 = vld [vmem:[#allocation10 + $0xb8] sm:$0xff]
        %v2909 = vld [vmem:[#allocation10 + $0xc0] sm:$0xff]
        %v2910 = vld [vmem:[#allocation10 + $0xc8] sm:$0xff]
        %v2911 = vld [vmem:[#allocation10 + $0xd0] sm:$0xff]
        %v2912 = vld [vmem:[#allocation10 + $0xd8] sm:$0xff]
        %v2913 = vld [vmem:[#allocation10 + $0xe0] sm:$0xff]
        %v2914 = vld [vmem:[#allocation10 + $0xe8] sm:$0xff]
        %v2915 = vld [vmem:[#allocation10 + $0xf0] sm:$0xff]
        %v2916 = vld [vmem:[#allocation10 + $0xf8] sm:$0xff]
        %v2917 = vld [vmem:[%s27] sm:$0xf]
        %v2918 = vld [vmem:[#allocation12] sm:$0xf]
        %v2919 = vld [vmem:[#allocation12 + $0x4] sm:$0xf]
        %v2920 = vld [vmem:[#allocation12 + $0x8] sm:$0xf]
        %v2921 = vld [vmem:[#allocation12 + $0xc] sm:$0xf]
        %v2922 = vld [vmem:[#allocation12 + $0x10] sm:$0xf]
        %v2923 = vld [vmem:[#allocation12 + $0x14] sm:$0xf]
        %v2924 = vld [vmem:[#allocation12 + $0x18] sm:$0xf]
        %v2925 = vld [vmem:[#allocation12 + $0x1c] sm:$0xf]
        %v2926 = vld [vmem:[#allocation12 + $0x20] sm:$0xf]
        %v2927 = vld [vmem:[#allocation12 + $0x24] sm:$0xf]
        %v2928 = vld [vmem:[#allocation12 + $0x28] sm:$0xf]
        %v2929 = vld [vmem:[#allocation12 + $0x2c] sm:$0xf]
        %v2930 = vld [vmem:[#allocation12 + $0x30] sm:$0xf]
        %v2931 = vld [vmem:[#allocation12 + $0x34] sm:$0xf]
        %v2932 = vld [vmem:[#allocation12 + $0x38] sm:$0xf]
        %v2933 = vld [vmem:[#allocation12 + $0x3c] sm:$0xf]
        %v2934 = vld [vmem:[#allocation12 + $0x40] sm:$0xf]
        %v2935 = vld [vmem:[#allocation12 + $0x44] sm:$0xf]
        %v2936 = vld [vmem:[#allocation12 + $0x48] sm:$0xf]
        %v2937 = vld [vmem:[#allocation12 + $0x4c] sm:$0xf]
        %v2938 = vld [vmem:[#allocation12 + $0x50] sm:$0xf]
        %v2939 = vld [vmem:[#allocation12 + $0x54] sm:$0xf]
        %v2940 = vld [vmem:[#allocation12 + $0x58] sm:$0xf]
        %v2941 = vld [vmem:[#allocation12 + $0x5c] sm:$0xf]
        %v2942 = vld [vmem:[#allocation12 + $0x60] sm:$0xf]
        %v2943 = vld [vmem:[#allocation12 + $0x64] sm:$0xf]
        %v2944 = vld [vmem:[#allocation12 + $0x68] sm:$0xf]
        %v2945 = vld [vmem:[#allocation12 + $0x6c] sm:$0xf]
        %v2946 = vld [vmem:[#allocation12 + $0x70] sm:$0xf]
        %v2947 = vld [vmem:[#allocation12 + $0x74] sm:$0xf]
        %v2948 = vld [vmem:[#allocation12 + $0x78] sm:$0xf]
        %v2949 = vld [vmem:[#allocation12 + $0x7c] sm:$0xf]
        %v2950 = vld [vmem:[#allocation12 + $0x80] sm:$0xf]
        %v2951 = vld [vmem:[#allocation12 + $0x84] sm:$0xf]
        %v2952 = vld [vmem:[#allocation12 + $0x88] sm:$0xf]
        %v2953 = vld [vmem:[#allocation12 + $0x8c] sm:$0xf]
        %v2954 = vld [vmem:[#allocation12 + $0x90] sm:$0xf]
        %v2955 = vld [vmem:[#allocation12 + $0x94] sm:$0xf]
        %v2956 = vld [vmem:[#allocation12 + $0x98] sm:$0xf]
        %v2957 = vld [vmem:[#allocation12 + $0x9c] sm:$0xf]
        %v2958 = vld [vmem:[#allocation12 + $0xa0] sm:$0xf]
        %v2959 = vld [vmem:[#allocation12 + $0xa4] sm:$0xf]
        %v2960 = vld [vmem:[#allocation12 + $0xa8] sm:$0xf]
        %v2961 = vld [vmem:[#allocation12 + $0xac] sm:$0xf]
        %v2962 = vld [vmem:[#allocation12 + $0xb0] sm:$0xf]
        %v2963 = vld [vmem:[#allocation12 + $0xb4] sm:$0xf]
        %v2964 = vld [vmem:[#allocation12 + $0xb8] sm:$0xf]
        %v2965 = vld [vmem:[#allocation12 + $0xbc] sm:$0xf]
        %v2966 = vld [vmem:[#allocation12 + $0xc0] sm:$0xf]
        %v2967 = vld [vmem:[#allocation12 + $0xc4] sm:$0xf]
        %v2968 = vld [vmem:[#allocation12 + $0xc8] sm:$0xf]
        %v2969 = vld [vmem:[#allocation12 + $0xcc] sm:$0xf]
        %v2970 = vld [vmem:[#allocation12 + $0xd0] sm:$0xf]
        %v2971 = vld [vmem:[#allocation12 + $0xd4] sm:$0xf]
        %v2972 = vld [vmem:[#allocation12 + $0xd8] sm:$0xf]
        %v2973 = vld [vmem:[#allocation12 + $0xdc] sm:$0xf]
        %v2974 = vld [vmem:[#allocation12 + $0xe0] sm:$0xf]
        %v2975 = vld [vmem:[#allocation12 + $0xe4] sm:$0xf]
        %v2976 = vld [vmem:[#allocation12 + $0xe8] sm:$0xf]
        %v2977 = vld [vmem:[#allocation12 + $0xec] sm:$0xf]
        %v2978 = vld [vmem:[#allocation12 + $0xf0] sm:$0xf]
        %v2979 = vld [vmem:[#allocation12 + $0xf4] sm:$0xf]
        %v2980 = vld [vmem:[#allocation12 + $0xf8] sm:$0xf]
        %v2981 = vld [vmem:[#allocation12 + $0xfc] sm:$0xf]
        %v2982 = vld [vmem:[#allocation13] sm:$0x1]
        %v2983 = vld [vmem:[%s33] sm:$0x1]
        %v2984 = vld [vmem:[%s35] sm:$0x1]
        %v2985 = vpack.c.bf16 %v2830, %v2830
        %v2987 = vperm.slane %v2865, 0
        %v2988 = vperm.slane %v2865, 1
        %v2989 = vperm.slane %v2865, 2
        %v3025 = vunpack.c.l.b16 %v2833
        %v3026 = vunpack.c.h.b16 %v2833
        %v3027 = vunpack.c.l.b16 %v2834
        %v3028 = vunpack.c.l.b16 %v2835
        %v3029 = vunpack.c.h.b16 %v2835
        %v3030 = vunpack.c.l.b16 %v2836
        %v3031 = vunpack.c.l.b16 %v2837
        %v3032 = vunpack.c.h.b16 %v2837
        %v3033 = vunpack.c.l.b16 %v2838
        %v3034 = vunpack.c.l.b16 %v2839
        %v3035 = vunpack.c.h.b16 %v2839
        %v3036 = vunpack.c.l.b16 %v2840
        %v3037 = vunpack.c.l.b16 %v2841
        %v3038 = vunpack.c.h.b16 %v2841
        %v3039 = vunpack.c.l.b16 %v2842
        %v3040 = vunpack.c.l.b16 %v2843
        %v3041 = vunpack.c.h.b16 %v2843
        %v3042 = vunpack.c.l.b16 %v2844
        %v3043 = vunpack.c.l.b16 %v2845
        %v3044 = vunpack.c.h.b16 %v2845
        %v3045 = vunpack.c.l.b16 %v2846
        %v3046 = vunpack.c.l.b16 %v2847
        %v3047 = vunpack.c.h.b16 %v2847
        %v3048 = vunpack.c.l.b16 %v2848
        %v3049 = vunpack.c.l.b16 %v2849
        %v3050 = vunpack.c.h.b16 %v2849
        %v3051 = vunpack.c.l.b16 %v2850
        %v3052 = vunpack.c.l.b16 %v2851
        %v3053 = vunpack.c.h.b16 %v2851
        %v3054 = vunpack.c.l.b16 %v2852
        %v3055 = vunpack.c.l.b16 %v2853
        %v3056 = vunpack.c.h.b16 %v2853
        %v3057 = vunpack.c.l.b16 %v2854
        %v3058 = vunpack.c.l.b16 %v2855
        %v3059 = vunpack.c.h.b16 %v2855
        %v3060 = vunpack.c.l.b16 %v2856
        %v3061 = vunpack.c.l.b16 %v2857
        %v3062 = vunpack.c.h.b16 %v2857
        %v3063 = vunpack.c.l.b16 %v2858
        %v3064 = vunpack.c.l.b16 %v2859
        %v3065 = vunpack.c.h.b16 %v2859
        %v3066 = vunpack.c.l.b16 %v2860
        %v3067 = vunpack.c.l.b16 %v2861
        %v3068 = vunpack.c.h.b16 %v2861
        %v3069 = vunpack.c.l.b16 %v2862
        %v3070 = vunpack.c.l.b16 %v2863
        %v3071 = vunpack.c.h.b16 %v2863
        %v3072 = vunpack.c.l.b16 %v2864
        %v3073 = vpack.c.b16 %v3028, %v3025
        %v3074 = vpack.c.b16 %v3029, %v3026
        %v3075 = vpack.c.b16 %v3030, %v3027
        %v3076 = vpack.c.b16 %v3034, %v3031
        %v3077 = vpack.c.b16 %v3035, %v3032
        %v3078 = vpack.c.b16 %v3036, %v3033
        %v3079 = vpack.c.b16 %v3040, %v3037
        %v3080 = vpack.c.b16 %v3041, %v3038
        %v3081 = vpack.c.b16 %v3042, %v3039
        %v3082 = vpack.c.b16 %v3046, %v3043
        %v3083 = vpack.c.b16 %v3047, %v3044
        %v3084 = vpack.c.b16 %v3048, %v3045
        %v3085 = vpack.c.b16 %v3052, %v3049
        %v3086 = vpack.c.b16 %v3053, %v3050
        %v3087 = vpack.c.b16 %v3054, %v3051
        %v3088 = vpack.c.b16 %v3058, %v3055
        %v3089 = vpack.c.b16 %v3059, %v3056
        %v3090 = vpack.c.b16 %v3060, %v3057
        %v3091 = vpack.c.b16 %v3064, %v3061
        %v3092 = vpack.c.b16 %v3065, %v3062
        %v3093 = vpack.c.b16 %v3066, %v3063
        %v3094 = vpack.c.b16 %v3070, %v3067
        %v3095 = vpack.c.b16 %v3071, %v3068
        %v3096 = vpack.c.b16 %v3072, %v3069
        %3121 = vmatpush.bf16.msra.mxu0 %v3094
        %3122 = vmatpush.bf16.msra.mxu0 %v3091
        %3123 = vmatpush.bf16.msra.mxu0 %v3088
        %3124 = vmatpush.bf16.msra.mxu0 %v3085
        %3125 = vmatpush.bf16.msra.mxu0 %v3082
        %3126 = vmatpush.bf16.msra.mxu0 %v3079
        %3127 = vmatpush.bf16.msra.mxu0 %v3076
        %3128 = vmatpush.bf16.msra.mxu0 %v3073
        %3129 = vmatmul.bf16.gmra.mxu0 %v2985
        %v3130 = vpop.f32.mrf.mxu0
        %v3131 = vadd.f32 %v2987, %v3130
        %v3132 = vpop.f32.mrf.mxu0
        %3133 = vdwg.mxu0
        %3134 = vmatpush.bf16.msra.mxu0 %v3095
        %3135 = vmatpush.bf16.msra.mxu0 %v3092
        %3136 = vmatpush.bf16.msra.mxu0 %v3089
        %3137 = vmatpush.bf16.msra.mxu0 %v3086
        %3138 = vmatpush.bf16.msra.mxu0 %v3083
        %3139 = vmatpush.bf16.msra.mxu0 %v3080
        %3140 = vmatpush.bf16.msra.mxu0 %v3077
        %3141 = vmatpush.bf16.msra.mxu0 %v3074
        %3142 = vmatmul.bf16.gmra.mxu0 %v2985
        %v3143 = vpop.f32.mrf.mxu0
        %v3144 = vadd.f32 %v2988, %v3143
        %v3145 = vpop.f32.mrf.mxu0
        %3146 = vdwg.mxu0
        %3147 = vmatpush.bf16.msra.mxu0 %v3096
        %3148 = vmatpush.bf16.msra.mxu0 %v3093
        %3149 = vmatpush.bf16.msra.mxu0 %v3090
        %3150 = vmatpush.bf16.msra.mxu0 %v3087
        %3151 = vmatpush.bf16.msra.mxu0 %v3084
        %3152 = vmatpush.bf16.msra.mxu0 %v3081
        %3153 = vmatpush.bf16.msra.mxu0 %v3078
        %3154 = vmatpush.bf16.msra.mxu0 %v3075
        %3155 = vmatmul.bf16.gmra.mxu0 %v2985
        %v3156 = vpop.f32.mrf.mxu0
        %v3157 = vadd.f32 %v2989, %v3156
        %v3158 = vpop.f32.mrf.mxu0
        %3159 = vdwg.mxu0
        %v3160 = vpack.c.bf16 %v3131, %v3131
        %v3161 = vpack.c.bf16 %v3144, %v3144
        %v3162 = vpack.c.bf16 %v3157, %v3157
        %vm3163 = vcmask 261120
        %v3165 = vsel %vm3163, %v3160, 0
        %v3168 = vsel %vm3163, %v3161, 0
        %3170 = vmatpush.bf16.xpose.msra.mxu0 0
        %3171 = vmatpush.bf16.xpose.msra.mxu0 0
        %3172 = vmatpush.bf16.xpose.msra.mxu0 0
        %3173 = vmatpush.bf16.xpose.msra.mxu0 0
        %3174 = vmatpush.bf16.xpose.msra.mxu0 0
        %3175 = vmatpush.bf16.xpose.msra.mxu0 0
        %3176 = vmatpush.bf16.xpose.msra.mxu0 0
        %3177 = vmatpush.bf16.xpose.msra.mxu0 %v3168
        %3178 = vmatmul.bf16.gmra.mxu0 %v3165
        %v3179 = vpop.f32.mrf.mxu0
        %v3180 = vadd.f32 0.0, %v3179
        %v3181 = vpop.f32.mrf.mxu0
        %3182 = vdwg.mxu0
        %v3183 = vmul.f32 %v3180, 0.17677669
        %vm3184 = vcmask 64512
        %v3185 = vsel %vm3184, %v3183, -inf
        %3186 = vmax.xlane.f32.xlu0 %v3185
        %v3187 = vpop.xlane.xlu0 %3186
        %v3188 = vsub.f32 %v3183, %v3187
        %v3189 = vmul.f32 %v3188, 1.442695
        %v3190 = vpow.pop %v3189
        %v3191 = vsel %vm3184, %v3190, 0.0
        %3192 = vadd.xlane.f32.xlu0 %v3191
        %v3193 = vpop.xlane.xlu0 %3192
        %v3194 = vrcp.pop %v3193
        %v3195 = vmul.f32 %v3190, %v3194
        %v3196 = vpack.c.bf16 %v3195, %v3195
        %v3198 = vsel %vm3184, %v3196, 0
        %v3201 = vsel %vm1341, %v3162, 0
        %3203 = vmatpush.bf16.msra.mxu0 0
        %3204 = vmatpush.bf16.msra.mxu0 0
        %3205 = vmatpush.bf16.msra.mxu0 0
        %3206 = vmatpush.bf16.msra.mxu0 0
        %3207 = vmatpush.bf16.msra.mxu0 0
        %3208 = vmatpush.bf16.msra.mxu0 0
        %3209 = vmatpush.bf16.msra.mxu0 0
        %3210 = vmatpush.bf16.msra.mxu0 %v3201
        %3211 = vmatmul.bf16.gmra.mxu0 %v3198
        %v3212 = vpop.f32.mrf.mxu0
        %v3213 = vadd.f32 0.0, %v3212
        %v3214 = vpop.f32.mrf.mxu0
        %3215 = vdwg.mxu0
        %v3217 = vunpack.c.l.b16 %v3160
        %v3218 = vpack.c.b16 %v3217, %v3217
        %3219 = vrot.lane.b32.xlu0 %v3218, 96
        %v3220 = vpop.permute.xlu0 %3219
        %v3222 = vunpack.c.l.b16 %v3161
        %v3223 = vpack.c.b16 %v3222, %v3222
        %3224 = vrot.lane.b32.xlu0 %v3223, 96
        %v3225 = vpop.permute.xlu0 %3224
        %v3227 = vsel %vm3163, %v3220, 0
        %v3230 = vsel %vm3163, %v3225, 0
        %3232 = vmatpush.bf16.xpose.msra.mxu0 0
        %3233 = vmatpush.bf16.xpose.msra.mxu0 0
        %3234 = vmatpush.bf16.xpose.msra.mxu0 0
        %3235 = vmatpush.bf16.xpose.msra.mxu0 0
        %3236 = vmatpush.bf16.xpose.msra.mxu0 0
        %3237 = vmatpush.bf16.xpose.msra.mxu0 0
        %3238 = vmatpush.bf16.xpose.msra.mxu0 0
        %3239 = vmatpush.bf16.xpose.msra.mxu0 %v3230
        %3240 = vmatmul.bf16.gmra.mxu0 %v3227
        %v3241 = vpop.f32.mrf.mxu0
        %v3242 = vadd.f32 0.0, %v3241
        %v3243 = vpop.f32.mrf.mxu0
        %3244 = vdwg.mxu0
        %v3245 = vmul.f32 %v3242, 0.17677669
        %v3246 = vsel %vm3184, %v3245, -inf
        %3247 = vmax.xlane.f32.xlu0 %v3246
        %v3248 = vpop.xlane.xlu0 %3247
        %v3249 = vsub.f32 %v3245, %v3248
        %v3250 = vmul.f32 %v3249, 1.442695
        %v3251 = vpow.pop %v3250
        %v3252 = vsel %vm3184, %v3251, 0.0
        %3253 = vadd.xlane.f32.xlu0 %v3252
        %v3254 = vpop.xlane.xlu0 %3253
        %v3255 = vrcp.pop %v3254
        %v3256 = vmul.f32 %v3251, %v3255
        %v3257 = vpack.c.bf16 %v3256, %v3256
        %v3259 = vunpack.c.l.b16 %v3162
        %v3260 = vpack.c.b16 %v3259, %v3259
        %3261 = vrot.lane.b32.xlu0 %v3260, 96
        %v3262 = vpop.permute.xlu0 %3261
        %v3264 = vsel %vm3184, %v3257, 0
        %v3267 = vsel %vm1341, %v3262, 0
        %3269 = vmatpush.bf16.msra.mxu0 0
        %3270 = vmatpush.bf16.msra.mxu0 0
        %3271 = vmatpush.bf16.msra.mxu0 0
        %3272 = vmatpush.bf16.msra.mxu0 0
        %3273 = vmatpush.bf16.msra.mxu0 0
        %3274 = vmatpush.bf16.msra.mxu0 0
        %3275 = vmatpush.bf16.msra.mxu0 0
        %3276 = vmatpush.bf16.msra.mxu0 %v3267
        %3277 = vmatmul.bf16.gmra.mxu0 %v3264
        %v3278 = vpop.f32.mrf.mxu0
        %v3279 = vadd.f32 0.0, %v3278
        %v3280 = vpop.f32.mrf.mxu0
        %3281 = vdwg.mxu0
        %3282 = vrot.lane.b32.xlu0 %v3218, 64
        %v3283 = vpop.permute.xlu0 %3282
        %3284 = vrot.lane.b32.xlu0 %v3223, 64
        %v3285 = vpop.permute.xlu0 %3284
        %v3287 = vsel %vm3163, %v3283, 0
        %v3290 = vsel %vm3163, %v3285, 0
        %3292 = vmatpush.bf16.xpose.msra.mxu0 0
        %3293 = vmatpush.bf16.xpose.msra.mxu0 0
        %3294 = vmatpush.bf16.xpose.msra.mxu0 0
        %3295 = vmatpush.bf16.xpose.msra.mxu0 0
        %3296 = vmatpush.bf16.xpose.msra.mxu0 0
        %3297 = vmatpush.bf16.xpose.msra.mxu0 0
        %3298 = vmatpush.bf16.xpose.msra.mxu0 0
        %3299 = vmatpush.bf16.xpose.msra.mxu0 %v3290
        %3300 = vmatmul.bf16.gmra.mxu0 %v3287
        %v3301 = vpop.f32.mrf.mxu0
        %v3302 = vadd.f32 0.0, %v3301
        %v3303 = vpop.f32.mrf.mxu0
        %3304 = vdwg.mxu0
        %v3305 = vmul.f32 %v3302, 0.17677669
        %v3306 = vsel %vm3184, %v3305, -inf
        %3307 = vmax.xlane.f32.xlu0 %v3306
        %v3308 = vpop.xlane.xlu0 %3307
        %v3309 = vsub.f32 %v3305, %v3308
        %v3310 = vmul.f32 %v3309, 1.442695
        %v3311 = vpow.pop %v3310
        %v3312 = vsel %vm3184, %v3311, 0.0
        %3313 = vadd.xlane.f32.xlu0 %v3312
        %v3314 = vpop.xlane.xlu0 %3313
        %v3315 = vrcp.pop %v3314
        %v3316 = vmul.f32 %v3311, %v3315
        %v3317 = vpack.c.bf16 %v3316, %v3316
        %3318 = vrot.lane.b32.xlu0 %v3260, 64
        %v3319 = vpop.permute.xlu0 %3318
        %v3321 = vsel %vm3184, %v3317, 0
        %v3324 = vsel %vm1341, %v3319, 0
        %3326 = vmatpush.bf16.msra.mxu0 0
        %3327 = vmatpush.bf16.msra.mxu0 0
        %3328 = vmatpush.bf16.msra.mxu0 0
        %3329 = vmatpush.bf16.msra.mxu0 0
        %3330 = vmatpush.bf16.msra.mxu0 0
        %3331 = vmatpush.bf16.msra.mxu0 0
        %3332 = vmatpush.bf16.msra.mxu0 0
        %3333 = vmatpush.bf16.msra.mxu0 %v3324
        %3334 = vmatmul.bf16.gmra.mxu0 %v3321
        %v3335 = vpop.f32.mrf.mxu0
        %v3336 = vadd.f32 0.0, %v3335
        %v3337 = vpop.f32.mrf.mxu0
        %3338 = vdwg.mxu0
        %3339 = vrot.lane.b32.xlu0 %v3218, 32
        %v3340 = vpop.permute.xlu0 %3339
        %3341 = vrot.lane.b32.xlu0 %v3223, 32
        %v3342 = vpop.permute.xlu0 %3341
        %v3344 = vsel %vm3163, %v3340, 0
        %v3347 = vsel %vm3163, %v3342, 0
        %3349 = vmatpush.bf16.xpose.msra.mxu0 0
        %3350 = vmatpush.bf16.xpose.msra.mxu0 0
        %3351 = vmatpush.bf16.xpose.msra.mxu0 0
        %3352 = vmatpush.bf16.xpose.msra.mxu0 0
        %3353 = vmatpush.bf16.xpose.msra.mxu0 0
        %3354 = vmatpush.bf16.xpose.msra.mxu0 0
        %3355 = vmatpush.bf16.xpose.msra.mxu0 0
        %3356 = vmatpush.bf16.xpose.msra.mxu0 %v3347
        %3357 = vmatmul.bf16.gmra.mxu0 %v3344
        %v3358 = vpop.f32.mrf.mxu0
        %v3359 = vadd.f32 0.0, %v3358
        %v3360 = vpop.f32.mrf.mxu0
        %3361 = vdwg.mxu0
        %v3362 = vmul.f32 %v3359, 0.17677669
        %v3363 = vsel %vm3184, %v3362, -inf
        %3364 = vmax.xlane.f32.xlu0 %v3363
        %v3365 = vpop.xlane.xlu0 %3364
        %v3366 = vsub.f32 %v3362, %v3365
        %v3367 = vmul.f32 %v3366, 1.442695
        %v3368 = vpow.pop %v3367
        %v3369 = vsel %vm3184, %v3368, 0.0
        %3370 = vadd.xlane.f32.xlu0 %v3369
        %v3371 = vpop.xlane.xlu0 %3370
        %v3372 = vrcp.pop %v3371
        %v3373 = vmul.f32 %v3368, %v3372
        %v3374 = vpack.c.bf16 %v3373, %v3373
        %3375 = vrot.lane.b32.xlu0 %v3260, 32
        %v3376 = vpop.permute.xlu0 %3375
        %v3378 = vsel %vm3184, %v3374, 0
        %v3381 = vsel %vm1341, %v3376, 0
        %3383 = vmatpush.bf16.msra.mxu0 0
        %3384 = vmatpush.bf16.msra.mxu0 0
        %3385 = vmatpush.bf16.msra.mxu0 0
        %3386 = vmatpush.bf16.msra.mxu0 0
        %3387 = vmatpush.bf16.msra.mxu0 0
        %3388 = vmatpush.bf16.msra.mxu0 0
        %3389 = vmatpush.bf16.msra.mxu0 0
        %3390 = vmatpush.bf16.msra.mxu0 %v3381
        %3391 = vmatmul.bf16.gmra.mxu0 %v3378
        %v3392 = vpop.f32.mrf.mxu0
        %v3393 = vadd.f32 0.0, %v3392
        %v3394 = vpop.f32.mrf.mxu0
        %3395 = vdwg.mxu0
        %3397 = vrot.lane.b32.xlu0 %v3279, 32
        %v3398 = vpop.permute.xlu0 %3397
        %3401 = vrot.lane.b32.xlu0 %v3336, 64
        %v3402 = vpop.permute.xlu0 %3401
        %3405 = vrot.lane.b32.xlu0 %v3393, 96
        %v3406 = vpop.permute.xlu0 %3405
        %v3408 = vsel %vm3163, %v3213, %v3398
        %vm3409 = vcmask 523264
        %v3410 = vsel %vm3409, %v3408, %v3402
        %vm3411 = vcmask 785408
        %v3412 = vsel %vm3411, %v3410, %v3406
        %v3413 = vpack.c.bf16 %v3412, %v3412
        %v3415 = vperm.slane %v2882, 0
        %v3433 = vunpack.c.l.b16 %v2866
        %v3434 = vunpack.c.l.b16 %v2867
        %v3435 = vunpack.c.l.b16 %v2868
        %v3436 = vunpack.c.l.b16 %v2869
        %v3437 = vunpack.c.l.b16 %v2870
        %v3438 = vunpack.c.l.b16 %v2871
        %v3439 = vunpack.c.l.b16 %v2872
        %v3440 = vunpack.c.l.b16 %v2873
        %v3441 = vunpack.c.l.b16 %v2874
        %v3442 = vunpack.c.l.b16 %v2875
        %v3443 = vunpack.c.l.b16 %v2876
        %v3444 = vunpack.c.l.b16 %v2877
        %v3445 = vunpack.c.l.b16 %v2878
        %v3446 = vunpack.c.l.b16 %v2879
        %v3447 = vunpack.c.l.b16 %v2880
        %v3448 = vunpack.c.l.b16 %v2881
        %v3449 = vpack.c.b16 %v3434, %v3433
        %v3450 = vpack.c.b16 %v3436, %v3435
        %v3451 = vpack.c.b16 %v3438, %v3437
        %v3452 = vpack.c.b16 %v3440, %v3439
        %v3453 = vpack.c.b16 %v3442, %v3441
        %v3454 = vpack.c.b16 %v3444, %v3443
        %v3455 = vpack.c.b16 %v3446, %v3445
        %v3456 = vpack.c.b16 %v3448, %v3447
        %3465 = vmatpush.bf16.msra.mxu0 %v3456
        %3466 = vmatpush.bf16.msra.mxu0 %v3455
        %3467 = vmatpush.bf16.msra.mxu0 %v3454
        %3468 = vmatpush.bf16.msra.mxu0 %v3453
        %3469 = vmatpush.bf16.msra.mxu0 %v3452
        %3470 = vmatpush.bf16.msra.mxu0 %v3451
        %3471 = vmatpush.bf16.msra.mxu0 %v3450
        %3472 = vmatpush.bf16.msra.mxu0 %v3449
        %3473 = vmatmul.bf16.gmra.mxu0 %v3413
        %v3474 = vpop.f32.mrf.mxu0
        %v3475 = vadd.f32 %v3415, %v3474
        %v3476 = vpop.f32.mrf.mxu0
        %3477 = vdwg.mxu0
        %v3478 = vadd.f32 %v2830, %v3475
        %3479 = vadd.xlane.f32.xlu0 %v3478
        %v3480 = vpop.xlane.xlu0 %3479
        %v3481 = vrcp.pop 128.0
        %v3482 = vmul.f32 128.0, %v3481
        %v3483 = vsub.f32 1.0, %v3482
        %v3484 = vmul.f32 %v3481, %v3483
        %v3485 = vadd.f32 %v3481, %v3484
        %vm3486 = vweird.f32 %v3481
        %v3487 = vsel %vm3486, %v3481, %v3485
        %v3488 = vmul.f32 %v3480, %v3487
        %v3489 = vsub.f32 %v3478, %v3488
        %v3490 = vmul.f32 %v3489, %v3489
        %3491 = vadd.xlane.f32.xlu0 %v3490
        %v3492 = vpop.xlane.xlu0 %3491
        %v3493 = vmul.f32 %v3492, %v3487
        %v3494 = vadd.f32 %v3493, 1e-05
        %v3495 = vrsqrt.pop %v3494
        %v3496 = vmul.f32 %v3495, %v3494
        %v3497 = vmul.f32 %v3496, %v3495
        %v3498 = vmul.f32 0.5, %v3497
        %v3499 = vsub.f32 1.5, %v3498
        %v3500 = vmul.f32 %v3495, %v3499
        %vm3501 = vweird.f32 %v3494
        %vm3502 = vweird.f32 %v3495
        %vm3503 = vmor %vm3501, %vm3502
        %v3504 = vsel %vm3503, %v3495, %v3500
        %v3505 = vmul.f32 %v3489, %v3504
        %v3507 = vperm.slane %v2883, 0
        %v3509 = vmul.f32 %v3505, %v3507
        %v3511 = vperm.slane %v2884, 0
        %v3513 = vadd.f32 %v3509, %v3511
        %v3514 = vpack.c.bf16 %v3513, %v3513
        %v3516 = vperm.slane %v2917, 0
        %v3517 = vperm.slane %v2917, 1
        %v3518 = vperm.slane %v2917, 2
        %v3519 = vperm.slane %v2917, 3
        %v3556 = vunpack.c.l.b16 %v2885
        %v3557 = vunpack.c.h.b16 %v2885
        %v3558 = vunpack.c.l.b16 %v2886
        %v3559 = vunpack.c.h.b16 %v2886
        %v3560 = vunpack.c.l.b16 %v2887
        %v3561 = vunpack.c.h.b16 %v2887
        %v3562 = vunpack.c.l.b16 %v2888
        %v3563 = vunpack.c.h.b16 %v2888
        %v3564 = vunpack.c.l.b16 %v2889
        %v3565 = vunpack.c.h.b16 %v2889
        %v3566 = vunpack.c.l.b16 %v2890
        %v3567 = vunpack.c.h.b16 %v2890
        %v3568 = vunpack.c.l.b16 %v2891
        %v3569 = vunpack.c.h.b16 %v2891
        %v3570 = vunpack.c.l.b16 %v2892
        %v3571 = vunpack.c.h.b16 %v2892
        %v3572 = vunpack.c.l.b16 %v2893
        %v3573 = vunpack.c.h.b16 %v2893
        %v3574 = vunpack.c.l.b16 %v2894
        %v3575 = vunpack.c.h.b16 %v2894
        %v3576 = vunpack.c.l.b16 %v2895
        %v3577 = vunpack.c.h.b16 %v2895
        %v3578 = vunpack.c.l.b16 %v2896
        %v3579 = vunpack.c.h.b16 %v2896
        %v3580 = vunpack.c.l.b16 %v2897
        %v3581 = vunpack.c.h.b16 %v2897
        %v3582 = vunpack.c.l.b16 %v2898
        %v3583 = vunpack.c.h.b16 %v2898
        %v3584 = vunpack.c.l.b16 %v2899
        %v3585 = vunpack.c.h.b16 %v2899
        %v3586 = vunpack.c.l.b16 %v2900
        %v3587 = vunpack.c.h.b16 %v2900
        %v3588 = vunpack.c.l.b16 %v2901
        %v3589 = vunpack.c.h.b16 %v2901
        %v3590 = vunpack.c.l.b16 %v2902
        %v3591 = vunpack.c.h.b16 %v2902
        %v3592 = vunpack.c.l.b16 %v2903
        %v3593 = vunpack.c.h.b16 %v2903
        %v3594 = vunpack.c.l.b16 %v2904
        %v3595 = vunpack.c.h.b16 %v2904
        %v3596 = vunpack.c.l.b16 %v2905
        %v3597 = vunpack.c.h.b16 %v2905
        %v3598 = vunpack.c.l.b16 %v2906
        %v3599 = vunpack.c.h.b16 %v2906
        %v3600 = vunpack.c.l.b16 %v2907
        %v3601 = vunpack.c.h.b16 %v2907
        %v3602 = vunpack.c.l.b16 %v2908
        %v3603 = vunpack.c.h.b16 %v2908
        %v3604 = vunpack.c.l.b16 %v2909
        %v3605 = vunpack.c.h.b16 %v2909
        %v3606 = vunpack.c.l.b16 %v2910
        %v3607 = vunpack.c.h.b16 %v2910
        %v3608 = vunpack.c.l.b16 %v2911
        %v3609 = vunpack.c.h.b16 %v2911
        %v3610 = vunpack.c.l.b16 %v2912
        %v3611 = vunpack.c.h.b16 %v2912
        %v3612 = vunpack.c.l.b16 %v2913
        %v3613 = vunpack.c.h.b16 %v2913
        %v3614 = vunpack.c.l.b16 %v2914
        %v3615 = vunpack.c.h.b16 %v2914
        %v3616 = vunpack.c.l.b16 %v2915
        %v3617 = vunpack.c.h.b16 %v2915
        %v3618 = vunpack.c.l.b16 %v2916
        %v3619 = vunpack.c.h.b16 %v2916
        %v3620 = vpack.c.b16 %v3560, %v3556
        %v3621 = vpack.c.b16 %v3561, %v3557
        %v3622 = vpack.c.b16 %v3562, %v3558
        %v3623 = vpack.c.b16 %v3563, %v3559
        %v3624 = vpack.c.b16 %v3568, %v3564
        %v3625 = vpack.c.b16 %v3569, %v3565
        %v3626 = vpack.c.b16 %v3570, %v3566
        %v3627 = vpack.c.b16 %v3571, %v3567
        %v3628 = vpack.c.b16 %v3576, %v3572
        %v3629 = vpack.c.b16 %v3577, %v3573
        %v3630 = vpack.c.b16 %v3578, %v3574
        %v3631 = vpack.c.b16 %v3579, %v3575
        %v3632 = vpack.c.b16 %v3584, %v3580
        %v3633 = vpack.c.b16 %v3585, %v3581
        %v3634 = vpack.c.b16 %v3586, %v3582
        %v3635 = vpack.c.b16 %v3587, %v3583
        %v3636 = vpack.c.b16 %v3592, %v3588
        %v3637 = vpack.c.b16 %v3593, %v3589
        %v3638 = vpack.c.b16 %v3594, %v3590
        %v3639 = vpack.c.b16 %v3595, %v3591
        %v3640 = vpack.c.b16 %v3600, %v3596
        %v3641 = vpack.c.b16 %v3601, %v3597
        %v3642 = vpack.c.b16 %v3602, %v3598
        %v3643 = vpack.c.b16 %v3603, %v3599
        %v3644 = vpack.c.b16 %v3608, %v3604
        %v3645 = vpack.c.b16 %v3609, %v3605
        %v3646 = vpack.c.b16 %v3610, %v3606
        %v3647 = vpack.c.b16 %v3611, %v3607
        %v3648 = vpack.c.b16 %v3616, %v3612
        %v3649 = vpack.c.b16 %v3617, %v3613
        %v3650 = vpack.c.b16 %v3618, %v3614
        %v3651 = vpack.c.b16 %v3619, %v3615
        %3684 = vmatpush.bf16.msra.mxu0 %v3648
        %3685 = vmatpush.bf16.msra.mxu0 %v3644
        %3686 = vmatpush.bf16.msra.mxu0 %v3640
        %3687 = vmatpush.bf16.msra.mxu0 %v3636
        %3688 = vmatpush.bf16.msra.mxu0 %v3632
        %3689 = vmatpush.bf16.msra.mxu0 %v3628
        %3690 = vmatpush.bf16.msra.mxu0 %v3624
        %3691 = vmatpush.bf16.msra.mxu0 %v3620
        %3692 = vmatmul.bf16.gmra.mxu0 %v3514
        %v3693 = vpop.f32.mrf.mxu0
        %v3694 = vadd.f32 %v3516, %v3693
        %v3695 = vpop.f32.mrf.mxu0
        %3696 = vdwg.mxu0
        %3697 = vmatpush.bf16.msra.mxu0 %v3649
        %3698 = vmatpush.bf16.msra.mxu0 %v3645
        %3699 = vmatpush.bf16.msra.mxu0 %v3641
        %3700 = vmatpush.bf16.msra.mxu0 %v3637
        %3701 = vmatpush.bf16.msra.mxu0 %v3633
        %3702 = vmatpush.bf16.msra.mxu0 %v3629
        %3703 = vmatpush.bf16.msra.mxu0 %v3625
        %3704 = vmatpush.bf16.msra.mxu0 %v3621
        %3705 = vmatmul.bf16.gmra.mxu0 %v3514
        %v3706 = vpop.f32.mrf.mxu0
        %v3707 = vadd.f32 %v3517, %v3706
        %v3708 = vpop.f32.mrf.mxu0
        %3709 = vdwg.mxu0
        %3710 = vmatpush.bf16.msra.mxu0 %v3650
        %3711 = vmatpush.bf16.msra.mxu0 %v3646
        %3712 = vmatpush.bf16.msra.mxu0 %v3642
        %3713 = vmatpush.bf16.msra.mxu0 %v3638
        %3714 = vmatpush.bf16.msra.mxu0 %v3634
        %3715 = vmatpush.bf16.msra.mxu0 %v3630
        %3716 = vmatpush.bf16.msra.mxu0 %v3626
        %3717 = vmatpush.bf16.msra.mxu0 %v3622
        %3718 = vmatmul.bf16.gmra.mxu0 %v3514
        %v3719 = vpop.f32.mrf.mxu0
        %v3720 = vadd.f32 %v3518, %v3719
        %v3721 = vpop.f32.mrf.mxu0
        %3722 = vdwg.mxu0
        %3723 = vmatpush.bf16.msra.mxu0 %v3651
        %3724 = vmatpush.bf16.msra.mxu0 %v3647
        %3725 = vmatpush.bf16.msra.mxu0 %v3643
        %3726 = vmatpush.bf16.msra.mxu0 %v3639
        %3727 = vmatpush.bf16.msra.mxu0 %v3635
        %3728 = vmatpush.bf16.msra.mxu0 %v3631
        %3729 = vmatpush.bf16.msra.mxu0 %v3627
        %3730 = vmatpush.bf16.msra.mxu0 %v3623
        %3731 = vmatmul.bf16.gmra.mxu0 %v3514
        %v3732 = vpop.f32.mrf.mxu0
        %v3733 = vadd.f32 %v3519, %v3732
        %v3734 = vpop.f32.mrf.mxu0
        %3735 = vdwg.mxu0
        %v3736 = vmul.f32 %v3694, 0.5
        %v3737 = vmul.f32 %v3707, 0.5
        %v3738 = vmul.f32 %v3720, 0.5
        %v3739 = vmul.f32 %v3733, 0.5
        %v3740 = vmul.f32 %v3694, 0.70710677
        %v3741 = vmul.f32 %v3707, 0.70710677
        %v3742 = vmul.f32 %v3720, 0.70710677
        %v3743 = vmul.f32 %v3733, 0.70710677
        %v3744 = vand.u32 2147483647, %v3740
        %v3745 = vand.u32 2147483647, %v3741
        %v3746 = vand.u32 2147483647, %v3742
        %v3747 = vand.u32 2147483647, %v3743
        %v3748 = vmul.f32 %v3744, 0.3275911
        %v3749 = vmul.f32 %v3745, 0.3275911
        %v3750 = vmul.f32 %v3746, 0.3275911
        %v3751 = vmul.f32 %v3747, 0.3275911
        %v3752 = vadd.f32 %v3748, 1.0
        %v3753 = vadd.f32 %v3749, 1.0
        %v3754 = vadd.f32 %v3750, 1.0
        %v3755 = vadd.f32 %v3751, 1.0
        %v3756 = vrcp.pop %v3752
        %v3757 = vmul.f32 %v3752, %v3756
        %v3758 = vsub.f32 1.0, %v3757
        %v3759 = vmul.f32 %v3756, %v3758
        %v3760 = vadd.f32 %v3756, %v3759
        %vm3761 = vweird.f32 %v3752
        %vm3762 = vweird.f32 %v3756
        %vm3763 = vmor %vm3761, %vm3762
        %v3764 = vsel %vm3763, %v3756, %v3760
        %v3765 = vand.u32 2147483647, %v3752
        %vm3766 = vcmp.eq.f32.partialorder %v3765, 8.507059e+37
        %v3767 = vand.u32 %v3752, 2147483648
        %v3768 = vor.u32 1.1754944e-38, %v3767
        %v3769 = vsel %vm3766, %v3768, %v3764
        %v3770 = vmul.f32 1.0, %v3769
        %v3771 = vrcp.pop %v3753
        %v3772 = vmul.f32 %v3753, %v3771
        %v3773 = vsub.f32 1.0, %v3772
        %v3774 = vmul.f32 %v3771, %v3773
        %v3775 = vadd.f32 %v3771, %v3774
        %vm3776 = vweird.f32 %v3753
        %vm3777 = vweird.f32 %v3771
        %vm3778 = vmor %vm3776, %vm3777
        %v3779 = vsel %vm3778, %v3771, %v3775
        %v3780 = vand.u32 2147483647, %v3753
        %vm3781 = vcmp.eq.f32.partialorder %v3780, 8.507059e+37
        %v3782 = vand.u32 %v3753, 2147483648
        %v3783 = vor.u32 1.1754944e-38, %v3782
        %v3784 = vsel %vm3781, %v3783, %v3779
        %v3785 = vmul.f32 1.0, %v3784
        %v3786 = vrcp.pop %v3754
        %v3787 = vmul.f32 %v3754, %v3786
        %v3788 = vsub.f32 1.0, %v3787
        %v3789 = vmul.f32 %v3786, %v3788
        %v3790 = vadd.f32 %v3786, %v3789
        %vm3791 = vweird.f32 %v3754
        %vm3792 = vweird.f32 %v3786
        %vm3793 = vmor %vm3791, %vm3792
        %v3794 = vsel %vm3793, %v3786, %v3790
        %v3795 = vand.u32 2147483647, %v3754
        %vm3796 = vcmp.eq.f32.partialorder %v3795, 8.507059e+37
        %v3797 = vand.u32 %v3754, 2147483648
        %v3798 = vor.u32 1.1754944e-38, %v3797
        %v3799 = vsel %vm3796, %v3798, %v3794
        %v3800 = vmul.f32 1.0, %v3799
        %v3801 = vrcp.pop %v3755
        %v3802 = vmul.f32 %v3755, %v3801
        %v3803 = vsub.f32 1.0, %v3802
        %v3804 = vmul.f32 %v3801, %v3803
        %v3805 = vadd.f32 %v3801, %v3804
        %vm3806 = vweird.f32 %v3755
        %vm3807 = vweird.f32 %v3801
        %vm3808 = vmor %vm3806, %vm3807
        %v3809 = vsel %vm3808, %v3801, %v3805
        %v3810 = vand.u32 2147483647, %v3755
        %vm3811 = vcmp.eq.f32.partialorder %v3810, 8.507059e+37
        %v3812 = vand.u32 %v3755, 2147483648
        %v3813 = vor.u32 1.1754944e-38, %v3812
        %v3814 = vsel %vm3811, %v3813, %v3809
        %v3815 = vmul.f32 1.0, %v3814
        %v3816 = vmul.f32 %v3770, 1.0614054
        %v3817 = vmul.f32 %v3785, 1.0614054
        %v3818 = vmul.f32 %v3800, 1.0614054
        %v3819 = vmul.f32 %v3815, 1.0614054
        %v3820 = vadd.f32 %v3816, -1.4531521
        %v3821 = vadd.f32 %v3817, -1.4531521
        %v3822 = vadd.f32 %v3818, -1.4531521
        %v3823 = vadd.f32 %v3819, -1.4531521
        %v3824 = vmul.f32 %v3820, %v3770
        %v3825 = vmul.f32 %v3821, %v3785
        %v3826 = vmul.f32 %v3822, %v3800
        %v3827 = vmul.f32 %v3823, %v3815
        %v3828 = vadd.f32 %v3824, 1.4214138
        %v3829 = vadd.f32 %v3825, 1.4214138
        %v3830 = vadd.f32 %v3826, 1.4214138
        %v3831 = vadd.f32 %v3827, 1.4214138
        %v3832 = vmul.f32 %v3828, %v3770
        %v3833 = vmul.f32 %v3829, %v3785
        %v3834 = vmul.f32 %v3830, %v3800
        %v3835 = vmul.f32 %v3831, %v3815
        %v3836 = vadd.f32 %v3832, -0.28449672
        %v3837 = vadd.f32 %v3833, -0.28449672
        %v3838 = vadd.f32 %v3834, -0.28449672
        %v3839 = vadd.f32 %v3835, -0.28449672
        %v3840 = vmul.f32 %v3836, %v3770
        %v3841 = vmul.f32 %v3837, %v3785
        %v3842 = vmul.f32 %v3838, %v3800
        %v3843 = vmul.f32 %v3839, %v3815
        %v3844 = vadd.f32 %v3840, 0.2548296
        %v3845 = vadd.f32 %v3841, 0.2548296
        %v3846 = vadd.f32 %v3842, 0.2548296
        %v3847 = vadd.f32 %v3843, 0.2548296
        %v3848 = vmul.f32 %v3844, %v3770
        %v3849 = vmul.f32 %v3845, %v3785
        %v3850 = vmul.f32 %v3846, %v3800
        %v3851 = vmul.f32 %v3847, %v3815
        %v3852 = vsub.f32 0.0, %v3744
        %v3853 = vsub.f32 0.0, %v3745
        %v3854 = vsub.f32 0.0, %v3746
        %v3855 = vsub.f32 0.0, %v3747
        %v3856 = vmul.f32 %v3852, %v3744
        %v3857 = vmul.f32 %v3853, %v3745
        %v3858 = vmul.f32 %v3854, %v3746
        %v3859 = vmul.f32 %v3855, %v3747
        %v3860 = vmul.f32 %v3856, 1.442695
        %v3861 = vpow.pop %v3860
        %v3862 = vmul.f32 %v3857, 1.442695
        %v3863 = vpow.pop %v3862
        %v3864 = vmul.f32 %v3858, 1.442695
        %v3865 = vpow.pop %v3864
        %v3866 = vmul.f32 %v3859, 1.442695
        %v3867 = vpow.pop %v3866
        %v3868 = vmul.f32 %v3848, %v3861
        %v3869 = vmul.f32 %v3849, %v3863
        %v3870 = vmul.f32 %v3850, %v3865
        %v3871 = vmul.f32 %v3851, %v3867
        %v3872 = vsub.f32 1.0, %v3868
        %v3873 = vsub.f32 1.0, %v3869
        %v3874 = vsub.f32 1.0, %v3870
        %v3875 = vsub.f32 1.0, %v3871
        %vm3876 = vcmp.ge.f32.partialorder %v3740, 0.0
        %vm3877 = vcmp.ge.f32.partialorder %v3741, 0.0
        %vm3878 = vcmp.ge.f32.partialorder %v3742, 0.0
        %vm3879 = vcmp.ge.f32.partialorder %v3743, 0.0
        %v3880 = vsub.f32 0.0, %v3872
        %v3881 = vsub.f32 0.0, %v3873
        %v3882 = vsub.f32 0.0, %v3874
        %v3883 = vsub.f32 0.0, %v3875
        %v3884 = vsel %vm3876, %v3872, %v3880
        %v3885 = vsel %vm3877, %v3873, %v3881
        %v3886 = vsel %vm3878, %v3874, %v3882
        %v3887 = vsel %vm3879, %v3875, %v3883
        %v3888 = vadd.f32 %v3884, 1.0
        %v3889 = vadd.f32 %v3885, 1.0
        %v3890 = vadd.f32 %v3886, 1.0
        %v3891 = vadd.f32 %v3887, 1.0
        %v3892 = vmul.f32 %v3736, %v3888
        %v3893 = vmul.f32 %v3737, %v3889
        %v3894 = vmul.f32 %v3738, %v3890
        %v3895 = vmul.f32 %v3739, %v3891
        %v3896 = vpack.c.bf16 %v3892, %v3892
        %v3897 = vpack.c.bf16 %v3893, %v3893
        %v3898 = vpack.c.bf16 %v3894, %v3894
        %v3899 = vpack.c.bf16 %v3895, %v3895
        %v3901 = vperm.slane %v2982, 0
        %v3967 = vunpack.c.l.b16 %v2918
        %v3968 = vunpack.c.l.b16 %v2919
        %v3969 = vunpack.c.l.b16 %v2920
        %v3970 = vunpack.c.l.b16 %v2921
        %v3971 = vunpack.c.l.b16 %v2922
        %v3972 = vunpack.c.l.b16 %v2923
        %v3973 = vunpack.c.l.b16 %v2924
        %v3974 = vunpack.c.l.b16 %v2925
        %v3975 = vunpack.c.l.b16 %v2926
        %v3976 = vunpack.c.l.b16 %v2927
        %v3977 = vunpack.c.l.b16 %v2928
        %v3978 = vunpack.c.l.b16 %v2929
        %v3979 = vunpack.c.l.b16 %v2930
        %v3980 = vunpack.c.l.b16 %v2931
        %v3981 = vunpack.c.l.b16 %v2932
        %v3982 = vunpack.c.l.b16 %v2933
        %v3983 = vunpack.c.l.b16 %v2934
        %v3984 = vunpack.c.l.b16 %v2935
        %v3985 = vunpack.c.l.b16 %v2936
        %v3986 = vunpack.c.l.b16 %v2937
        %v3987 = vunpack.c.l.b16 %v2938
        %v3988 = vunpack.c.l.b16 %v2939
        %v3989 = vunpack.c.l.b16 %v2940
        %v3990 = vunpack.c.l.b16 %v2941
        %v3991 = vunpack.c.l.b16 %v2942
        %v3992 = vunpack.c.l.b16 %v2943
        %v3993 = vunpack.c.l.b16 %v2944
        %v3994 = vunpack.c.l.b16 %v2945
        %v3995 = vunpack.c.l.b16 %v2946
        %v3996 = vunpack.c.l.b16 %v2947
        %v3997 = vunpack.c.l.b16 %v2948
        %v3998 = vunpack.c.l.b16 %v2949
        %v3999 = vunpack.c.l.b16 %v2950
        %v4000 = vunpack.c.l.b16 %v2951
        %v4001 = vunpack.c.l.b16 %v2952
        %v4002 = vunpack.c.l.b16 %v2953
        %v4003 = vunpack.c.l.b16 %v2954
        %v4004 = vunpack.c.l.b16 %v2955
        %v4005 = vunpack.c.l.b16 %v2956
        %v4006 = vunpack.c.l.b16 %v2957
        %v4007 = vunpack.c.l.b16 %v2958
        %v4008 = vunpack.c.l.b16 %v2959
        %v4009 = vunpack.c.l.b16 %v2960
        %v4010 = vunpack.c.l.b16 %v2961
        %v4011 = vunpack.c.l.b16 %v2962
        %v4012 = vunpack.c.l.b16 %v2963
        %v4013 = vunpack.c.l.b16 %v2964
        %v4014 = vunpack.c.l.b16 %v2965
        %v4015 = vunpack.c.l.b16 %v2966
        %v4016 = vunpack.c.l.b16 %v2967
        %v4017 = vunpack.c.l.b16 %v2968
        %v4018 = vunpack.c.l.b16 %v2969
        %v4019 = vunpack.c.l.b16 %v2970
        %v4020 = vunpack.c.l.b16 %v2971
        %v4021 = vunpack.c.l.b16 %v2972
        %v4022 = vunpack.c.l.b16 %v2973
        %v4023 = vunpack.c.l.b16 %v2974
        %v4024 = vunpack.c.l.b16 %v2975
        %v4025 = vunpack.c.l.b16 %v2976
        %v4026 = vunpack.c.l.b16 %v2977
        %v4027 = vunpack.c.l.b16 %v2978
        %v4028 = vunpack.c.l.b16 %v2979
        %v4029 = vunpack.c.l.b16 %v2980
        %v4030 = vunpack.c.l.b16 %v2981
        %v4031 = vpack.c.b16 %v3968, %v3967
        %v4032 = vpack.c.b16 %v3970, %v3969
        %v4033 = vpack.c.b16 %v3972, %v3971
        %v4034 = vpack.c.b16 %v3974, %v3973
        %v4035 = vpack.c.b16 %v3976, %v3975
        %v4036 = vpack.c.b16 %v3978, %v3977
        %v4037 = vpack.c.b16 %v3980, %v3979
        %v4038 = vpack.c.b16 %v3982, %v3981
        %v4039 = vpack.c.b16 %v3984, %v3983
        %v4040 = vpack.c.b16 %v3986, %v3985
        %v4041 = vpack.c.b16 %v3988, %v3987
        %v4042 = vpack.c.b16 %v3990, %v3989
        %v4043 = vpack.c.b16 %v3992, %v3991
        %v4044 = vpack.c.b16 %v3994, %v3993
        %v4045 = vpack.c.b16 %v3996, %v3995
        %v4046 = vpack.c.b16 %v3998, %v3997
        %v4047 = vpack.c.b16 %v4000, %v3999
        %v4048 = vpack.c.b16 %v4002, %v4001
        %v4049 = vpack.c.b16 %v4004, %v4003
        %v4050 = vpack.c.b16 %v4006, %v4005
        %v4051 = vpack.c.b16 %v4008, %v4007
        %v4052 = vpack.c.b16 %v4010, %v4009
        %v4053 = vpack.c.b16 %v4012, %v4011
        %v4054 = vpack.c.b16 %v4014, %v4013
        %v4055 = vpack.c.b16 %v4016, %v4015
        %v4056 = vpack.c.b16 %v4018, %v4017
        %v4057 = vpack.c.b16 %v4020, %v4019
        %v4058 = vpack.c.b16 %v4022, %v4021
        %v4059 = vpack.c.b16 %v4024, %v4023
        %v4060 = vpack.c.b16 %v4026, %v4025
        %v4061 = vpack.c.b16 %v4028, %v4027
        %v4062 = vpack.c.b16 %v4030, %v4029
        %4095 = vmatpush.bf16.msra.mxu0 %v4038
        %4096 = vmatpush.bf16.msra.mxu0 %v4037
        %4097 = vmatpush.bf16.msra.mxu0 %v4036
        %4098 = vmatpush.bf16.msra.mxu0 %v4035
        %4099 = vmatpush.bf16.msra.mxu0 %v4034
        %4100 = vmatpush.bf16.msra.mxu0 %v4033
        %4101 = vmatpush.bf16.msra.mxu0 %v4032
        %4102 = vmatpush.bf16.msra.mxu0 %v4031
        %4103 = vmatmul.bf16.gmra.mxu0 %v3896
        %v4104 = vpop.f32.mrf.mxu0
        %v4105 = vadd.f32 %v3901, %v4104
        %v4106 = vpop.f32.mrf.mxu0
        %4107 = vdwg.mxu0
        %4108 = vmatpush.bf16.msra.mxu0 %v4046
        %4109 = vmatpush.bf16.msra.mxu0 %v4045
        %4110 = vmatpush.bf16.msra.mxu0 %v4044
        %4111 = vmatpush.bf16.msra.mxu0 %v4043
        %4112 = vmatpush.bf16.msra.mxu0 %v4042
        %4113 = vmatpush.bf16.msra.mxu0 %v4041
        %4114 = vmatpush.bf16.msra.mxu0 %v4040
        %4115 = vmatpush.bf16.msra.mxu0 %v4039
        %4116 = vmatmul.bf16.gmra.mxu0 %v3897
        %v4117 = vpop.f32.mrf.mxu0
        %v4118 = vadd.f32 %v4105, %v4117
        %v4119 = vpop.f32.mrf.mxu0
        %4120 = vdwg.mxu0
        %4121 = vmatpush.bf16.msra.mxu0 %v4054
        %4122 = vmatpush.bf16.msra.mxu0 %v4053
        %4123 = vmatpush.bf16.msra.mxu0 %v4052
        %4124 = vmatpush.bf16.msra.mxu0 %v4051
        %4125 = vmatpush.bf16.msra.mxu0 %v4050
        %4126 = vmatpush.bf16.msra.mxu0 %v4049
        %4127 = vmatpush.bf16.msra.mxu0 %v4048
        %4128 = vmatpush.bf16.msra.mxu0 %v4047
        %4129 = vmatmul.bf16.gmra.mxu0 %v3898
        %v4130 = vpop.f32.mrf.mxu0
        %v4131 = vadd.f32 %v4118, %v4130
        %v4132 = vpop.f32.mrf.mxu0
        %4133 = vdwg.mxu0
        %4134 = vmatpush.bf16.msra.mxu0 %v4062
        %4135 = vmatpush.bf16.msra.mxu0 %v4061
        %4136 = vmatpush.bf16.msra.mxu0 %v4060
        %4137 = vmatpush.bf16.msra.mxu0 %v4059
        %4138 = vmatpush.bf16.msra.mxu0 %v4058
        %4139 = vmatpush.bf16.msra.mxu0 %v4057
        %4140 = vmatpush.bf16.msra.mxu0 %v4056
        %4141 = vmatpush.bf16.msra.mxu0 %v4055
        %4142 = vmatmul.bf16.gmra.mxu0 %v3899
        %v4143 = vpop.f32.mrf.mxu0
        %v4144 = vadd.f32 %v4131, %v4143
        %v4145 = vpop.f32.mrf.mxu0
        %4146 = vdwg.mxu0
        %v4147 = vadd.f32 %v3513, %v4144
        %4148 = vadd.xlane.f32.xlu0 %v4147
        %v4149 = vpop.xlane.xlu0 %4148
        %v4150 = vmul.f32 %v4149, %v3487
        %v4151 = vsub.f32 %v4147, %v4150
        %v4152 = vmul.f32 %v4151, %v4151
        %4153 = vadd.xlane.f32.xlu0 %v4152
        %v4154 = vpop.xlane.xlu0 %4153
        %v4155 = vmul.f32 %v4154, %v3487
        %v4156 = vadd.f32 %v4155, 1e-05
        %v4157 = vrsqrt.pop %v4156
        %v4158 = vmul.f32 %v4157, %v4156
        %v4159 = vmul.f32 %v4158, %v4157
        %v4160 = vmul.f32 0.5, %v4159
        %v4161 = vsub.f32 1.5, %v4160
        %v4162 = vmul.f32 %v4157, %v4161
        %vm4163 = vweird.f32 %v4156
        %vm4164 = vweird.f32 %v4157
        %vm4165 = vmor %vm4163, %vm4164
        %v4166 = vsel %vm4165, %v4157, %v4162
        %v4167 = vmul.f32 %v4151, %v4166
        %v4169 = vperm.slane %v2983, 0
        %v4171 = vmul.f32 %v4167, %v4169
        %v4173 = vperm.slane %v2984, 0
        %v4175 = vadd.f32 %v4171, %v4173
        %v4176 = vld [vmem:[#allocation15] sm:$0xff]
        %v4177 = vld [vmem:[#allocation15 + $0x8] sm:$0xf]
        %v4178 = vld [vmem:[#allocation15 + $0xc] sm:$0xff]
        %v4179 = vld [vmem:[#allocation15 + $0x14] sm:$0xf]
        %v4180 = vld [vmem:[#allocation15 + $0x18] sm:$0xff]
        %v4181 = vld [vmem:[#allocation15 + $0x20] sm:$0xf]
        %v4182 = vld [vmem:[#allocation15 + $0x24] sm:$0xff]
        %v4183 = vld [vmem:[#allocation15 + $0x2c] sm:$0xf]
        %v4184 = vld [vmem:[#allocation15 + $0x30] sm:$0xff]
        %v4185 = vld [vmem:[#allocation15 + $0x38] sm:$0xf]
        %v4186 = vld [vmem:[#allocation15 + $0x3c] sm:$0xff]
        %v4187 = vld [vmem:[#allocation15 + $0x44] sm:$0xf]
        %v4188 = vld [vmem:[#allocation15 + $0x48] sm:$0xff]
        %v4189 = vld [vmem:[#allocation15 + $0x50] sm:$0xf]
        %v4190 = vld [vmem:[#allocation15 + $0x54] sm:$0xff]
        %v4191 = vld [vmem:[#allocation15 + $0x5c] sm:$0xf]
        %v4192 = vld [vmem:[#allocation15 + $0x60] sm:$0xff]
        %v4193 = vld [vmem:[#allocation15 + $0x68] sm:$0xf]
        %v4194 = vld [vmem:[#allocation15 + $0x6c] sm:$0xff]
        %v4195 = vld [vmem:[#allocation15 + $0x74] sm:$0xf]
        %v4196 = vld [vmem:[#allocation15 + $0x78] sm:$0xff]
        %v4197 = vld [vmem:[#allocation15 + $0x80] sm:$0xf]
        %v4198 = vld [vmem:[#allocation15 + $0x84] sm:$0xff]
        %v4199 = vld [vmem:[#allocation15 + $0x8c] sm:$0xf]
        %v4200 = vld [vmem:[#allocation15 + $0x90] sm:$0xff]
        %v4201 = vld [vmem:[#allocation15 + $0x98] sm:$0xf]
        %v4202 = vld [vmem:[#allocation15 + $0x9c] sm:$0xff]
        %v4203 = vld [vmem:[#allocation15 + $0xa4] sm:$0xf]
        %v4204 = vld [vmem:[#allocation15 + $0xa8] sm:$0xff]
        %v4205 = vld [vmem:[#allocation15 + $0xb0] sm:$0xf]
        %v4206 = vld [vmem:[#allocation15 + $0xb4] sm:$0xff]
        %v4207 = vld [vmem:[#allocation15 + $0xbc] sm:$0xf]
        %v4208 = vld [vmem:[%s39] sm:$0x7]
        %v4209 = vld [vmem:[#allocation16] sm:$0xf]
        %v4210 = vld [vmem:[#allocation16 + $0x4] sm:$0xf]
        %v4211 = vld [vmem:[#allocation16 + $0x8] sm:$0xf]
        %v4212 = vld [vmem:[#allocation16 + $0xc] sm:$0xf]
        %v4213 = vld [vmem:[#allocation16 + $0x10] sm:$0xf]
        %v4214 = vld [vmem:[#allocation16 + $0x14] sm:$0xf]
        %v4215 = vld [vmem:[#allocation16 + $0x18] sm:$0xf]
        %v4216 = vld [vmem:[#allocation16 + $0x1c] sm:$0xf]
        %v4217 = vld [vmem:[#allocation16 + $0x20] sm:$0xf]
        %v4218 = vld [vmem:[#allocation16 + $0x24] sm:$0xf]
        %v4219 = vld [vmem:[#allocation16 + $0x28] sm:$0xf]
        %v4220 = vld [vmem:[#allocation16 + $0x2c] sm:$0xf]
        %v4221 = vld [vmem:[#allocation16 + $0x30] sm:$0xf]
        %v4222 = vld [vmem:[#allocation16 + $0x34] sm:$0xf]
        %v4223 = vld [vmem:[#allocation16 + $0x38] sm:$0xf]
        %v4224 = vld [vmem:[#allocation16 + $0x3c] sm:$0xf]
        %v4225 = vld [vmem:[%s43] sm:$0x1]
        %v4226 = vld [vmem:[%s45] sm:$0x1]
        %v4227 = vld [vmem:[%s47] sm:$0x1]
        %v4228 = vld [vmem:[#allocation18] sm:$0xff]
        %v4229 = vld [vmem:[#allocation18 + $0x8] sm:$0xff]
        %v4230 = vld [vmem:[#allocation18 + $0x10] sm:$0xff]
        %v4231 = vld [vmem:[#allocation18 + $0x18] sm:$0xff]
        %v4232 = vld [vmem:[#allocation18 + $0x20] sm:$0xff]
        %v4233 = vld [vmem:[#allocation18 + $0x28] sm:$0xff]
        %v4234 = vld [vmem:[#allocation18 + $0x30] sm:$0xff]
        %v4235 = vld [vmem:[#allocation18 + $0x38] sm:$0xff]
        %v4236 = vld [vmem:[#allocation18 + $0x40] sm:$0xff]
        %v4237 = vld [vmem:[#allocation18 + $0x48] sm:$0xff]
        %v4238 = vld [vmem:[#allocation18 + $0x50] sm:$0xff]
        %v4239 = vld [vmem:[#allocation18 + $0x58] sm:$0xff]
        %v4240 = vld [vmem:[#allocation18 + $0x60] sm:$0xff]
        %v4241 = vld [vmem:[#allocation18 + $0x68] sm:$0xff]
        %v4242 = vld [vmem:[#allocation18 + $0x70] sm:$0xff]
        %v4243 = vld [vmem:[#allocation18 + $0x78] sm:$0xff]
        %v4244 = vld [vmem:[#allocation18 + $0x80] sm:$0xff]
        %v4245 = vld [vmem:[#allocation18 + $0x88] sm:$0xff]
        %v4246 = vld [vmem:[#allocation18 + $0x90] sm:$0xff]
        %v4247 = vld [vmem:[#allocation18 + $0x98] sm:$0xff]
        %v4248 = vld [vmem:[#allocation18 + $0xa0] sm:$0xff]
        %v4249 = vld [vmem:[#allocation18 + $0xa8] sm:$0xff]
        %v4250 = vld [vmem:[#allocation18 + $0xb0] sm:$0xff]
        %v4251 = vld [vmem:[#allocation18 + $0xb8] sm:$0xff]
        %v4252 = vld [vmem:[#allocation18 + $0xc0] sm:$0xff]
        %v4253 = vld [vmem:[#allocation18 + $0xc8] sm:$0xff]
        %v4254 = vld [vmem:[#allocation18 + $0xd0] sm:$0xff]
        %v4255 = vld [vmem:[#allocation18 + $0xd8] sm:$0xff]
        %v4256 = vld [vmem:[#allocation18 + $0xe0] sm:$0xff]
        %v4257 = vld [vmem:[#allocation18 + $0xe8] sm:$0xff]
        %v4258 = vld [vmem:[#allocation18 + $0xf0] sm:$0xff]
        %v4259 = vld [vmem:[#allocation18 + $0xf8] sm:$0xff]
        %v4260 = vld [vmem:[%s51] sm:$0xf]
        %v4261 = vld [vmem:[#allocation19] sm:$0xf]
        %v4262 = vld [vmem:[#allocation19 + $0x4] sm:$0xf]
        %v4263 = vld [vmem:[#allocation19 + $0x8] sm:$0xf]
        %v4264 = vld [vmem:[#allocation19 + $0xc] sm:$0xf]
        %v4265 = vld [vmem:[#allocation19 + $0x10] sm:$0xf]
        %v4266 = vld [vmem:[#allocation19 + $0x14] sm:$0xf]
        %v4267 = vld [vmem:[#allocation19 + $0x18] sm:$0xf]
        %v4268 = vld [vmem:[#allocation19 + $0x1c] sm:$0xf]
        %v4269 = vld [vmem:[#allocation19 + $0x20] sm:$0xf]
        %v4270 = vld [vmem:[#allocation19 + $0x24] sm:$0xf]
        %v4271 = vld [vmem:[#allocation19 + $0x28] sm:$0xf]
        %v4272 = vld [vmem:[#allocation19 + $0x2c] sm:$0xf]
        %v4273 = vld [vmem:[#allocation19 + $0x30] sm:$0xf]
        %v4274 = vld [vmem:[#allocation19 + $0x34] sm:$0xf]
        %v4275 = vld [vmem:[#allocation19 + $0x38] sm:$0xf]
        %v4276 = vld [vmem:[#allocation19 + $0x3c] sm:$0xf]
        %v4277 = vld [vmem:[#allocation19 + $0x40] sm:$0xf]
        %v4278 = vld [vmem:[#allocation19 + $0x44] sm:$0xf]
        %v4279 = vld [vmem:[#allocation19 + $0x48] sm:$0xf]
        %v4280 = vld [vmem:[#allocation19 + $0x4c] sm:$0xf]
        %v4281 = vld [vmem:[#allocation19 + $0x50] sm:$0xf]
        %v4282 = vld [vmem:[#allocation19 + $0x54] sm:$0xf]
        %v4283 = vld [vmem:[#allocation19 + $0x58] sm:$0xf]
        %v4284 = vld [vmem:[#allocation19 + $0x5c] sm:$0xf]
        %v4285 = vld [vmem:[#allocation19 + $0x60] sm:$0xf]
        %v4286 = vld [vmem:[#allocation19 + $0x64] sm:$0xf]
        %v4287 = vld [vmem:[#allocation19 + $0x68] sm:$0xf]
        %v4288 = vld [vmem:[#allocation19 + $0x6c] sm:$0xf]
        %v4289 = vld [vmem:[#allocation19 + $0x70] sm:$0xf]
        %v4290 = vld [vmem:[#allocation19 + $0x74] sm:$0xf]
        %v4291 = vld [vmem:[#allocation19 + $0x78] sm:$0xf]
        %v4292 = vld [vmem:[#allocation19 + $0x7c] sm:$0xf]
        %v4293 = vld [vmem:[#allocation19 + $0x80] sm:$0xf]
        %v4294 = vld [vmem:[#allocation19 + $0x84] sm:$0xf]
        %v4295 = vld [vmem:[#allocation19 + $0x88] sm:$0xf]
        %v4296 = vld [vmem:[#allocation19 + $0x8c] sm:$0xf]
        %v4297 = vld [vmem:[#allocation19 + $0x90] sm:$0xf]
        %v4298 = vld [vmem:[#allocation19 + $0x94] sm:$0xf]
        %v4299 = vld [vmem:[#allocation19 + $0x98] sm:$0xf]
        %v4300 = vld [vmem:[#allocation19 + $0x9c] sm:$0xf]
        %v4301 = vld [vmem:[#allocation19 + $0xa0] sm:$0xf]
        %v4302 = vld [vmem:[#allocation19 + $0xa4] sm:$0xf]
        %v4303 = vld [vmem:[#allocation19 + $0xa8] sm:$0xf]
        %v4304 = vld [vmem:[#allocation19 + $0xac] sm:$0xf]
        %v4305 = vld [vmem:[#allocation19 + $0xb0] sm:$0xf]
        %v4306 = vld [vmem:[#allocation19 + $0xb4] sm:$0xf]
        %v4307 = vld [vmem:[#allocation19 + $0xb8] sm:$0xf]
        %v4308 = vld [vmem:[#allocation19 + $0xbc] sm:$0xf]
        %v4309 = vld [vmem:[#allocation19 + $0xc0] sm:$0xf]
        %v4310 = vld [vmem:[#allocation19 + $0xc4] sm:$0xf]
        %v4311 = vld [vmem:[#allocation19 + $0xc8] sm:$0xf]
        %v4312 = vld [vmem:[#allocation19 + $0xcc] sm:$0xf]
        %v4313 = vld [vmem:[#allocation19 + $0xd0] sm:$0xf]
        %v4314 = vld [vmem:[#allocation19 + $0xd4] sm:$0xf]
        %v4315 = vld [vmem:[#allocation19 + $0xd8] sm:$0xf]
        %v4316 = vld [vmem:[#allocation19 + $0xdc] sm:$0xf]
        %v4317 = vld [vmem:[#allocation19 + $0xe0] sm:$0xf]
        %v4318 = vld [vmem:[#allocation19 + $0xe4] sm:$0xf]
        %v4319 = vld [vmem:[#allocation19 + $0xe8] sm:$0xf]
        %v4320 = vld [vmem:[#allocation19 + $0xec] sm:$0xf]
        %v4321 = vld [vmem:[#allocation19 + $0xf0] sm:$0xf]
        %v4322 = vld [vmem:[#allocation19 + $0xf4] sm:$0xf]
        %v4323 = vld [vmem:[#allocation19 + $0xf8] sm:$0xf]
        %v4324 = vld [vmem:[#allocation19 + $0xfc] sm:$0xf]
        %v4325 = vld [vmem:[%s55] sm:$0x1]
        %v4326 = vld [vmem:[%s57] sm:$0x1]
        %v4327 = vld [vmem:[%s59] sm:$0x1]
        %v4328 = vpack.c.bf16 %v4175, %v4175
        %v4330 = vperm.slane %v4208, 0
        %v4331 = vperm.slane %v4208, 1
        %v4332 = vperm.slane %v4208, 2
        %v4368 = vunpack.c.l.b16 %v4176
        %v4369 = vunpack.c.h.b16 %v4176
        %v4370 = vunpack.c.l.b16 %v4177
        %v4371 = vunpack.c.l.b16 %v4178
        %v4372 = vunpack.c.h.b16 %v4178
        %v4373 = vunpack.c.l.b16 %v4179
        %v4374 = vunpack.c.l.b16 %v4180
        %v4375 = vunpack.c.h.b16 %v4180
        %v4376 = vunpack.c.l.b16 %v4181
        %v4377 = vunpack.c.l.b16 %v4182
        %v4378 = vunpack.c.h.b16 %v4182
        %v4379 = vunpack.c.l.b16 %v4183
        %v4380 = vunpack.c.l.b16 %v4184
        %v4381 = vunpack.c.h.b16 %v4184
        %v4382 = vunpack.c.l.b16 %v4185
        %v4383 = vunpack.c.l.b16 %v4186
        %v4384 = vunpack.c.h.b16 %v4186
        %v4385 = vunpack.c.l.b16 %v4187
        %v4386 = vunpack.c.l.b16 %v4188
        %v4387 = vunpack.c.h.b16 %v4188
        %v4388 = vunpack.c.l.b16 %v4189
        %v4389 = vunpack.c.l.b16 %v4190
        %v4390 = vunpack.c.h.b16 %v4190
        %v4391 = vunpack.c.l.b16 %v4191
        %v4392 = vunpack.c.l.b16 %v4192
        %v4393 = vunpack.c.h.b16 %v4192
        %v4394 = vunpack.c.l.b16 %v4193
        %v4395 = vunpack.c.l.b16 %v4194
        %v4396 = vunpack.c.h.b16 %v4194
        %v4397 = vunpack.c.l.b16 %v4195
        %v4398 = vunpack.c.l.b16 %v4196
        %v4399 = vunpack.c.h.b16 %v4196
        %v4400 = vunpack.c.l.b16 %v4197
        %v4401 = vunpack.c.l.b16 %v4198
        %v4402 = vunpack.c.h.b16 %v4198
        %v4403 = vunpack.c.l.b16 %v4199
        %v4404 = vunpack.c.l.b16 %v4200
        %v4405 = vunpack.c.h.b16 %v4200
        %v4406 = vunpack.c.l.b16 %v4201
        %v4407 = vunpack.c.l.b16 %v4202
        %v4408 = vunpack.c.h.b16 %v4202
        %v4409 = vunpack.c.l.b16 %v4203
        %v4410 = vunpack.c.l.b16 %v4204
        %v4411 = vunpack.c.h.b16 %v4204
        %v4412 = vunpack.c.l.b16 %v4205
        %v4413 = vunpack.c.l.b16 %v4206
        %v4414 = vunpack.c.h.b16 %v4206
        %v4415 = vunpack.c.l.b16 %v4207
        %v4416 = vpack.c.b16 %v4371, %v4368
        %v4417 = vpack.c.b16 %v4372, %v4369
        %v4418 = vpack.c.b16 %v4373, %v4370
        %v4419 = vpack.c.b16 %v4377, %v4374
        %v4420 = vpack.c.b16 %v4378, %v4375
        %v4421 = vpack.c.b16 %v4379, %v4376
        %v4422 = vpack.c.b16 %v4383, %v4380
        %v4423 = vpack.c.b16 %v4384, %v4381
        %v4424 = vpack.c.b16 %v4385, %v4382
        %v4425 = vpack.c.b16 %v4389, %v4386
        %v4426 = vpack.c.b16 %v4390, %v4387
        %v4427 = vpack.c.b16 %v4391, %v4388
        %v4428 = vpack.c.b16 %v4395, %v4392
        %v4429 = vpack.c.b16 %v4396, %v4393
        %v4430 = vpack.c.b16 %v4397, %v4394
        %v4431 = vpack.c.b16 %v4401, %v4398
        %v4432 = vpack.c.b16 %v4402, %v4399
        %v4433 = vpack.c.b16 %v4403, %v4400
        %v4434 = vpack.c.b16 %v4407, %v4404
        %v4435 = vpack.c.b16 %v4408, %v4405
        %v4436 = vpack.c.b16 %v4409, %v4406
        %v4437 = vpack.c.b16 %v4413, %v4410
        %v4438 = vpack.c.b16 %v4414, %v4411
        %v4439 = vpack.c.b16 %v4415, %v4412
        %4464 = vmatpush.bf16.msra.mxu0 %v4437
        %4465 = vmatpush.bf16.msra.mxu0 %v4434
        %4466 = vmatpush.bf16.msra.mxu0 %v4431
        %4467 = vmatpush.bf16.msra.mxu0 %v4428
        %4468 = vmatpush.bf16.msra.mxu0 %v4425
        %4469 = vmatpush.bf16.msra.mxu0 %v4422
        %4470 = vmatpush.bf16.msra.mxu0 %v4419
        %4471 = vmatpush.bf16.msra.mxu0 %v4416
        %4472 = vmatmul.bf16.gmra.mxu0 %v4328
        %v4473 = vpop.f32.mrf.mxu0
        %v4474 = vadd.f32 %v4330, %v4473
        %v4475 = vpop.f32.mrf.mxu0
        %4476 = vdwg.mxu0
        %4477 = vmatpush.bf16.msra.mxu0 %v4438
        %4478 = vmatpush.bf16.msra.mxu0 %v4435
        %4479 = vmatpush.bf16.msra.mxu0 %v4432
        %4480 = vmatpush.bf16.msra.mxu0 %v4429
        %4481 = vmatpush.bf16.msra.mxu0 %v4426
        %4482 = vmatpush.bf16.msra.mxu0 %v4423
        %4483 = vmatpush.bf16.msra.mxu0 %v4420
        %4484 = vmatpush.bf16.msra.mxu0 %v4417
        %4485 = vmatmul.bf16.gmra.mxu0 %v4328
        %v4486 = vpop.f32.mrf.mxu0
        %v4487 = vadd.f32 %v4331, %v4486
        %v4488 = vpop.f32.mrf.mxu0
        %4489 = vdwg.mxu0
        %4490 = vmatpush.bf16.msra.mxu0 %v4439
        %4491 = vmatpush.bf16.msra.mxu0 %v4436
        %4492 = vmatpush.bf16.msra.mxu0 %v4433
        %4493 = vmatpush.bf16.msra.mxu0 %v4430
        %4494 = vmatpush.bf16.msra.mxu0 %v4427
        %4495 = vmatpush.bf16.msra.mxu0 %v4424
        %4496 = vmatpush.bf16.msra.mxu0 %v4421
        %4497 = vmatpush.bf16.msra.mxu0 %v4418
        %4498 = vmatmul.bf16.gmra.mxu0 %v4328
        %v4499 = vpop.f32.mrf.mxu0
        %v4500 = vadd.f32 %v4332, %v4499
        %v4501 = vpop.f32.mrf.mxu0
        %4502 = vdwg.mxu0
        %v4503 = vpack.c.bf16 %v4474, %v4474
        %v4504 = vpack.c.bf16 %v4487, %v4487
        %v4505 = vpack.c.bf16 %v4500, %v4500
        %v4507 = vunpack.c.l.b16 %v4503
        %v4508 = vpack.c.b16 %v4507, %v4507
        %v4510 = vshrl.u32 %v4508, 16
        %v4512 = vrot.slane %v4510, 3
        %v4514 = vsel %vm3163, %v4512, 0
        %v4517 = vsel %vm3163, %v4504, 0
        %4519 = vmatpush.bf16.xpose.msra.mxu0 0
        %4520 = vmatpush.bf16.xpose.msra.mxu0 0
        %4521 = vmatpush.bf16.xpose.msra.mxu0 0
        %4522 = vmatpush.bf16.xpose.msra.mxu0 0
        %4523 = vmatpush.bf16.xpose.msra.mxu0 0
        %4524 = vmatpush.bf16.xpose.msra.mxu0 0
        %4525 = vmatpush.bf16.xpose.msra.mxu0 0
        %4526 = vmatpush.bf16.xpose.msra.mxu0 %v4517
        %4527 = vmatmul.bf16.gmra.mxu0 %v4514
        %v4528 = vpop.f32.mrf.mxu0
        %v4529 = vadd.f32 0.0, %v4528
        %v4530 = vpop.f32.mrf.mxu0
        %4531 = vdwg.mxu0
        %v4532 = vmul.f32 %v4529, 0.17677669
        %vm4533 = vcmask 57344
        %v4534 = vsel %vm4533, %v4532, -inf
        %4535 = vmax.xlane.f32.xlu0 %v4534
        %v4536 = vpop.xlane.xlu0 %4535
        %v4537 = vsub.f32 %v4532, %v4536
        %v4538 = vmul.f32 %v4537, 1.442695
        %v4539 = vpow.pop %v4538
        %v4540 = vsel %vm4533, %v4539, 0.0
        %4541 = vadd.xlane.f32.xlu0 %v4540
        %v4542 = vpop.xlane.xlu0 %4541
        %v4543 = vrcp.pop %v4542
        %v4544 = vmul.f32 %v4539, %v4543
        %v4545 = vpack.c.bf16 %v4544, %v4544
        %v4547 = vsel %vm3184, %v4545, 0
        %v4550 = vsel %vm1341, %v4505, 0
        %4552 = vmatpush.bf16.msra.mxu0 0
        %4553 = vmatpush.bf16.msra.mxu0 0
        %4554 = vmatpush.bf16.msra.mxu0 0
        %4555 = vmatpush.bf16.msra.mxu0 0
        %4556 = vmatpush.bf16.msra.mxu0 0
        %4557 = vmatpush.bf16.msra.mxu0 0
        %4558 = vmatpush.bf16.msra.mxu0 0
        %4559 = vmatpush.bf16.msra.mxu0 %v4550
        %4560 = vmatmul.bf16.gmra.mxu0 %v4547
        %v4561 = vpop.f32.mrf.mxu0
        %v4562 = vadd.f32 0.0, %v4561
        %v4563 = vpop.f32.mrf.mxu0
        %4564 = vdwg.mxu0
        %4565 = vrot.lane.b32.xlu0 %v4512, 96
        %v4566 = vpop.permute.xlu0 %4565
        %v4568 = vunpack.c.l.b16 %v4504
        %v4569 = vpack.c.b16 %v4568, %v4568
        %4570 = vrot.lane.b32.xlu0 %v4569, 96
        %v4571 = vpop.permute.xlu0 %4570
        %v4573 = vsel %vm3163, %v4566, 0
        %v4576 = vsel %vm3163, %v4571, 0
        %4578 = vmatpush.bf16.xpose.msra.mxu0 0
        %4579 = vmatpush.bf16.xpose.msra.mxu0 0
        %4580 = vmatpush.bf16.xpose.msra.mxu0 0
        %4581 = vmatpush.bf16.xpose.msra.mxu0 0
        %4582 = vmatpush.bf16.xpose.msra.mxu0 0
        %4583 = vmatpush.bf16.xpose.msra.mxu0 0
        %4584 = vmatpush.bf16.xpose.msra.mxu0 0
        %4585 = vmatpush.bf16.xpose.msra.mxu0 %v4576
        %4586 = vmatmul.bf16.gmra.mxu0 %v4573
        %v4587 = vpop.f32.mrf.mxu0
        %v4588 = vadd.f32 0.0, %v4587
        %v4589 = vpop.f32.mrf.mxu0
        %4590 = vdwg.mxu0
        %v4591 = vmul.f32 %v4588, 0.17677669
        %v4592 = vsel %vm4533, %v4591, -inf
        %4593 = vmax.xlane.f32.xlu0 %v4592
        %v4594 = vpop.xlane.xlu0 %4593
        %v4595 = vsub.f32 %v4591, %v4594
        %v4596 = vmul.f32 %v4595, 1.442695
        %v4597 = vpow.pop %v4596
        %v4598 = vsel %vm4533, %v4597, 0.0
        %4599 = vadd.xlane.f32.xlu0 %v4598
        %v4600 = vpop.xlane.xlu0 %4599
        %v4601 = vrcp.pop %v4600
        %v4602 = vmul.f32 %v4597, %v4601
        %v4603 = vpack.c.bf16 %v4602, %v4602
        %v4605 = vunpack.c.l.b16 %v4505
        %v4606 = vpack.c.b16 %v4605, %v4605
        %4607 = vrot.lane.b32.xlu0 %v4606, 96
        %v4608 = vpop.permute.xlu0 %4607
        %v4610 = vsel %vm3184, %v4603, 0
        %v4613 = vsel %vm1341, %v4608, 0
        %4615 = vmatpush.bf16.msra.mxu0 0
        %4616 = vmatpush.bf16.msra.mxu0 0
        %4617 = vmatpush.bf16.msra.mxu0 0
        %4618 = vmatpush.bf16.msra.mxu0 0
        %4619 = vmatpush.bf16.msra.mxu0 0
        %4620 = vmatpush.bf16.msra.mxu0 0
        %4621 = vmatpush.bf16.msra.mxu0 0
        %4622 = vmatpush.bf16.msra.mxu0 %v4613
        %4623 = vmatmul.bf16.gmra.mxu0 %v4610
        %v4624 = vpop.f32.mrf.mxu0
        %v4625 = vadd.f32 0.0, %v4624
        %v4626 = vpop.f32.mrf.mxu0
        %4627 = vdwg.mxu0
        %4628 = vrot.lane.b32.xlu0 %v4512, 64
        %v4629 = vpop.permute.xlu0 %4628
        %4630 = vrot.lane.b32.xlu0 %v4569, 64
        %v4631 = vpop.permute.xlu0 %4630
        %v4633 = vsel %vm3163, %v4629, 0
        %v4636 = vsel %vm3163, %v4631, 0
        %4638 = vmatpush.bf16.xpose.msra.mxu0 0
        %4639 = vmatpush.bf16.xpose.msra.mxu0 0
        %4640 = vmatpush.bf16.xpose.msra.mxu0 0
        %4641 = vmatpush.bf16.xpose.msra.mxu0 0
        %4642 = vmatpush.bf16.xpose.msra.mxu0 0
        %4643 = vmatpush.bf16.xpose.msra.mxu0 0
        %4644 = vmatpush.bf16.xpose.msra.mxu0 0
        %4645 = vmatpush.bf16.xpose.msra.mxu0 %v4636
        %4646 = vmatmul.bf16.gmra.mxu0 %v4633
        %v4647 = vpop.f32.mrf.mxu0
        %v4648 = vadd.f32 0.0, %v4647
        %v4649 = vpop.f32.mrf.mxu0
        %4650 = vdwg.mxu0
        %v4651 = vmul.f32 %v4648, 0.17677669
        %v4652 = vsel %vm4533, %v4651, -inf
        %4653 = vmax.xlane.f32.xlu0 %v4652
        %v4654 = vpop.xlane.xlu0 %4653
        %v4655 = vsub.f32 %v4651, %v4654
        %v4656 = vmul.f32 %v4655, 1.442695
        %v4657 = vpow.pop %v4656
        %v4658 = vsel %vm4533, %v4657, 0.0
        %4659 = vadd.xlane.f32.xlu0 %v4658
        %v4660 = vpop.xlane.xlu0 %4659
        %v4661 = vrcp.pop %v4660
        %v4662 = vmul.f32 %v4657, %v4661
        %v4663 = vpack.c.bf16 %v4662, %v4662
        %4664 = vrot.lane.b32.xlu0 %v4606, 64
        %v4665 = vpop.permute.xlu0 %4664
        %v4667 = vsel %vm3184, %v4663, 0
        %v4670 = vsel %vm1341, %v4665, 0
        %4672 = vmatpush.bf16.msra.mxu0 0
        %4673 = vmatpush.bf16.msra.mxu0 0
        %4674 = vmatpush.bf16.msra.mxu0 0
        %4675 = vmatpush.bf16.msra.mxu0 0
        %4676 = vmatpush.bf16.msra.mxu0 0
        %4677 = vmatpush.bf16.msra.mxu0 0
        %4678 = vmatpush.bf16.msra.mxu0 0
        %4679 = vmatpush.bf16.msra.mxu0 %v4670
        %4680 = vmatmul.bf16.gmra.mxu0 %v4667
        %v4681 = vpop.f32.mrf.mxu0
        %v4682 = vadd.f32 0.0, %v4681
        %v4683 = vpop.f32.mrf.mxu0
        %4684 = vdwg.mxu0
        %4685 = vrot.lane.b32.xlu0 %v4512, 32
        %v4686 = vpop.permute.xlu0 %4685
        %4687 = vrot.lane.b32.xlu0 %v4569, 32
        %v4688 = vpop.permute.xlu0 %4687
        %v4690 = vsel %vm3163, %v4686, 0
        %v4693 = vsel %vm3163, %v4688, 0
        %4695 = vmatpush.bf16.xpose.msra.mxu0 0
        %4696 = vmatpush.bf16.xpose.msra.mxu0 0
        %4697 = vmatpush.bf16.xpose.msra.mxu0 0
        %4698 = vmatpush.bf16.xpose.msra.mxu0 0
        %4699 = vmatpush.bf16.xpose.msra.mxu0 0
        %4700 = vmatpush.bf16.xpose.msra.mxu0 0
        %4701 = vmatpush.bf16.xpose.msra.mxu0 0
        %4702 = vmatpush.bf16.xpose.msra.mxu0 %v4693
        %4703 = vmatmul.bf16.gmra.mxu0 %v4690
        %v4704 = vpop.f32.mrf.mxu0
        %v4705 = vadd.f32 0.0, %v4704
        %v4706 = vpop.f32.mrf.mxu0
        %4707 = vdwg.mxu0
        %v4708 = vmul.f32 %v4705, 0.17677669
        %v4709 = vsel %vm4533, %v4708, -inf
        %4710 = vmax.xlane.f32.xlu0 %v4709
        %v4711 = vpop.xlane.xlu0 %4710
        %v4712 = vsub.f32 %v4708, %v4711
        %v4713 = vmul.f32 %v4712, 1.442695
        %v4714 = vpow.pop %v4713
        %v4715 = vsel %vm4533, %v4714, 0.0
        %4716 = vadd.xlane.f32.xlu0 %v4715
        %v4717 = vpop.xlane.xlu0 %4716
        %v4718 = vrcp.pop %v4717
        %v4719 = vmul.f32 %v4714, %v4718
        %v4720 = vpack.c.bf16 %v4719, %v4719
        %4721 = vrot.lane.b32.xlu0 %v4606, 32
        %v4722 = vpop.permute.xlu0 %4721
        %v4724 = vsel %vm3184, %v4720, 0
        %v4727 = vsel %vm1341, %v4722, 0
        %4729 = vmatpush.bf16.msra.mxu0 0
        %4730 = vmatpush.bf16.msra.mxu0 0
        %4731 = vmatpush.bf16.msra.mxu0 0
        %4732 = vmatpush.bf16.msra.mxu0 0
        %4733 = vmatpush.bf16.msra.mxu0 0
        %4734 = vmatpush.bf16.msra.mxu0 0
        %4735 = vmatpush.bf16.msra.mxu0 0
        %4736 = vmatpush.bf16.msra.mxu0 %v4727
        %4737 = vmatmul.bf16.gmra.mxu0 %v4724
        %v4738 = vpop.f32.mrf.mxu0
        %v4739 = vadd.f32 0.0, %v4738
        %v4740 = vpop.f32.mrf.mxu0
        %4741 = vdwg.mxu0
        %4743 = vrot.lane.b32.xlu0 %v4625, 32
        %v4744 = vpop.permute.xlu0 %4743
        %4747 = vrot.lane.b32.xlu0 %v4682, 64
        %v4748 = vpop.permute.xlu0 %4747
        %4751 = vrot.lane.b32.xlu0 %v4739, 96
        %v4752 = vpop.permute.xlu0 %4751
        %v4754 = vsel %vm3163, %v4562, %v4744
        %v4755 = vsel %vm3409, %v4754, %v4748
        %v4756 = vsel %vm3411, %v4755, %v4752
        %v4757 = vpack.c.bf16 %v4756, %v4756
        %v4774 = vunpack.c.l.b16 %v4209
        %v4775 = vunpack.c.l.b16 %v4210
        %v4776 = vunpack.c.l.b16 %v4211
        %v4777 = vunpack.c.l.b16 %v4212
        %v4778 = vunpack.c.l.b16 %v4213
        %v4779 = vunpack.c.l.b16 %v4214
        %v4780 = vunpack.c.l.b16 %v4215
        %v4781 = vunpack.c.l.b16 %v4216
        %v4782 = vunpack.c.l.b16 %v4217
        %v4783 = vunpack.c.l.b16 %v4218
        %v4784 = vunpack.c.l.b16 %v4219
        %v4785 = vunpack.c.l.b16 %v4220
        %v4786 = vunpack.c.l.b16 %v4221
        %v4787 = vunpack.c.l.b16 %v4222
        %v4788 = vunpack.c.l.b16 %v4223
        %v4789 = vunpack.c.l.b16 %v4224
        %v4790 = vpack.c.b16 %v4775, %v4774
        %v4791 = vpack.c.b16 %v4777, %v4776
        %v4792 = vpack.c.b16 %v4779, %v4778
        %v4793 = vpack.c.b16 %v4781, %v4780
        %v4794 = vpack.c.b16 %v4783, %v4782
        %v4795 = vpack.c.b16 %v4785, %v4784
        %v4796 = vpack.c.b16 %v4787, %v4786
        %v4797 = vpack.c.b16 %v4789, %v4788
        %4806 = vmatpush.bf16.msra.mxu0 %v4797
        %4807 = vmatpush.bf16.msra.mxu0 %v4796
        %4808 = vmatpush.bf16.msra.mxu0 %v4795
        %4809 = vmatpush.bf16.msra.mxu0 %v4794
        %4810 = vmatpush.bf16.msra.mxu0 %v4793
        %4811 = vmatpush.bf16.msra.mxu0 %v4792
        %4812 = vmatpush.bf16.msra.mxu0 %v4791
        %4813 = vmatpush.bf16.msra.mxu0 %v4790
        %4814 = vmatmul.bf16.gmra.mxu0 %v4757
        %v4815 = vpop.f32.mrf.mxu0
        %v4816 = vadd.f32 %v4225, %v4815
        %v4817 = vpop.f32.mrf.mxu0
        %4818 = vdwg.mxu0
        %v4820 = vrot.slane %v4816, 1
        %v4822 = vadd.f32 %v4175, %v4820
        %vm4823 = vcmask 1047559
        %v4824 = vsel %vm4823, %v4822, 0.0
        %4825 = vadd.xlane.f32.xlu0 %v4824
        %v4826 = vpop.xlane.xlu0 %4825
        %v4827 = vmul.f32 %v4826, %v3487
        %v4828 = vsub.f32 %v4822, %v4827
        %v4829 = vmul.f32 %v4828, %v4828
        %v4830 = vsel %vm4823, %v4829, 0.0
        %4831 = vadd.xlane.f32.xlu0 %v4830
        %v4832 = vpop.xlane.xlu0 %4831
        %v4833 = vmul.f32 %v4832, %v3487
        %v4834 = vadd.f32 %v4833, 1e-05
        %v4835 = vrsqrt.pop %v4834
        %v4836 = vmul.f32 %v4835, %v4834
        %v4837 = vmul.f32 %v4836, %v4835
        %v4838 = vmul.f32 0.5, %v4837
        %v4839 = vsub.f32 1.5, %v4838
        %v4840 = vmul.f32 %v4835, %v4839
        %vm4841 = vweird.f32 %v4834
        %vm4842 = vweird.f32 %v4835
        %vm4843 = vmor %vm4841, %vm4842
        %v4844 = vsel %vm4843, %v4835, %v4840
        %v4845 = vmul.f32 %v4828, %v4844
        %v4847 = vperm.slane %v4226, 0
        %v4849 = vmul.f32 %v4845, %v4847
        %v4851 = vperm.slane %v4227, 0
        %v4853 = vadd.f32 %v4849, %v4851
        %v4854 = vpack.c.bf16 %v4853, %v4853
        %v4856 = vshrl.u32 %v4854, 16
        %v4858 = vrot.slane %v4856, 3
        %v4892 = vunpack.c.l.b16 %v4228
        %v4893 = vunpack.c.h.b16 %v4228
        %v4894 = vunpack.c.l.b16 %v4229
        %v4895 = vunpack.c.h.b16 %v4229
        %v4896 = vunpack.c.l.b16 %v4230
        %v4897 = vunpack.c.h.b16 %v4230
        %v4898 = vunpack.c.l.b16 %v4231
        %v4899 = vunpack.c.h.b16 %v4231
        %v4900 = vunpack.c.l.b16 %v4232
        %v4901 = vunpack.c.h.b16 %v4232
        %v4902 = vunpack.c.l.b16 %v4233
        %v4903 = vunpack.c.h.b16 %v4233
        %v4904 = vunpack.c.l.b16 %v4234
        %v4905 = vunpack.c.h.b16 %v4234
        %v4906 = vunpack.c.l.b16 %v4235
        %v4907 = vunpack.c.h.b16 %v4235
        %v4908 = vunpack.c.l.b16 %v4236
        %v4909 = vunpack.c.h.b16 %v4236
        %v4910 = vunpack.c.l.b16 %v4237
        %v4911 = vunpack.c.h.b16 %v4237
        %v4912 = vunpack.c.l.b16 %v4238
        %v4913 = vunpack.c.h.b16 %v4238
        %v4914 = vunpack.c.l.b16 %v4239
        %v4915 = vunpack.c.h.b16 %v4239
        %v4916 = vunpack.c.l.b16 %v4240
        %v4917 = vunpack.c.h.b16 %v4240
        %v4918 = vunpack.c.l.b16 %v4241
        %v4919 = vunpack.c.h.b16 %v4241
        %v4920 = vunpack.c.l.b16 %v4242
        %v4921 = vunpack.c.h.b16 %v4242
        %v4922 = vunpack.c.l.b16 %v4243
        %v4923 = vunpack.c.h.b16 %v4243
        %v4924 = vunpack.c.l.b16 %v4244
        %v4925 = vunpack.c.h.b16 %v4244
        %v4926 = vunpack.c.l.b16 %v4245
        %v4927 = vunpack.c.h.b16 %v4245
        %v4928 = vunpack.c.l.b16 %v4246
        %v4929 = vunpack.c.h.b16 %v4246
        %v4930 = vunpack.c.l.b16 %v4247
        %v4931 = vunpack.c.h.b16 %v4247
        %v4932 = vunpack.c.l.b16 %v4248
        %v4933 = vunpack.c.h.b16 %v4248
        %v4934 = vunpack.c.l.b16 %v4249
        %v4935 = vunpack.c.h.b16 %v4249
        %v4936 = vunpack.c.l.b16 %v4250
        %v4937 = vunpack.c.h.b16 %v4250
        %v4938 = vunpack.c.l.b16 %v4251
        %v4939 = vunpack.c.h.b16 %v4251
        %v4940 = vunpack.c.l.b16 %v4252
        %v4941 = vunpack.c.h.b16 %v4252
        %v4942 = vunpack.c.l.b16 %v4253
        %v4943 = vunpack.c.h.b16 %v4253
        %v4944 = vunpack.c.l.b16 %v4254
        %v4945 = vunpack.c.h.b16 %v4254
        %v4946 = vunpack.c.l.b16 %v4255
        %v4947 = vunpack.c.h.b16 %v4255
        %v4948 = vunpack.c.l.b16 %v4256
        %v4949 = vunpack.c.h.b16 %v4256
        %v4950 = vunpack.c.l.b16 %v4257
        %v4951 = vunpack.c.h.b16 %v4257
        %v4952 = vunpack.c.l.b16 %v4258
        %v4953 = vunpack.c.h.b16 %v4258
        %v4954 = vunpack.c.l.b16 %v4259
        %v4955 = vunpack.c.h.b16 %v4259
        %v4956 = vpack.c.b16 %v4896, %v4892
        %v4957 = vpack.c.b16 %v4897, %v4893
        %v4958 = vpack.c.b16 %v4898, %v4894
        %v4959 = vpack.c.b16 %v4899, %v4895
        %v4960 = vpack.c.b16 %v4904, %v4900
        %v4961 = vpack.c.b16 %v4905, %v4901
        %v4962 = vpack.c.b16 %v4906, %v4902
        %v4963 = vpack.c.b16 %v4907, %v4903
        %v4964 = vpack.c.b16 %v4912, %v4908
        %v4965 = vpack.c.b16 %v4913, %v4909
        %v4966 = vpack.c.b16 %v4914, %v4910
        %v4967 = vpack.c.b16 %v4915, %v4911
        %v4968 = vpack.c.b16 %v4920, %v4916
        %v4969 = vpack.c.b16 %v4921, %v4917
        %v4970 = vpack.c.b16 %v4922, %v4918
        %v4971 = vpack.c.b16 %v4923, %v4919
        %v4972 = vpack.c.b16 %v4928, %v4924
        %v4973 = vpack.c.b16 %v4929, %v4925
        %v4974 = vpack.c.b16 %v4930, %v4926
        %v4975 = vpack.c.b16 %v4931, %v4927
        %v4976 = vpack.c.b16 %v4936, %v4932
        %v4977 = vpack.c.b16 %v4937, %v4933
        %v4978 = vpack.c.b16 %v4938, %v4934
        %v4979 = vpack.c.b16 %v4939, %v4935
        %v4980 = vpack.c.b16 %v4944, %v4940
        %v4981 = vpack.c.b16 %v4945, %v4941
        %v4982 = vpack.c.b16 %v4946, %v4942
        %v4983 = vpack.c.b16 %v4947, %v4943
        %v4984 = vpack.c.b16 %v4952, %v4948
        %v4985 = vpack.c.b16 %v4953, %v4949
        %v4986 = vpack.c.b16 %v4954, %v4950
        %v4987 = vpack.c.b16 %v4955, %v4951
        %v5021 = vperm.slane %v4260, 0
        %v5022 = vperm.slane %v4260, 1
        %v5023 = vperm.slane %v4260, 2
        %v5024 = vperm.slane %v4260, 3
        %5029 = vmatpush.bf16.msra.mxu0 %v4984
        %5030 = vmatpush.bf16.msra.mxu0 %v4980
        %5031 = vmatpush.bf16.msra.mxu0 %v4976
        %5032 = vmatpush.bf16.msra.mxu0 %v4972
        %5033 = vmatpush.bf16.msra.mxu0 %v4968
        %5034 = vmatpush.bf16.msra.mxu0 %v4964
        %5035 = vmatpush.bf16.msra.mxu0 %v4960
        %5036 = vmatpush.bf16.msra.mxu0 %v4956
        %5037 = vmatmul.bf16.gmra.mxu0 %v4858
        %v5038 = vpop.f32.mrf.mxu0
        %v5039 = vadd.f32 %v5021, %v5038
        %v5040 = vpop.f32.mrf.mxu0
        %5041 = vdwg.mxu0
        %5042 = vmatpush.bf16.msra.mxu0 %v4985
        %5043 = vmatpush.bf16.msra.mxu0 %v4981
        %5044 = vmatpush.bf16.msra.mxu0 %v4977
        %5045 = vmatpush.bf16.msra.mxu0 %v4973
        %5046 = vmatpush.bf16.msra.mxu0 %v4969
        %5047 = vmatpush.bf16.msra.mxu0 %v4965
        %5048 = vmatpush.bf16.msra.mxu0 %v4961
        %5049 = vmatpush.bf16.msra.mxu0 %v4957
        %5050 = vmatmul.bf16.gmra.mxu0 %v4858
        %v5051 = vpop.f32.mrf.mxu0
        %v5052 = vadd.f32 %v5022, %v5051
        %v5053 = vpop.f32.mrf.mxu0
        %5054 = vdwg.mxu0
        %5055 = vmatpush.bf16.msra.mxu0 %v4986
        %5056 = vmatpush.bf16.msra.mxu0 %v4982
        %5057 = vmatpush.bf16.msra.mxu0 %v4978
        %5058 = vmatpush.bf16.msra.mxu0 %v4974
        %5059 = vmatpush.bf16.msra.mxu0 %v4970
        %5060 = vmatpush.bf16.msra.mxu0 %v4966
        %5061 = vmatpush.bf16.msra.mxu0 %v4962
        %5062 = vmatpush.bf16.msra.mxu0 %v4958
        %5063 = vmatmul.bf16.gmra.mxu0 %v4858
        %v5064 = vpop.f32.mrf.mxu0
        %v5065 = vadd.f32 %v5023, %v5064
        %v5066 = vpop.f32.mrf.mxu0
        %5067 = vdwg.mxu0
        %5068 = vmatpush.bf16.msra.mxu0 %v4987
        %5069 = vmatpush.bf16.msra.mxu0 %v4983
        %5070 = vmatpush.bf16.msra.mxu0 %v4979
        %5071 = vmatpush.bf16.msra.mxu0 %v4975
        %5072 = vmatpush.bf16.msra.mxu0 %v4971
        %5073 = vmatpush.bf16.msra.mxu0 %v4967
        %5074 = vmatpush.bf16.msra.mxu0 %v4963
        %5075 = vmatpush.bf16.msra.mxu0 %v4959
        %5076 = vmatmul.bf16.gmra.mxu0 %v4858
        %v5077 = vpop.f32.mrf.mxu0
        %v5078 = vadd.f32 %v5024, %v5077
        %v5079 = vpop.f32.mrf.mxu0
        %5080 = vdwg.mxu0
        %v5081 = vmul.f32 %v5039, 0.5
        %v5082 = vmul.f32 %v5052, 0.5
        %v5083 = vmul.f32 %v5065, 0.5
        %v5084 = vmul.f32 %v5078, 0.5
        %v5085 = vmul.f32 %v5039, 0.70710677
        %v5086 = vmul.f32 %v5052, 0.70710677
        %v5087 = vmul.f32 %v5065, 0.70710677
        %v5088 = vmul.f32 %v5078, 0.70710677
        %v5089 = vand.u32 2147483647, %v5085
        %v5090 = vand.u32 2147483647, %v5086
        %v5091 = vand.u32 2147483647, %v5087
        %v5092 = vand.u32 2147483647, %v5088
        %v5093 = vmul.f32 %v5089, 0.3275911
        %v5094 = vmul.f32 %v5090, 0.3275911
        %v5095 = vmul.f32 %v5091, 0.3275911
        %v5096 = vmul.f32 %v5092, 0.3275911
        %v5097 = vadd.f32 %v5093, 1.0
        %v5098 = vadd.f32 %v5094, 1.0
        %v5099 = vadd.f32 %v5095, 1.0
        %v5100 = vadd.f32 %v5096, 1.0
        %v5101 = vrcp.pop %v5097
        %v5102 = vmul.f32 %v5097, %v5101
        %v5103 = vsub.f32 1.0, %v5102
        %v5104 = vmul.f32 %v5101, %v5103
        %v5105 = vadd.f32 %v5101, %v5104
        %vm5106 = vweird.f32 %v5097
        %vm5107 = vweird.f32 %v5101
        %vm5108 = vmor %vm5106, %vm5107
        %v5109 = vsel %vm5108, %v5101, %v5105
        %v5110 = vand.u32 2147483647, %v5097
        %vm5111 = vcmp.eq.f32.partialorder %v5110, 8.507059e+37
        %v5112 = vand.u32 %v5097, 2147483648
        %v5113 = vor.u32 1.1754944e-38, %v5112
        %v5114 = vsel %vm5111, %v5113, %v5109
        %v5115 = vmul.f32 1.0, %v5114
        %v5116 = vrcp.pop %v5098
        %v5117 = vmul.f32 %v5098, %v5116
        %v5118 = vsub.f32 1.0, %v5117
        %v5119 = vmul.f32 %v5116, %v5118
        %v5120 = vadd.f32 %v5116, %v5119
        %vm5121 = vweird.f32 %v5098
        %vm5122 = vweird.f32 %v5116
        %vm5123 = vmor %vm5121, %vm5122
        %v5124 = vsel %vm5123, %v5116, %v5120
        %v5125 = vand.u32 2147483647, %v5098
        %vm5126 = vcmp.eq.f32.partialorder %v5125, 8.507059e+37
        %v5127 = vand.u32 %v5098, 2147483648
        %v5128 = vor.u32 1.1754944e-38, %v5127
        %v5129 = vsel %vm5126, %v5128, %v5124
        %v5130 = vmul.f32 1.0, %v5129
        %v5131 = vrcp.pop %v5099
        %v5132 = vmul.f32 %v5099, %v5131
        %v5133 = vsub.f32 1.0, %v5132
        %v5134 = vmul.f32 %v5131, %v5133
        %v5135 = vadd.f32 %v5131, %v5134
        %vm5136 = vweird.f32 %v5099
        %vm5137 = vweird.f32 %v5131
        %vm5138 = vmor %vm5136, %vm5137
        %v5139 = vsel %vm5138, %v5131, %v5135
        %v5140 = vand.u32 2147483647, %v5099
        %vm5141 = vcmp.eq.f32.partialorder %v5140, 8.507059e+37
        %v5142 = vand.u32 %v5099, 2147483648
        %v5143 = vor.u32 1.1754944e-38, %v5142
        %v5144 = vsel %vm5141, %v5143, %v5139
        %v5145 = vmul.f32 1.0, %v5144
        %v5146 = vrcp.pop %v5100
        %v5147 = vmul.f32 %v5100, %v5146
        %v5148 = vsub.f32 1.0, %v5147
        %v5149 = vmul.f32 %v5146, %v5148
        %v5150 = vadd.f32 %v5146, %v5149
        %vm5151 = vweird.f32 %v5100
        %vm5152 = vweird.f32 %v5146
        %vm5153 = vmor %vm5151, %vm5152
        %v5154 = vsel %vm5153, %v5146, %v5150
        %v5155 = vand.u32 2147483647, %v5100
        %vm5156 = vcmp.eq.f32.partialorder %v5155, 8.507059e+37
        %v5157 = vand.u32 %v5100, 2147483648
        %v5158 = vor.u32 1.1754944e-38, %v5157
        %v5159 = vsel %vm5156, %v5158, %v5154
        %v5160 = vmul.f32 1.0, %v5159
        %v5161 = vmul.f32 %v5115, 1.0614054
        %v5162 = vmul.f32 %v5130, 1.0614054
        %v5163 = vmul.f32 %v5145, 1.0614054
        %v5164 = vmul.f32 %v5160, 1.0614054
        %v5165 = vadd.f32 %v5161, -1.4531521
        %v5166 = vadd.f32 %v5162, -1.4531521
        %v5167 = vadd.f32 %v5163, -1.4531521
        %v5168 = vadd.f32 %v5164, -1.4531521
        %v5169 = vmul.f32 %v5165, %v5115
        %v5170 = vmul.f32 %v5166, %v5130
        %v5171 = vmul.f32 %v5167, %v5145
        %v5172 = vmul.f32 %v5168, %v5160
        %v5173 = vadd.f32 %v5169, 1.4214138
        %v5174 = vadd.f32 %v5170, 1.4214138
        %v5175 = vadd.f32 %v5171, 1.4214138
        %v5176 = vadd.f32 %v5172, 1.4214138
        %v5177 = vmul.f32 %v5173, %v5115
        %v5178 = vmul.f32 %v5174, %v5130
        %v5179 = vmul.f32 %v5175, %v5145
        %v5180 = vmul.f32 %v5176, %v5160
        %v5181 = vadd.f32 %v5177, -0.28449672
        %v5182 = vadd.f32 %v5178, -0.28449672
        %v5183 = vadd.f32 %v5179, -0.28449672
        %v5184 = vadd.f32 %v5180, -0.28449672
        %v5185 = vmul.f32 %v5181, %v5115
        %v5186 = vmul.f32 %v5182, %v5130
        %v5187 = vmul.f32 %v5183, %v5145
        %v5188 = vmul.f32 %v5184, %v5160
        %v5189 = vadd.f32 %v5185, 0.2548296
        %v5190 = vadd.f32 %v5186, 0.2548296
        %v5191 = vadd.f32 %v5187, 0.2548296
        %v5192 = vadd.f32 %v5188, 0.2548296
        %v5193 = vmul.f32 %v5189, %v5115
        %v5194 = vmul.f32 %v5190, %v5130
        %v5195 = vmul.f32 %v5191, %v5145
        %v5196 = vmul.f32 %v5192, %v5160
        %v5197 = vsub.f32 0.0, %v5089
        %v5198 = vsub.f32 0.0, %v5090
        %v5199 = vsub.f32 0.0, %v5091
        %v5200 = vsub.f32 0.0, %v5092
        %v5201 = vmul.f32 %v5197, %v5089
        %v5202 = vmul.f32 %v5198, %v5090
        %v5203 = vmul.f32 %v5199, %v5091
        %v5204 = vmul.f32 %v5200, %v5092
        %v5205 = vmul.f32 %v5201, 1.442695
        %v5206 = vpow.pop %v5205
        %v5207 = vmul.f32 %v5202, 1.442695
        %v5208 = vpow.pop %v5207
        %v5209 = vmul.f32 %v5203, 1.442695
        %v5210 = vpow.pop %v5209
        %v5211 = vmul.f32 %v5204, 1.442695
        %v5212 = vpow.pop %v5211
        %v5213 = vmul.f32 %v5193, %v5206
        %v5214 = vmul.f32 %v5194, %v5208
        %v5215 = vmul.f32 %v5195, %v5210
        %v5216 = vmul.f32 %v5196, %v5212
        %v5217 = vsub.f32 1.0, %v5213
        %v5218 = vsub.f32 1.0, %v5214
        %v5219 = vsub.f32 1.0, %v5215
        %v5220 = vsub.f32 1.0, %v5216
        %vm5221 = vcmp.ge.f32.partialorder %v5085, 0.0
        %vm5222 = vcmp.ge.f32.partialorder %v5086, 0.0
        %vm5223 = vcmp.ge.f32.partialorder %v5087, 0.0
        %vm5224 = vcmp.ge.f32.partialorder %v5088, 0.0
        %v5225 = vsub.f32 0.0, %v5217
        %v5226 = vsub.f32 0.0, %v5218
        %v5227 = vsub.f32 0.0, %v5219
        %v5228 = vsub.f32 0.0, %v5220
        %v5229 = vsel %vm5221, %v5217, %v5225
        %v5230 = vsel %vm5222, %v5218, %v5226
        %v5231 = vsel %vm5223, %v5219, %v5227
        %v5232 = vsel %vm5224, %v5220, %v5228
        %v5233 = vadd.f32 %v5229, 1.0
        %v5234 = vadd.f32 %v5230, 1.0
        %v5235 = vadd.f32 %v5231, 1.0
        %v5236 = vadd.f32 %v5232, 1.0
        %v5237 = vmul.f32 %v5081, %v5233
        %v5238 = vmul.f32 %v5082, %v5234
        %v5239 = vmul.f32 %v5083, %v5235
        %v5240 = vmul.f32 %v5084, %v5236
        %v5241 = vpack.c.bf16 %v5237, %v5237
        %v5242 = vpack.c.bf16 %v5238, %v5238
        %v5243 = vpack.c.bf16 %v5239, %v5239
        %v5244 = vpack.c.bf16 %v5240, %v5240
        %v5309 = vunpack.c.l.b16 %v4261
        %v5310 = vunpack.c.l.b16 %v4262
        %v5311 = vunpack.c.l.b16 %v4263
        %v5312 = vunpack.c.l.b16 %v4264
        %v5313 = vunpack.c.l.b16 %v4265
        %v5314 = vunpack.c.l.b16 %v4266
        %v5315 = vunpack.c.l.b16 %v4267
        %v5316 = vunpack.c.l.b16 %v4268
        %v5317 = vunpack.c.l.b16 %v4269
        %v5318 = vunpack.c.l.b16 %v4270
        %v5319 = vunpack.c.l.b16 %v4271
        %v5320 = vunpack.c.l.b16 %v4272
        %v5321 = vunpack.c.l.b16 %v4273
        %v5322 = vunpack.c.l.b16 %v4274
        %v5323 = vunpack.c.l.b16 %v4275
        %v5324 = vunpack.c.l.b16 %v4276
        %v5325 = vunpack.c.l.b16 %v4277
        %v5326 = vunpack.c.l.b16 %v4278
        %v5327 = vunpack.c.l.b16 %v4279
        %v5328 = vunpack.c.l.b16 %v4280
        %v5329 = vunpack.c.l.b16 %v4281
        %v5330 = vunpack.c.l.b16 %v4282
        %v5331 = vunpack.c.l.b16 %v4283
        %v5332 = vunpack.c.l.b16 %v4284
        %v5333 = vunpack.c.l.b16 %v4285
        %v5334 = vunpack.c.l.b16 %v4286
        %v5335 = vunpack.c.l.b16 %v4287
        %v5336 = vunpack.c.l.b16 %v4288
        %v5337 = vunpack.c.l.b16 %v4289
        %v5338 = vunpack.c.l.b16 %v4290
        %v5339 = vunpack.c.l.b16 %v4291
        %v5340 = vunpack.c.l.b16 %v4292
        %v5341 = vunpack.c.l.b16 %v4293
        %v5342 = vunpack.c.l.b16 %v4294
        %v5343 = vunpack.c.l.b16 %v4295
        %v5344 = vunpack.c.l.b16 %v4296
        %v5345 = vunpack.c.l.b16 %v4297
        %v5346 = vunpack.c.l.b16 %v4298
        %v5347 = vunpack.c.l.b16 %v4299
        %v5348 = vunpack.c.l.b16 %v4300
        %v5349 = vunpack.c.l.b16 %v4301
        %v5350 = vunpack.c.l.b16 %v4302
        %v5351 = vunpack.c.l.b16 %v4303
        %v5352 = vunpack.c.l.b16 %v4304
        %v5353 = vunpack.c.l.b16 %v4305
        %v5354 = vunpack.c.l.b16 %v4306
        %v5355 = vunpack.c.l.b16 %v4307
        %v5356 = vunpack.c.l.b16 %v4308
        %v5357 = vunpack.c.l.b16 %v4309
        %v5358 = vunpack.c.l.b16 %v4310
        %v5359 = vunpack.c.l.b16 %v4311
        %v5360 = vunpack.c.l.b16 %v4312
        %v5361 = vunpack.c.l.b16 %v4313
        %v5362 = vunpack.c.l.b16 %v4314
        %v5363 = vunpack.c.l.b16 %v4315
        %v5364 = vunpack.c.l.b16 %v4316
        %v5365 = vunpack.c.l.b16 %v4317
        %v5366 = vunpack.c.l.b16 %v4318
        %v5367 = vunpack.c.l.b16 %v4319
        %v5368 = vunpack.c.l.b16 %v4320
        %v5369 = vunpack.c.l.b16 %v4321
        %v5370 = vunpack.c.l.b16 %v4322
        %v5371 = vunpack.c.l.b16 %v4323
        %v5372 = vunpack.c.l.b16 %v4324
        %v5373 = vpack.c.b16 %v5310, %v5309
        %v5374 = vpack.c.b16 %v5312, %v5311
        %v5375 = vpack.c.b16 %v5314, %v5313
        %v5376 = vpack.c.b16 %v5316, %v5315
        %v5377 = vpack.c.b16 %v5318, %v5317
        %v5378 = vpack.c.b16 %v5320, %v5319
        %v5379 = vpack.c.b16 %v5322, %v5321
        %v5380 = vpack.c.b16 %v5324, %v5323
        %v5381 = vpack.c.b16 %v5326, %v5325
        %v5382 = vpack.c.b16 %v5328, %v5327
        %v5383 = vpack.c.b16 %v5330, %v5329
        %v5384 = vpack.c.b16 %v5332, %v5331
        %v5385 = vpack.c.b16 %v5334, %v5333
        %v5386 = vpack.c.b16 %v5336, %v5335
        %v5387 = vpack.c.b16 %v5338, %v5337
        %v5388 = vpack.c.b16 %v5340, %v5339
        %v5389 = vpack.c.b16 %v5342, %v5341
        %v5390 = vpack.c.b16 %v5344, %v5343
        %v5391 = vpack.c.b16 %v5346, %v5345
        %v5392 = vpack.c.b16 %v5348, %v5347
        %v5393 = vpack.c.b16 %v5350, %v5349
        %v5394 = vpack.c.b16 %v5352, %v5351
        %v5395 = vpack.c.b16 %v5354, %v5353
        %v5396 = vpack.c.b16 %v5356, %v5355
        %v5397 = vpack.c.b16 %v5358, %v5357
        %v5398 = vpack.c.b16 %v5360, %v5359
        %v5399 = vpack.c.b16 %v5362, %v5361
        %v5400 = vpack.c.b16 %v5364, %v5363
        %v5401 = vpack.c.b16 %v5366, %v5365
        %v5402 = vpack.c.b16 %v5368, %v5367
        %v5403 = vpack.c.b16 %v5370, %v5369
        %v5404 = vpack.c.b16 %v5372, %v5371
        %5437 = vmatpush.bf16.msra.mxu0 %v5380
        %5438 = vmatpush.bf16.msra.mxu0 %v5379
        %5439 = vmatpush.bf16.msra.mxu0 %v5378
        %5440 = vmatpush.bf16.msra.mxu0 %v5377
        %5441 = vmatpush.bf16.msra.mxu0 %v5376
        %5442 = vmatpush.bf16.msra.mxu0 %v5375
        %5443 = vmatpush.bf16.msra.mxu0 %v5374
        %5444 = vmatpush.bf16.msra.mxu0 %v5373
        %5445 = vmatmul.bf16.gmra.mxu0 %v5241
        %v5446 = vpop.f32.mrf.mxu0
        %v5447 = vadd.f32 %v4325, %v5446
        %v5448 = vpop.f32.mrf.mxu0
        %5449 = vdwg.mxu0
        %5450 = vmatpush.bf16.msra.mxu0 %v5388
        %5451 = vmatpush.bf16.msra.mxu0 %v5387
        %5452 = vmatpush.bf16.msra.mxu0 %v5386
        %5453 = vmatpush.bf16.msra.mxu0 %v5385
        %5454 = vmatpush.bf16.msra.mxu0 %v5384
        %5455 = vmatpush.bf16.msra.mxu0 %v5383
        %5456 = vmatpush.bf16.msra.mxu0 %v5382
        %5457 = vmatpush.bf16.msra.mxu0 %v5381
        %5458 = vmatmul.bf16.gmra.mxu0 %v5242
        %v5459 = vpop.f32.mrf.mxu0
        %v5460 = vadd.f32 %v5447, %v5459
        %v5461 = vpop.f32.mrf.mxu0
        %5462 = vdwg.mxu0
        %5463 = vmatpush.bf16.msra.mxu0 %v5396
        %5464 = vmatpush.bf16.msra.mxu0 %v5395
        %5465 = vmatpush.bf16.msra.mxu0 %v5394
        %5466 = vmatpush.bf16.msra.mxu0 %v5393
        %5467 = vmatpush.bf16.msra.mxu0 %v5392
        %5468 = vmatpush.bf16.msra.mxu0 %v5391
        %5469 = vmatpush.bf16.msra.mxu0 %v5390
        %5470 = vmatpush.bf16.msra.mxu0 %v5389
        %5471 = vmatmul.bf16.gmra.mxu0 %v5243
        %v5472 = vpop.f32.mrf.mxu0
        %v5473 = vadd.f32 %v5460, %v5472
        %v5474 = vpop.f32.mrf.mxu0
        %5475 = vdwg.mxu0
        %5476 = vmatpush.bf16.msra.mxu0 %v5404
        %5477 = vmatpush.bf16.msra.mxu0 %v5403
        %5478 = vmatpush.bf16.msra.mxu0 %v5402
        %5479 = vmatpush.bf16.msra.mxu0 %v5401
        %5480 = vmatpush.bf16.msra.mxu0 %v5400
        %5481 = vmatpush.bf16.msra.mxu0 %v5399
        %5482 = vmatpush.bf16.msra.mxu0 %v5398
        %5483 = vmatpush.bf16.msra.mxu0 %v5397
        %5484 = vmatmul.bf16.gmra.mxu0 %v5244
        %v5485 = vpop.f32.mrf.mxu0
        %v5486 = vadd.f32 %v5473, %v5485
        %v5487 = vpop.f32.mrf.mxu0
        %5488 = vdwg.mxu0
        %v5490 = vrot.slane %v5486, 1
        %v5492 = vadd.f32 %v4853, %v5490
        %v5493 = vsel %vm4823, %v5492, 0.0
        %5494 = vadd.xlane.f32.xlu0 %v5493
        %v5495 = vpop.xlane.xlu0 %5494
        %v5496 = vmul.f32 %v5495, %v3487
        %v5497 = vsub.f32 %v5492, %v5496
        %v5498 = vmul.f32 %v5497, %v5497
        %v5499 = vsel %vm4823, %v5498, 0.0
        %5500 = vadd.xlane.f32.xlu0 %v5499
        %v5501 = vpop.xlane.xlu0 %5500
        %v5502 = vmul.f32 %v5501, %v3487
        %v5503 = vadd.f32 %v5502, 1e-05
        %v5504 = vrsqrt.pop %v5503
        %v5505 = vmul.f32 %v5504, %v5503
        %v5506 = vmul.f32 %v5505, %v5504
        %v5507 = vmul.f32 0.5, %v5506
        %v5508 = vsub.f32 1.5, %v5507
        %v5509 = vmul.f32 %v5504, %v5508
        %vm5510 = vweird.f32 %v5503
        %vm5511 = vweird.f32 %v5504
        %vm5512 = vmor %vm5510, %vm5511
        %v5513 = vsel %vm5512, %v5504, %v5509
        %v5514 = vmul.f32 %v5497, %v5513
        %v5516 = vperm.slane %v4326, 0
        %v5518 = vmul.f32 %v5514, %v5516
        %v5520 = vperm.slane %v4327, 0
        %v5522 = vadd.f32 %v5518, %v5520
        %v5523 = vpack.c.bf16 %v5522, %v5522
        %v5524 = vld [vmem:[#allocation21] sm:$0xf]
        %v5525 = vld [vmem:[#allocation21 + $0x4] sm:$0xf]
        %v5526 = vld [vmem:[#allocation21 + $0x8] sm:$0xf]
        %v5527 = vld [vmem:[#allocation21 + $0xc] sm:$0xf]
        %v5528 = vld [vmem:[#allocation21 + $0x10] sm:$0xf]
        %v5529 = vld [vmem:[#allocation21 + $0x14] sm:$0xf]
        %v5530 = vld [vmem:[#allocation21 + $0x18] sm:$0xf]
        %v5531 = vld [vmem:[#allocation21 + $0x1c] sm:$0xf]
        %v5532 = vld [vmem:[#allocation21 + $0x20] sm:$0xf]
        %v5533 = vld [vmem:[#allocation21 + $0x24] sm:$0xf]
        %v5534 = vld [vmem:[#allocation21 + $0x28] sm:$0xf]
        %v5535 = vld [vmem:[#allocation21 + $0x2c] sm:$0xf]
        %v5536 = vld [vmem:[#allocation21 + $0x30] sm:$0xf]
        %v5537 = vld [vmem:[#allocation21 + $0x34] sm:$0xf]
        %v5538 = vld [vmem:[#allocation21 + $0x38] sm:$0xf]
        %v5539 = vld [vmem:[#allocation21 + $0x3c] sm:$0xf]
        %v5540 = vld [vmem:[#allocation22] sm:$0x1]
        %v5542 = vshrl.u32 %v5523, 16
        %v5544 = vrot.slane %v5542, 3
        %v5562 = vunpack.c.l.b16 %v5524
        %v5563 = vunpack.c.l.b16 %v5525
        %v5564 = vunpack.c.l.b16 %v5526
        %v5565 = vunpack.c.l.b16 %v5527
        %v5566 = vunpack.c.l.b16 %v5528
        %v5567 = vunpack.c.l.b16 %v5529
        %v5568 = vunpack.c.l.b16 %v5530
        %v5569 = vunpack.c.l.b16 %v5531
        %v5570 = vunpack.c.l.b16 %v5532
        %v5571 = vunpack.c.l.b16 %v5533
        %v5572 = vunpack.c.l.b16 %v5534
        %v5573 = vunpack.c.l.b16 %v5535
        %v5574 = vunpack.c.l.b16 %v5536
        %v5575 = vunpack.c.l.b16 %v5537
        %v5576 = vunpack.c.l.b16 %v5538
        %v5577 = vunpack.c.l.b16 %v5539
        %v5578 = vpack.c.b16 %v5563, %v5562
        %v5579 = vpack.c.b16 %v5565, %v5564
        %v5580 = vpack.c.b16 %v5567, %v5566
        %v5581 = vpack.c.b16 %v5569, %v5568
        %v5582 = vpack.c.b16 %v5571, %v5570
        %v5583 = vpack.c.b16 %v5573, %v5572
        %v5584 = vpack.c.b16 %v5575, %v5574
        %v5585 = vpack.c.b16 %v5577, %v5576
        %5594 = vmatpush.bf16.msra.mxu0 %v5585
        %5595 = vmatpush.bf16.msra.mxu0 %v5584
        %5596 = vmatpush.bf16.msra.mxu0 %v5583
        %5597 = vmatpush.bf16.msra.mxu0 %v5582
        %5598 = vmatpush.bf16.msra.mxu0 %v5581
        %5599 = vmatpush.bf16.msra.mxu0 %v5580
        %5600 = vmatpush.bf16.msra.mxu0 %v5579
        %5601 = vmatpush.bf16.msra.mxu0 %v5578
        %5602 = vmatmul.bf16.gmra.mxu0 %v5544
        %v5603 = vpop.f32.mrf.mxu0
        %v5604 = vadd.f32 %v5540, %v5603
        %v5605 = vpop.f32.mrf.mxu0
        %5606 = vdwg.mxu0
        %5607 = vst [vmem:[%s1205] sm:$0x1] %v5604
        %p5608 = scmp.lt.s32.totalorder %s84, 1
        %s5609 = scalar_select %p5608, %s84, 1
        %s5610 = scalar_lea.vmem %s65, %s5609
        // Predicated region
        $region205: #{lstm_tft_forward.1} parent=147 // pred_check
          %p5611 = pneg %p779
        $region206: #{lstm_tft_forward.1} parent=147 // pred_check_branch
          %5613 = sbr.rel (%p5611) target = $region208
        $region207: #{lstm_tft_forward.1} parent=147 // pred_region
          _
        $region208: #{lstm_tft_forward.1} parent=147 // pred_fallthru
          _
      $region148: #{lstm_tft_forward.1} parent=5 // pred_fallthru
        _
      %p5614 = scmp.le.s32.totalorder 2, %s79
      // Predicated region
      $region209: #{lstm_tft_forward.1} parent=5 // pred_check
        %p5615 = pneg %p5614
      $region210: #{lstm_tft_forward.1} parent=5 // pred_check_branch
        %5617 = sbr.rel (%p5615) target = $region212
      $region211: #{lstm_tft_forward.1} parent=5 // pred_region
        %s5618 = ssub.s32 %s79, 2
        // Predicated region
        $region213: #{lstm_tft_forward.1} parent=211 // pred_check
          %p5619 = pneg %p785
        $region214: #{lstm_tft_forward.1} parent=211 // pred_check_branch
          %5621 = sbr.rel (%p5619) target = $region216
        $region215: #{lstm_tft_forward.1} parent=211 // pred_region
          %p5622 = scmp.lt.s32.totalorder %s85, 1
          %s5623 = scalar_select %p5622, %s85, 1
          %s5624 = scalar_lea.vmem %s65, %s5623
        $region216: #{lstm_tft_forward.1} parent=211 // pred_fallthru
          _
      $region212: #{lstm_tft_forward.1} parent=5 // pred_fallthru
        _
    $region6: #{lstm_tft_forward.1} parent=1 // loop_footer
      %s83 = sadd.s32 1, %s79
    $region7: #{lstm_tft_forward.1} parent=1 // loop_footer_branch
      %78 = sbr.rel target = $region3
    $region8: #{lstm_tft_forward.1} parent=1 // loop_exit
      _
    %5625 = vsyncpa [#allocation3], 1
    %s5626 = scalar_lea.sflag [#allocation3], 1
    %5627 = vsyncpa %s5626, 1
    %5628 = vsyncpa [#allocation5], 1
    %5629 = vsyncpa [#allocation8], 1
    %5630 = vsyncpa [#allocation11], 1
    %5631 = vsyncpa [#allocation14], 1
    %5632 = vsyncpa [#allocation17], 1
    %5633 = vsyncpa [#allocation20], 1
    %5634 = vsyncpa [#allocation23], 1

</llo_original>
